<compile_context>
chip_gen: v5e
topology: v5e:2x2
jax: 0.10.0
libtpu: 0.0.40
codegen_flags: <defaults>
</compile_context>

<pallas_src>
import functools
import math

import jax
import jax.numpy as jnp
from jax.experimental import pallas as pl
from jax.experimental.pallas import tpu as pltpu  # noqa: F401  (TPU backend assumed)

# ----------------------------- model hyper-parameters -----------------------------
I_VOCAB = 50
P_VOCAB = 50
T_VOCAB = 50
SRC_PAD = 0
TRG_PAD = 0
PRO_PAD = 0
HEAD_NUM = 4
HIDDEN = 32
INNER = 64
HEAD_DIM = HIDDEN // HEAD_NUM
GEN_ENC_LAYERS = 3
GEN_DEC_LAYERS = 1
EXC_ENC_LAYERS = 1
OUT_PAD = 128            # lane-dense padded logits width (>= P_VOCAB)
NEG_INF = -1e9

BATCH = 2
L_IN = 8                 # inputs length
L_PR = 8                 # programs length
L_TG = 8                 # targets length


# --------------------------- in-kernel building blocks ----------------------------
def _layernorm(x, g, b):
    """LayerNorm over last dim of x:(M,H) f32, eps=1e-6 (reference repo default)."""
    mean = jnp.mean(x, axis=-1, keepdims=True)
    c = x - mean
    var = jnp.mean(c * c, axis=-1, keepdims=True)
    return c * jax.lax.rsqrt(var + 1e-6) * g + b


def _mha(x_q, x_kv, bias, wq, wk, wv, wo, batch):
    """Multi-head attention.

    x_q:(B*Lq,H) f32, x_kv:(B*Lk,H) f32, bias:(B,Lq,Lk) f32 additive (0 / -1e9).
    Per-head weight stacks (loaded arrays): wq/wk/wv:(nh,H,Dh) bf16 (scale folded
    into wq), wo:(nh,Dh,H) bf16.  Returns (B*Lq,H) f32.
    """
    lq = x_q.shape[0] // batch
    lk = x_kv.shape[0] // batch
    xq16 = x_q.astype(jnp.bfloat16)
    xkv16 = x_kv.astype(jnp.bfloat16)
    out = jnp.zeros((batch * lq, HIDDEN), jnp.float32)
    for h in range(HEAD_NUM):
        q = jnp.dot(xq16, wq[h], preferred_element_type=jnp.float32)
        k = jnp.dot(xkv16, wk[h], preferred_element_type=jnp.float32)
        v = jnp.dot(xkv16, wv[h], preferred_element_type=jnp.float32)
        q3 = q.reshape(batch, lq, HEAD_DIM).astype(jnp.bfloat16)
        k3 = k.reshape(batch, lk, HEAD_DIM).astype(jnp.bfloat16)
        v3 = v.reshape(batch, lk, HEAD_DIM).astype(jnp.bfloat16)
        s = jnp.einsum("bqd,bkd->bqk", q3, k3, preferred_element_type=jnp.float32)
        s = s + bias                                          # masked_fill_(-1e9)
        s = s - jnp.max(s, axis=-1, keepdims=True)
        e = jnp.exp(s)
        pr = e * pl.reciprocal(jnp.sum(e, axis=-1, keepdims=True), approx=True)
        o = jnp.einsum("bqk,bkd->bqd", pr.astype(jnp.bfloat16), v3,
                       preferred_element_type=jnp.float32)
        o2 = o.reshape(batch * lq, HEAD_DIM).astype(jnp.bfloat16)
        out = out + jnp.dot(o2, wo[h], preferred_element_type=jnp.float32)
    return out


def _ffn(x, w1, b1, w2, b2):
    h = jnp.dot(x.astype(jnp.bfloat16), w1, preferred_element_type=jnp.float32) + b1
    h = jnp.maximum(h, 0.0)
    return jnp.dot(h.astype(jnp.bfloat16), w2, preferred_element_type=jnp.float32) + b2


def _encoder_layer(x, bias, ep, li, batch):
    """ep: dict of stacked-parameter refs; li: static layer index."""
    y = _layernorm(x, ep["ln1_g"][li], ep["ln1_b"][li])
    y = _mha(y, y, bias, ep["wq"][li], ep["wk"][li], ep["wv"][li], ep["wo"][li], batch)
    x = x + y
    y = _layernorm(x, ep["ln2_g"][li], ep["ln2_b"][li])
    y = _ffn(y, ep["w1"][li], ep["b1"][li], ep["w2"][li], ep["b2"][li])
    return x + y


def _decoder_layer(x, enc_out, self_bias, cross_bias, dp, li, batch):
    y = _layernorm(x, dp["ln1_g"][li], dp["ln1_b"][li])
    y = _mha(y, y, self_bias,
             dp["sa_wq"][li], dp["sa_wk"][li], dp["sa_wv"][li], dp["sa_wo"][li], batch)
    x = x + y
    y = _layernorm(x, dp["ln2_g"][li], dp["ln2_b"][li])
    y = _mha(y, enc_out, cross_bias,
             dp["ca_wq"][li], dp["ca_wk"][li], dp["ca_wv"][li], dp["ca_wo"][li], batch)
    x = x + y
    y = _layernorm(x, dp["ln3_g"][li], dp["ln3_b"][li])
    y = _ffn(y, dp["w1"][li], dp["b1"][li], dp["w2"][li], dp["b2"][li])
    return x + y


# ------------------------------- fused Pallas kernel -------------------------------
def _glossification_kernel(*refs, treedef, n_data):
    (x_enc_ref, x_dec_ref, x_exc_ref,
     enc_b_ref, self_b_ref, cross_b_ref, exc_b_ref, edit_b_ref) = refs[:n_data]
    out_ref = refs[-1]
    p = jax.tree_util.tree_unflatten(treedef, refs[n_data:-1])

    batch = enc_b_ref.shape[0]

    # ---- Generator encoder ----
    enc_bias = enc_b_ref[...]
    x = x_enc_ref[...]
    for li in range(GEN_ENC_LAYERS):
        x = _encoder_layer(x, enc_bias, p["enc"], li, batch)
    enc_out = x

    # ---- Generator decoder ----
    self_bias = self_b_ref[...]
    cross_bias = cross_b_ref[...]
    y = x_dec_ref[...]
    for li in range(GEN_DEC_LAYERS):
        y = _decoder_layer(y, enc_out, self_bias, cross_bias, p["dec"], li, batch)
    gen_out = y

    # ---- Executor encoder (shares the stacked encoder-layer params, offset) ----
    exc_bias = exc_b_ref[...]
    z = x_exc_ref[...]
    for li in range(EXC_ENC_LAYERS):
        z = _encoder_layer(z, exc_bias, p["enc"], GEN_ENC_LAYERS + li, batch)
    exc_out = z

    # ---- Editing attention + (lane-dense padded) output projection ----
    edit = _mha(gen_out, exc_out, edit_b_ref[...],
                p["edit"]["wq"][0], p["edit"]["wk"][0],
                p["edit"]["wv"][0], p["edit"]["wo"][0], batch)
    logits = jnp.dot(edit.astype(jnp.bfloat16), p["out_w"][...],
                     preferred_element_type=jnp.float32) + p["out_b"][...]
    out_ref[...] = logits.astype(out_ref.dtype)


# --------------------------- parameter packing for kernel --------------------------
def _pack_mha(mp):
    """(H,H) weights -> per-head stacks; fold attention scale into wq; cast to bf16."""
    scale = HEAD_DIM ** -0.5

    def split_in(w):                                  # (H,H) -> (nh, H, Dh)
        return w.reshape(HIDDEN, HEAD_NUM, HEAD_DIM).transpose(1, 0, 2)

    def split_out(w):                                 # (H,H) -> (nh, Dh, H)
        return w.reshape(HEAD_NUM, HEAD_DIM, HIDDEN)

    return dict(
        wq=(split_in(mp["wq"]) * scale).astype(jnp.bfloat16),
        wk=split_in(mp["wk"]).astype(jnp.bfloat16),
        wv=split_in(mp["wv"]).astype(jnp.bfloat16),
        wo=split_out(mp["wo"]).astype(jnp.bfloat16),
    )


def _pack_encoder_layer_flat(lp):
    a = _pack_mha(lp["attn"])
    f = lp["ffn"]
    return dict(
        ln1_g=lp["ln1_g"].reshape(1, HIDDEN), ln1_b=lp["ln1_b"].reshape(1, HIDDEN),
        wq=a["wq"], wk=a["wk"], wv=a["wv"], wo=a["wo"],
        ln2_g=lp["ln2_g"].reshape(1, HIDDEN), ln2_b=lp["ln2_b"].reshape(1, HIDDEN),
        w1=f["w1"].astype(jnp.bfloat16), b1=f["b1"].reshape(1, INNER),
        w2=f["w2"].astype(jnp.bfloat16), b2=f["b2"].reshape(1, HIDDEN),
    )


def _pack_decoder_layer_flat(lp):
    sa = _pack_mha(lp["self_attn"])
    ca = _pack_mha(lp["cross_attn"])
    f = lp["ffn"]
    return dict(
        ln1_g=lp["ln1_g"].reshape(1, HIDDEN), ln1_b=lp["ln1_b"].reshape(1, HIDDEN),
        sa_wq=sa["wq"], sa_wk=sa["wk"], sa_wv=sa["wv"], sa_wo=sa["wo"],
        ln2_g=lp["ln2_g"].reshape(1, HIDDEN), ln2_b=lp["ln2_b"].reshape(1, HIDDEN),
        ca_wq=ca["wq"], ca_wk=ca["wk"], ca_wv=ca["wv"], ca_wo=ca["wo"],
        ln3_g=lp["ln3_g"].reshape(1, HIDDEN), ln3_b=lp["ln3_b"].reshape(1, HIDDEN),
        w1=f["w1"].astype(jnp.bfloat16), b1=f["b1"].reshape(1, INNER),
        w2=f["w2"].astype(jnp.bfloat16), b2=f["b2"].reshape(1, HIDDEN),
    )


def _stack_layers(layer_dicts):
    """Stack a list of same-structure param dicts along a new leading (layer) dim."""
    return jax.tree_util.tree_map(lambda *xs: jnp.stack(xs, axis=0), *layer_dicts)


def _pack_params(params):
    enc_layers = list(params["gen"]["enc"]) + list(params["exc"]["enc"])
    enc = _stack_layers([_pack_encoder_layer_flat(lp) for lp in enc_layers])
    dec = _stack_layers([_pack_decoder_layer_flat(lp) for lp in params["gen"]["dec"]])
    edit = _stack_layers([_pack_mha(params["edit_attn"])])
    out_w = jnp.zeros((HIDDEN, OUT_PAD), jnp.float32).at[:, :P_VOCAB].set(params["out_w"])
    out_b = jnp.zeros((1, OUT_PAD), jnp.float32).at[:, :P_VOCAB].set(
        params["out_b"].reshape(1, P_VOCAB))
    return dict(enc=enc, dec=dec, edit=edit,
                out_w=out_w.astype(jnp.bfloat16), out_b=out_b)


# ------------------------------- parameter creation --------------------------------
def _init_mha(key, H):
    ks = jax.random.split(key, 4)
    scale = H ** -0.5
    return dict(
        wq=jax.random.normal(ks[0], (H, H), jnp.float32) * scale,
        wk=jax.random.normal(ks[1], (H, H), jnp.float32) * scale,
        wv=jax.random.normal(ks[2], (H, H), jnp.float32) * scale,
        wo=jax.random.normal(ks[3], (H, H), jnp.float32) * scale,
    )


def _init_ffn(key, H, F):
    k1, k2 = jax.random.split(key)
    return dict(
        w1=jax.random.normal(k1, (H, F), jnp.float32) * (H ** -0.5),
        b1=jnp.zeros((F,), jnp.float32),
        w2=jax.random.normal(k2, (F, H), jnp.float32) * (F ** -0.5),
        b2=jnp.zeros((H,), jnp.float32),
    )


def _init_encoder_layer(key, H, F):
    k1, k2 = jax.random.split(key)
    return dict(
        ln1_g=jnp.ones((H,), jnp.float32), ln1_b=jnp.zeros((H,), jnp.float32),
        attn=_init_mha(k1, H),
        ln2_g=jnp.ones((H,), jnp.float32), ln2_b=jnp.zeros((H,), jnp.float32),
        ffn=_init_ffn(k2, H, F),
    )


def _init_decoder_layer(key, H, F):
    k1, k2, k3 = jax.random.split(key, 3)
    return dict(
        ln1_g=jnp.ones((H,), jnp.float32), ln1_b=jnp.zeros((H,), jnp.float32),
        self_attn=_init_mha(k1, H),
        ln2_g=jnp.ones((H,), jnp.float32), ln2_b=jnp.zeros((H,), jnp.float32),
        cross_attn=_init_mha(k2, H),
        ln3_g=jnp.ones((H,), jnp.float32), ln3_b=jnp.zeros((H,), jnp.float32),
        ffn=_init_ffn(k3, H, F),
    )


def init_params(key):
    keys = jax.random.split(key, 8)
    i_emb = jax.random.normal(keys[0], (I_VOCAB, HIDDEN), jnp.float32) * 0.02
    t_emb = jax.random.normal(keys[1], (T_VOCAB, HIDDEN), jnp.float32) * 0.02
    gen_enc = [_init_encoder_layer(k, HIDDEN, INNER)
               for k in jax.random.split(keys[2], GEN_ENC_LAYERS)]
    gen_dec = [_init_decoder_layer(k, HIDDEN, INNER)
               for k in jax.random.split(keys[3], GEN_DEC_LAYERS)]
    exc_enc = [_init_encoder_layer(k, HIDDEN, INNER)
               for k in jax.random.split(keys[4], EXC_ENC_LAYERS)]
    edit_attn = _init_mha(keys[5], HIDDEN)
    out_w = jax.random.normal(keys[6], (HIDDEN, P_VOCAB), jnp.float32) * (HIDDEN ** -0.5)
    out_b = jnp.zeros((P_VOCAB,), jnp.float32)
    return dict(
        gen=dict(i_emb=i_emb, p_emb=i_emb,   # share_target_embeddings=True
                 enc=gen_enc, dec=gen_dec),
        exc=dict(t_emb=t_emb, enc=exc_enc),
        edit_attn=edit_attn, out_w=out_w, out_b=out_b,
    )


# ----------------------------------- forward pass ----------------------------------
def position_encoding(length, hidden_size):
    num_timescales = hidden_size // 2
    log_inc = math.log(10000.0 / 1.0) / max(num_timescales - 1, 1)
    inv_timescales = jnp.exp(jnp.arange(num_timescales, dtype=jnp.float32) * -log_inc)
    position = jnp.arange(length, dtype=jnp.float32)
    scaled = position[:, None] * inv_timescales[None, :]
    signal = jnp.concatenate([jnp.sin(scaled), jnp.cos(scaled)], axis=1)
    return signal.reshape(1, length, hidden_size)   # hidden_size even -> no extra pad


def glossification_forward(params, inputs, targets, programs):
    emb_scale = HIDDEN ** 0.5
    B = inputs.shape[0]
    Li, Lp, Lt = inputs.shape[1], programs.shape[1], targets.shape[1]

    # ---- embeddings / positional encodings / additive masks (cheap, plain XLA) ----
    i_mask = (inputs == SRC_PAD)
    x = params["gen"]["i_emb"][inputs]
    x = jnp.where(i_mask[..., None], 0.0, x)
    x = x * emb_scale + position_encoding(Li, HIDDEN)

    p_mask = (programs == TRG_PAD)
    pe = params["gen"]["p_emb"][programs]
    pe = jnp.where(p_mask[..., None], 0.0, pe)
    pe = pe[:, :-1]
    pe = jnp.pad(pe, ((0, 0), (1, 0), (0, 0)))                # shift right one step
    pe = pe * emb_scale + position_encoding(Lp, HIDDEN)

    t_mask = (targets == PRO_PAD)
    z = params["exc"]["t_emb"][targets]
    z = jnp.where(t_mask[..., None], 0.0, z)
    z = z * emb_scale + position_encoding(Lt, HIDDEN)

    # additive attention biases: 0 where visible, -1e9 where masked
    i_bias = jnp.where(i_mask, NEG_INF, 0.0).astype(jnp.float32)
    t_bias = jnp.where(t_mask, NEG_INF, 0.0).astype(jnp.float32)
    enc_bias = jnp.broadcast_to(i_bias[:, None, :], (B, Li, Li))
    causal = jnp.triu(jnp.full((Lp, Lp), NEG_INF, jnp.float32), k=1)
    self_bias = jnp.broadcast_to(causal[None], (B, Lp, Lp))
    cross_bias = jnp.broadcast_to(i_bias[:, None, :], (B, Lp, Li))
    exc_bias = jnp.broadcast_to(t_bias[:, None, :], (B, Lt, Lt))
    # TODO(synk): Glossification.execute is undefined in the source; use the pad mask
    # of the attention keys (targets) as d_mask.
    edit_bias = jnp.broadcast_to(t_bias[:, None, :], (B, Lp, Lt))

    data = [
        x.reshape(B * Li, HIDDEN).astype(jnp.float32),
        pe.reshape(B * Lp, HIDDEN).astype(jnp.float32),
        z.reshape(B * Lt, HIDDEN).astype(jnp.float32),
        enc_bias, self_bias, cross_bias, exc_bias, edit_bias,
    ]

    kparams = _pack_params(params)
    leaves, treedef = jax.tree_util.tree_flatten(kparams)

    kernel = functools.partial(_glossification_kernel,
                               treedef=treedef, n_data=len(data))

    def _full_spec(a):
        return pl.BlockSpec(a.shape, lambda *_, n=a.ndim: (0,) * n)

    out_padded = pl.pallas_call(
        kernel,
        out_shape=jax.ShapeDtypeStruct((B * Lp, OUT_PAD), jnp.float32),
        in_specs=[_full_spec(a) for a in data + leaves],
        out_specs=pl.BlockSpec((B * Lp, OUT_PAD), lambda *_: (0, 0)),
    )(*data, *leaves)

    return out_padded[:, :P_VOCAB].reshape(B, Lp, P_VOCAB)


# -------------------------------------- main ---------------------------------------
if __name__ == "__main__":
    root = jax.random.PRNGKey(0)
    kp, ki, kt, kpr = jax.random.split(root, 4)

    params = init_params(kp)

    inputs = jax.random.randint(ki, (BATCH, L_IN), 1, I_VOCAB, dtype=jnp.int32)
    targets = jax.random.randint(kt, (BATCH, L_TG), 1, T_VOCAB, dtype=jnp.int32)
    programs = jax.random.randint(kpr, (BATCH, L_PR), 1, P_VOCAB, dtype=jnp.int32)
    # introduce some padding tokens to exercise the pad masks
    inputs = inputs.at[:, -2:].set(SRC_PAD)
    targets = targets.at[:, -1:].set(PRO_PAD)
    programs = programs.at[:, -1:].set(TRG_PAD)

    fwd = jax.jit(glossification_forward)
    out = fwd(params, inputs, targets, programs)
    out = jax.block_until_ready(out)

    assert out.shape == (BATCH, L_PR, P_VOCAB), out.shape
    assert bool(jnp.all(jnp.isfinite(out)))
    print("KERNEL_OK")
</pallas_src>

<mosaic_0001>
module attributes {stable_mosaic.version = 11 : i64} {
  func.func @_glossification_kernel(%arg0: memref<16x32xf32, #tpu.memory_space<vmem>>, %arg1: memref<16x32xf32, #tpu.memory_space<vmem>>, %arg2: memref<16x32xf32, #tpu.memory_space<vmem>>, %arg3: memref<2x8x8xf32, #tpu.memory_space<vmem>>, %arg4: memref<2x8x8xf32, #tpu.memory_space<vmem>>, %arg5: memref<2x8x8xf32, #tpu.memory_space<vmem>>, %arg6: memref<2x8x8xf32, #tpu.memory_space<vmem>>, %arg7: memref<2x8x8xf32, #tpu.memory_space<vmem>>, %arg8: memref<1x1x64xf32, #tpu.memory_space<vmem>>, %arg9: memref<1x1x32xf32, #tpu.memory_space<vmem>>, %arg10: memref<1x4x32x8xbf16, #tpu.memory_space<vmem>>, %arg11: memref<1x4x8x32xbf16, #tpu.memory_space<vmem>>, %arg12: memref<1x4x32x8xbf16, #tpu.memory_space<vmem>>, %arg13: memref<1x4x32x8xbf16, #tpu.memory_space<vmem>>, %arg14: memref<1x1x32xf32, #tpu.memory_space<vmem>>, %arg15: memref<1x1x32xf32, #tpu.memory_space<vmem>>, %arg16: memref<1x1x32xf32, #tpu.memory_space<vmem>>, %arg17: memref<1x1x32xf32, #tpu.memory_space<vmem>>, %arg18: memref<1x1x32xf32, #tpu.memory_space<vmem>>, %arg19: memref<1x1x32xf32, #tpu.memory_space<vmem>>, %arg20: memref<1x4x32x8xbf16, #tpu.memory_space<vmem>>, %arg21: memref<1x4x8x32xbf16, #tpu.memory_space<vmem>>, %arg22: memref<1x4x32x8xbf16, #tpu.memory_space<vmem>>, %arg23: memref<1x4x32x8xbf16, #tpu.memory_space<vmem>>, %arg24: memref<1x32x64xbf16, #tpu.memory_space<vmem>>, %arg25: memref<1x64x32xbf16, #tpu.memory_space<vmem>>, %arg26: memref<1x4x32x8xbf16, #tpu.memory_space<vmem>>, %arg27: memref<1x4x8x32xbf16, #tpu.memory_space<vmem>>, %arg28: memref<1x4x32x8xbf16, #tpu.memory_space<vmem>>, %arg29: memref<1x4x32x8xbf16, #tpu.memory_space<vmem>>, %arg30: memref<4x1x64xf32, #tpu.memory_space<vmem>>, %arg31: memref<4x1x32xf32, #tpu.memory_space<vmem>>, %arg32: memref<4x1x32xf32, #tpu.memory_space<vmem>>, %arg33: memref<4x1x32xf32, #tpu.memory_space<vmem>>, %arg34: memref<4x1x32xf32, #tpu.memory_space<vmem>>, %arg35: memref<4x1x32xf32, #tpu.memory_space<vmem>>, %arg36: memref<4x32x64xbf16, #tpu.memory_space<vmem>>, %arg37: memref<4x64x32xbf16, #tpu.memory_space<vmem>>, %arg38: memref<4x4x32x8xbf16, #tpu.memory_space<vmem>>, %arg39: memref<4x4x8x32xbf16, #tpu.memory_space<vmem>>, %arg40: memref<4x4x32x8xbf16, #tpu.memory_space<vmem>>, %arg41: memref<4x4x32x8xbf16, #tpu.memory_space<vmem>>, %arg42: memref<1x128xf32, #tpu.memory_space<vmem>>, %arg43: memref<32x128xbf16, #tpu.memory_space<vmem>>, %arg44: memref<16x128xf32, #tpu.memory_space<vmem>>) attributes {dimension_semantics = [], scalar_prefetch = 0 : i64, scratch_operands = 0 : i64, tpu.core_type = #tpu.core_type<tc>} {
    %c0 = arith.constant 0 : index
    %c0_0 = arith.constant 0 : index
    %c0_1 = arith.constant 0 : index
    %0 = vector.load %arg3[%c0, %c0_0, %c0_1] : memref<2x8x8xf32, #tpu.memory_space<vmem>>, vector<2x8x8xf32>
    %c0_2 = arith.constant 0 : index
    %c0_3 = arith.constant 0 : index
    %1 = vector.load %arg0[%c0_2, %c0_3] : memref<16x32xf32, #tpu.memory_space<vmem>>, vector<16x32xf32>
    %c0_4 = arith.constant 0 : index
    %c0_5 = arith.constant 0 : index
    %c0_6 = arith.constant 0 : index
    %2 = vector.load %arg33[%c0_4, %c0_5, %c0_6] : memref<4x1x32xf32, #tpu.memory_space<vmem>>, vector<1x1x32xf32>
    %3 = vector.shape_cast %2 : vector<1x1x32xf32> to vector<1x32xf32>
    %c0_7 = arith.constant 0 : index
    %c0_8 = arith.constant 0 : index
    %c0_9 = arith.constant 0 : index
    %4 = vector.load %arg32[%c0_7, %c0_8, %c0_9] : memref<4x1x32xf32, #tpu.memory_space<vmem>>, vector<1x1x32xf32>
    %5 = vector.shape_cast %4 : vector<1x1x32xf32> to vector<1x32xf32>
    %cst = arith.constant dense<0.000000e+00> : vector<16xf32>
    %6 = vector.multi_reduction <add>, %1, %cst [1] : vector<16x32xf32> to vector<16xf32>
    %7 = vector.shape_cast %6 : vector<16xf32> to vector<16x1xf32>
    %cst_10 = arith.constant 3.200000e+01 : f32
    %8 = vector.broadcast %cst_10 : f32 to vector<16x1xf32>
    %9 = arith.divf %7, %8 : vector<16x1xf32>
    %10 = vector.broadcast %9 : vector<16x1xf32> to vector<16x32xf32>
    %11 = arith.subf %1, %10 : vector<16x32xf32>
    %12 = arith.mulf %11, %11 : vector<16x32xf32>
    %cst_11 = arith.constant dense<0.000000e+00> : vector<16xf32>
    %13 = vector.multi_reduction <add>, %12, %cst_11 [1] : vector<16x32xf32> to vector<16xf32>
    %14 = vector.shape_cast %13 : vector<16xf32> to vector<16x1xf32>
    %cst_12 = arith.constant 3.200000e+01 : f32
    %15 = vector.broadcast %cst_12 : f32 to vector<16x1xf32>
    %16 = arith.divf %14, %15 : vector<16x1xf32>
    %cst_13 = arith.constant 9.99999997E-7 : f32
    %17 = vector.broadcast %cst_13 : f32 to vector<16x1xf32>
    %18 = arith.addf %16, %17 : vector<16x1xf32>
    %19 = math.rsqrt %18 : vector<16x1xf32>
    %20 = vector.broadcast %19 : vector<16x1xf32> to vector<16x32xf32>
    %21 = arith.mulf %11, %20 : vector<16x32xf32>
    %22 = vector.broadcast %3 : vector<1x32xf32> to vector<16x32xf32>
    %23 = arith.mulf %21, %22 : vector<16x32xf32>
    %24 = vector.broadcast %5 : vector<1x32xf32> to vector<16x32xf32>
    %25 = arith.addf %23, %24 : vector<16x32xf32>
    %c0_14 = arith.constant 0 : index
    %c0_15 = arith.constant 0 : index
    %c0_16 = arith.constant 0 : index
    %c0_17 = arith.constant 0 : index
    %26 = vector.load %arg40[%c0_14, %c0_15, %c0_16, %c0_17] : memref<4x4x32x8xbf16, #tpu.memory_space<vmem>>, vector<1x4x32x8xbf16>
    %27 = vector.shape_cast %26 : vector<1x4x32x8xbf16> to vector<4x32x8xbf16>
    %c0_18 = arith.constant 0 : index
    %c0_19 = arith.constant 0 : index
    %c0_20 = arith.constant 0 : index
    %c0_21 = arith.constant 0 : index
    %28 = vector.load %arg38[%c0_18, %c0_19, %c0_20, %c0_21] : memref<4x4x32x8xbf16, #tpu.memory_space<vmem>>, vector<1x4x32x8xbf16>
    %29 = vector.shape_cast %28 : vector<1x4x32x8xbf16> to vector<4x32x8xbf16>
    %c0_22 = arith.constant 0 : index
    %c0_23 = arith.constant 0 : index
    %c0_24 = arith.constant 0 : index
    %c0_25 = arith.constant 0 : index
    %30 = vector.load %arg41[%c0_22, %c0_23, %c0_24, %c0_25] : memref<4x4x32x8xbf16, #tpu.memory_space<vmem>>, vector<1x4x32x8xbf16>
    %31 = vector.shape_cast %30 : vector<1x4x32x8xbf16> to vector<4x32x8xbf16>
    %c0_26 = arith.constant 0 : index
    %c0_27 = arith.constant 0 : index
    %c0_28 = arith.constant 0 : index
    %c0_29 = arith.constant 0 : index
    %32 = vector.load %arg39[%c0_26, %c0_27, %c0_28, %c0_29] : memref<4x4x8x32xbf16, #tpu.memory_space<vmem>>, vector<1x4x8x32xbf16>
    %33 = vector.shape_cast %32 : vector<1x4x8x32xbf16> to vector<4x8x32xbf16>
    %34 = arith.truncf %25 : vector<16x32xf32> to vector<16x32xbf16>
    %35 = arith.truncf %25 : vector<16x32xf32> to vector<16x32xbf16>
    %cst_30 = arith.constant 0.000000e+00 : f32
    %36 = vector.broadcast %cst_30 : f32 to vector<16x32xf32>
    %37 = vector.extract_strided_slice %27 {offsets = [0, 0, 0], sizes = [1, 32, 8], strides = [1, 1, 1]} : vector<4x32x8xbf16> to vector<1x32x8xbf16>
    %38 = vector.shape_cast %37 : vector<1x32x8xbf16> to vector<32x8xbf16>
    %cst_31 = arith.constant dense<0.000000e+00> : vector<16x8xf32>
    %39 = tpu.matmul %34, %38, %cst_31 {dimension_numbers = #tpu.dot_dimension_numbers<[1], [0], [0], [1], [0, 0, 1, 1], [], []>} : vector<16x32xbf16>, vector<32x8xbf16>, vector<16x8xf32> -> vector<16x8xf32>
    %40 = vector.extract_strided_slice %29 {offsets = [0, 0, 0], sizes = [1, 32, 8], strides = [1, 1, 1]} : vector<4x32x8xbf16> to vector<1x32x8xbf16>
    %41 = vector.shape_cast %40 : vector<1x32x8xbf16> to vector<32x8xbf16>
    %cst_32 = arith.constant dense<0.000000e+00> : vector<16x8xf32>
    %42 = tpu.matmul %35, %41, %cst_32 {dimension_numbers = #tpu.dot_dimension_numbers<[1], [0], [0], [1], [0, 0, 1, 1], [], []>} : vector<16x32xbf16>, vector<32x8xbf16>, vector<16x8xf32> -> vector<16x8xf32>
    %43 = vector.extract_strided_slice %31 {offsets = [0, 0, 0], sizes = [1, 32, 8], strides = [1, 1, 1]} : vector<4x32x8xbf16> to vector<1x32x8xbf16>
    %44 = vector.shape_cast %43 : vector<1x32x8xbf16> to vector<32x8xbf16>
    %cst_33 = arith.constant dense<0.000000e+00> : vector<16x8xf32>
    %45 = tpu.matmul %35, %44, %cst_33 {dimension_numbers = #tpu.dot_dimension_numbers<[1], [0], [0], [1], [0, 0, 1, 1], [], []>} : vector<16x32xbf16>, vector<32x8xbf16>, vector<16x8xf32> -> vector<16x8xf32>
    %46 = vector.shape_cast %39 : vector<16x8xf32> to vector<2x8x8xf32>
    %47 = arith.truncf %46 : vector<2x8x8xf32> to vector<2x8x8xbf16>
    %48 = vector.shape_cast %42 : vector<16x8xf32> to vector<2x8x8xf32>
    %49 = arith.truncf %48 : vector<2x8x8xf32> to vector<2x8x8xbf16>
    %50 = vector.shape_cast %45 : vector<16x8xf32> to vector<2x8x8xf32>
    %51 = arith.truncf %50 : vector<2x8x8xf32> to vector<2x8x8xbf16>
    "tpu.trace_start"() <{level = 10 : i32, message = "bqd,bkd->bqk"}> : () -> ()
    %cst_34 = arith.constant dense<0.000000e+00> : vector<2x8x8xf32>
    %52 = tpu.matmul %47, %49, %cst_34 {dimension_numbers = #tpu.dot_dimension_numbers<[2], [2], [1], [1], [0, 0, 0, 1, 1, 1], [0], [0]>} : vector<2x8x8xbf16>, vector<2x8x8xbf16>, vector<2x8x8xf32> -> vector<2x8x8xf32>
    "tpu.trace_stop"() : () -> ()
    %53 = arith.addf %52, %0 : vector<2x8x8xf32>
    %cst_35 = arith.constant dense<0xFF800000> : vector<2x8xf32>
    %54 = vector.multi_reduction <maximumf>, %53, %cst_35 [2] : vector<2x8x8xf32> to vector<2x8xf32>
    %55 = vector.shape_cast %54 : vector<2x8xf32> to vector<2x8x1xf32>
    %56 = vector.broadcast %55 : vector<2x8x1xf32> to vector<2x8x8xf32>
    %57 = arith.subf %53, %56 : vector<2x8x8xf32>
    %58 = math.exp %57 : vector<2x8x8xf32>
    %cst_36 = arith.constant dense<0.000000e+00> : vector<2x8xf32>
    %59 = vector.multi_reduction <add>, %58, %cst_36 [2] : vector<2x8x8xf32> to vector<2x8xf32>
    %60 = vector.shape_cast %59 : vector<2x8xf32> to vector<2x8x1xf32>
    %61 = tpu.reciprocal %60 {approx = true} : vector<2x8x1xf32> -> vector<2x8x1xf32>
    %62 = vector.broadcast %61 : vector<2x8x1xf32> to vector<2x8x8xf32>
    %63 = arith.mulf %58, %62 : vector<2x8x8xf32>
    %64 = arith.truncf %63 : vector<2x8x8xf32> to vector<2x8x8xbf16>
    "tpu.trace_start"() <{level = 10 : i32, message = "bqk,bkd->bqd"}> : () -> ()
    %cst_37 = arith.constant dense<0.000000e+00> : vector<2x8x8xf32>
    %65 = tpu.matmul %64, %51, %cst_37 {dimension_numbers = #tpu.dot_dimension_numbers<[2], [1], [1], [2], [0, 0, 0, 1, 1, 2], [0], [0]>} : vector<2x8x8xbf16>, vector<2x8x8xbf16>, vector<2x8x8xf32> -> vector<2x8x8xf32>
    "tpu.trace_stop"() : () -> ()
    %66 = vector.shape_cast %65 : vector<2x8x8xf32> to vector<16x8xf32>
    %67 = arith.truncf %66 : vector<16x8xf32> to vector<16x8xbf16>
    %68 = vector.extract_strided_slice %33 {offsets = [0, 0, 0], sizes = [1, 8, 32], strides = [1, 1, 1]} : vector<4x8x32xbf16> to vector<1x8x32xbf16>
    %69 = vector.shape_cast %68 : vector<1x8x32xbf16> to vector<8x32xbf16>
    %cst_38 = arith.constant dense<0.000000e+00> : vector<16x32xf32>
    %70 = tpu.matmul %67, %69, %cst_38 {dimension_numbers = #tpu.dot_dimension_numbers<[1], [0], [0], [1], [0, 0, 1, 1], [], []>} : vector<16x8xbf16>, vector<8x32xbf16>, vector<16x32xf32> -> vector<16x32xf32>
    %71 = arith.addf %36, %70 : vector<16x32xf32>
    %72 = vector.extract_strided_slice %27 {offsets = [1, 0, 0], sizes = [1, 32, 8], strides = [1, 1, 1]} : vector<4x32x8xbf16> to vector<1x32x8xbf16>
    %73 = vector.shape_cast %72 : vector<1x32x8xbf16> to vector<32x8xbf16>
    %cst_39 = arith.constant dense<0.000000e+00> : vector<16x8xf32>
    %74 = tpu.matmul %34, %73, %cst_39 {dimension_numbers = #tpu.dot_dimension_numbers<[1], [0], [0], [1], [0, 0, 1, 1], [], []>} : vector<16x32xbf16>, vector<32x8xbf16>, vector<16x8xf32> -> vector<16x8xf32>
    %75 = vector.extract_strided_slice %29 {offsets = [1, 0, 0], sizes = [1, 32, 8], strides = [1, 1, 1]} : vector<4x32x8xbf16> to vector<1x32x8xbf16>
    %76 = vector.shape_cast %75 : vector<1x32x8xbf16> to vector<32x8xbf16>
    %cst_40 = arith.constant dense<0.000000e+00> : vector<16x8xf32>
    %77 = tpu.matmul %35, %76, %cst_40 {dimension_numbers = #tpu.dot_dimension_numbers<[1], [0], [0], [1], [0, 0, 1, 1], [], []>} : vector<16x32xbf16>, vector<32x8xbf16>, vector<16x8xf32> -> vector<16x8xf32>
    %78 = vector.extract_strided_slice %31 {offsets = [1, 0, 0], sizes = [1, 32, 8], strides = [1, 1, 1]} : vector<4x32x8xbf16> to vector<1x32x8xbf16>
    %79 = vector.shape_cast %78 : vector<1x32x8xbf16> to vector<32x8xbf16>
    %cst_41 = arith.constant dense<0.000000e+00> : vector<16x8xf32>
    %80 = tpu.matmul %35, %79, %cst_41 {dimension_numbers = #tpu.dot_dimension_numbers<[1], [0], [0], [1], [0, 0, 1, 1], [], []>} : vector<16x32xbf16>, vector<32x8xbf16>, vector<16x8xf32> -> vector<16x8xf32>
    %81 = vector.shape_cast %74 : vector<16x8xf32> to vector<2x8x8xf32>
    %82 = arith.truncf %81 : vector<2x8x8xf32> to vector<2x8x8xbf16>
    %83 = vector.shape_cast %77 : vector<16x8xf32> to vector<2x8x8xf32>
    %84 = arith.truncf %83 : vector<2x8x8xf32> to vector<2x8x8xbf16>
    %85 = vector.shape_cast %80 : vector<16x8xf32> to vector<2x8x8xf32>
    %86 = arith.truncf %85 : vector<2x8x8xf32> to vector<2x8x8xbf16>
    "tpu.trace_start"() <{level = 10 : i32, message = "bqd,bkd->bqk"}> : () -> ()
    %cst_42 = arith.constant dense<0.000000e+00> : vector<2x8x8xf32>
    %87 = tpu.matmul %82, %84, %cst_42 {dimension_numbers = #tpu.dot_dimension_numbers<[2], [2], [1], [1], [0, 0, 0, 1, 1, 1], [0], [0]>} : vector<2x8x8xbf16>, vector<2x8x8xbf16>, vector<2x8x8xf32> -> vector<2x8x8xf32>
    "tpu.trace_stop"() : () -> ()
    %88 = arith.addf %87, %0 : vector<2x8x8xf32>
    %cst_43 = arith.constant dense<0xFF800000> : vector<2x8xf32>
    %89 = vector.multi_reduction <maximumf>, %88, %cst_43 [2] : vector<2x8x8xf32> to vector<2x8xf32>
    %90 = vector.shape_cast %89 : vector<2x8xf32> to vector<2x8x1xf32>
    %91 = vector.broadcast %90 : vector<2x8x1xf32> to vector<2x8x8xf32>
    %92 = arith.subf %88, %91 : vector<2x8x8xf32>
    %93 = math.exp %92 : vector<2x8x8xf32>
    %cst_44 = arith.constant dense<0.000000e+00> : vector<2x8xf32>
    %94 = vector.multi_reduction <add>, %93, %cst_44 [2] : vector<2x8x8xf32> to vector<2x8xf32>
    %95 = vector.shape_cast %94 : vector<2x8xf32> to vector<2x8x1xf32>
    %96 = tpu.reciprocal %95 {approx = true} : vector<2x8x1xf32> -> vector<2x8x1xf32>
    %97 = vector.broadcast %96 : vector<2x8x1xf32> to vector<2x8x8xf32>
    %98 = arith.mulf %93, %97 : vector<2x8x8xf32>
    %99 = arith.truncf %98 : vector<2x8x8xf32> to vector<2x8x8xbf16>
    "tpu.trace_start"() <{level = 10 : i32, message = "bqk,bkd->bqd"}> : () -> ()
    %cst_45 = arith.constant dense<0.000000e+00> : vector<2x8x8xf32>
    %100 = tpu.matmul %99, %86, %cst_45 {dimension_numbers = #tpu.dot_dimension_numbers<[2], [1], [1], [2], [0, 0, 0, 1, 1, 2], [0], [0]>} : vector<2x8x8xbf16>, vector<2x8x8xbf16>, vector<2x8x8xf32> -> vector<2x8x8xf32>
    "tpu.trace_stop"() : () -> ()
    %101 = vector.shape_cast %100 : vector<2x8x8xf32> to vector<16x8xf32>
    %102 = arith.truncf %101 : vector<16x8xf32> to vector<16x8xbf16>
    %103 = vector.extract_strided_slice %33 {offsets = [1, 0, 0], sizes = [1, 8, 32], strides = [1, 1, 1]} : vector<4x8x32xbf16> to vector<1x8x32xbf16>
    %104 = vector.shape_cast %103 : vector<1x8x32xbf16> to vector<8x32xbf16>
    %cst_46 = arith.constant dense<0.000000e+00> : vector<16x32xf32>
    %105 = tpu.matmul %102, %104, %cst_46 {dimension_numbers = #tpu.dot_dimension_numbers<[1], [0], [0], [1], [0, 0, 1, 1], [], []>} : vector<16x8xbf16>, vector<8x32xbf16>, vector<16x32xf32> -> vector<16x32xf32>
    %106 = arith.addf %71, %105 : vector<16x32xf32>
    %107 = vector.extract_strided_slice %27 {offsets = [2, 0, 0], sizes = [1, 32, 8], strides = [1, 1, 1]} : vector<4x32x8xbf16> to vector<1x32x8xbf16>
    %108 = vector.shape_cast %107 : vector<1x32x8xbf16> to vector<32x8xbf16>
    %cst_47 = arith.constant dense<0.000000e+00> : vector<16x8xf32>
    %109 = tpu.matmul %34, %108, %cst_47 {dimension_numbers = #tpu.dot_dimension_numbers<[1], [0], [0], [1], [0, 0, 1, 1], [], []>} : vector<16x32xbf16>, vector<32x8xbf16>, vector<16x8xf32> -> vector<16x8xf32>
    %110 = vector.extract_strided_slice %29 {offsets = [2, 0, 0], sizes = [1, 32, 8], strides = [1, 1, 1]} : vector<4x32x8xbf16> to vector<1x32x8xbf16>
    %111 = vector.shape_cast %110 : vector<1x32x8xbf16> to vector<32x8xbf16>
    %cst_48 = arith.constant dense<0.000000e+00> : vector<16x8xf32>
    %112 = tpu.matmul %35, %111, %cst_48 {dimension_numbers = #tpu.dot_dimension_numbers<[1], [0], [0], [1], [0, 0, 1, 1], [], []>} : vector<16x32xbf16>, vector<32x8xbf16>, vector<16x8xf32> -> vector<16x8xf32>
    %113 = vector.extract_strided_slice %31 {offsets = [2, 0, 0], sizes = [1, 32, 8], strides = [1, 1, 1]} : vector<4x32x8xbf16> to vector<1x32x8xbf16>
    %114 = vector.shape_cast %113 : vector<1x32x8xbf16> to vector<32x8xbf16>
    %cst_49 = arith.constant dense<0.000000e+00> : vector<16x8xf32>
    %115 = tpu.matmul %35, %114, %cst_49 {dimension_numbers = #tpu.dot_dimension_numbers<[1], [0], [0], [1], [0, 0, 1, 1], [], []>} : vector<16x32xbf16>, vector<32x8xbf16>, vector<16x8xf32> -> vector<16x8xf32>
    %116 = vector.shape_cast %109 : vector<16x8xf32> to vector<2x8x8xf32>
    %117 = arith.truncf %116 : vector<2x8x8xf32> to vector<2x8x8xbf16>
    %118 = vector.shape_cast %112 : vector<16x8xf32> to vector<2x8x8xf32>
    %119 = arith.truncf %118 : vector<2x8x8xf32> to vector<2x8x8xbf16>
    %120 = vector.shape_cast %115 : vector<16x8xf32> to vector<2x8x8xf32>
    %121 = arith.truncf %120 : vector<2x8x8xf32> to vector<2x8x8xbf16>
    "tpu.trace_start"() <{level = 10 : i32, message = "bqd,bkd->bqk"}> : () -> ()
    %cst_50 = arith.constant dense<0.000000e+00> : vector<2x8x8xf32>
    %122 = tpu.matmul %117, %119, %cst_50 {dimension_numbers = #tpu.dot_dimension_numbers<[2], [2], [1], [1], [0, 0, 0, 1, 1, 1], [0], [0]>} : vector<2x8x8xbf16>, vector<2x8x8xbf16>, vector<2x8x8xf32> -> vector<2x8x8xf32>
    "tpu.trace_stop"() : () -> ()
    %123 = arith.addf %122, %0 : vector<2x8x8xf32>
    %cst_51 = arith.constant dense<0xFF800000> : vector<2x8xf32>
    %124 = vector.multi_reduction <maximumf>, %123, %cst_51 [2] : vector<2x8x8xf32> to vector<2x8xf32>
    %125 = vector.shape_cast %124 : vector<2x8xf32> to vector<2x8x1xf32>
    %126 = vector.broadcast %125 : vector<2x8x1xf32> to vector<2x8x8xf32>
    %127 = arith.subf %123, %126 : vector<2x8x8xf32>
    %128 = math.exp %127 : vector<2x8x8xf32>
    %cst_52 = arith.constant dense<0.000000e+00> : vector<2x8xf32>
    %129 = vector.multi_reduction <add>, %128, %cst_52 [2] : vector<2x8x8xf32> to vector<2x8xf32>
    %130 = vector.shape_cast %129 : vector<2x8xf32> to vector<2x8x1xf32>
    %131 = tpu.reciprocal %130 {approx = true} : vector<2x8x1xf32> -> vector<2x8x1xf32>
    %132 = vector.broadcast %131 : vector<2x8x1xf32> to vector<2x8x8xf32>
    %133 = arith.mulf %128, %132 : vector<2x8x8xf32>
    %134 = arith.truncf %133 : vector<2x8x8xf32> to vector<2x8x8xbf16>
    "tpu.trace_start"() <{level = 10 : i32, message = "bqk,bkd->bqd"}> : () -> ()
    %cst_53 = arith.constant dense<0.000000e+00> : vector<2x8x8xf32>
    %135 = tpu.matmul %134, %121, %cst_53 {dimension_numbers = #tpu.dot_dimension_numbers<[2], [1], [1], [2], [0, 0, 0, 1, 1, 2], [0], [0]>} : vector<2x8x8xbf16>, vector<2x8x8xbf16>, vector<2x8x8xf32> -> vector<2x8x8xf32>
    "tpu.trace_stop"() : () -> ()
    %136 = vector.shape_cast %135 : vector<2x8x8xf32> to vector<16x8xf32>
    %137 = arith.truncf %136 : vector<16x8xf32> to vector<16x8xbf16>
    %138 = vector.extract_strided_slice %33 {offsets = [2, 0, 0], sizes = [1, 8, 32], strides = [1, 1, 1]} : vector<4x8x32xbf16> to vector<1x8x32xbf16>
    %139 = vector.shape_cast %138 : vector<1x8x32xbf16> to vector<8x32xbf16>
    %cst_54 = arith.constant dense<0.000000e+00> : vector<16x32xf32>
    %140 = tpu.matmul %137, %139, %cst_54 {dimension_numbers = #tpu.dot_dimension_numbers<[1], [0], [0], [1], [0, 0, 1, 1], [], []>} : vector<16x8xbf16>, vector<8x32xbf16>, vector<16x32xf32> -> vector<16x32xf32>
    %141 = arith.addf %106, %140 : vector<16x32xf32>
    %142 = vector.extract_strided_slice %27 {offsets = [3, 0, 0], sizes = [1, 32, 8], strides = [1, 1, 1]} : vector<4x32x8xbf16> to vector<1x32x8xbf16>
    %143 = vector.shape_cast %142 : vector<1x32x8xbf16> to vector<32x8xbf16>
    %cst_55 = arith.constant dense<0.000000e+00> : vector<16x8xf32>
    %144 = tpu.matmul %34, %143, %cst_55 {dimension_numbers = #tpu.dot_dimension_numbers<[1], [0], [0], [1], [0, 0, 1, 1], [], []>} : vector<16x32xbf16>, vector<32x8xbf16>, vector<16x8xf32> -> vector<16x8xf32>
    %145 = vector.extract_strided_slice %29 {offsets = [3, 0, 0], sizes = [1, 32, 8], strides = [1, 1, 1]} : vector<4x32x8xbf16> to vector<1x32x8xbf16>
    %146 = vector.shape_cast %145 : vector<1x32x8xbf16> to vector<32x8xbf16>
    %cst_56 = arith.constant dense<0.000000e+00> : vector<16x8xf32>
    %147 = tpu.matmul %35, %146, %cst_56 {dimension_numbers = #tpu.dot_dimension_numbers<[1], [0], [0], [1], [0, 0, 1, 1], [], []>} : vector<16x32xbf16>, vector<32x8xbf16>, vector<16x8xf32> -> vector<16x8xf32>
    %148 = vector.extract_strided_slice %31 {offsets = [3, 0, 0], sizes = [1, 32, 8], strides = [1, 1, 1]} : vector<4x32x8xbf16> to vector<1x32x8xbf16>
    %149 = vector.shape_cast %148 : vector<1x32x8xbf16> to vector<32x8xbf16>
    %cst_57 = arith.constant dense<0.000000e+00> : vector<16x8xf32>
    %150 = tpu.matmul %35, %149, %cst_57 {dimension_numbers = #tpu.dot_dimension_numbers<[1], [0], [0], [1], [0, 0, 1, 1], [], []>} : vector<16x32xbf16>, vector<32x8xbf16>, vector<16x8xf32> -> vector<16x8xf32>
    %151 = vector.shape_cast %144 : vector<16x8xf32> to vector<2x8x8xf32>
    %152 = arith.truncf %151 : vector<2x8x8xf32> to vector<2x8x8xbf16>
    %153 = vector.shape_cast %147 : vector<16x8xf32> to vector<2x8x8xf32>
    %154 = arith.truncf %153 : vector<2x8x8xf32> to vector<2x8x8xbf16>
    %155 = vector.shape_cast %150 : vector<16x8xf32> to vector<2x8x8xf32>
    %156 = arith.truncf %155 : vector<2x8x8xf32> to vector<2x8x8xbf16>
    "tpu.trace_start"() <{level = 10 : i32, message = "bqd,bkd->bqk"}> : () -> ()
    %cst_58 = arith.constant dense<0.000000e+00> : vector<2x8x8xf32>
    %157 = tpu.matmul %152, %154, %cst_58 {dimension_numbers = #tpu.dot_dimension_numbers<[2], [2], [1], [1], [0, 0, 0, 1, 1, 1], [0], [0]>} : vector<2x8x8xbf16>, vector<2x8x8xbf16>, vector<2x8x8xf32> -> vector<2x8x8xf32>
    "tpu.trace_stop"() : () -> ()
    %158 = arith.addf %157, %0 : vector<2x8x8xf32>
    %cst_59 = arith.constant dense<0xFF800000> : vector<2x8xf32>
    %159 = vector.multi_reduction <maximumf>, %158, %cst_59 [2] : vector<2x8x8xf32> to vector<2x8xf32>
    %160 = vector.shape_cast %159 : vector<2x8xf32> to vector<2x8x1xf32>
    %161 = vector.broadcast %160 : vector<2x8x1xf32> to vector<2x8x8xf32>
    %162 = arith.subf %158, %161 : vector<2x8x8xf32>
    %163 = math.exp %162 : vector<2x8x8xf32>
    %cst_60 = arith.constant dense<0.000000e+00> : vector<2x8xf32>
    %164 = vector.multi_reduction <add>, %163, %cst_60 [2] : vector<2x8x8xf32> to vector<2x8xf32>
    %165 = vector.shape_cast %164 : vector<2x8xf32> to vector<2x8x1xf32>
    %166 = tpu.reciprocal %165 {approx = true} : vector<2x8x1xf32> -> vector<2x8x1xf32>
    %167 = vector.broadcast %166 : vector<2x8x1xf32> to vector<2x8x8xf32>
    %168 = arith.mulf %163, %167 : vector<2x8x8xf32>
    %169 = arith.truncf %168 : vector<2x8x8xf32> to vector<2x8x8xbf16>
    "tpu.trace_start"() <{level = 10 : i32, message = "bqk,bkd->bqd"}> : () -> ()
    %cst_61 = arith.constant dense<0.000000e+00> : vector<2x8x8xf32>
    %170 = tpu.matmul %169, %156, %cst_61 {dimension_numbers = #tpu.dot_dimension_numbers<[2], [1], [1], [2], [0, 0, 0, 1, 1, 2], [0], [0]>} : vector<2x8x8xbf16>, vector<2x8x8xbf16>, vector<2x8x8xf32> -> vector<2x8x8xf32>
    "tpu.trace_stop"() : () -> ()
    %171 = vector.shape_cast %170 : vector<2x8x8xf32> to vector<16x8xf32>
    %172 = arith.truncf %171 : vector<16x8xf32> to vector<16x8xbf16>
    %173 = vector.extract_strided_slice %33 {offsets = [3, 0, 0], sizes = [1, 8, 32], strides = [1, 1, 1]} : vector<4x8x32xbf16> to vector<1x8x32xbf16>
    %174 = vector.shape_cast %173 : vector<1x8x32xbf16> to vector<8x32xbf16>
    %cst_62 = arith.constant dense<0.000000e+00> : vector<16x32xf32>
    %175 = tpu.matmul %172, %174, %cst_62 {dimension_numbers = #tpu.dot_dimension_numbers<[1], [0], [0], [1], [0, 0, 1, 1], [], []>} : vector<16x8xbf16>, vector<8x32xbf16>, vector<16x32xf32> -> vector<16x32xf32>
    %176 = arith.addf %141, %175 : vector<16x32xf32>
    %177 = arith.addf %1, %176 : vector<16x32xf32>
    %c0_63 = arith.constant 0 : index
    %c0_64 = arith.constant 0 : index
    %c0_65 = arith.constant 0 : index
    %178 = vector.load %arg35[%c0_63, %c0_64, %c0_65] : memref<4x1x32xf32, #tpu.memory_space<vmem>>, vector<1x1x32xf32>
    %179 = vector.shape_cast %178 : vector<1x1x32xf32> to vector<1x32xf32>
    %c0_66 = arith.constant 0 : index
    %c0_67 = arith.constant 0 : index
    %c0_68 = arith.constant 0 : index
    %180 = vector.load %arg34[%c0_66, %c0_67, %c0_68] : memref<4x1x32xf32, #tpu.memory_space<vmem>>, vector<1x1x32xf32>
    %181 = vector.shape_cast %180 : vector<1x1x32xf32> to vector<1x32xf32>
    %cst_69 = arith.constant dense<0.000000e+00> : vector<16xf32>
    %182 = vector.multi_reduction <add>, %177, %cst_69 [1] : vector<16x32xf32> to vector<16xf32>
    %183 = vector.shape_cast %182 : vector<16xf32> to vector<16x1xf32>
    %cst_70 = arith.constant 3.200000e+01 : f32
    %184 = vector.broadcast %cst_70 : f32 to vector<16x1xf32>
    %185 = arith.divf %183, %184 : vector<16x1xf32>
    %186 = vector.broadcast %185 : vector<16x1xf32> to vector<16x32xf32>
    %187 = arith.subf %177, %186 : vector<16x32xf32>
    %188 = arith.mulf %187, %187 : vector<16x32xf32>
    %cst_71 = arith.constant dense<0.000000e+00> : vector<16xf32>
    %189 = vector.multi_reduction <add>, %188, %cst_71 [1] : vector<16x32xf32> to vector<16xf32>
    %190 = vector.shape_cast %189 : vector<16xf32> to vector<16x1xf32>
    %cst_72 = arith.constant 3.200000e+01 : f32
    %191 = vector.broadcast %cst_72 : f32 to vector<16x1xf32>
    %192 = arith.divf %190, %191 : vector<16x1xf32>
    %cst_73 = arith.constant 9.99999997E-7 : f32
    %193 = vector.broadcast %cst_73 : f32 to vector<16x1xf32>
    %194 = arith.addf %192, %193 : vector<16x1xf32>
    %195 = math.rsqrt %194 : vector<16x1xf32>
    %196 = vector.broadcast %195 : vector<16x1xf32> to vector<16x32xf32>
    %197 = arith.mulf %187, %196 : vector<16x32xf32>
    %198 = vector.broadcast %179 : vector<1x32xf32> to vector<16x32xf32>
    %199 = arith.mulf %197, %198 : vector<16x32xf32>
    %200 = vector.broadcast %181 : vector<1x32xf32> to vector<16x32xf32>
    %201 = arith.addf %199, %200 : vector<16x32xf32>
    %c0_74 = arith.constant 0 : index
    %c0_75 = arith.constant 0 : index
    %c0_76 = arith.constant 0 : index
    %202 = vector.load %arg36[%c0_74, %c0_75, %c0_76] : memref<4x32x64xbf16, #tpu.memory_space<vmem>>, vector<1x32x64xbf16>
    %203 = vector.shape_cast %202 : vector<1x32x64xbf16> to vector<32x64xbf16>
    %c0_77 = arith.constant 0 : index
    %c0_78 = arith.constant 0 : index
    %c0_79 = arith.constant 0 : index
    %204 = vector.load %arg30[%c0_77, %c0_78, %c0_79] : memref<4x1x64xf32, #tpu.memory_space<vmem>>, vector<1x1x64xf32>
    %205 = vector.shape_cast %204 : vector<1x1x64xf32> to vector<1x64xf32>
    %c0_80 = arith.constant 0 : index
    %c0_81 = arith.constant 0 : index
    %c0_82 = arith.constant 0 : index
    %206 = vector.load %arg37[%c0_80, %c0_81, %c0_82] : memref<4x64x32xbf16, #tpu.memory_space<vmem>>, vector<1x64x32xbf16>
    %207 = vector.shape_cast %206 : vector<1x64x32xbf16> to vector<64x32xbf16>
    %c0_83 = arith.constant 0 : index
    %c0_84 = arith.constant 0 : index
    %c0_85 = arith.constant 0 : index
    %208 = vector.load %arg31[%c0_83, %c0_84, %c0_85] : memref<4x1x32xf32, #tpu.memory_space<vmem>>, vector<1x1x32xf32>
    %209 = vector.shape_cast %208 : vector<1x1x32xf32> to vector<1x32xf32>
    %210 = arith.truncf %201 : vector<16x32xf32> to vector<16x32xbf16>
    %cst_86 = arith.constant dense<0.000000e+00> : vector<16x64xf32>
    %211 = tpu.matmul %210, %203, %cst_86 {dimension_numbers = #tpu.dot_dimension_numbers<[1], [0], [0], [1], [0, 0, 1, 1], [], []>} : vector<16x32xbf16>, vector<32x64xbf16>, vector<16x64xf32> -> vector<16x64xf32>
    %212 = vector.broadcast %205 : vector<1x64xf32> to vector<16x64xf32>
    %213 = arith.addf %211, %212 : vector<16x64xf32>
    %cst_87 = arith.constant 0.000000e+00 : f32
    %214 = vector.broadcast %cst_87 : f32 to vector<16x64xf32>
    %215 = arith.maximumf %213, %214 : vector<16x64xf32>
    %216 = arith.truncf %215 : vector<16x64xf32> to vector<16x64xbf16>
    %cst_88 = arith.constant dense<0.000000e+00> : vector<16x32xf32>
    %217 = tpu.matmul %216, %207, %cst_88 {dimension_numbers = #tpu.dot_dimension_numbers<[1], [0], [0], [1], [0, 0, 1, 1], [], []>} : vector<16x64xbf16>, vector<64x32xbf16>, vector<16x32xf32> -> vector<16x32xf32>
    %218 = vector.broadcast %209 : vector<1x32xf32> to vector<16x32xf32>
    %219 = arith.addf %217, %218 : vector<16x32xf32>
    %220 = arith.addf %177, %219 : vector<16x32xf32>
    %c1 = arith.constant 1 : index
    %c0_89 = arith.constant 0 : index
    %c0_90 = arith.constant 0 : index
    %221 = vector.load %arg33[%c1, %c0_89, %c0_90] : memref<4x1x32xf32, #tpu.memory_space<vmem>>, vector<1x1x32xf32>
    %222 = vector.shape_cast %221 : vector<1x1x32xf32> to vector<1x32xf32>
    %c1_91 = arith.constant 1 : index
    %c0_92 = arith.constant 0 : index
    %c0_93 = arith.constant 0 : index
    %223 = vector.load %arg32[%c1_91, %c0_92, %c0_93] : memref<4x1x32xf32, #tpu.memory_space<vmem>>, vector<1x1x32xf32>
    %224 = vector.shape_cast %223 : vector<1x1x32xf32> to vector<1x32xf32>
    %cst_94 = arith.constant dense<0.000000e+00> : vector<16xf32>
    %225 = vector.multi_reduction <add>, %220, %cst_94 [1] : vector<16x32xf32> to vector<16xf32>
    %226 = vector.shape_cast %225 : vector<16xf32> to vector<16x1xf32>
    %cst_95 = arith.constant 3.200000e+01 : f32
    %227 = vector.broadcast %cst_95 : f32 to vector<16x1xf32>
    %228 = arith.divf %226, %227 : vector<16x1xf32>
    %229 = vector.broadcast %228 : vector<16x1xf32> to vector<16x32xf32>
    %230 = arith.subf %220, %229 : vector<16x32xf32>
    %231 = arith.mulf %230, %230 : vector<16x32xf32>
    %cst_96 = arith.constant dense<0.000000e+00> : vector<16xf32>
    %232 = vector.multi_reduction <add>, %231, %cst_96 [1] : vector<16x32xf32> to vector<16xf32>
    %233 = vector.shape_cast %232 : vector<16xf32> to vector<16x1xf32>
    %cst_97 = arith.constant 3.200000e+01 : f32
    %234 = vector.broadcast %cst_97 : f32 to vector<16x1xf32>
    %235 = arith.divf %233, %234 : vector<16x1xf32>
    %cst_98 = arith.constant 9.99999997E-7 : f32
    %236 = vector.broadcast %cst_98 : f32 to vector<16x1xf32>
    %237 = arith.addf %235, %236 : vector<16x1xf32>
    %238 = math.rsqrt %237 : vector<16x1xf32>
    %239 = vector.broadcast %238 : vector<16x1xf32> to vector<16x32xf32>
    %240 = arith.mulf %230, %239 : vector<16x32xf32>
    %241 = vector.broadcast %222 : vector<1x32xf32> to vector<16x32xf32>
    %242 = arith.mulf %240, %241 : vector<16x32xf32>
    %243 = vector.broadcast %224 : vector<1x32xf32> to vector<16x32xf32>
    %244 = arith.addf %242, %243 : vector<16x32xf32>
    %c1_99 = arith.constant 1 : index
    %c0_100 = arith.constant 0 : index
    %c0_101 = arith.constant 0 : index
    %c0_102 = arith.constant 0 : index
    %245 = vector.load %arg40[%c1_99, %c0_100, %c0_101, %c0_102] : memref<4x4x32x8xbf16, #tpu.memory_space<vmem>>, vector<1x4x32x8xbf16>
    %246 = vector.shape_cast %245 : vector<1x4x32x8xbf16> to vector<4x32x8xbf16>
    %c1_103 = arith.constant 1 : index
    %c0_104 = arith.constant 0 : index
    %c0_105 = arith.constant 0 : index
    %c0_106 = arith.constant 0 : index
    %247 = vector.load %arg38[%c1_103, %c0_104, %c0_105, %c0_106] : memref<4x4x32x8xbf16, #tpu.memory_space<vmem>>, vector<1x4x32x8xbf16>
    %248 = vector.shape_cast %247 : vector<1x4x32x8xbf16> to vector<4x32x8xbf16>
    %c1_107 = arith.constant 1 : index
    %c0_108 = arith.constant 0 : index
    %c0_109 = arith.constant 0 : index
    %c0_110 = arith.constant 0 : index
    %249 = vector.load %arg41[%c1_107, %c0_108, %c0_109, %c0_110] : memref<4x4x32x8xbf16, #tpu.memory_space<vmem>>, vector<1x4x32x8xbf16>
    %250 = vector.shape_cast %249 : vector<1x4x32x8xbf16> to vector<4x32x8xbf16>
    %c1_111 = arith.constant 1 : index
    %c0_112 = arith.constant 0 : index
    %c0_113 = arith.constant 0 : index
    %c0_114 = arith.constant 0 : index
    %251 = vector.load %arg39[%c1_111, %c0_112, %c0_113, %c0_114] : memref<4x4x8x32xbf16, #tpu.memory_space<vmem>>, vector<1x4x8x32xbf16>
    %252 = vector.shape_cast %251 : vector<1x4x8x32xbf16> to vector<4x8x32xbf16>
    %253 = arith.truncf %244 : vector<16x32xf32> to vector<16x32xbf16>
    %254 = arith.truncf %244 : vector<16x32xf32> to vector<16x32xbf16>
    %cst_115 = arith.constant 0.000000e+00 : f32
    %255 = vector.broadcast %cst_115 : f32 to vector<16x32xf32>
    %256 = vector.extract_strided_slice %246 {offsets = [0, 0, 0], sizes = [1, 32, 8], strides = [1, 1, 1]} : vector<4x32x8xbf16> to vector<1x32x8xbf16>
    %257 = vector.shape_cast %256 : vector<1x32x8xbf16> to vector<32x8xbf16>
    %cst_116 = arith.constant dense<0.000000e+00> : vector<16x8xf32>
    %258 = tpu.matmul %253, %257, %cst_116 {dimension_numbers = #tpu.dot_dimension_numbers<[1], [0], [0], [1], [0, 0, 1, 1], [], []>} : vector<16x32xbf16>, vector<32x8xbf16>, vector<16x8xf32> -> vector<16x8xf32>
    %259 = vector.extract_strided_slice %248 {offsets = [0, 0, 0], sizes = [1, 32, 8], strides = [1, 1, 1]} : vector<4x32x8xbf16> to vector<1x32x8xbf16>
    %260 = vector.shape_cast %259 : vector<1x32x8xbf16> to vector<32x8xbf16>
    %cst_117 = arith.constant dense<0.000000e+00> : vector<16x8xf32>
    %261 = tpu.matmul %254, %260, %cst_117 {dimension_numbers = #tpu.dot_dimension_numbers<[1], [0], [0], [1], [0, 0, 1, 1], [], []>} : vector<16x32xbf16>, vector<32x8xbf16>, vector<16x8xf32> -> vector<16x8xf32>
    %262 = vector.extract_strided_slice %250 {offsets = [0, 0, 0], sizes = [1, 32, 8], strides = [1, 1, 1]} : vector<4x32x8xbf16> to vector<1x32x8xbf16>
    %263 = vector.shape_cast %262 : vector<1x32x8xbf16> to vector<32x8xbf16>
    %cst_118 = arith.constant dense<0.000000e+00> : vector<16x8xf32>
    %264 = tpu.matmul %254, %263, %cst_118 {dimension_numbers = #tpu.dot_dimension_numbers<[1], [0], [0], [1], [0, 0, 1, 1], [], []>} : vector<16x32xbf16>, vector<32x8xbf16>, vector<16x8xf32> -> vector<16x8xf32>
    %265 = vector.shape_cast %258 : vector<16x8xf32> to vector<2x8x8xf32>
    %266 = arith.truncf %265 : vector<2x8x8xf32> to vector<2x8x8xbf16>
    %267 = vector.shape_cast %261 : vector<16x8xf32> to vector<2x8x8xf32>
    %268 = arith.truncf %267 : vector<2x8x8xf32> to vector<2x8x8xbf16>
    %269 = vector.shape_cast %264 : vector<16x8xf32> to vector<2x8x8xf32>
    %270 = arith.truncf %269 : vector<2x8x8xf32> to vector<2x8x8xbf16>
    "tpu.trace_start"() <{level = 10 : i32, message = "bqd,bkd->bqk"}> : () -> ()
    %cst_119 = arith.constant dense<0.000000e+00> : vector<2x8x8xf32>
    %271 = tpu.matmul %266, %268, %cst_119 {dimension_numbers = #tpu.dot_dimension_numbers<[2], [2], [1], [1], [0, 0, 0, 1, 1, 1], [0], [0]>} : vector<2x8x8xbf16>, vector<2x8x8xbf16>, vector<2x8x8xf32> -> vector<2x8x8xf32>
    "tpu.trace_stop"() : () -> ()
    %272 = arith.addf %271, %0 : vector<2x8x8xf32>
    %cst_120 = arith.constant dense<0xFF800000> : vector<2x8xf32>
    %273 = vector.multi_reduction <maximumf>, %272, %cst_120 [2] : vector<2x8x8xf32> to vector<2x8xf32>
    %274 = vector.shape_cast %273 : vector<2x8xf32> to vector<2x8x1xf32>
    %275 = vector.broadcast %274 : vector<2x8x1xf32> to vector<2x8x8xf32>
    %276 = arith.subf %272, %275 : vector<2x8x8xf32>
    %277 = math.exp %276 : vector<2x8x8xf32>
    %cst_121 = arith.constant dense<0.000000e+00> : vector<2x8xf32>
    %278 = vector.multi_reduction <add>, %277, %cst_121 [2] : vector<2x8x8xf32> to vector<2x8xf32>
    %279 = vector.shape_cast %278 : vector<2x8xf32> to vector<2x8x1xf32>
    %280 = tpu.reciprocal %279 {approx = true} : vector<2x8x1xf32> -> vector<2x8x1xf32>
    %281 = vector.broadcast %280 : vector<2x8x1xf32> to vector<2x8x8xf32>
    %282 = arith.mulf %277, %281 : vector<2x8x8xf32>
    %283 = arith.truncf %282 : vector<2x8x8xf32> to vector<2x8x8xbf16>
    "tpu.trace_start"() <{level = 10 : i32, message = "bqk,bkd->bqd"}> : () -> ()
    %cst_122 = arith.constant dense<0.000000e+00> : vector<2x8x8xf32>
    %284 = tpu.matmul %283, %270, %cst_122 {dimension_numbers = #tpu.dot_dimension_numbers<[2], [1], [1], [2], [0, 0, 0, 1, 1, 2], [0], [0]>} : vector<2x8x8xbf16>, vector<2x8x8xbf16>, vector<2x8x8xf32> -> vector<2x8x8xf32>
    "tpu.trace_stop"() : () -> ()
    %285 = vector.shape_cast %284 : vector<2x8x8xf32> to vector<16x8xf32>
    %286 = arith.truncf %285 : vector<16x8xf32> to vector<16x8xbf16>
    %287 = vector.extract_strided_slice %252 {offsets = [0, 0, 0], sizes = [1, 8, 32], strides = [1, 1, 1]} : vector<4x8x32xbf16> to vector<1x8x32xbf16>
    %288 = vector.shape_cast %287 : vector<1x8x32xbf16> to vector<8x32xbf16>
    %cst_123 = arith.constant dense<0.000000e+00> : vector<16x32xf32>
    %289 = tpu.matmul %286, %288, %cst_123 {dimension_numbers = #tpu.dot_dimension_numbers<[1], [0], [0], [1], [0, 0, 1, 1], [], []>} : vector<16x8xbf16>, vector<8x32xbf16>, vector<16x32xf32> -> vector<16x32xf32>
    %290 = arith.addf %255, %289 : vector<16x32xf32>
    %291 = vector.extract_strided_slice %246 {offsets = [1, 0, 0], sizes = [1, 32, 8], strides = [1, 1, 1]} : vector<4x32x8xbf16> to vector<1x32x8xbf16>
    %292 = vector.shape_cast %291 : vector<1x32x8xbf16> to vector<32x8xbf16>
    %cst_124 = arith.constant dense<0.000000e+00> : vector<16x8xf32>
    %293 = tpu.matmul %253, %292, %cst_124 {dimension_numbers = #tpu.dot_dimension_numbers<[1], [0], [0], [1], [0, 0, 1, 1], [], []>} : vector<16x32xbf16>, vector<32x8xbf16>, vector<16x8xf32> -> vector<16x8xf32>
    %294 = vector.extract_strided_slice %248 {offsets = [1, 0, 0], sizes = [1, 32, 8], strides = [1, 1, 1]} : vector<4x32x8xbf16> to vector<1x32x8xbf16>
    %295 = vector.shape_cast %294 : vector<1x32x8xbf16> to vector<32x8xbf16>
    %cst_125 = arith.constant dense<0.000000e+00> : vector<16x8xf32>
    %296 = tpu.matmul %254, %295, %cst_125 {dimension_numbers = #tpu.dot_dimension_numbers<[1], [0], [0], [1], [0, 0, 1, 1], [], []>} : vector<16x32xbf16>, vector<32x8xbf16>, vector<16x8xf32> -> vector<16x8xf32>
    %297 = vector.extract_strided_slice %250 {offsets = [1, 0, 0], sizes = [1, 32, 8], strides = [1, 1, 1]} : vector<4x32x8xbf16> to vector<1x32x8xbf16>
    %298 = vector.shape_cast %297 : vector<1x32x8xbf16> to vector<32x8xbf16>
    %cst_126 = arith.constant dense<0.000000e+00> : vector<16x8xf32>
    %299 = tpu.matmul %254, %298, %cst_126 {dimension_numbers = #tpu.dot_dimension_numbers<[1], [0], [0], [1], [0, 0, 1, 1], [], []>} : vector<16x32xbf16>, vector<32x8xbf16>, vector<16x8xf32> -> vector<16x8xf32>
    %300 = vector.shape_cast %293 : vector<16x8xf32> to vector<2x8x8xf32>
    %301 = arith.truncf %300 : vector<2x8x8xf32> to vector<2x8x8xbf16>
    %302 = vector.shape_cast %296 : vector<16x8xf32> to vector<2x8x8xf32>
    %303 = arith.truncf %302 : vector<2x8x8xf32> to vector<2x8x8xbf16>
    %304 = vector.shape_cast %299 : vector<16x8xf32> to vector<2x8x8xf32>
    %305 = arith.truncf %304 : vector<2x8x8xf32> to vector<2x8x8xbf16>
    "tpu.trace_start"() <{level = 10 : i32, message = "bqd,bkd->bqk"}> : () -> ()
    %cst_127 = arith.constant dense<0.000000e+00> : vector<2x8x8xf32>
    %306 = tpu.matmul %301, %303, %cst_127 {dimension_numbers = #tpu.dot_dimension_numbers<[2], [2], [1], [1], [0, 0, 0, 1, 1, 1], [0], [0]>} : vector<2x8x8xbf16>, vector<2x8x8xbf16>, vector<2x8x8xf32> -> vector<2x8x8xf32>
    "tpu.trace_stop"() : () -> ()
    %307 = arith.addf %306, %0 : vector<2x8x8xf32>
    %cst_128 = arith.constant dense<0xFF800000> : vector<2x8xf32>
    %308 = vector.multi_reduction <maximumf>, %307, %cst_128 [2] : vector<2x8x8xf32> to vector<2x8xf32>
    %309 = vector.shape_cast %308 : vector<2x8xf32> to vector<2x8x1xf32>
    %310 = vector.broadcast %309 : vector<2x8x1xf32> to vector<2x8x8xf32>
    %311 = arith.subf %307, %310 : vector<2x8x8xf32>
    %312 = math.exp %311 : vector<2x8x8xf32>
    %cst_129 = arith.constant dense<0.000000e+00> : vector<2x8xf32>
    %313 = vector.multi_reduction <add>, %312, %cst_129 [2] : vector<2x8x8xf32> to vector<2x8xf32>
    %314 = vector.shape_cast %313 : vector<2x8xf32> to vector<2x8x1xf32>
    %315 = tpu.reciprocal %314 {approx = true} : vector<2x8x1xf32> -> vector<2x8x1xf32>
    %316 = vector.broadcast %315 : vector<2x8x1xf32> to vector<2x8x8xf32>
    %317 = arith.mulf %312, %316 : vector<2x8x8xf32>
    %318 = arith.truncf %317 : vector<2x8x8xf32> to vector<2x8x8xbf16>
    "tpu.trace_start"() <{level = 10 : i32, message = "bqk,bkd->bqd"}> : () -> ()
    %cst_130 = arith.constant dense<0.000000e+00> : vector<2x8x8xf32>
    %319 = tpu.matmul %318, %305, %cst_130 {dimension_numbers = #tpu.dot_dimension_numbers<[2], [1], [1], [2], [0, 0, 0, 1, 1, 2], [0], [0]>} : vector<2x8x8xbf16>, vector<2x8x8xbf16>, vector<2x8x8xf32> -> vector<2x8x8xf32>
    "tpu.trace_stop"() : () -> ()
    %320 = vector.shape_cast %319 : vector<2x8x8xf32> to vector<16x8xf32>
    %321 = arith.truncf %320 : vector<16x8xf32> to vector<16x8xbf16>
    %322 = vector.extract_strided_slice %252 {offsets = [1, 0, 0], sizes = [1, 8, 32], strides = [1, 1, 1]} : vector<4x8x32xbf16> to vector<1x8x32xbf16>
    %323 = vector.shape_cast %322 : vector<1x8x32xbf16> to vector<8x32xbf16>
    %cst_131 = arith.constant dense<0.000000e+00> : vector<16x32xf32>
    %324 = tpu.matmul %321, %323, %cst_131 {dimension_numbers = #tpu.dot_dimension_numbers<[1], [0], [0], [1], [0, 0, 1, 1], [], []>} : vector<16x8xbf16>, vector<8x32xbf16>, vector<16x32xf32> -> vector<16x32xf32>
    %325 = arith.addf %290, %324 : vector<16x32xf32>
    %326 = vector.extract_strided_slice %246 {offsets = [2, 0, 0], sizes = [1, 32, 8], strides = [1, 1, 1]} : vector<4x32x8xbf16> to vector<1x32x8xbf16>
    %327 = vector.shape_cast %326 : vector<1x32x8xbf16> to vector<32x8xbf16>
    %cst_132 = arith.constant dense<0.000000e+00> : vector<16x8xf32>
    %328 = tpu.matmul %253, %327, %cst_132 {dimension_numbers = #tpu.dot_dimension_numbers<[1], [0], [0], [1], [0, 0, 1, 1], [], []>} : vector<16x32xbf16>, vector<32x8xbf16>, vector<16x8xf32> -> vector<16x8xf32>
    %329 = vector.extract_strided_slice %248 {offsets = [2, 0, 0], sizes = [1, 32, 8], strides = [1, 1, 1]} : vector<4x32x8xbf16> to vector<1x32x8xbf16>
    %330 = vector.shape_cast %329 : vector<1x32x8xbf16> to vector<32x8xbf16>
    %cst_133 = arith.constant dense<0.000000e+00> : vector<16x8xf32>
    %331 = tpu.matmul %254, %330, %cst_133 {dimension_numbers = #tpu.dot_dimension_numbers<[1], [0], [0], [1], [0, 0, 1, 1], [], []>} : vector<16x32xbf16>, vector<32x8xbf16>, vector<16x8xf32> -> vector<16x8xf32>
    %332 = vector.extract_strided_slice %250 {offsets = [2, 0, 0], sizes = [1, 32, 8], strides = [1, 1, 1]} : vector<4x32x8xbf16> to vector<1x32x8xbf16>
    %333 = vector.shape_cast %332 : vector<1x32x8xbf16> to vector<32x8xbf16>
    %cst_134 = arith.constant dense<0.000000e+00> : vector<16x8xf32>
    %334 = tpu.matmul %254, %333, %cst_134 {dimension_numbers = #tpu.dot_dimension_numbers<[1], [0], [0], [1], [0, 0, 1, 1], [], []>} : vector<16x32xbf16>, vector<32x8xbf16>, vector<16x8xf32> -> vector<16x8xf32>
    %335 = vector.shape_cast %328 : vector<16x8xf32> to vector<2x8x8xf32>
    %336 = arith.truncf %335 : vector<2x8x8xf32> to vector<2x8x8xbf16>
    %337 = vector.shape_cast %331 : vector<16x8xf32> to vector<2x8x8xf32>
    %338 = arith.truncf %337 : vector<2x8x8xf32> to vector<2x8x8xbf16>
    %339 = vector.shape_cast %334 : vector<16x8xf32> to vector<2x8x8xf32>
    %340 = arith.truncf %339 : vector<2x8x8xf32> to vector<2x8x8xbf16>
    "tpu.trace_start"() <{level = 10 : i32, message = "bqd,bkd->bqk"}> : () -> ()
    %cst_135 = arith.constant dense<0.000000e+00> : vector<2x8x8xf32>
    %341 = tpu.matmul %336, %338, %cst_135 {dimension_numbers = #tpu.dot_dimension_numbers<[2], [2], [1], [1], [0, 0, 0, 1, 1, 1], [0], [0]>} : vector<2x8x8xbf16>, vector<2x8x8xbf16>, vector<2x8x8xf32> -> vector<2x8x8xf32>
    "tpu.trace_stop"() : () -> ()
    %342 = arith.addf %341, %0 : vector<2x8x8xf32>
    %cst_136 = arith.constant dense<0xFF800000> : vector<2x8xf32>
    %343 = vector.multi_reduction <maximumf>, %342, %cst_136 [2] : vector<2x8x8xf32> to vector<2x8xf32>
    %344 = vector.shape_cast %343 : vector<2x8xf32> to vector<2x8x1xf32>
    %345 = vector.broadcast %344 : vector<2x8x1xf32> to vector<2x8x8xf32>
    %346 = arith.subf %342, %345 : vector<2x8x8xf32>
    %347 = math.exp %346 : vector<2x8x8xf32>
    %cst_137 = arith.constant dense<0.000000e+00> : vector<2x8xf32>
    %348 = vector.multi_reduction <add>, %347, %cst_137 [2] : vector<2x8x8xf32> to vector<2x8xf32>
    %349 = vector.shape_cast %348 : vector<2x8xf32> to vector<2x8x1xf32>
    %350 = tpu.reciprocal %349 {approx = true} : vector<2x8x1xf32> -> vector<2x8x1xf32>
    %351 = vector.broadcast %350 : vector<2x8x1xf32> to vector<2x8x8xf32>
    %352 = arith.mulf %347, %351 : vector<2x8x8xf32>
    %353 = arith.truncf %352 : vector<2x8x8xf32> to vector<2x8x8xbf16>
    "tpu.trace_start"() <{level = 10 : i32, message = "bqk,bkd->bqd"}> : () -> ()
    %cst_138 = arith.constant dense<0.000000e+00> : vector<2x8x8xf32>
    %354 = tpu.matmul %353, %340, %cst_138 {dimension_numbers = #tpu.dot_dimension_numbers<[2], [1], [1], [2], [0, 0, 0, 1, 1, 2], [0], [0]>} : vector<2x8x8xbf16>, vector<2x8x8xbf16>, vector<2x8x8xf32> -> vector<2x8x8xf32>
    "tpu.trace_stop"() : () -> ()
    %355 = vector.shape_cast %354 : vector<2x8x8xf32> to vector<16x8xf32>
    %356 = arith.truncf %355 : vector<16x8xf32> to vector<16x8xbf16>
    %357 = vector.extract_strided_slice %252 {offsets = [2, 0, 0], sizes = [1, 8, 32], strides = [1, 1, 1]} : vector<4x8x32xbf16> to vector<1x8x32xbf16>
    %358 = vector.shape_cast %357 : vector<1x8x32xbf16> to vector<8x32xbf16>
    %cst_139 = arith.constant dense<0.000000e+00> : vector<16x32xf32>
    %359 = tpu.matmul %356, %358, %cst_139 {dimension_numbers = #tpu.dot_dimension_numbers<[1], [0], [0], [1], [0, 0, 1, 1], [], []>} : vector<16x8xbf16>, vector<8x32xbf16>, vector<16x32xf32> -> vector<16x32xf32>
    %360 = arith.addf %325, %359 : vector<16x32xf32>
    %361 = vector.extract_strided_slice %246 {offsets = [3, 0, 0], sizes = [1, 32, 8], strides = [1, 1, 1]} : vector<4x32x8xbf16> to vector<1x32x8xbf16>
    %362 = vector.shape_cast %361 : vector<1x32x8xbf16> to vector<32x8xbf16>
    %cst_140 = arith.constant dense<0.000000e+00> : vector<16x8xf32>
    %363 = tpu.matmul %253, %362, %cst_140 {dimension_numbers = #tpu.dot_dimension_numbers<[1], [0], [0], [1], [0, 0, 1, 1], [], []>} : vector<16x32xbf16>, vector<32x8xbf16>, vector<16x8xf32> -> vector<16x8xf32>
    %364 = vector.extract_strided_slice %248 {offsets = [3, 0, 0], sizes = [1, 32, 8], strides = [1, 1, 1]} : vector<4x32x8xbf16> to vector<1x32x8xbf16>
    %365 = vector.shape_cast %364 : vector<1x32x8xbf16> to vector<32x8xbf16>
    %cst_141 = arith.constant dense<0.000000e+00> : vector<16x8xf32>
    %366 = tpu.matmul %254, %365, %cst_141 {dimension_numbers = #tpu.dot_dimension_numbers<[1], [0], [0], [1], [0, 0, 1, 1], [], []>} : vector<16x32xbf16>, vector<32x8xbf16>, vector<16x8xf32> -> vector<16x8xf32>
    %367 = vector.extract_strided_slice %250 {offsets = [3, 0, 0], sizes = [1, 32, 8], strides = [1, 1, 1]} : vector<4x32x8xbf16> to vector<1x32x8xbf16>
    %368 = vector.shape_cast %367 : vector<1x32x8xbf16> to vector<32x8xbf16>
    %cst_142 = arith.constant dense<0.000000e+00> : vector<16x8xf32>
    %369 = tpu.matmul %254, %368, %cst_142 {dimension_numbers = #tpu.dot_dimension_numbers<[1], [0], [0], [1], [0, 0, 1, 1], [], []>} : vector<16x32xbf16>, vector<32x8xbf16>, vector<16x8xf32> -> vector<16x8xf32>
    %370 = vector.shape_cast %363 : vector<16x8xf32> to vector<2x8x8xf32>
    %371 = arith.truncf %370 : vector<2x8x8xf32> to vector<2x8x8xbf16>
    %372 = vector.shape_cast %366 : vector<16x8xf32> to vector<2x8x8xf32>
    %373 = arith.truncf %372 : vector<2x8x8xf32> to vector<2x8x8xbf16>
    %374 = vector.shape_cast %369 : vector<16x8xf32> to vector<2x8x8xf32>
    %375 = arith.truncf %374 : vector<2x8x8xf32> to vector<2x8x8xbf16>
    "tpu.trace_start"() <{level = 10 : i32, message = "bqd,bkd->bqk"}> : () -> ()
    %cst_143 = arith.constant dense<0.000000e+00> : vector<2x8x8xf32>
    %376 = tpu.matmul %371, %373, %cst_143 {dimension_numbers = #tpu.dot_dimension_numbers<[2], [2], [1], [1], [0, 0, 0, 1, 1, 1], [0], [0]>} : vector<2x8x8xbf16>, vector<2x8x8xbf16>, vector<2x8x8xf32> -> vector<2x8x8xf32>
    "tpu.trace_stop"() : () -> ()
    %377 = arith.addf %376, %0 : vector<2x8x8xf32>
    %cst_144 = arith.constant dense<0xFF800000> : vector<2x8xf32>
    %378 = vector.multi_reduction <maximumf>, %377, %cst_144 [2] : vector<2x8x8xf32> to vector<2x8xf32>
    %379 = vector.shape_cast %378 : vector<2x8xf32> to vector<2x8x1xf32>
    %380 = vector.broadcast %379 : vector<2x8x1xf32> to vector<2x8x8xf32>
    %381 = arith.subf %377, %380 : vector<2x8x8xf32>
    %382 = math.exp %381 : vector<2x8x8xf32>
    %cst_145 = arith.constant dense<0.000000e+00> : vector<2x8xf32>
    %383 = vector.multi_reduction <add>, %382, %cst_145 [2] : vector<2x8x8xf32> to vector<2x8xf32>
    %384 = vector.shape_cast %383 : vector<2x8xf32> to vector<2x8x1xf32>
    %385 = tpu.reciprocal %384 {approx = true} : vector<2x8x1xf32> -> vector<2x8x1xf32>
    %386 = vector.broadcast %385 : vector<2x8x1xf32> to vector<2x8x8xf32>
    %387 = arith.mulf %382, %386 : vector<2x8x8xf32>
    %388 = arith.truncf %387 : vector<2x8x8xf32> to vector<2x8x8xbf16>
    "tpu.trace_start"() <{level = 10 : i32, message = "bqk,bkd->bqd"}> : () -> ()
    %cst_146 = arith.constant dense<0.000000e+00> : vector<2x8x8xf32>
    %389 = tpu.matmul %388, %375, %cst_146 {dimension_numbers = #tpu.dot_dimension_numbers<[2], [1], [1], [2], [0, 0, 0, 1, 1, 2], [0], [0]>} : vector<2x8x8xbf16>, vector<2x8x8xbf16>, vector<2x8x8xf32> -> vector<2x8x8xf32>
    "tpu.trace_stop"() : () -> ()
    %390 = vector.shape_cast %389 : vector<2x8x8xf32> to vector<16x8xf32>
    %391 = arith.truncf %390 : vector<16x8xf32> to vector<16x8xbf16>
    %392 = vector.extract_strided_slice %252 {offsets = [3, 0, 0], sizes = [1, 8, 32], strides = [1, 1, 1]} : vector<4x8x32xbf16> to vector<1x8x32xbf16>
    %393 = vector.shape_cast %392 : vector<1x8x32xbf16> to vector<8x32xbf16>
    %cst_147 = arith.constant dense<0.000000e+00> : vector<16x32xf32>
    %394 = tpu.matmul %391, %393, %cst_147 {dimension_numbers = #tpu.dot_dimension_numbers<[1], [0], [0], [1], [0, 0, 1, 1], [], []>} : vector<16x8xbf16>, vector<8x32xbf16>, vector<16x32xf32> -> vector<16x32xf32>
    %395 = arith.addf %360, %394 : vector<16x32xf32>
    %396 = arith.addf %220, %395 : vector<16x32xf32>
    %c1_148 = arith.constant 1 : index
    %c0_149 = arith.constant 0 : index
    %c0_150 = arith.constant 0 : index
    %397 = vector.load %arg35[%c1_148, %c0_149, %c0_150] : memref<4x1x32xf32, #tpu.memory_space<vmem>>, vector<1x1x32xf32>
    %398 = vector.shape_cast %397 : vector<1x1x32xf32> to vector<1x32xf32>
    %c1_151 = arith.constant 1 : index
    %c0_152 = arith.constant 0 : index
    %c0_153 = arith.constant 0 : index
    %399 = vector.load %arg34[%c1_151, %c0_152, %c0_153] : memref<4x1x32xf32, #tpu.memory_space<vmem>>, vector<1x1x32xf32>
    %400 = vector.shape_cast %399 : vector<1x1x32xf32> to vector<1x32xf32>
    %cst_154 = arith.constant dense<0.000000e+00> : vector<16xf32>
    %401 = vector.multi_reduction <add>, %396, %cst_154 [1] : vector<16x32xf32> to vector<16xf32>
    %402 = vector.shape_cast %401 : vector<16xf32> to vector<16x1xf32>
    %cst_155 = arith.constant 3.200000e+01 : f32
    %403 = vector.broadcast %cst_155 : f32 to vector<16x1xf32>
    %404 = arith.divf %402, %403 : vector<16x1xf32>
    %405 = vector.broadcast %404 : vector<16x1xf32> to vector<16x32xf32>
    %406 = arith.subf %396, %405 : vector<16x32xf32>
    %407 = arith.mulf %406, %406 : vector<16x32xf32>
    %cst_156 = arith.constant dense<0.000000e+00> : vector<16xf32>
    %408 = vector.multi_reduction <add>, %407, %cst_156 [1] : vector<16x32xf32> to vector<16xf32>
    %409 = vector.shape_cast %408 : vector<16xf32> to vector<16x1xf32>
    %cst_157 = arith.constant 3.200000e+01 : f32
    %410 = vector.broadcast %cst_157 : f32 to vector<16x1xf32>
    %411 = arith.divf %409, %410 : vector<16x1xf32>
    %cst_158 = arith.constant 9.99999997E-7 : f32
    %412 = vector.broadcast %cst_158 : f32 to vector<16x1xf32>
    %413 = arith.addf %411, %412 : vector<16x1xf32>
    %414 = math.rsqrt %413 : vector<16x1xf32>
    %415 = vector.broadcast %414 : vector<16x1xf32> to vector<16x32xf32>
    %416 = arith.mulf %406, %415 : vector<16x32xf32>
    %417 = vector.broadcast %398 : vector<1x32xf32> to vector<16x32xf32>
    %418 = arith.mulf %416, %417 : vector<16x32xf32>
    %419 = vector.broadcast %400 : vector<1x32xf32> to vector<16x32xf32>
    %420 = arith.addf %418, %419 : vector<16x32xf32>
    %c1_159 = arith.constant 1 : index
    %c0_160 = arith.constant 0 : index
    %c0_161 = arith.constant 0 : index
    %421 = vector.load %arg36[%c1_159, %c0_160, %c0_161] : memref<4x32x64xbf16, #tpu.memory_space<vmem>>, vector<1x32x64xbf16>
    %422 = vector.shape_cast %421 : vector<1x32x64xbf16> to vector<32x64xbf16>
    %c1_162 = arith.constant 1 : index
    %c0_163 = arith.constant 0 : index
    %c0_164 = arith.constant 0 : index
    %423 = vector.load %arg30[%c1_162, %c0_163, %c0_164] : memref<4x1x64xf32, #tpu.memory_space<vmem>>, vector<1x1x64xf32>
    %424 = vector.shape_cast %423 : vector<1x1x64xf32> to vector<1x64xf32>
    %c1_165 = arith.constant 1 : index
    %c0_166 = arith.constant 0 : index
    %c0_167 = arith.constant 0 : index
    %425 = vector.load %arg37[%c1_165, %c0_166, %c0_167] : memref<4x64x32xbf16, #tpu.memory_space<vmem>>, vector<1x64x32xbf16>
    %426 = vector.shape_cast %425 : vector<1x64x32xbf16> to vector<64x32xbf16>
    %c1_168 = arith.constant 1 : index
    %c0_169 = arith.constant 0 : index
    %c0_170 = arith.constant 0 : index
    %427 = vector.load %arg31[%c1_168, %c0_169, %c0_170] : memref<4x1x32xf32, #tpu.memory_space<vmem>>, vector<1x1x32xf32>
    %428 = vector.shape_cast %427 : vector<1x1x32xf32> to vector<1x32xf32>
    %429 = arith.truncf %420 : vector<16x32xf32> to vector<16x32xbf16>
    %cst_171 = arith.constant dense<0.000000e+00> : vector<16x64xf32>
    %430 = tpu.matmul %429, %422, %cst_171 {dimension_numbers = #tpu.dot_dimension_numbers<[1], [0], [0], [1], [0, 0, 1, 1], [], []>} : vector<16x32xbf16>, vector<32x64xbf16>, vector<16x64xf32> -> vector<16x64xf32>
    %431 = vector.broadcast %424 : vector<1x64xf32> to vector<16x64xf32>
    %432 = arith.addf %430, %431 : vector<16x64xf32>
    %cst_172 = arith.constant 0.000000e+00 : f32
    %433 = vector.broadcast %cst_172 : f32 to vector<16x64xf32>
    %434 = arith.maximumf %432, %433 : vector<16x64xf32>
    %435 = arith.truncf %434 : vector<16x64xf32> to vector<16x64xbf16>
    %cst_173 = arith.constant dense<0.000000e+00> : vector<16x32xf32>
    %436 = tpu.matmul %435, %426, %cst_173 {dimension_numbers = #tpu.dot_dimension_numbers<[1], [0], [0], [1], [0, 0, 1, 1], [], []>} : vector<16x64xbf16>, vector<64x32xbf16>, vector<16x32xf32> -> vector<16x32xf32>
    %437 = vector.broadcast %428 : vector<1x32xf32> to vector<16x32xf32>
    %438 = arith.addf %436, %437 : vector<16x32xf32>
    %439 = arith.addf %396, %438 : vector<16x32xf32>
    %c2 = arith.constant 2 : index
    %c0_174 = arith.constant 0 : index
    %c0_175 = arith.constant 0 : index
    %440 = vector.load %arg33[%c2, %c0_174, %c0_175] : memref<4x1x32xf32, #tpu.memory_space<vmem>>, vector<1x1x32xf32>
    %441 = vector.shape_cast %440 : vector<1x1x32xf32> to vector<1x32xf32>
    %c2_176 = arith.constant 2 : index
    %c0_177 = arith.constant 0 : index
    %c0_178 = arith.constant 0 : index
    %442 = vector.load %arg32[%c2_176, %c0_177, %c0_178] : memref<4x1x32xf32, #tpu.memory_space<vmem>>, vector<1x1x32xf32>
    %443 = vector.shape_cast %442 : vector<1x1x32xf32> to vector<1x32xf32>
    %cst_179 = arith.constant dense<0.000000e+00> : vector<16xf32>
    %444 = vector.multi_reduction <add>, %439, %cst_179 [1] : vector<16x32xf32> to vector<16xf32>
    %445 = vector.shape_cast %444 : vector<16xf32> to vector<16x1xf32>
    %cst_180 = arith.constant 3.200000e+01 : f32
    %446 = vector.broadcast %cst_180 : f32 to vector<16x1xf32>
    %447 = arith.divf %445, %446 : vector<16x1xf32>
    %448 = vector.broadcast %447 : vector<16x1xf32> to vector<16x32xf32>
    %449 = arith.subf %439, %448 : vector<16x32xf32>
    %450 = arith.mulf %449, %449 : vector<16x32xf32>
    %cst_181 = arith.constant dense<0.000000e+00> : vector<16xf32>
    %451 = vector.multi_reduction <add>, %450, %cst_181 [1] : vector<16x32xf32> to vector<16xf32>
    %452 = vector.shape_cast %451 : vector<16xf32> to vector<16x1xf32>
    %cst_182 = arith.constant 3.200000e+01 : f32
    %453 = vector.broadcast %cst_182 : f32 to vector<16x1xf32>
    %454 = arith.divf %452, %453 : vector<16x1xf32>
    %cst_183 = arith.constant 9.99999997E-7 : f32
    %455 = vector.broadcast %cst_183 : f32 to vector<16x1xf32>
    %456 = arith.addf %454, %455 : vector<16x1xf32>
    %457 = math.rsqrt %456 : vector<16x1xf32>
    %458 = vector.broadcast %457 : vector<16x1xf32> to vector<16x32xf32>
    %459 = arith.mulf %449, %458 : vector<16x32xf32>
    %460 = vector.broadcast %441 : vector<1x32xf32> to vector<16x32xf32>
    %461 = arith.mulf %459, %460 : vector<16x32xf32>
    %462 = vector.broadcast %443 : vector<1x32xf32> to vector<16x32xf32>
    %463 = arith.addf %461, %462 : vector<16x32xf32>
    %c2_184 = arith.constant 2 : index
    %c0_185 = arith.constant 0 : index
    %c0_186 = arith.constant 0 : index
    %c0_187 = arith.constant 0 : index
    %464 = vector.load %arg40[%c2_184, %c0_185, %c0_186, %c0_187] : memref<4x4x32x8xbf16, #tpu.memory_space<vmem>>, vector<1x4x32x8xbf16>
    %465 = vector.shape_cast %464 : vector<1x4x32x8xbf16> to vector<4x32x8xbf16>
    %c2_188 = arith.constant 2 : index
    %c0_189 = arith.constant 0 : index
    %c0_190 = arith.constant 0 : index
    %c0_191 = arith.constant 0 : index
    %466 = vector.load %arg38[%c2_188, %c0_189, %c0_190, %c0_191] : memref<4x4x32x8xbf16, #tpu.memory_space<vmem>>, vector<1x4x32x8xbf16>
    %467 = vector.shape_cast %466 : vector<1x4x32x8xbf16> to vector<4x32x8xbf16>
    %c2_192 = arith.constant 2 : index
    %c0_193 = arith.constant 0 : index
    %c0_194 = arith.constant 0 : index
    %c0_195 = arith.constant 0 : index
    %468 = vector.load %arg41[%c2_192, %c0_193, %c0_194, %c0_195] : memref<4x4x32x8xbf16, #tpu.memory_space<vmem>>, vector<1x4x32x8xbf16>
    %469 = vector.shape_cast %468 : vector<1x4x32x8xbf16> to vector<4x32x8xbf16>
    %c2_196 = arith.constant 2 : index
    %c0_197 = arith.constant 0 : index
    %c0_198 = arith.constant 0 : index
    %c0_199 = arith.constant 0 : index
    %470 = vector.load %arg39[%c2_196, %c0_197, %c0_198, %c0_199] : memref<4x4x8x32xbf16, #tpu.memory_space<vmem>>, vector<1x4x8x32xbf16>
    %471 = vector.shape_cast %470 : vector<1x4x8x32xbf16> to vector<4x8x32xbf16>
    %472 = arith.truncf %463 : vector<16x32xf32> to vector<16x32xbf16>
    %473 = arith.truncf %463 : vector<16x32xf32> to vector<16x32xbf16>
    %cst_200 = arith.constant 0.000000e+00 : f32
    %474 = vector.broadcast %cst_200 : f32 to vector<16x32xf32>
    %475 = vector.extract_strided_slice %465 {offsets = [0, 0, 0], sizes = [1, 32, 8], strides = [1, 1, 1]} : vector<4x32x8xbf16> to vector<1x32x8xbf16>
    %476 = vector.shape_cast %475 : vector<1x32x8xbf16> to vector<32x8xbf16>
    %cst_201 = arith.constant dense<0.000000e+00> : vector<16x8xf32>
    %477 = tpu.matmul %472, %476, %cst_201 {dimension_numbers = #tpu.dot_dimension_numbers<[1], [0], [0], [1], [0, 0, 1, 1], [], []>} : vector<16x32xbf16>, vector<32x8xbf16>, vector<16x8xf32> -> vector<16x8xf32>
    %478 = vector.extract_strided_slice %467 {offsets = [0, 0, 0], sizes = [1, 32, 8], strides = [1, 1, 1]} : vector<4x32x8xbf16> to vector<1x32x8xbf16>
    %479 = vector.shape_cast %478 : vector<1x32x8xbf16> to vector<32x8xbf16>
    %cst_202 = arith.constant dense<0.000000e+00> : vector<16x8xf32>
    %480 = tpu.matmul %473, %479, %cst_202 {dimension_numbers = #tpu.dot_dimension_numbers<[1], [0], [0], [1], [0, 0, 1, 1], [], []>} : vector<16x32xbf16>, vector<32x8xbf16>, vector<16x8xf32> -> vector<16x8xf32>
    %481 = vector.extract_strided_slice %469 {offsets = [0, 0, 0], sizes = [1, 32, 8], strides = [1, 1, 1]} : vector<4x32x8xbf16> to vector<1x32x8xbf16>
    %482 = vector.shape_cast %481 : vector<1x32x8xbf16> to vector<32x8xbf16>
    %cst_203 = arith.constant dense<0.000000e+00> : vector<16x8xf32>
    %483 = tpu.matmul %473, %482, %cst_203 {dimension_numbers = #tpu.dot_dimension_numbers<[1], [0], [0], [1], [0, 0, 1, 1], [], []>} : vector<16x32xbf16>, vector<32x8xbf16>, vector<16x8xf32> -> vector<16x8xf32>
    %484 = vector.shape_cast %477 : vector<16x8xf32> to vector<2x8x8xf32>
    %485 = arith.truncf %484 : vector<2x8x8xf32> to vector<2x8x8xbf16>
    %486 = vector.shape_cast %480 : vector<16x8xf32> to vector<2x8x8xf32>
    %487 = arith.truncf %486 : vector<2x8x8xf32> to vector<2x8x8xbf16>
    %488 = vector.shape_cast %483 : vector<16x8xf32> to vector<2x8x8xf32>
    %489 = arith.truncf %488 : vector<2x8x8xf32> to vector<2x8x8xbf16>
    "tpu.trace_start"() <{level = 10 : i32, message = "bqd,bkd->bqk"}> : () -> ()
    %cst_204 = arith.constant dense<0.000000e+00> : vector<2x8x8xf32>
    %490 = tpu.matmul %485, %487, %cst_204 {dimension_numbers = #tpu.dot_dimension_numbers<[2], [2], [1], [1], [0, 0, 0, 1, 1, 1], [0], [0]>} : vector<2x8x8xbf16>, vector<2x8x8xbf16>, vector<2x8x8xf32> -> vector<2x8x8xf32>
    "tpu.trace_stop"() : () -> ()
    %491 = arith.addf %490, %0 : vector<2x8x8xf32>
    %cst_205 = arith.constant dense<0xFF800000> : vector<2x8xf32>
    %492 = vector.multi_reduction <maximumf>, %491, %cst_205 [2] : vector<2x8x8xf32> to vector<2x8xf32>
    %493 = vector.shape_cast %492 : vector<2x8xf32> to vector<2x8x1xf32>
    %494 = vector.broadcast %493 : vector<2x8x1xf32> to vector<2x8x8xf32>
    %495 = arith.subf %491, %494 : vector<2x8x8xf32>
    %496 = math.exp %495 : vector<2x8x8xf32>
    %cst_206 = arith.constant dense<0.000000e+00> : vector<2x8xf32>
    %497 = vector.multi_reduction <add>, %496, %cst_206 [2] : vector<2x8x8xf32> to vector<2x8xf32>
    %498 = vector.shape_cast %497 : vector<2x8xf32> to vector<2x8x1xf32>
    %499 = tpu.reciprocal %498 {approx = true} : vector<2x8x1xf32> -> vector<2x8x1xf32>
    %500 = vector.broadcast %499 : vector<2x8x1xf32> to vector<2x8x8xf32>
    %501 = arith.mulf %496, %500 : vector<2x8x8xf32>
    %502 = arith.truncf %501 : vector<2x8x8xf32> to vector<2x8x8xbf16>
    "tpu.trace_start"() <{level = 10 : i32, message = "bqk,bkd->bqd"}> : () -> ()
    %cst_207 = arith.constant dense<0.000000e+00> : vector<2x8x8xf32>
    %503 = tpu.matmul %502, %489, %cst_207 {dimension_numbers = #tpu.dot_dimension_numbers<[2], [1], [1], [2], [0, 0, 0, 1, 1, 2], [0], [0]>} : vector<2x8x8xbf16>, vector<2x8x8xbf16>, vector<2x8x8xf32> -> vector<2x8x8xf32>
    "tpu.trace_stop"() : () -> ()
    %504 = vector.shape_cast %503 : vector<2x8x8xf32> to vector<16x8xf32>
    %505 = arith.truncf %504 : vector<16x8xf32> to vector<16x8xbf16>
    %506 = vector.extract_strided_slice %471 {offsets = [0, 0, 0], sizes = [1, 8, 32], strides = [1, 1, 1]} : vector<4x8x32xbf16> to vector<1x8x32xbf16>
    %507 = vector.shape_cast %506 : vector<1x8x32xbf16> to vector<8x32xbf16>
    %cst_208 = arith.constant dense<0.000000e+00> : vector<16x32xf32>
    %508 = tpu.matmul %505, %507, %cst_208 {dimension_numbers = #tpu.dot_dimension_numbers<[1], [0], [0], [1], [0, 0, 1, 1], [], []>} : vector<16x8xbf16>, vector<8x32xbf16>, vector<16x32xf32> -> vector<16x32xf32>
    %509 = arith.addf %474, %508 : vector<16x32xf32>
    %510 = vector.extract_strided_slice %465 {offsets = [1, 0, 0], sizes = [1, 32, 8], strides = [1, 1, 1]} : vector<4x32x8xbf16> to vector<1x32x8xbf16>
    %511 = vector.shape_cast %510 : vector<1x32x8xbf16> to vector<32x8xbf16>
    %cst_209 = arith.constant dense<0.000000e+00> : vector<16x8xf32>
    %512 = tpu.matmul %472, %511, %cst_209 {dimension_numbers = #tpu.dot_dimension_numbers<[1], [0], [0], [1], [0, 0, 1, 1], [], []>} : vector<16x32xbf16>, vector<32x8xbf16>, vector<16x8xf32> -> vector<16x8xf32>
    %513 = vector.extract_strided_slice %467 {offsets = [1, 0, 0], sizes = [1, 32, 8], strides = [1, 1, 1]} : vector<4x32x8xbf16> to vector<1x32x8xbf16>
    %514 = vector.shape_cast %513 : vector<1x32x8xbf16> to vector<32x8xbf16>
    %cst_210 = arith.constant dense<0.000000e+00> : vector<16x8xf32>
    %515 = tpu.matmul %473, %514, %cst_210 {dimension_numbers = #tpu.dot_dimension_numbers<[1], [0], [0], [1], [0, 0, 1, 1], [], []>} : vector<16x32xbf16>, vector<32x8xbf16>, vector<16x8xf32> -> vector<16x8xf32>
    %516 = vector.extract_strided_slice %469 {offsets = [1, 0, 0], sizes = [1, 32, 8], strides = [1, 1, 1]} : vector<4x32x8xbf16> to vector<1x32x8xbf16>
    %517 = vector.shape_cast %516 : vector<1x32x8xbf16> to vector<32x8xbf16>
    %cst_211 = arith.constant dense<0.000000e+00> : vector<16x8xf32>
    %518 = tpu.matmul %473, %517, %cst_211 {dimension_numbers = #tpu.dot_dimension_numbers<[1], [0], [0], [1], [0, 0, 1, 1], [], []>} : vector<16x32xbf16>, vector<32x8xbf16>, vector<16x8xf32> -> vector<16x8xf32>
    %519 = vector.shape_cast %512 : vector<16x8xf32> to vector<2x8x8xf32>
    %520 = arith.truncf %519 : vector<2x8x8xf32> to vector<2x8x8xbf16>
    %521 = vector.shape_cast %515 : vector<16x8xf32> to vector<2x8x8xf32>
    %522 = arith.truncf %521 : vector<2x8x8xf32> to vector<2x8x8xbf16>
    %523 = vector.shape_cast %518 : vector<16x8xf32> to vector<2x8x8xf32>
    %524 = arith.truncf %523 : vector<2x8x8xf32> to vector<2x8x8xbf16>
    "tpu.trace_start"() <{level = 10 : i32, message = "bqd,bkd->bqk"}> : () -> ()
    %cst_212 = arith.constant dense<0.000000e+00> : vector<2x8x8xf32>
    %525 = tpu.matmul %520, %522, %cst_212 {dimension_numbers = #tpu.dot_dimension_numbers<[2], [2], [1], [1], [0, 0, 0, 1, 1, 1], [0], [0]>} : vector<2x8x8xbf16>, vector<2x8x8xbf16>, vector<2x8x8xf32> -> vector<2x8x8xf32>
    "tpu.trace_stop"() : () -> ()
    %526 = arith.addf %525, %0 : vector<2x8x8xf32>
    %cst_213 = arith.constant dense<0xFF800000> : vector<2x8xf32>
    %527 = vector.multi_reduction <maximumf>, %526, %cst_213 [2] : vector<2x8x8xf32> to vector<2x8xf32>
    %528 = vector.shape_cast %527 : vector<2x8xf32> to vector<2x8x1xf32>
    %529 = vector.broadcast %528 : vector<2x8x1xf32> to vector<2x8x8xf32>
    %530 = arith.subf %526, %529 : vector<2x8x8xf32>
    %531 = math.exp %530 : vector<2x8x8xf32>
    %cst_214 = arith.constant dense<0.000000e+00> : vector<2x8xf32>
    %532 = vector.multi_reduction <add>, %531, %cst_214 [2] : vector<2x8x8xf32> to vector<2x8xf32>
    %533 = vector.shape_cast %532 : vector<2x8xf32> to vector<2x8x1xf32>
    %534 = tpu.reciprocal %533 {approx = true} : vector<2x8x1xf32> -> vector<2x8x1xf32>
    %535 = vector.broadcast %534 : vector<2x8x1xf32> to vector<2x8x8xf32>
    %536 = arith.mulf %531, %535 : vector<2x8x8xf32>
    %537 = arith.truncf %536 : vector<2x8x8xf32> to vector<2x8x8xbf16>
    "tpu.trace_start"() <{level = 10 : i32, message = "bqk,bkd->bqd"}> : () -> ()
    %cst_215 = arith.constant dense<0.000000e+00> : vector<2x8x8xf32>
    %538 = tpu.matmul %537, %524, %cst_215 {dimension_numbers = #tpu.dot_dimension_numbers<[2], [1], [1], [2], [0, 0, 0, 1, 1, 2], [0], [0]>} : vector<2x8x8xbf16>, vector<2x8x8xbf16>, vector<2x8x8xf32> -> vector<2x8x8xf32>
    "tpu.trace_stop"() : () -> ()
    %539 = vector.shape_cast %538 : vector<2x8x8xf32> to vector<16x8xf32>
    %540 = arith.truncf %539 : vector<16x8xf32> to vector<16x8xbf16>
    %541 = vector.extract_strided_slice %471 {offsets = [1, 0, 0], sizes = [1, 8, 32], strides = [1, 1, 1]} : vector<4x8x32xbf16> to vector<1x8x32xbf16>
    %542 = vector.shape_cast %541 : vector<1x8x32xbf16> to vector<8x32xbf16>
    %cst_216 = arith.constant dense<0.000000e+00> : vector<16x32xf32>
    %543 = tpu.matmul %540, %542, %cst_216 {dimension_numbers = #tpu.dot_dimension_numbers<[1], [0], [0], [1], [0, 0, 1, 1], [], []>} : vector<16x8xbf16>, vector<8x32xbf16>, vector<16x32xf32> -> vector<16x32xf32>
    %544 = arith.addf %509, %543 : vector<16x32xf32>
    %545 = vector.extract_strided_slice %465 {offsets = [2, 0, 0], sizes = [1, 32, 8], strides = [1, 1, 1]} : vector<4x32x8xbf16> to vector<1x32x8xbf16>
    %546 = vector.shape_cast %545 : vector<1x32x8xbf16> to vector<32x8xbf16>
    %cst_217 = arith.constant dense<0.000000e+00> : vector<16x8xf32>
    %547 = tpu.matmul %472, %546, %cst_217 {dimension_numbers = #tpu.dot_dimension_numbers<[1], [0], [0], [1], [0, 0, 1, 1], [], []>} : vector<16x32xbf16>, vector<32x8xbf16>, vector<16x8xf32> -> vector<16x8xf32>
    %548 = vector.extract_strided_slice %467 {offsets = [2, 0, 0], sizes = [1, 32, 8], strides = [1, 1, 1]} : vector<4x32x8xbf16> to vector<1x32x8xbf16>
    %549 = vector.shape_cast %548 : vector<1x32x8xbf16> to vector<32x8xbf16>
    %cst_218 = arith.constant dense<0.000000e+00> : vector<16x8xf32>
    %550 = tpu.matmul %473, %549, %cst_218 {dimension_numbers = #tpu.dot_dimension_numbers<[1], [0], [0], [1], [0, 0, 1, 1], [], []>} : vector<16x32xbf16>, vector<32x8xbf16>, vector<16x8xf32> -> vector<16x8xf32>
    %551 = vector.extract_strided_slice %469 {offsets = [2, 0, 0], sizes = [1, 32, 8], strides = [1, 1, 1]} : vector<4x32x8xbf16> to vector<1x32x8xbf16>
    %552 = vector.shape_cast %551 : vector<1x32x8xbf16> to vector<32x8xbf16>
    %cst_219 = arith.constant dense<0.000000e+00> : vector<16x8xf32>
    %553 = tpu.matmul %473, %552, %cst_219 {dimension_numbers = #tpu.dot_dimension_numbers<[1], [0], [0], [1], [0, 0, 1, 1], [], []>} : vector<16x32xbf16>, vector<32x8xbf16>, vector<16x8xf32> -> vector<16x8xf32>
    %554 = vector.shape_cast %547 : vector<16x8xf32> to vector<2x8x8xf32>
    %555 = arith.truncf %554 : vector<2x8x8xf32> to vector<2x8x8xbf16>
    %556 = vector.shape_cast %550 : vector<16x8xf32> to vector<2x8x8xf32>
    %557 = arith.truncf %556 : vector<2x8x8xf32> to vector<2x8x8xbf16>
    %558 = vector.shape_cast %553 : vector<16x8xf32> to vector<2x8x8xf32>
    %559 = arith.truncf %558 : vector<2x8x8xf32> to vector<2x8x8xbf16>
    "tpu.trace_start"() <{level = 10 : i32, message = "bqd,bkd->bqk"}> : () -> ()
    %cst_220 = arith.constant dense<0.000000e+00> : vector<2x8x8xf32>
    %560 = tpu.matmul %555, %557, %cst_220 {dimension_numbers = #tpu.dot_dimension_numbers<[2], [2], [1], [1], [0, 0, 0, 1, 1, 1], [0], [0]>} : vector<2x8x8xbf16>, vector<2x8x8xbf16>, vector<2x8x8xf32> -> vector<2x8x8xf32>
    "tpu.trace_stop"() : () -> ()
    %561 = arith.addf %560, %0 : vector<2x8x8xf32>
    %cst_221 = arith.constant dense<0xFF800000> : vector<2x8xf32>
    %562 = vector.multi_reduction <maximumf>, %561, %cst_221 [2] : vector<2x8x8xf32> to vector<2x8xf32>
    %563 = vector.shape_cast %562 : vector<2x8xf32> to vector<2x8x1xf32>
    %564 = vector.broadcast %563 : vector<2x8x1xf32> to vector<2x8x8xf32>
    %565 = arith.subf %561, %564 : vector<2x8x8xf32>
    %566 = math.exp %565 : vector<2x8x8xf32>
    %cst_222 = arith.constant dense<0.000000e+00> : vector<2x8xf32>
    %567 = vector.multi_reduction <add>, %566, %cst_222 [2] : vector<2x8x8xf32> to vector<2x8xf32>
    %568 = vector.shape_cast %567 : vector<2x8xf32> to vector<2x8x1xf32>
    %569 = tpu.reciprocal %568 {approx = true} : vector<2x8x1xf32> -> vector<2x8x1xf32>
    %570 = vector.broadcast %569 : vector<2x8x1xf32> to vector<2x8x8xf32>
    %571 = arith.mulf %566, %570 : vector<2x8x8xf32>
    %572 = arith.truncf %571 : vector<2x8x8xf32> to vector<2x8x8xbf16>
    "tpu.trace_start"() <{level = 10 : i32, message = "bqk,bkd->bqd"}> : () -> ()
    %cst_223 = arith.constant dense<0.000000e+00> : vector<2x8x8xf32>
    %573 = tpu.matmul %572, %559, %cst_223 {dimension_numbers = #tpu.dot_dimension_numbers<[2], [1], [1], [2], [0, 0, 0, 1, 1, 2], [0], [0]>} : vector<2x8x8xbf16>, vector<2x8x8xbf16>, vector<2x8x8xf32> -> vector<2x8x8xf32>
    "tpu.trace_stop"() : () -> ()
    %574 = vector.shape_cast %573 : vector<2x8x8xf32> to vector<16x8xf32>
    %575 = arith.truncf %574 : vector<16x8xf32> to vector<16x8xbf16>
    %576 = vector.extract_strided_slice %471 {offsets = [2, 0, 0], sizes = [1, 8, 32], strides = [1, 1, 1]} : vector<4x8x32xbf16> to vector<1x8x32xbf16>
    %577 = vector.shape_cast %576 : vector<1x8x32xbf16> to vector<8x32xbf16>
    %cst_224 = arith.constant dense<0.000000e+00> : vector<16x32xf32>
    %578 = tpu.matmul %575, %577, %cst_224 {dimension_numbers = #tpu.dot_dimension_numbers<[1], [0], [0], [1], [0, 0, 1, 1], [], []>} : vector<16x8xbf16>, vector<8x32xbf16>, vector<16x32xf32> -> vector<16x32xf32>
    %579 = arith.addf %544, %578 : vector<16x32xf32>
    %580 = vector.extract_strided_slice %465 {offsets = [3, 0, 0], sizes = [1, 32, 8], strides = [1, 1, 1]} : vector<4x32x8xbf16> to vector<1x32x8xbf16>
    %581 = vector.shape_cast %580 : vector<1x32x8xbf16> to vector<32x8xbf16>
    %cst_225 = arith.constant dense<0.000000e+00> : vector<16x8xf32>
    %582 = tpu.matmul %472, %581, %cst_225 {dimension_numbers = #tpu.dot_dimension_numbers<[1], [0], [0], [1], [0, 0, 1, 1], [], []>} : vector<16x32xbf16>, vector<32x8xbf16>, vector<16x8xf32> -> vector<16x8xf32>
    %583 = vector.extract_strided_slice %467 {offsets = [3, 0, 0], sizes = [1, 32, 8], strides = [1, 1, 1]} : vector<4x32x8xbf16> to vector<1x32x8xbf16>
    %584 = vector.shape_cast %583 : vector<1x32x8xbf16> to vector<32x8xbf16>
    %cst_226 = arith.constant dense<0.000000e+00> : vector<16x8xf32>
    %585 = tpu.matmul %473, %584, %cst_226 {dimension_numbers = #tpu.dot_dimension_numbers<[1], [0], [0], [1], [0, 0, 1, 1], [], []>} : vector<16x32xbf16>, vector<32x8xbf16>, vector<16x8xf32> -> vector<16x8xf32>
    %586 = vector.extract_strided_slice %469 {offsets = [3, 0, 0], sizes = [1, 32, 8], strides = [1, 1, 1]} : vector<4x32x8xbf16> to vector<1x32x8xbf16>
    %587 = vector.shape_cast %586 : vector<1x32x8xbf16> to vector<32x8xbf16>
    %cst_227 = arith.constant dense<0.000000e+00> : vector<16x8xf32>
    %588 = tpu.matmul %473, %587, %cst_227 {dimension_numbers = #tpu.dot_dimension_numbers<[1], [0], [0], [1], [0, 0, 1, 1], [], []>} : vector<16x32xbf16>, vector<32x8xbf16>, vector<16x8xf32> -> vector<16x8xf32>
    %589 = vector.shape_cast %582 : vector<16x8xf32> to vector<2x8x8xf32>
    %590 = arith.truncf %589 : vector<2x8x8xf32> to vector<2x8x8xbf16>
    %591 = vector.shape_cast %585 : vector<16x8xf32> to vector<2x8x8xf32>
    %592 = arith.truncf %591 : vector<2x8x8xf32> to vector<2x8x8xbf16>
    %593 = vector.shape_cast %588 : vector<16x8xf32> to vector<2x8x8xf32>
    %594 = arith.truncf %593 : vector<2x8x8xf32> to vector<2x8x8xbf16>
    "tpu.trace_start"() <{level = 10 : i32, message = "bqd,bkd->bqk"}> : () -> ()
    %cst_228 = arith.constant dense<0.000000e+00> : vector<2x8x8xf32>
    %595 = tpu.matmul %590, %592, %cst_228 {dimension_numbers = #tpu.dot_dimension_numbers<[2], [2], [1], [1], [0, 0, 0, 1, 1, 1], [0], [0]>} : vector<2x8x8xbf16>, vector<2x8x8xbf16>, vector<2x8x8xf32> -> vector<2x8x8xf32>
    "tpu.trace_stop"() : () -> ()
    %596 = arith.addf %595, %0 : vector<2x8x8xf32>
    %cst_229 = arith.constant dense<0xFF800000> : vector<2x8xf32>
    %597 = vector.multi_reduction <maximumf>, %596, %cst_229 [2] : vector<2x8x8xf32> to vector<2x8xf32>
    %598 = vector.shape_cast %597 : vector<2x8xf32> to vector<2x8x1xf32>
    %599 = vector.broadcast %598 : vector<2x8x1xf32> to vector<2x8x8xf32>
    %600 = arith.subf %596, %599 : vector<2x8x8xf32>
    %601 = math.exp %600 : vector<2x8x8xf32>
    %cst_230 = arith.constant dense<0.000000e+00> : vector<2x8xf32>
    %602 = vector.multi_reduction <add>, %601, %cst_230 [2] : vector<2x8x8xf32> to vector<2x8xf32>
    %603 = vector.shape_cast %602 : vector<2x8xf32> to vector<2x8x1xf32>
    %604 = tpu.reciprocal %603 {approx = true} : vector<2x8x1xf32> -> vector<2x8x1xf32>
    %605 = vector.broadcast %604 : vector<2x8x1xf32> to vector<2x8x8xf32>
    %606 = arith.mulf %601, %605 : vector<2x8x8xf32>
    %607 = arith.truncf %606 : vector<2x8x8xf32> to vector<2x8x8xbf16>
    "tpu.trace_start"() <{level = 10 : i32, message = "bqk,bkd->bqd"}> : () -> ()
    %cst_231 = arith.constant dense<0.000000e+00> : vector<2x8x8xf32>
    %608 = tpu.matmul %607, %594, %cst_231 {dimension_numbers = #tpu.dot_dimension_numbers<[2], [1], [1], [2], [0, 0, 0, 1, 1, 2], [0], [0]>} : vector<2x8x8xbf16>, vector<2x8x8xbf16>, vector<2x8x8xf32> -> vector<2x8x8xf32>
    "tpu.trace_stop"() : () -> ()
    %609 = vector.shape_cast %608 : vector<2x8x8xf32> to vector<16x8xf32>
    %610 = arith.truncf %609 : vector<16x8xf32> to vector<16x8xbf16>
    %611 = vector.extract_strided_slice %471 {offsets = [3, 0, 0], sizes = [1, 8, 32], strides = [1, 1, 1]} : vector<4x8x32xbf16> to vector<1x8x32xbf16>
    %612 = vector.shape_cast %611 : vector<1x8x32xbf16> to vector<8x32xbf16>
    %cst_232 = arith.constant dense<0.000000e+00> : vector<16x32xf32>
    %613 = tpu.matmul %610, %612, %cst_232 {dimension_numbers = #tpu.dot_dimension_numbers<[1], [0], [0], [1], [0, 0, 1, 1], [], []>} : vector<16x8xbf16>, vector<8x32xbf16>, vector<16x32xf32> -> vector<16x32xf32>
    %614 = arith.addf %579, %613 : vector<16x32xf32>
    %615 = arith.addf %439, %614 : vector<16x32xf32>
    %c2_233 = arith.constant 2 : index
    %c0_234 = arith.constant 0 : index
    %c0_235 = arith.constant 0 : index
    %616 = vector.load %arg35[%c2_233, %c0_234, %c0_235] : memref<4x1x32xf32, #tpu.memory_space<vmem>>, vector<1x1x32xf32>
    %617 = vector.shape_cast %616 : vector<1x1x32xf32> to vector<1x32xf32>
    %c2_236 = arith.constant 2 : index
    %c0_237 = arith.constant 0 : index
    %c0_238 = arith.constant 0 : index
    %618 = vector.load %arg34[%c2_236, %c0_237, %c0_238] : memref<4x1x32xf32, #tpu.memory_space<vmem>>, vector<1x1x32xf32>
    %619 = vector.shape_cast %618 : vector<1x1x32xf32> to vector<1x32xf32>
    %cst_239 = arith.constant dense<0.000000e+00> : vector<16xf32>
    %620 = vector.multi_reduction <add>, %615, %cst_239 [1] : vector<16x32xf32> to vector<16xf32>
    %621 = vector.shape_cast %620 : vector<16xf32> to vector<16x1xf32>
    %cst_240 = arith.constant 3.200000e+01 : f32
    %622 = vector.broadcast %cst_240 : f32 to vector<16x1xf32>
    %623 = arith.divf %621, %622 : vector<16x1xf32>
    %624 = vector.broadcast %623 : vector<16x1xf32> to vector<16x32xf32>
    %625 = arith.subf %615, %624 : vector<16x32xf32>
    %626 = arith.mulf %625, %625 : vector<16x32xf32>
    %cst_241 = arith.constant dense<0.000000e+00> : vector<16xf32>
    %627 = vector.multi_reduction <add>, %626, %cst_241 [1] : vector<16x32xf32> to vector<16xf32>
    %628 = vector.shape_cast %627 : vector<16xf32> to vector<16x1xf32>
    %cst_242 = arith.constant 3.200000e+01 : f32
    %629 = vector.broadcast %cst_242 : f32 to vector<16x1xf32>
    %630 = arith.divf %628, %629 : vector<16x1xf32>
    %cst_243 = arith.constant 9.99999997E-7 : f32
    %631 = vector.broadcast %cst_243 : f32 to vector<16x1xf32>
    %632 = arith.addf %630, %631 : vector<16x1xf32>
    %633 = math.rsqrt %632 : vector<16x1xf32>
    %634 = vector.broadcast %633 : vector<16x1xf32> to vector<16x32xf32>
    %635 = arith.mulf %625, %634 : vector<16x32xf32>
    %636 = vector.broadcast %617 : vector<1x32xf32> to vector<16x32xf32>
    %637 = arith.mulf %635, %636 : vector<16x32xf32>
    %638 = vector.broadcast %619 : vector<1x32xf32> to vector<16x32xf32>
    %639 = arith.addf %637, %638 : vector<16x32xf32>
    %c2_244 = arith.constant 2 : index
    %c0_245 = arith.constant 0 : index
    %c0_246 = arith.constant 0 : index
    %640 = vector.load %arg36[%c2_244, %c0_245, %c0_246] : memref<4x32x64xbf16, #tpu.memory_space<vmem>>, vector<1x32x64xbf16>
    %641 = vector.shape_cast %640 : vector<1x32x64xbf16> to vector<32x64xbf16>
    %c2_247 = arith.constant 2 : index
    %c0_248 = arith.constant 0 : index
    %c0_249 = arith.constant 0 : index
    %642 = vector.load %arg30[%c2_247, %c0_248, %c0_249] : memref<4x1x64xf32, #tpu.memory_space<vmem>>, vector<1x1x64xf32>
    %643 = vector.shape_cast %642 : vector<1x1x64xf32> to vector<1x64xf32>
    %c2_250 = arith.constant 2 : index
    %c0_251 = arith.constant 0 : index
    %c0_252 = arith.constant 0 : index
    %644 = vector.load %arg37[%c2_250, %c0_251, %c0_252] : memref<4x64x32xbf16, #tpu.memory_space<vmem>>, vector<1x64x32xbf16>
    %645 = vector.shape_cast %644 : vector<1x64x32xbf16> to vector<64x32xbf16>
    %c2_253 = arith.constant 2 : index
    %c0_254 = arith.constant 0 : index
    %c0_255 = arith.constant 0 : index
    %646 = vector.load %arg31[%c2_253, %c0_254, %c0_255] : memref<4x1x32xf32, #tpu.memory_space<vmem>>, vector<1x1x32xf32>
    %647 = vector.shape_cast %646 : vector<1x1x32xf32> to vector<1x32xf32>
    %648 = arith.truncf %639 : vector<16x32xf32> to vector<16x32xbf16>
    %cst_256 = arith.constant dense<0.000000e+00> : vector<16x64xf32>
    %649 = tpu.matmul %648, %641, %cst_256 {dimension_numbers = #tpu.dot_dimension_numbers<[1], [0], [0], [1], [0, 0, 1, 1], [], []>} : vector<16x32xbf16>, vector<32x64xbf16>, vector<16x64xf32> -> vector<16x64xf32>
    %650 = vector.broadcast %643 : vector<1x64xf32> to vector<16x64xf32>
    %651 = arith.addf %649, %650 : vector<16x64xf32>
    %cst_257 = arith.constant 0.000000e+00 : f32
    %652 = vector.broadcast %cst_257 : f32 to vector<16x64xf32>
    %653 = arith.maximumf %651, %652 : vector<16x64xf32>
    %654 = arith.truncf %653 : vector<16x64xf32> to vector<16x64xbf16>
    %cst_258 = arith.constant dense<0.000000e+00> : vector<16x32xf32>
    %655 = tpu.matmul %654, %645, %cst_258 {dimension_numbers = #tpu.dot_dimension_numbers<[1], [0], [0], [1], [0, 0, 1, 1], [], []>} : vector<16x64xbf16>, vector<64x32xbf16>, vector<16x32xf32> -> vector<16x32xf32>
    %656 = vector.broadcast %647 : vector<1x32xf32> to vector<16x32xf32>
    %657 = arith.addf %655, %656 : vector<16x32xf32>
    %658 = arith.addf %615, %657 : vector<16x32xf32>
    %c0_259 = arith.constant 0 : index
    %c0_260 = arith.constant 0 : index
    %c0_261 = arith.constant 0 : index
    %659 = vector.load %arg4[%c0_259, %c0_260, %c0_261] : memref<2x8x8xf32, #tpu.memory_space<vmem>>, vector<2x8x8xf32>
    %c0_262 = arith.constant 0 : index
    %c0_263 = arith.constant 0 : index
    %c0_264 = arith.constant 0 : index
    %660 = vector.load %arg5[%c0_262, %c0_263, %c0_264] : memref<2x8x8xf32, #tpu.memory_space<vmem>>, vector<2x8x8xf32>
    %c0_265 = arith.constant 0 : index
    %c0_266 = arith.constant 0 : index
    %661 = vector.load %arg1[%c0_265, %c0_266] : memref<16x32xf32, #tpu.memory_space<vmem>>, vector<16x32xf32>
    %c0_267 = arith.constant 0 : index
    %c0_268 = arith.constant 0 : index
    %c0_269 = arith.constant 0 : index
    %662 = vector.load %arg15[%c0_267, %c0_268, %c0_269] : memref<1x1x32xf32, #tpu.memory_space<vmem>>, vector<1x1x32xf32>
    %663 = vector.shape_cast %662 : vector<1x1x32xf32> to vector<1x32xf32>
    %c0_270 = arith.constant 0 : index
    %c0_271 = arith.constant 0 : index
    %c0_272 = arith.constant 0 : index
    %664 = vector.load %arg14[%c0_270, %c0_271, %c0_272] : memref<1x1x32xf32, #tpu.memory_space<vmem>>, vector<1x1x32xf32>
    %665 = vector.shape_cast %664 : vector<1x1x32xf32> to vector<1x32xf32>
    %cst_273 = arith.constant dense<0.000000e+00> : vector<16xf32>
    %666 = vector.multi_reduction <add>, %661, %cst_273 [1] : vector<16x32xf32> to vector<16xf32>
    %667 = vector.shape_cast %666 : vector<16xf32> to vector<16x1xf32>
    %cst_274 = arith.constant 3.200000e+01 : f32
    %668 = vector.broadcast %cst_274 : f32 to vector<16x1xf32>
    %669 = arith.divf %667, %668 : vector<16x1xf32>
    %670 = vector.broadcast %669 : vector<16x1xf32> to vector<16x32xf32>
    %671 = arith.subf %661, %670 : vector<16x32xf32>
    %672 = arith.mulf %671, %671 : vector<16x32xf32>
    %cst_275 = arith.constant dense<0.000000e+00> : vector<16xf32>
    %673 = vector.multi_reduction <add>, %672, %cst_275 [1] : vector<16x32xf32> to vector<16xf32>
    %674 = vector.shape_cast %673 : vector<16xf32> to vector<16x1xf32>
    %cst_276 = arith.constant 3.200000e+01 : f32
    %675 = vector.broadcast %cst_276 : f32 to vector<16x1xf32>
    %676 = arith.divf %674, %675 : vector<16x1xf32>
    %cst_277 = arith.constant 9.99999997E-7 : f32
    %677 = vector.broadcast %cst_277 : f32 to vector<16x1xf32>
    %678 = arith.addf %676, %677 : vector<16x1xf32>
    %679 = math.rsqrt %678 : vector<16x1xf32>
    %680 = vector.broadcast %679 : vector<16x1xf32> to vector<16x32xf32>
    %681 = arith.mulf %671, %680 : vector<16x32xf32>
    %682 = vector.broadcast %663 : vector<1x32xf32> to vector<16x32xf32>
    %683 = arith.mulf %681, %682 : vector<16x32xf32>
    %684 = vector.broadcast %665 : vector<1x32xf32> to vector<16x32xf32>
    %685 = arith.addf %683, %684 : vector<16x32xf32>
    %c0_278 = arith.constant 0 : index
    %c0_279 = arith.constant 0 : index
    %c0_280 = arith.constant 0 : index
    %c0_281 = arith.constant 0 : index
    %686 = vector.load %arg22[%c0_278, %c0_279, %c0_280, %c0_281] : memref<1x4x32x8xbf16, #tpu.memory_space<vmem>>, vector<1x4x32x8xbf16>
    %687 = vector.shape_cast %686 : vector<1x4x32x8xbf16> to vector<4x32x8xbf16>
    %c0_282 = arith.constant 0 : index
    %c0_283 = arith.constant 0 : index
    %c0_284 = arith.constant 0 : index
    %c0_285 = arith.constant 0 : index
    %688 = vector.load %arg20[%c0_282, %c0_283, %c0_284, %c0_285] : memref<1x4x32x8xbf16, #tpu.memory_space<vmem>>, vector<1x4x32x8xbf16>
    %689 = vector.shape_cast %688 : vector<1x4x32x8xbf16> to vector<4x32x8xbf16>
    %c0_286 = arith.constant 0 : index
    %c0_287 = arith.constant 0 : index
    %c0_288 = arith.constant 0 : index
    %c0_289 = arith.constant 0 : index
    %690 = vector.load %arg23[%c0_286, %c0_287, %c0_288, %c0_289] : memref<1x4x32x8xbf16, #tpu.memory_space<vmem>>, vector<1x4x32x8xbf16>
    %691 = vector.shape_cast %690 : vector<1x4x32x8xbf16> to vector<4x32x8xbf16>
    %c0_290 = arith.constant 0 : index
    %c0_291 = arith.constant 0 : index
    %c0_292 = arith.constant 0 : index
    %c0_293 = arith.constant 0 : index
    %692 = vector.load %arg21[%c0_290, %c0_291, %c0_292, %c0_293] : memref<1x4x8x32xbf16, #tpu.memory_space<vmem>>, vector<1x4x8x32xbf16>
    %693 = vector.shape_cast %692 : vector<1x4x8x32xbf16> to vector<4x8x32xbf16>
    %694 = arith.truncf %685 : vector<16x32xf32> to vector<16x32xbf16>
    %695 = arith.truncf %685 : vector<16x32xf32> to vector<16x32xbf16>
    %cst_294 = arith.constant 0.000000e+00 : f32
    %696 = vector.broadcast %cst_294 : f32 to vector<16x32xf32>
    %697 = vector.extract_strided_slice %687 {offsets = [0, 0, 0], sizes = [1, 32, 8], strides = [1, 1, 1]} : vector<4x32x8xbf16> to vector<1x32x8xbf16>
    %698 = vector.shape_cast %697 : vector<1x32x8xbf16> to vector<32x8xbf16>
    %cst_295 = arith.constant dense<0.000000e+00> : vector<16x8xf32>
    %699 = tpu.matmul %694, %698, %cst_295 {dimension_numbers = #tpu.dot_dimension_numbers<[1], [0], [0], [1], [0, 0, 1, 1], [], []>} : vector<16x32xbf16>, vector<32x8xbf16>, vector<16x8xf32> -> vector<16x8xf32>
    %700 = vector.extract_strided_slice %689 {offsets = [0, 0, 0], sizes = [1, 32, 8], strides = [1, 1, 1]} : vector<4x32x8xbf16> to vector<1x32x8xbf16>
    %701 = vector.shape_cast %700 : vector<1x32x8xbf16> to vector<32x8xbf16>
    %cst_296 = arith.constant dense<0.000000e+00> : vector<16x8xf32>
    %702 = tpu.matmul %695, %701, %cst_296 {dimension_numbers = #tpu.dot_dimension_numbers<[1], [0], [0], [1], [0, 0, 1, 1], [], []>} : vector<16x32xbf16>, vector<32x8xbf16>, vector<16x8xf32> -> vector<16x8xf32>
    %703 = vector.extract_strided_slice %691 {offsets = [0, 0, 0], sizes = [1, 32, 8], strides = [1, 1, 1]} : vector<4x32x8xbf16> to vector<1x32x8xbf16>
    %704 = vector.shape_cast %703 : vector<1x32x8xbf16> to vector<32x8xbf16>
    %cst_297 = arith.constant dense<0.000000e+00> : vector<16x8xf32>
    %705 = tpu.matmul %695, %704, %cst_297 {dimension_numbers = #tpu.dot_dimension_numbers<[1], [0], [0], [1], [0, 0, 1, 1], [], []>} : vector<16x32xbf16>, vector<32x8xbf16>, vector<16x8xf32> -> vector<16x8xf32>
    %706 = vector.shape_cast %699 : vector<16x8xf32> to vector<2x8x8xf32>
    %707 = arith.truncf %706 : vector<2x8x8xf32> to vector<2x8x8xbf16>
    %708 = vector.shape_cast %702 : vector<16x8xf32> to vector<2x8x8xf32>
    %709 = arith.truncf %708 : vector<2x8x8xf32> to vector<2x8x8xbf16>
    %710 = vector.shape_cast %705 : vector<16x8xf32> to vector<2x8x8xf32>
    %711 = arith.truncf %710 : vector<2x8x8xf32> to vector<2x8x8xbf16>
    "tpu.trace_start"() <{level = 10 : i32, message = "bqd,bkd->bqk"}> : () -> ()
    %cst_298 = arith.constant dense<0.000000e+00> : vector<2x8x8xf32>
    %712 = tpu.matmul %707, %709, %cst_298 {dimension_numbers = #tpu.dot_dimension_numbers<[2], [2], [1], [1], [0, 0, 0, 1, 1, 1], [0], [0]>} : vector<2x8x8xbf16>, vector<2x8x8xbf16>, vector<2x8x8xf32> -> vector<2x8x8xf32>
    "tpu.trace_stop"() : () -> ()
    %713 = arith.addf %712, %659 : vector<2x8x8xf32>
    %cst_299 = arith.constant dense<0xFF800000> : vector<2x8xf32>
    %714 = vector.multi_reduction <maximumf>, %713, %cst_299 [2] : vector<2x8x8xf32> to vector<2x8xf32>
    %715 = vector.shape_cast %714 : vector<2x8xf32> to vector<2x8x1xf32>
    %716 = vector.broadcast %715 : vector<2x8x1xf32> to vector<2x8x8xf32>
    %717 = arith.subf %713, %716 : vector<2x8x8xf32>
    %718 = math.exp %717 : vector<2x8x8xf32>
    %cst_300 = arith.constant dense<0.000000e+00> : vector<2x8xf32>
    %719 = vector.multi_reduction <add>, %718, %cst_300 [2] : vector<2x8x8xf32> to vector<2x8xf32>
    %720 = vector.shape_cast %719 : vector<2x8xf32> to vector<2x8x1xf32>
    %721 = tpu.reciprocal %720 {approx = true} : vector<2x8x1xf32> -> vector<2x8x1xf32>
    %722 = vector.broadcast %721 : vector<2x8x1xf32> to vector<2x8x8xf32>
    %723 = arith.mulf %718, %722 : vector<2x8x8xf32>
    %724 = arith.truncf %723 : vector<2x8x8xf32> to vector<2x8x8xbf16>
    "tpu.trace_start"() <{level = 10 : i32, message = "bqk,bkd->bqd"}> : () -> ()
    %cst_301 = arith.constant dense<0.000000e+00> : vector<2x8x8xf32>
    %725 = tpu.matmul %724, %711, %cst_301 {dimension_numbers = #tpu.dot_dimension_numbers<[2], [1], [1], [2], [0, 0, 0, 1, 1, 2], [0], [0]>} : vector<2x8x8xbf16>, vector<2x8x8xbf16>, vector<2x8x8xf32> -> vector<2x8x8xf32>
    "tpu.trace_stop"() : () -> ()
    %726 = vector.shape_cast %725 : vector<2x8x8xf32> to vector<16x8xf32>
    %727 = arith.truncf %726 : vector<16x8xf32> to vector<16x8xbf16>
    %728 = vector.extract_strided_slice %693 {offsets = [0, 0, 0], sizes = [1, 8, 32], strides = [1, 1, 1]} : vector<4x8x32xbf16> to vector<1x8x32xbf16>
    %729 = vector.shape_cast %728 : vector<1x8x32xbf16> to vector<8x32xbf16>
    %cst_302 = arith.constant dense<0.000000e+00> : vector<16x32xf32>
    %730 = tpu.matmul %727, %729, %cst_302 {dimension_numbers = #tpu.dot_dimension_numbers<[1], [0], [0], [1], [0, 0, 1, 1], [], []>} : vector<16x8xbf16>, vector<8x32xbf16>, vector<16x32xf32> -> vector<16x32xf32>
    %731 = arith.addf %696, %730 : vector<16x32xf32>
    %732 = vector.extract_strided_slice %687 {offsets = [1, 0, 0], sizes = [1, 32, 8], strides = [1, 1, 1]} : vector<4x32x8xbf16> to vector<1x32x8xbf16>
    %733 = vector.shape_cast %732 : vector<1x32x8xbf16> to vector<32x8xbf16>
    %cst_303 = arith.constant dense<0.000000e+00> : vector<16x8xf32>
    %734 = tpu.matmul %694, %733, %cst_303 {dimension_numbers = #tpu.dot_dimension_numbers<[1], [0], [0], [1], [0, 0, 1, 1], [], []>} : vector<16x32xbf16>, vector<32x8xbf16>, vector<16x8xf32> -> vector<16x8xf32>
    %735 = vector.extract_strided_slice %689 {offsets = [1, 0, 0], sizes = [1, 32, 8], strides = [1, 1, 1]} : vector<4x32x8xbf16> to vector<1x32x8xbf16>
    %736 = vector.shape_cast %735 : vector<1x32x8xbf16> to vector<32x8xbf16>
    %cst_304 = arith.constant dense<0.000000e+00> : vector<16x8xf32>
    %737 = tpu.matmul %695, %736, %cst_304 {dimension_numbers = #tpu.dot_dimension_numbers<[1], [0], [0], [1], [0, 0, 1, 1], [], []>} : vector<16x32xbf16>, vector<32x8xbf16>, vector<16x8xf32> -> vector<16x8xf32>
    %738 = vector.extract_strided_slice %691 {offsets = [1, 0, 0], sizes = [1, 32, 8], strides = [1, 1, 1]} : vector<4x32x8xbf16> to vector<1x32x8xbf16>
    %739 = vector.shape_cast %738 : vector<1x32x8xbf16> to vector<32x8xbf16>
    %cst_305 = arith.constant dense<0.000000e+00> : vector<16x8xf32>
    %740 = tpu.matmul %695, %739, %cst_305 {dimension_numbers = #tpu.dot_dimension_numbers<[1], [0], [0], [1], [0, 0, 1, 1], [], []>} : vector<16x32xbf16>, vector<32x8xbf16>, vector<16x8xf32> -> vector<16x8xf32>
    %741 = vector.shape_cast %734 : vector<16x8xf32> to vector<2x8x8xf32>
    %742 = arith.truncf %741 : vector<2x8x8xf32> to vector<2x8x8xbf16>
    %743 = vector.shape_cast %737 : vector<16x8xf32> to vector<2x8x8xf32>
    %744 = arith.truncf %743 : vector<2x8x8xf32> to vector<2x8x8xbf16>
    %745 = vector.shape_cast %740 : vector<16x8xf32> to vector<2x8x8xf32>
    %746 = arith.truncf %745 : vector<2x8x8xf32> to vector<2x8x8xbf16>
    "tpu.trace_start"() <{level = 10 : i32, message = "bqd,bkd->bqk"}> : () -> ()
    %cst_306 = arith.constant dense<0.000000e+00> : vector<2x8x8xf32>
    %747 = tpu.matmul %742, %744, %cst_306 {dimension_numbers = #tpu.dot_dimension_numbers<[2], [2], [1], [1], [0, 0, 0, 1, 1, 1], [0], [0]>} : vector<2x8x8xbf16>, vector<2x8x8xbf16>, vector<2x8x8xf32> -> vector<2x8x8xf32>
    "tpu.trace_stop"() : () -> ()
    %748 = arith.addf %747, %659 : vector<2x8x8xf32>
    %cst_307 = arith.constant dense<0xFF800000> : vector<2x8xf32>
    %749 = vector.multi_reduction <maximumf>, %748, %cst_307 [2] : vector<2x8x8xf32> to vector<2x8xf32>
    %750 = vector.shape_cast %749 : vector<2x8xf32> to vector<2x8x1xf32>
    %751 = vector.broadcast %750 : vector<2x8x1xf32> to vector<2x8x8xf32>
    %752 = arith.subf %748, %751 : vector<2x8x8xf32>
    %753 = math.exp %752 : vector<2x8x8xf32>
    %cst_308 = arith.constant dense<0.000000e+00> : vector<2x8xf32>
    %754 = vector.multi_reduction <add>, %753, %cst_308 [2] : vector<2x8x8xf32> to vector<2x8xf32>
    %755 = vector.shape_cast %754 : vector<2x8xf32> to vector<2x8x1xf32>
    %756 = tpu.reciprocal %755 {approx = true} : vector<2x8x1xf32> -> vector<2x8x1xf32>
    %757 = vector.broadcast %756 : vector<2x8x1xf32> to vector<2x8x8xf32>
    %758 = arith.mulf %753, %757 : vector<2x8x8xf32>
    %759 = arith.truncf %758 : vector<2x8x8xf32> to vector<2x8x8xbf16>
    "tpu.trace_start"() <{level = 10 : i32, message = "bqk,bkd->bqd"}> : () -> ()
    %cst_309 = arith.constant dense<0.000000e+00> : vector<2x8x8xf32>
    %760 = tpu.matmul %759, %746, %cst_309 {dimension_numbers = #tpu.dot_dimension_numbers<[2], [1], [1], [2], [0, 0, 0, 1, 1, 2], [0], [0]>} : vector<2x8x8xbf16>, vector<2x8x8xbf16>, vector<2x8x8xf32> -> vector<2x8x8xf32>
    "tpu.trace_stop"() : () -> ()
    %761 = vector.shape_cast %760 : vector<2x8x8xf32> to vector<16x8xf32>
    %762 = arith.truncf %761 : vector<16x8xf32> to vector<16x8xbf16>
    %763 = vector.extract_strided_slice %693 {offsets = [1, 0, 0], sizes = [1, 8, 32], strides = [1, 1, 1]} : vector<4x8x32xbf16> to vector<1x8x32xbf16>
    %764 = vector.shape_cast %763 : vector<1x8x32xbf16> to vector<8x32xbf16>
    %cst_310 = arith.constant dense<0.000000e+00> : vector<16x32xf32>
    %765 = tpu.matmul %762, %764, %cst_310 {dimension_numbers = #tpu.dot_dimension_numbers<[1], [0], [0], [1], [0, 0, 1, 1], [], []>} : vector<16x8xbf16>, vector<8x32xbf16>, vector<16x32xf32> -> vector<16x32xf32>
    %766 = arith.addf %731, %765 : vector<16x32xf32>
    %767 = vector.extract_strided_slice %687 {offsets = [2, 0, 0], sizes = [1, 32, 8], strides = [1, 1, 1]} : vector<4x32x8xbf16> to vector<1x32x8xbf16>
    %768 = vector.shape_cast %767 : vector<1x32x8xbf16> to vector<32x8xbf16>
    %cst_311 = arith.constant dense<0.000000e+00> : vector<16x8xf32>
    %769 = tpu.matmul %694, %768, %cst_311 {dimension_numbers = #tpu.dot_dimension_numbers<[1], [0], [0], [1], [0, 0, 1, 1], [], []>} : vector<16x32xbf16>, vector<32x8xbf16>, vector<16x8xf32> -> vector<16x8xf32>
    %770 = vector.extract_strided_slice %689 {offsets = [2, 0, 0], sizes = [1, 32, 8], strides = [1, 1, 1]} : vector<4x32x8xbf16> to vector<1x32x8xbf16>
    %771 = vector.shape_cast %770 : vector<1x32x8xbf16> to vector<32x8xbf16>
    %cst_312 = arith.constant dense<0.000000e+00> : vector<16x8xf32>
    %772 = tpu.matmul %695, %771, %cst_312 {dimension_numbers = #tpu.dot_dimension_numbers<[1], [0], [0], [1], [0, 0, 1, 1], [], []>} : vector<16x32xbf16>, vector<32x8xbf16>, vector<16x8xf32> -> vector<16x8xf32>
    %773 = vector.extract_strided_slice %691 {offsets = [2, 0, 0], sizes = [1, 32, 8], strides = [1, 1, 1]} : vector<4x32x8xbf16> to vector<1x32x8xbf16>
    %774 = vector.shape_cast %773 : vector<1x32x8xbf16> to vector<32x8xbf16>
    %cst_313 = arith.constant dense<0.000000e+00> : vector<16x8xf32>
    %775 = tpu.matmul %695, %774, %cst_313 {dimension_numbers = #tpu.dot_dimension_numbers<[1], [0], [0], [1], [0, 0, 1, 1], [], []>} : vector<16x32xbf16>, vector<32x8xbf16>, vector<16x8xf32> -> vector<16x8xf32>
    %776 = vector.shape_cast %769 : vector<16x8xf32> to vector<2x8x8xf32>
    %777 = arith.truncf %776 : vector<2x8x8xf32> to vector<2x8x8xbf16>
    %778 = vector.shape_cast %772 : vector<16x8xf32> to vector<2x8x8xf32>
    %779 = arith.truncf %778 : vector<2x8x8xf32> to vector<2x8x8xbf16>
    %780 = vector.shape_cast %775 : vector<16x8xf32> to vector<2x8x8xf32>
    %781 = arith.truncf %780 : vector<2x8x8xf32> to vector<2x8x8xbf16>
    "tpu.trace_start"() <{level = 10 : i32, message = "bqd,bkd->bqk"}> : () -> ()
    %cst_314 = arith.constant dense<0.000000e+00> : vector<2x8x8xf32>
    %782 = tpu.matmul %777, %779, %cst_314 {dimension_numbers = #tpu.dot_dimension_numbers<[2], [2], [1], [1], [0, 0, 0, 1, 1, 1], [0], [0]>} : vector<2x8x8xbf16>, vector<2x8x8xbf16>, vector<2x8x8xf32> -> vector<2x8x8xf32>
    "tpu.trace_stop"() : () -> ()
    %783 = arith.addf %782, %659 : vector<2x8x8xf32>
    %cst_315 = arith.constant dense<0xFF800000> : vector<2x8xf32>
    %784 = vector.multi_reduction <maximumf>, %783, %cst_315 [2] : vector<2x8x8xf32> to vector<2x8xf32>
    %785 = vector.shape_cast %784 : vector<2x8xf32> to vector<2x8x1xf32>
    %786 = vector.broadcast %785 : vector<2x8x1xf32> to vector<2x8x8xf32>
    %787 = arith.subf %783, %786 : vector<2x8x8xf32>
    %788 = math.exp %787 : vector<2x8x8xf32>
    %cst_316 = arith.constant dense<0.000000e+00> : vector<2x8xf32>
    %789 = vector.multi_reduction <add>, %788, %cst_316 [2] : vector<2x8x8xf32> to vector<2x8xf32>
    %790 = vector.shape_cast %789 : vector<2x8xf32> to vector<2x8x1xf32>
    %791 = tpu.reciprocal %790 {approx = true} : vector<2x8x1xf32> -> vector<2x8x1xf32>
    %792 = vector.broadcast %791 : vector<2x8x1xf32> to vector<2x8x8xf32>
    %793 = arith.mulf %788, %792 : vector<2x8x8xf32>
    %794 = arith.truncf %793 : vector<2x8x8xf32> to vector<2x8x8xbf16>
    "tpu.trace_start"() <{level = 10 : i32, message = "bqk,bkd->bqd"}> : () -> ()
    %cst_317 = arith.constant dense<0.000000e+00> : vector<2x8x8xf32>
    %795 = tpu.matmul %794, %781, %cst_317 {dimension_numbers = #tpu.dot_dimension_numbers<[2], [1], [1], [2], [0, 0, 0, 1, 1, 2], [0], [0]>} : vector<2x8x8xbf16>, vector<2x8x8xbf16>, vector<2x8x8xf32> -> vector<2x8x8xf32>
    "tpu.trace_stop"() : () -> ()
    %796 = vector.shape_cast %795 : vector<2x8x8xf32> to vector<16x8xf32>
    %797 = arith.truncf %796 : vector<16x8xf32> to vector<16x8xbf16>
    %798 = vector.extract_strided_slice %693 {offsets = [2, 0, 0], sizes = [1, 8, 32], strides = [1, 1, 1]} : vector<4x8x32xbf16> to vector<1x8x32xbf16>
    %799 = vector.shape_cast %798 : vector<1x8x32xbf16> to vector<8x32xbf16>
    %cst_318 = arith.constant dense<0.000000e+00> : vector<16x32xf32>
    %800 = tpu.matmul %797, %799, %cst_318 {dimension_numbers = #tpu.dot_dimension_numbers<[1], [0], [0], [1], [0, 0, 1, 1], [], []>} : vector<16x8xbf16>, vector<8x32xbf16>, vector<16x32xf32> -> vector<16x32xf32>
    %801 = arith.addf %766, %800 : vector<16x32xf32>
    %802 = vector.extract_strided_slice %687 {offsets = [3, 0, 0], sizes = [1, 32, 8], strides = [1, 1, 1]} : vector<4x32x8xbf16> to vector<1x32x8xbf16>
    %803 = vector.shape_cast %802 : vector<1x32x8xbf16> to vector<32x8xbf16>
    %cst_319 = arith.constant dense<0.000000e+00> : vector<16x8xf32>
    %804 = tpu.matmul %694, %803, %cst_319 {dimension_numbers = #tpu.dot_dimension_numbers<[1], [0], [0], [1], [0, 0, 1, 1], [], []>} : vector<16x32xbf16>, vector<32x8xbf16>, vector<16x8xf32> -> vector<16x8xf32>
    %805 = vector.extract_strided_slice %689 {offsets = [3, 0, 0], sizes = [1, 32, 8], strides = [1, 1, 1]} : vector<4x32x8xbf16> to vector<1x32x8xbf16>
    %806 = vector.shape_cast %805 : vector<1x32x8xbf16> to vector<32x8xbf16>
    %cst_320 = arith.constant dense<0.000000e+00> : vector<16x8xf32>
    %807 = tpu.matmul %695, %806, %cst_320 {dimension_numbers = #tpu.dot_dimension_numbers<[1], [0], [0], [1], [0, 0, 1, 1], [], []>} : vector<16x32xbf16>, vector<32x8xbf16>, vector<16x8xf32> -> vector<16x8xf32>
    %808 = vector.extract_strided_slice %691 {offsets = [3, 0, 0], sizes = [1, 32, 8], strides = [1, 1, 1]} : vector<4x32x8xbf16> to vector<1x32x8xbf16>
    %809 = vector.shape_cast %808 : vector<1x32x8xbf16> to vector<32x8xbf16>
    %cst_321 = arith.constant dense<0.000000e+00> : vector<16x8xf32>
    %810 = tpu.matmul %695, %809, %cst_321 {dimension_numbers = #tpu.dot_dimension_numbers<[1], [0], [0], [1], [0, 0, 1, 1], [], []>} : vector<16x32xbf16>, vector<32x8xbf16>, vector<16x8xf32> -> vector<16x8xf32>
    %811 = vector.shape_cast %804 : vector<16x8xf32> to vector<2x8x8xf32>
    %812 = arith.truncf %811 : vector<2x8x8xf32> to vector<2x8x8xbf16>
    %813 = vector.shape_cast %807 : vector<16x8xf32> to vector<2x8x8xf32>
    %814 = arith.truncf %813 : vector<2x8x8xf32> to vector<2x8x8xbf16>
    %815 = vector.shape_cast %810 : vector<16x8xf32> to vector<2x8x8xf32>
    %816 = arith.truncf %815 : vector<2x8x8xf32> to vector<2x8x8xbf16>
    "tpu.trace_start"() <{level = 10 : i32, message = "bqd,bkd->bqk"}> : () -> ()
    %cst_322 = arith.constant dense<0.000000e+00> : vector<2x8x8xf32>
    %817 = tpu.matmul %812, %814, %cst_322 {dimension_numbers = #tpu.dot_dimension_numbers<[2], [2], [1], [1], [0, 0, 0, 1, 1, 1], [0], [0]>} : vector<2x8x8xbf16>, vector<2x8x8xbf16>, vector<2x8x8xf32> -> vector<2x8x8xf32>
    "tpu.trace_stop"() : () -> ()
    %818 = arith.addf %817, %659 : vector<2x8x8xf32>
    %cst_323 = arith.constant dense<0xFF800000> : vector<2x8xf32>
    %819 = vector.multi_reduction <maximumf>, %818, %cst_323 [2] : vector<2x8x8xf32> to vector<2x8xf32>
    %820 = vector.shape_cast %819 : vector<2x8xf32> to vector<2x8x1xf32>
    %821 = vector.broadcast %820 : vector<2x8x1xf32> to vector<2x8x8xf32>
    %822 = arith.subf %818, %821 : vector<2x8x8xf32>
    %823 = math.exp %822 : vector<2x8x8xf32>
    %cst_324 = arith.constant dense<0.000000e+00> : vector<2x8xf32>
    %824 = vector.multi_reduction <add>, %823, %cst_324 [2] : vector<2x8x8xf32> to vector<2x8xf32>
    %825 = vector.shape_cast %824 : vector<2x8xf32> to vector<2x8x1xf32>
    %826 = tpu.reciprocal %825 {approx = true} : vector<2x8x1xf32> -> vector<2x8x1xf32>
    %827 = vector.broadcast %826 : vector<2x8x1xf32> to vector<2x8x8xf32>
    %828 = arith.mulf %823, %827 : vector<2x8x8xf32>
    %829 = arith.truncf %828 : vector<2x8x8xf32> to vector<2x8x8xbf16>
    "tpu.trace_start"() <{level = 10 : i32, message = "bqk,bkd->bqd"}> : () -> ()
    %cst_325 = arith.constant dense<0.000000e+00> : vector<2x8x8xf32>
    %830 = tpu.matmul %829, %816, %cst_325 {dimension_numbers = #tpu.dot_dimension_numbers<[2], [1], [1], [2], [0, 0, 0, 1, 1, 2], [0], [0]>} : vector<2x8x8xbf16>, vector<2x8x8xbf16>, vector<2x8x8xf32> -> vector<2x8x8xf32>
    "tpu.trace_stop"() : () -> ()
    %831 = vector.shape_cast %830 : vector<2x8x8xf32> to vector<16x8xf32>
    %832 = arith.truncf %831 : vector<16x8xf32> to vector<16x8xbf16>
    %833 = vector.extract_strided_slice %693 {offsets = [3, 0, 0], sizes = [1, 8, 32], strides = [1, 1, 1]} : vector<4x8x32xbf16> to vector<1x8x32xbf16>
    %834 = vector.shape_cast %833 : vector<1x8x32xbf16> to vector<8x32xbf16>
    %cst_326 = arith.constant dense<0.000000e+00> : vector<16x32xf32>
    %835 = tpu.matmul %832, %834, %cst_326 {dimension_numbers = #tpu.dot_dimension_numbers<[1], [0], [0], [1], [0, 0, 1, 1], [], []>} : vector<16x8xbf16>, vector<8x32xbf16>, vector<16x32xf32> -> vector<16x32xf32>
    %836 = arith.addf %801, %835 : vector<16x32xf32>
    %837 = arith.addf %661, %836 : vector<16x32xf32>
    %c0_327 = arith.constant 0 : index
    %c0_328 = arith.constant 0 : index
    %c0_329 = arith.constant 0 : index
    %838 = vector.load %arg17[%c0_327, %c0_328, %c0_329] : memref<1x1x32xf32, #tpu.memory_space<vmem>>, vector<1x1x32xf32>
    %839 = vector.shape_cast %838 : vector<1x1x32xf32> to vector<1x32xf32>
    %c0_330 = arith.constant 0 : index
    %c0_331 = arith.constant 0 : index
    %c0_332 = arith.constant 0 : index
    %840 = vector.load %arg16[%c0_330, %c0_331, %c0_332] : memref<1x1x32xf32, #tpu.memory_space<vmem>>, vector<1x1x32xf32>
    %841 = vector.shape_cast %840 : vector<1x1x32xf32> to vector<1x32xf32>
    %cst_333 = arith.constant dense<0.000000e+00> : vector<16xf32>
    %842 = vector.multi_reduction <add>, %837, %cst_333 [1] : vector<16x32xf32> to vector<16xf32>
    %843 = vector.shape_cast %842 : vector<16xf32> to vector<16x1xf32>
    %cst_334 = arith.constant 3.200000e+01 : f32
    %844 = vector.broadcast %cst_334 : f32 to vector<16x1xf32>
    %845 = arith.divf %843, %844 : vector<16x1xf32>
    %846 = vector.broadcast %845 : vector<16x1xf32> to vector<16x32xf32>
    %847 = arith.subf %837, %846 : vector<16x32xf32>
    %848 = arith.mulf %847, %847 : vector<16x32xf32>
    %cst_335 = arith.constant dense<0.000000e+00> : vector<16xf32>
    %849 = vector.multi_reduction <add>, %848, %cst_335 [1] : vector<16x32xf32> to vector<16xf32>
    %850 = vector.shape_cast %849 : vector<16xf32> to vector<16x1xf32>
    %cst_336 = arith.constant 3.200000e+01 : f32
    %851 = vector.broadcast %cst_336 : f32 to vector<16x1xf32>
    %852 = arith.divf %850, %851 : vector<16x1xf32>
    %cst_337 = arith.constant 9.99999997E-7 : f32
    %853 = vector.broadcast %cst_337 : f32 to vector<16x1xf32>
    %854 = arith.addf %852, %853 : vector<16x1xf32>
    %855 = math.rsqrt %854 : vector<16x1xf32>
    %856 = vector.broadcast %855 : vector<16x1xf32> to vector<16x32xf32>
    %857 = arith.mulf %847, %856 : vector<16x32xf32>
    %858 = vector.broadcast %839 : vector<1x32xf32> to vector<16x32xf32>
    %859 = arith.mulf %857, %858 : vector<16x32xf32>
    %860 = vector.broadcast %841 : vector<1x32xf32> to vector<16x32xf32>
    %861 = arith.addf %859, %860 : vector<16x32xf32>
    %c0_338 = arith.constant 0 : index
    %c0_339 = arith.constant 0 : index
    %c0_340 = arith.constant 0 : index
    %c0_341 = arith.constant 0 : index
    %862 = vector.load %arg12[%c0_338, %c0_339, %c0_340, %c0_341] : memref<1x4x32x8xbf16, #tpu.memory_space<vmem>>, vector<1x4x32x8xbf16>
    %863 = vector.shape_cast %862 : vector<1x4x32x8xbf16> to vector<4x32x8xbf16>
    %c0_342 = arith.constant 0 : index
    %c0_343 = arith.constant 0 : index
    %c0_344 = arith.constant 0 : index
    %c0_345 = arith.constant 0 : index
    %864 = vector.load %arg10[%c0_342, %c0_343, %c0_344, %c0_345] : memref<1x4x32x8xbf16, #tpu.memory_space<vmem>>, vector<1x4x32x8xbf16>
    %865 = vector.shape_cast %864 : vector<1x4x32x8xbf16> to vector<4x32x8xbf16>
    %c0_346 = arith.constant 0 : index
    %c0_347 = arith.constant 0 : index
    %c0_348 = arith.constant 0 : index
    %c0_349 = arith.constant 0 : index
    %866 = vector.load %arg13[%c0_346, %c0_347, %c0_348, %c0_349] : memref<1x4x32x8xbf16, #tpu.memory_space<vmem>>, vector<1x4x32x8xbf16>
    %867 = vector.shape_cast %866 : vector<1x4x32x8xbf16> to vector<4x32x8xbf16>
    %c0_350 = arith.constant 0 : index
    %c0_351 = arith.constant 0 : index
    %c0_352 = arith.constant 0 : index
    %c0_353 = arith.constant 0 : index
    %868 = vector.load %arg11[%c0_350, %c0_351, %c0_352, %c0_353] : memref<1x4x8x32xbf16, #tpu.memory_space<vmem>>, vector<1x4x8x32xbf16>
    %869 = vector.shape_cast %868 : vector<1x4x8x32xbf16> to vector<4x8x32xbf16>
    %870 = arith.truncf %861 : vector<16x32xf32> to vector<16x32xbf16>
    %871 = arith.truncf %658 : vector<16x32xf32> to vector<16x32xbf16>
    %cst_354 = arith.constant 0.000000e+00 : f32
    %872 = vector.broadcast %cst_354 : f32 to vector<16x32xf32>
    %873 = vector.extract_strided_slice %863 {offsets = [0, 0, 0], sizes = [1, 32, 8], strides = [1, 1, 1]} : vector<4x32x8xbf16> to vector<1x32x8xbf16>
    %874 = vector.shape_cast %873 : vector<1x32x8xbf16> to vector<32x8xbf16>
    %cst_355 = arith.constant dense<0.000000e+00> : vector<16x8xf32>
    %875 = tpu.matmul %870, %874, %cst_355 {dimension_numbers = #tpu.dot_dimension_numbers<[1], [0], [0], [1], [0, 0, 1, 1], [], []>} : vector<16x32xbf16>, vector<32x8xbf16>, vector<16x8xf32> -> vector<16x8xf32>
    %876 = vector.extract_strided_slice %865 {offsets = [0, 0, 0], sizes = [1, 32, 8], strides = [1, 1, 1]} : vector<4x32x8xbf16> to vector<1x32x8xbf16>
    %877 = vector.shape_cast %876 : vector<1x32x8xbf16> to vector<32x8xbf16>
    %cst_356 = arith.constant dense<0.000000e+00> : vector<16x8xf32>
    %878 = tpu.matmul %871, %877, %cst_356 {dimension_numbers = #tpu.dot_dimension_numbers<[1], [0], [0], [1], [0, 0, 1, 1], [], []>} : vector<16x32xbf16>, vector<32x8xbf16>, vector<16x8xf32> -> vector<16x8xf32>
    %879 = vector.extract_strided_slice %867 {offsets = [0, 0, 0], sizes = [1, 32, 8], strides = [1, 1, 1]} : vector<4x32x8xbf16> to vector<1x32x8xbf16>
    %880 = vector.shape_cast %879 : vector<1x32x8xbf16> to vector<32x8xbf16>
    %cst_357 = arith.constant dense<0.000000e+00> : vector<16x8xf32>
    %881 = tpu.matmul %871, %880, %cst_357 {dimension_numbers = #tpu.dot_dimension_numbers<[1], [0], [0], [1], [0, 0, 1, 1], [], []>} : vector<16x32xbf16>, vector<32x8xbf16>, vector<16x8xf32> -> vector<16x8xf32>
    %882 = vector.shape_cast %875 : vector<16x8xf32> to vector<2x8x8xf32>
    %883 = arith.truncf %882 : vector<2x8x8xf32> to vector<2x8x8xbf16>
    %884 = vector.shape_cast %878 : vector<16x8xf32> to vector<2x8x8xf32>
    %885 = arith.truncf %884 : vector<2x8x8xf32> to vector<2x8x8xbf16>
    %886 = vector.shape_cast %881 : vector<16x8xf32> to vector<2x8x8xf32>
    %887 = arith.truncf %886 : vector<2x8x8xf32> to vector<2x8x8xbf16>
    "tpu.trace_start"() <{level = 10 : i32, message = "bqd,bkd->bqk"}> : () -> ()
    %cst_358 = arith.constant dense<0.000000e+00> : vector<2x8x8xf32>
    %888 = tpu.matmul %883, %885, %cst_358 {dimension_numbers = #tpu.dot_dimension_numbers<[2], [2], [1], [1], [0, 0, 0, 1, 1, 1], [0], [0]>} : vector<2x8x8xbf16>, vector<2x8x8xbf16>, vector<2x8x8xf32> -> vector<2x8x8xf32>
    "tpu.trace_stop"() : () -> ()
    %889 = arith.addf %888, %660 : vector<2x8x8xf32>
    %cst_359 = arith.constant dense<0xFF800000> : vector<2x8xf32>
    %890 = vector.multi_reduction <maximumf>, %889, %cst_359 [2] : vector<2x8x8xf32> to vector<2x8xf32>
    %891 = vector.shape_cast %890 : vector<2x8xf32> to vector<2x8x1xf32>
    %892 = vector.broadcast %891 : vector<2x8x1xf32> to vector<2x8x8xf32>
    %893 = arith.subf %889, %892 : vector<2x8x8xf32>
    %894 = math.exp %893 : vector<2x8x8xf32>
    %cst_360 = arith.constant dense<0.000000e+00> : vector<2x8xf32>
    %895 = vector.multi_reduction <add>, %894, %cst_360 [2] : vector<2x8x8xf32> to vector<2x8xf32>
    %896 = vector.shape_cast %895 : vector<2x8xf32> to vector<2x8x1xf32>
    %897 = tpu.reciprocal %896 {approx = true} : vector<2x8x1xf32> -> vector<2x8x1xf32>
    %898 = vector.broadcast %897 : vector<2x8x1xf32> to vector<2x8x8xf32>
    %899 = arith.mulf %894, %898 : vector<2x8x8xf32>
    %900 = arith.truncf %899 : vector<2x8x8xf32> to vector<2x8x8xbf16>
    "tpu.trace_start"() <{level = 10 : i32, message = "bqk,bkd->bqd"}> : () -> ()
    %cst_361 = arith.constant dense<0.000000e+00> : vector<2x8x8xf32>
    %901 = tpu.matmul %900, %887, %cst_361 {dimension_numbers = #tpu.dot_dimension_numbers<[2], [1], [1], [2], [0, 0, 0, 1, 1, 2], [0], [0]>} : vector<2x8x8xbf16>, vector<2x8x8xbf16>, vector<2x8x8xf32> -> vector<2x8x8xf32>
    "tpu.trace_stop"() : () -> ()
    %902 = vector.shape_cast %901 : vector<2x8x8xf32> to vector<16x8xf32>
    %903 = arith.truncf %902 : vector<16x8xf32> to vector<16x8xbf16>
    %904 = vector.extract_strided_slice %869 {offsets = [0, 0, 0], sizes = [1, 8, 32], strides = [1, 1, 1]} : vector<4x8x32xbf16> to vector<1x8x32xbf16>
    %905 = vector.shape_cast %904 : vector<1x8x32xbf16> to vector<8x32xbf16>
    %cst_362 = arith.constant dense<0.000000e+00> : vector<16x32xf32>
    %906 = tpu.matmul %903, %905, %cst_362 {dimension_numbers = #tpu.dot_dimension_numbers<[1], [0], [0], [1], [0, 0, 1, 1], [], []>} : vector<16x8xbf16>, vector<8x32xbf16>, vector<16x32xf32> -> vector<16x32xf32>
    %907 = arith.addf %872, %906 : vector<16x32xf32>
    %908 = vector.extract_strided_slice %863 {offsets = [1, 0, 0], sizes = [1, 32, 8], strides = [1, 1, 1]} : vector<4x32x8xbf16> to vector<1x32x8xbf16>
    %909 = vector.shape_cast %908 : vector<1x32x8xbf16> to vector<32x8xbf16>
    %cst_363 = arith.constant dense<0.000000e+00> : vector<16x8xf32>
    %910 = tpu.matmul %870, %909, %cst_363 {dimension_numbers = #tpu.dot_dimension_numbers<[1], [0], [0], [1], [0, 0, 1, 1], [], []>} : vector<16x32xbf16>, vector<32x8xbf16>, vector<16x8xf32> -> vector<16x8xf32>
    %911 = vector.extract_strided_slice %865 {offsets = [1, 0, 0], sizes = [1, 32, 8], strides = [1, 1, 1]} : vector<4x32x8xbf16> to vector<1x32x8xbf16>
    %912 = vector.shape_cast %911 : vector<1x32x8xbf16> to vector<32x8xbf16>
    %cst_364 = arith.constant dense<0.000000e+00> : vector<16x8xf32>
    %913 = tpu.matmul %871, %912, %cst_364 {dimension_numbers = #tpu.dot_dimension_numbers<[1], [0], [0], [1], [0, 0, 1, 1], [], []>} : vector<16x32xbf16>, vector<32x8xbf16>, vector<16x8xf32> -> vector<16x8xf32>
    %914 = vector.extract_strided_slice %867 {offsets = [1, 0, 0], sizes = [1, 32, 8], strides = [1, 1, 1]} : vector<4x32x8xbf16> to vector<1x32x8xbf16>
    %915 = vector.shape_cast %914 : vector<1x32x8xbf16> to vector<32x8xbf16>
    %cst_365 = arith.constant dense<0.000000e+00> : vector<16x8xf32>
    %916 = tpu.matmul %871, %915, %cst_365 {dimension_numbers = #tpu.dot_dimension_numbers<[1], [0], [0], [1], [0, 0, 1, 1], [], []>} : vector<16x32xbf16>, vector<32x8xbf16>, vector<16x8xf32> -> vector<16x8xf32>
    %917 = vector.shape_cast %910 : vector<16x8xf32> to vector<2x8x8xf32>
    %918 = arith.truncf %917 : vector<2x8x8xf32> to vector<2x8x8xbf16>
    %919 = vector.shape_cast %913 : vector<16x8xf32> to vector<2x8x8xf32>
    %920 = arith.truncf %919 : vector<2x8x8xf32> to vector<2x8x8xbf16>
    %921 = vector.shape_cast %916 : vector<16x8xf32> to vector<2x8x8xf32>
    %922 = arith.truncf %921 : vector<2x8x8xf32> to vector<2x8x8xbf16>
    "tpu.trace_start"() <{level = 10 : i32, message = "bqd,bkd->bqk"}> : () -> ()
    %cst_366 = arith.constant dense<0.000000e+00> : vector<2x8x8xf32>
    %923 = tpu.matmul %918, %920, %cst_366 {dimension_numbers = #tpu.dot_dimension_numbers<[2], [2], [1], [1], [0, 0, 0, 1, 1, 1], [0], [0]>} : vector<2x8x8xbf16>, vector<2x8x8xbf16>, vector<2x8x8xf32> -> vector<2x8x8xf32>
    "tpu.trace_stop"() : () -> ()
    %924 = arith.addf %923, %660 : vector<2x8x8xf32>
    %cst_367 = arith.constant dense<0xFF800000> : vector<2x8xf32>
    %925 = vector.multi_reduction <maximumf>, %924, %cst_367 [2] : vector<2x8x8xf32> to vector<2x8xf32>
    %926 = vector.shape_cast %925 : vector<2x8xf32> to vector<2x8x1xf32>
    %927 = vector.broadcast %926 : vector<2x8x1xf32> to vector<2x8x8xf32>
    %928 = arith.subf %924, %927 : vector<2x8x8xf32>
    %929 = math.exp %928 : vector<2x8x8xf32>
    %cst_368 = arith.constant dense<0.000000e+00> : vector<2x8xf32>
    %930 = vector.multi_reduction <add>, %929, %cst_368 [2] : vector<2x8x8xf32> to vector<2x8xf32>
    %931 = vector.shape_cast %930 : vector<2x8xf32> to vector<2x8x1xf32>
    %932 = tpu.reciprocal %931 {approx = true} : vector<2x8x1xf32> -> vector<2x8x1xf32>
    %933 = vector.broadcast %932 : vector<2x8x1xf32> to vector<2x8x8xf32>
    %934 = arith.mulf %929, %933 : vector<2x8x8xf32>
    %935 = arith.truncf %934 : vector<2x8x8xf32> to vector<2x8x8xbf16>
    "tpu.trace_start"() <{level = 10 : i32, message = "bqk,bkd->bqd"}> : () -> ()
    %cst_369 = arith.constant dense<0.000000e+00> : vector<2x8x8xf32>
    %936 = tpu.matmul %935, %922, %cst_369 {dimension_numbers = #tpu.dot_dimension_numbers<[2], [1], [1], [2], [0, 0, 0, 1, 1, 2], [0], [0]>} : vector<2x8x8xbf16>, vector<2x8x8xbf16>, vector<2x8x8xf32> -> vector<2x8x8xf32>
    "tpu.trace_stop"() : () -> ()
    %937 = vector.shape_cast %936 : vector<2x8x8xf32> to vector<16x8xf32>
    %938 = arith.truncf %937 : vector<16x8xf32> to vector<16x8xbf16>
    %939 = vector.extract_strided_slice %869 {offsets = [1, 0, 0], sizes = [1, 8, 32], strides = [1, 1, 1]} : vector<4x8x32xbf16> to vector<1x8x32xbf16>
    %940 = vector.shape_cast %939 : vector<1x8x32xbf16> to vector<8x32xbf16>
    %cst_370 = arith.constant dense<0.000000e+00> : vector<16x32xf32>
    %941 = tpu.matmul %938, %940, %cst_370 {dimension_numbers = #tpu.dot_dimension_numbers<[1], [0], [0], [1], [0, 0, 1, 1], [], []>} : vector<16x8xbf16>, vector<8x32xbf16>, vector<16x32xf32> -> vector<16x32xf32>
    %942 = arith.addf %907, %941 : vector<16x32xf32>
    %943 = vector.extract_strided_slice %863 {offsets = [2, 0, 0], sizes = [1, 32, 8], strides = [1, 1, 1]} : vector<4x32x8xbf16> to vector<1x32x8xbf16>
    %944 = vector.shape_cast %943 : vector<1x32x8xbf16> to vector<32x8xbf16>
    %cst_371 = arith.constant dense<0.000000e+00> : vector<16x8xf32>
    %945 = tpu.matmul %870, %944, %cst_371 {dimension_numbers = #tpu.dot_dimension_numbers<[1], [0], [0], [1], [0, 0, 1, 1], [], []>} : vector<16x32xbf16>, vector<32x8xbf16>, vector<16x8xf32> -> vector<16x8xf32>
    %946 = vector.extract_strided_slice %865 {offsets = [2, 0, 0], sizes = [1, 32, 8], strides = [1, 1, 1]} : vector<4x32x8xbf16> to vector<1x32x8xbf16>
    %947 = vector.shape_cast %946 : vector<1x32x8xbf16> to vector<32x8xbf16>
    %cst_372 = arith.constant dense<0.000000e+00> : vector<16x8xf32>
    %948 = tpu.matmul %871, %947, %cst_372 {dimension_numbers = #tpu.dot_dimension_numbers<[1], [0], [0], [1], [0, 0, 1, 1], [], []>} : vector<16x32xbf16>, vector<32x8xbf16>, vector<16x8xf32> -> vector<16x8xf32>
    %949 = vector.extract_strided_slice %867 {offsets = [2, 0, 0], sizes = [1, 32, 8], strides = [1, 1, 1]} : vector<4x32x8xbf16> to vector<1x32x8xbf16>
    %950 = vector.shape_cast %949 : vector<1x32x8xbf16> to vector<32x8xbf16>
    %cst_373 = arith.constant dense<0.000000e+00> : vector<16x8xf32>
    %951 = tpu.matmul %871, %950, %cst_373 {dimension_numbers = #tpu.dot_dimension_numbers<[1], [0], [0], [1], [0, 0, 1, 1], [], []>} : vector<16x32xbf16>, vector<32x8xbf16>, vector<16x8xf32> -> vector<16x8xf32>
    %952 = vector.shape_cast %945 : vector<16x8xf32> to vector<2x8x8xf32>
    %953 = arith.truncf %952 : vector<2x8x8xf32> to vector<2x8x8xbf16>
    %954 = vector.shape_cast %948 : vector<16x8xf32> to vector<2x8x8xf32>
    %955 = arith.truncf %954 : vector<2x8x8xf32> to vector<2x8x8xbf16>
    %956 = vector.shape_cast %951 : vector<16x8xf32> to vector<2x8x8xf32>
    %957 = arith.truncf %956 : vector<2x8x8xf32> to vector<2x8x8xbf16>
    "tpu.trace_start"() <{level = 10 : i32, message = "bqd,bkd->bqk"}> : () -> ()
    %cst_374 = arith.constant dense<0.000000e+00> : vector<2x8x8xf32>
    %958 = tpu.matmul %953, %955, %cst_374 {dimension_numbers = #tpu.dot_dimension_numbers<[2], [2], [1], [1], [0, 0, 0, 1, 1, 1], [0], [0]>} : vector<2x8x8xbf16>, vector<2x8x8xbf16>, vector<2x8x8xf32> -> vector<2x8x8xf32>
    "tpu.trace_stop"() : () -> ()
    %959 = arith.addf %958, %660 : vector<2x8x8xf32>
    %cst_375 = arith.constant dense<0xFF800000> : vector<2x8xf32>
    %960 = vector.multi_reduction <maximumf>, %959, %cst_375 [2] : vector<2x8x8xf32> to vector<2x8xf32>
    %961 = vector.shape_cast %960 : vector<2x8xf32> to vector<2x8x1xf32>
    %962 = vector.broadcast %961 : vector<2x8x1xf32> to vector<2x8x8xf32>
    %963 = arith.subf %959, %962 : vector<2x8x8xf32>
    %964 = math.exp %963 : vector<2x8x8xf32>
    %cst_376 = arith.constant dense<0.000000e+00> : vector<2x8xf32>
    %965 = vector.multi_reduction <add>, %964, %cst_376 [2] : vector<2x8x8xf32> to vector<2x8xf32>
    %966 = vector.shape_cast %965 : vector<2x8xf32> to vector<2x8x1xf32>
    %967 = tpu.reciprocal %966 {approx = true} : vector<2x8x1xf32> -> vector<2x8x1xf32>
    %968 = vector.broadcast %967 : vector<2x8x1xf32> to vector<2x8x8xf32>
    %969 = arith.mulf %964, %968 : vector<2x8x8xf32>
    %970 = arith.truncf %969 : vector<2x8x8xf32> to vector<2x8x8xbf16>
    "tpu.trace_start"() <{level = 10 : i32, message = "bqk,bkd->bqd"}> : () -> ()
    %cst_377 = arith.constant dense<0.000000e+00> : vector<2x8x8xf32>
    %971 = tpu.matmul %970, %957, %cst_377 {dimension_numbers = #tpu.dot_dimension_numbers<[2], [1], [1], [2], [0, 0, 0, 1, 1, 2], [0], [0]>} : vector<2x8x8xbf16>, vector<2x8x8xbf16>, vector<2x8x8xf32> -> vector<2x8x8xf32>
    "tpu.trace_stop"() : () -> ()
    %972 = vector.shape_cast %971 : vector<2x8x8xf32> to vector<16x8xf32>
    %973 = arith.truncf %972 : vector<16x8xf32> to vector<16x8xbf16>
    %974 = vector.extract_strided_slice %869 {offsets = [2, 0, 0], sizes = [1, 8, 32], strides = [1, 1, 1]} : vector<4x8x32xbf16> to vector<1x8x32xbf16>
    %975 = vector.shape_cast %974 : vector<1x8x32xbf16> to vector<8x32xbf16>
    %cst_378 = arith.constant dense<0.000000e+00> : vector<16x32xf32>
    %976 = tpu.matmul %973, %975, %cst_378 {dimension_numbers = #tpu.dot_dimension_numbers<[1], [0], [0], [1], [0, 0, 1, 1], [], []>} : vector<16x8xbf16>, vector<8x32xbf16>, vector<16x32xf32> -> vector<16x32xf32>
    %977 = arith.addf %942, %976 : vector<16x32xf32>
    %978 = vector.extract_strided_slice %863 {offsets = [3, 0, 0], sizes = [1, 32, 8], strides = [1, 1, 1]} : vector<4x32x8xbf16> to vector<1x32x8xbf16>
    %979 = vector.shape_cast %978 : vector<1x32x8xbf16> to vector<32x8xbf16>
    %cst_379 = arith.constant dense<0.000000e+00> : vector<16x8xf32>
    %980 = tpu.matmul %870, %979, %cst_379 {dimension_numbers = #tpu.dot_dimension_numbers<[1], [0], [0], [1], [0, 0, 1, 1], [], []>} : vector<16x32xbf16>, vector<32x8xbf16>, vector<16x8xf32> -> vector<16x8xf32>
    %981 = vector.extract_strided_slice %865 {offsets = [3, 0, 0], sizes = [1, 32, 8], strides = [1, 1, 1]} : vector<4x32x8xbf16> to vector<1x32x8xbf16>
    %982 = vector.shape_cast %981 : vector<1x32x8xbf16> to vector<32x8xbf16>
    %cst_380 = arith.constant dense<0.000000e+00> : vector<16x8xf32>
    %983 = tpu.matmul %871, %982, %cst_380 {dimension_numbers = #tpu.dot_dimension_numbers<[1], [0], [0], [1], [0, 0, 1, 1], [], []>} : vector<16x32xbf16>, vector<32x8xbf16>, vector<16x8xf32> -> vector<16x8xf32>
    %984 = vector.extract_strided_slice %867 {offsets = [3, 0, 0], sizes = [1, 32, 8], strides = [1, 1, 1]} : vector<4x32x8xbf16> to vector<1x32x8xbf16>
    %985 = vector.shape_cast %984 : vector<1x32x8xbf16> to vector<32x8xbf16>
    %cst_381 = arith.constant dense<0.000000e+00> : vector<16x8xf32>
    %986 = tpu.matmul %871, %985, %cst_381 {dimension_numbers = #tpu.dot_dimension_numbers<[1], [0], [0], [1], [0, 0, 1, 1], [], []>} : vector<16x32xbf16>, vector<32x8xbf16>, vector<16x8xf32> -> vector<16x8xf32>
    %987 = vector.shape_cast %980 : vector<16x8xf32> to vector<2x8x8xf32>
    %988 = arith.truncf %987 : vector<2x8x8xf32> to vector<2x8x8xbf16>
    %989 = vector.shape_cast %983 : vector<16x8xf32> to vector<2x8x8xf32>
    %990 = arith.truncf %989 : vector<2x8x8xf32> to vector<2x8x8xbf16>
    %991 = vector.shape_cast %986 : vector<16x8xf32> to vector<2x8x8xf32>
    %992 = arith.truncf %991 : vector<2x8x8xf32> to vector<2x8x8xbf16>
    "tpu.trace_start"() <{level = 10 : i32, message = "bqd,bkd->bqk"}> : () -> ()
    %cst_382 = arith.constant dense<0.000000e+00> : vector<2x8x8xf32>
    %993 = tpu.matmul %988, %990, %cst_382 {dimension_numbers = #tpu.dot_dimension_numbers<[2], [2], [1], [1], [0, 0, 0, 1, 1, 1], [0], [0]>} : vector<2x8x8xbf16>, vector<2x8x8xbf16>, vector<2x8x8xf32> -> vector<2x8x8xf32>
    "tpu.trace_stop"() : () -> ()
    %994 = arith.addf %993, %660 : vector<2x8x8xf32>
    %cst_383 = arith.constant dense<0xFF800000> : vector<2x8xf32>
    %995 = vector.multi_reduction <maximumf>, %994, %cst_383 [2] : vector<2x8x8xf32> to vector<2x8xf32>
    %996 = vector.shape_cast %995 : vector<2x8xf32> to vector<2x8x1xf32>
    %997 = vector.broadcast %996 : vector<2x8x1xf32> to vector<2x8x8xf32>
    %998 = arith.subf %994, %997 : vector<2x8x8xf32>
    %999 = math.exp %998 : vector<2x8x8xf32>
    %cst_384 = arith.constant dense<0.000000e+00> : vector<2x8xf32>
    %1000 = vector.multi_reduction <add>, %999, %cst_384 [2] : vector<2x8x8xf32> to vector<2x8xf32>
    %1001 = vector.shape_cast %1000 : vector<2x8xf32> to vector<2x8x1xf32>
    %1002 = tpu.reciprocal %1001 {approx = true} : vector<2x8x1xf32> -> vector<2x8x1xf32>
    %1003 = vector.broadcast %1002 : vector<2x8x1xf32> to vector<2x8x8xf32>
    %1004 = arith.mulf %999, %1003 : vector<2x8x8xf32>
    %1005 = arith.truncf %1004 : vector<2x8x8xf32> to vector<2x8x8xbf16>
    "tpu.trace_start"() <{level = 10 : i32, message = "bqk,bkd->bqd"}> : () -> ()
    %cst_385 = arith.constant dense<0.000000e+00> : vector<2x8x8xf32>
    %1006 = tpu.matmul %1005, %992, %cst_385 {dimension_numbers = #tpu.dot_dimension_numbers<[2], [1], [1], [2], [0, 0, 0, 1, 1, 2], [0], [0]>} : vector<2x8x8xbf16>, vector<2x8x8xbf16>, vector<2x8x8xf32> -> vector<2x8x8xf32>
    "tpu.trace_stop"() : () -> ()
    %1007 = vector.shape_cast %1006 : vector<2x8x8xf32> to vector<16x8xf32>
    %1008 = arith.truncf %1007 : vector<16x8xf32> to vector<16x8xbf16>
    %1009 = vector.extract_strided_slice %869 {offsets = [3, 0, 0], sizes = [1, 8, 32], strides = [1, 1, 1]} : vector<4x8x32xbf16> to vector<1x8x32xbf16>
    %1010 = vector.shape_cast %1009 : vector<1x8x32xbf16> to vector<8x32xbf16>
    %cst_386 = arith.constant dense<0.000000e+00> : vector<16x32xf32>
    %1011 = tpu.matmul %1008, %1010, %cst_386 {dimension_numbers = #tpu.dot_dimension_numbers<[1], [0], [0], [1], [0, 0, 1, 1], [], []>} : vector<16x8xbf16>, vector<8x32xbf16>, vector<16x32xf32> -> vector<16x32xf32>
    %1012 = arith.addf %977, %1011 : vector<16x32xf32>
    %1013 = arith.addf %837, %1012 : vector<16x32xf32>
    %c0_387 = arith.constant 0 : index
    %c0_388 = arith.constant 0 : index
    %c0_389 = arith.constant 0 : index
    %1014 = vector.load %arg19[%c0_387, %c0_388, %c0_389] : memref<1x1x32xf32, #tpu.memory_space<vmem>>, vector<1x1x32xf32>
    %1015 = vector.shape_cast %1014 : vector<1x1x32xf32> to vector<1x32xf32>
    %c0_390 = arith.constant 0 : index
    %c0_391 = arith.constant 0 : index
    %c0_392 = arith.constant 0 : index
    %1016 = vector.load %arg18[%c0_390, %c0_391, %c0_392] : memref<1x1x32xf32, #tpu.memory_space<vmem>>, vector<1x1x32xf32>
    %1017 = vector.shape_cast %1016 : vector<1x1x32xf32> to vector<1x32xf32>
    %cst_393 = arith.constant dense<0.000000e+00> : vector<16xf32>
    %1018 = vector.multi_reduction <add>, %1013, %cst_393 [1] : vector<16x32xf32> to vector<16xf32>
    %1019 = vector.shape_cast %1018 : vector<16xf32> to vector<16x1xf32>
    %cst_394 = arith.constant 3.200000e+01 : f32
    %1020 = vector.broadcast %cst_394 : f32 to vector<16x1xf32>
    %1021 = arith.divf %1019, %1020 : vector<16x1xf32>
    %1022 = vector.broadcast %1021 : vector<16x1xf32> to vector<16x32xf32>
    %1023 = arith.subf %1013, %1022 : vector<16x32xf32>
    %1024 = arith.mulf %1023, %1023 : vector<16x32xf32>
    %cst_395 = arith.constant dense<0.000000e+00> : vector<16xf32>
    %1025 = vector.multi_reduction <add>, %1024, %cst_395 [1] : vector<16x32xf32> to vector<16xf32>
    %1026 = vector.shape_cast %1025 : vector<16xf32> to vector<16x1xf32>
    %cst_396 = arith.constant 3.200000e+01 : f32
    %1027 = vector.broadcast %cst_396 : f32 to vector<16x1xf32>
    %1028 = arith.divf %1026, %1027 : vector<16x1xf32>
    %cst_397 = arith.constant 9.99999997E-7 : f32
    %1029 = vector.broadcast %cst_397 : f32 to vector<16x1xf32>
    %1030 = arith.addf %1028, %1029 : vector<16x1xf32>
    %1031 = math.rsqrt %1030 : vector<16x1xf32>
    %1032 = vector.broadcast %1031 : vector<16x1xf32> to vector<16x32xf32>
    %1033 = arith.mulf %1023, %1032 : vector<16x32xf32>
    %1034 = vector.broadcast %1015 : vector<1x32xf32> to vector<16x32xf32>
    %1035 = arith.mulf %1033, %1034 : vector<16x32xf32>
    %1036 = vector.broadcast %1017 : vector<1x32xf32> to vector<16x32xf32>
    %1037 = arith.addf %1035, %1036 : vector<16x32xf32>
    %c0_398 = arith.constant 0 : index
    %c0_399 = arith.constant 0 : index
    %c0_400 = arith.constant 0 : index
    %1038 = vector.load %arg24[%c0_398, %c0_399, %c0_400] : memref<1x32x64xbf16, #tpu.memory_space<vmem>>, vector<1x32x64xbf16>
    %1039 = vector.shape_cast %1038 : vector<1x32x64xbf16> to vector<32x64xbf16>
    %c0_401 = arith.constant 0 : index
    %c0_402 = arith.constant 0 : index
    %c0_403 = arith.constant 0 : index
    %1040 = vector.load %arg8[%c0_401, %c0_402, %c0_403] : memref<1x1x64xf32, #tpu.memory_space<vmem>>, vector<1x1x64xf32>
    %1041 = vector.shape_cast %1040 : vector<1x1x64xf32> to vector<1x64xf32>
    %c0_404 = arith.constant 0 : index
    %c0_405 = arith.constant 0 : index
    %c0_406 = arith.constant 0 : index
    %1042 = vector.load %arg25[%c0_404, %c0_405, %c0_406] : memref<1x64x32xbf16, #tpu.memory_space<vmem>>, vector<1x64x32xbf16>
    %1043 = vector.shape_cast %1042 : vector<1x64x32xbf16> to vector<64x32xbf16>
    %c0_407 = arith.constant 0 : index
    %c0_408 = arith.constant 0 : index
    %c0_409 = arith.constant 0 : index
    %1044 = vector.load %arg9[%c0_407, %c0_408, %c0_409] : memref<1x1x32xf32, #tpu.memory_space<vmem>>, vector<1x1x32xf32>
    %1045 = vector.shape_cast %1044 : vector<1x1x32xf32> to vector<1x32xf32>
    %1046 = arith.truncf %1037 : vector<16x32xf32> to vector<16x32xbf16>
    %cst_410 = arith.constant dense<0.000000e+00> : vector<16x64xf32>
    %1047 = tpu.matmul %1046, %1039, %cst_410 {dimension_numbers = #tpu.dot_dimension_numbers<[1], [0], [0], [1], [0, 0, 1, 1], [], []>} : vector<16x32xbf16>, vector<32x64xbf16>, vector<16x64xf32> -> vector<16x64xf32>
    %1048 = vector.broadcast %1041 : vector<1x64xf32> to vector<16x64xf32>
    %1049 = arith.addf %1047, %1048 : vector<16x64xf32>
    %cst_411 = arith.constant 0.000000e+00 : f32
    %1050 = vector.broadcast %cst_411 : f32 to vector<16x64xf32>
    %1051 = arith.maximumf %1049, %1050 : vector<16x64xf32>
    %1052 = arith.truncf %1051 : vector<16x64xf32> to vector<16x64xbf16>
    %cst_412 = arith.constant dense<0.000000e+00> : vector<16x32xf32>
    %1053 = tpu.matmul %1052, %1043, %cst_412 {dimension_numbers = #tpu.dot_dimension_numbers<[1], [0], [0], [1], [0, 0, 1, 1], [], []>} : vector<16x64xbf16>, vector<64x32xbf16>, vector<16x32xf32> -> vector<16x32xf32>
    %1054 = vector.broadcast %1045 : vector<1x32xf32> to vector<16x32xf32>
    %1055 = arith.addf %1053, %1054 : vector<16x32xf32>
    %1056 = arith.addf %1013, %1055 : vector<16x32xf32>
    %c0_413 = arith.constant 0 : index
    %c0_414 = arith.constant 0 : index
    %c0_415 = arith.constant 0 : index
    %1057 = vector.load %arg6[%c0_413, %c0_414, %c0_415] : memref<2x8x8xf32, #tpu.memory_space<vmem>>, vector<2x8x8xf32>
    %c0_416 = arith.constant 0 : index
    %c0_417 = arith.constant 0 : index
    %1058 = vector.load %arg2[%c0_416, %c0_417] : memref<16x32xf32, #tpu.memory_space<vmem>>, vector<16x32xf32>
    %c3 = arith.constant 3 : index
    %c0_418 = arith.constant 0 : index
    %c0_419 = arith.constant 0 : index
    %1059 = vector.load %arg33[%c3, %c0_418, %c0_419] : memref<4x1x32xf32, #tpu.memory_space<vmem>>, vector<1x1x32xf32>
    %1060 = vector.shape_cast %1059 : vector<1x1x32xf32> to vector<1x32xf32>
    %c3_420 = arith.constant 3 : index
    %c0_421 = arith.constant 0 : index
    %c0_422 = arith.constant 0 : index
    %1061 = vector.load %arg32[%c3_420, %c0_421, %c0_422] : memref<4x1x32xf32, #tpu.memory_space<vmem>>, vector<1x1x32xf32>
    %1062 = vector.shape_cast %1061 : vector<1x1x32xf32> to vector<1x32xf32>
    %cst_423 = arith.constant dense<0.000000e+00> : vector<16xf32>
    %1063 = vector.multi_reduction <add>, %1058, %cst_423 [1] : vector<16x32xf32> to vector<16xf32>
    %1064 = vector.shape_cast %1063 : vector<16xf32> to vector<16x1xf32>
    %cst_424 = arith.constant 3.200000e+01 : f32
    %1065 = vector.broadcast %cst_424 : f32 to vector<16x1xf32>
    %1066 = arith.divf %1064, %1065 : vector<16x1xf32>
    %1067 = vector.broadcast %1066 : vector<16x1xf32> to vector<16x32xf32>
    %1068 = arith.subf %1058, %1067 : vector<16x32xf32>
    %1069 = arith.mulf %1068, %1068 : vector<16x32xf32>
    %cst_425 = arith.constant dense<0.000000e+00> : vector<16xf32>
    %1070 = vector.multi_reduction <add>, %1069, %cst_425 [1] : vector<16x32xf32> to vector<16xf32>
    %1071 = vector.shape_cast %1070 : vector<16xf32> to vector<16x1xf32>
    %cst_426 = arith.constant 3.200000e+01 : f32
    %1072 = vector.broadcast %cst_426 : f32 to vector<16x1xf32>
    %1073 = arith.divf %1071, %1072 : vector<16x1xf32>
    %cst_427 = arith.constant 9.99999997E-7 : f32
    %1074 = vector.broadcast %cst_427 : f32 to vector<16x1xf32>
    %1075 = arith.addf %1073, %1074 : vector<16x1xf32>
    %1076 = math.rsqrt %1075 : vector<16x1xf32>
    %1077 = vector.broadcast %1076 : vector<16x1xf32> to vector<16x32xf32>
    %1078 = arith.mulf %1068, %1077 : vector<16x32xf32>
    %1079 = vector.broadcast %1060 : vector<1x32xf32> to vector<16x32xf32>
    %1080 = arith.mulf %1078, %1079 : vector<16x32xf32>
    %1081 = vector.broadcast %1062 : vector<1x32xf32> to vector<16x32xf32>
    %1082 = arith.addf %1080, %1081 : vector<16x32xf32>
    %c3_428 = arith.constant 3 : index
    %c0_429 = arith.constant 0 : index
    %c0_430 = arith.constant 0 : index
    %c0_431 = arith.constant 0 : index
    %1083 = vector.load %arg40[%c3_428, %c0_429, %c0_430, %c0_431] : memref<4x4x32x8xbf16, #tpu.memory_space<vmem>>, vector<1x4x32x8xbf16>
    %1084 = vector.shape_cast %1083 : vector<1x4x32x8xbf16> to vector<4x32x8xbf16>
    %c3_432 = arith.constant 3 : index
    %c0_433 = arith.constant 0 : index
    %c0_434 = arith.constant 0 : index
    %c0_435 = arith.constant 0 : index
    %1085 = vector.load %arg38[%c3_432, %c0_433, %c0_434, %c0_435] : memref<4x4x32x8xbf16, #tpu.memory_space<vmem>>, vector<1x4x32x8xbf16>
    %1086 = vector.shape_cast %1085 : vector<1x4x32x8xbf16> to vector<4x32x8xbf16>
    %c3_436 = arith.constant 3 : index
    %c0_437 = arith.constant 0 : index
    %c0_438 = arith.constant 0 : index
    %c0_439 = arith.constant 0 : index
    %1087 = vector.load %arg41[%c3_436, %c0_437, %c0_438, %c0_439] : memref<4x4x32x8xbf16, #tpu.memory_space<vmem>>, vector<1x4x32x8xbf16>
    %1088 = vector.shape_cast %1087 : vector<1x4x32x8xbf16> to vector<4x32x8xbf16>
    %c3_440 = arith.constant 3 : index
    %c0_441 = arith.constant 0 : index
    %c0_442 = arith.constant 0 : index
    %c0_443 = arith.constant 0 : index
    %1089 = vector.load %arg39[%c3_440, %c0_441, %c0_442, %c0_443] : memref<4x4x8x32xbf16, #tpu.memory_space<vmem>>, vector<1x4x8x32xbf16>
    %1090 = vector.shape_cast %1089 : vector<1x4x8x32xbf16> to vector<4x8x32xbf16>
    %1091 = arith.truncf %1082 : vector<16x32xf32> to vector<16x32xbf16>
    %1092 = arith.truncf %1082 : vector<16x32xf32> to vector<16x32xbf16>
    %cst_444 = arith.constant 0.000000e+00 : f32
    %1093 = vector.broadcast %cst_444 : f32 to vector<16x32xf32>
    %1094 = vector.extract_strided_slice %1084 {offsets = [0, 0, 0], sizes = [1, 32, 8], strides = [1, 1, 1]} : vector<4x32x8xbf16> to vector<1x32x8xbf16>
    %1095 = vector.shape_cast %1094 : vector<1x32x8xbf16> to vector<32x8xbf16>
    %cst_445 = arith.constant dense<0.000000e+00> : vector<16x8xf32>
    %1096 = tpu.matmul %1091, %1095, %cst_445 {dimension_numbers = #tpu.dot_dimension_numbers<[1], [0], [0], [1], [0, 0, 1, 1], [], []>} : vector<16x32xbf16>, vector<32x8xbf16>, vector<16x8xf32> -> vector<16x8xf32>
    %1097 = vector.extract_strided_slice %1086 {offsets = [0, 0, 0], sizes = [1, 32, 8], strides = [1, 1, 1]} : vector<4x32x8xbf16> to vector<1x32x8xbf16>
    %1098 = vector.shape_cast %1097 : vector<1x32x8xbf16> to vector<32x8xbf16>
    %cst_446 = arith.constant dense<0.000000e+00> : vector<16x8xf32>
    %1099 = tpu.matmul %1092, %1098, %cst_446 {dimension_numbers = #tpu.dot_dimension_numbers<[1], [0], [0], [1], [0, 0, 1, 1], [], []>} : vector<16x32xbf16>, vector<32x8xbf16>, vector<16x8xf32> -> vector<16x8xf32>
    %1100 = vector.extract_strided_slice %1088 {offsets = [0, 0, 0], sizes = [1, 32, 8], strides = [1, 1, 1]} : vector<4x32x8xbf16> to vector<1x32x8xbf16>
    %1101 = vector.shape_cast %1100 : vector<1x32x8xbf16> to vector<32x8xbf16>
    %cst_447 = arith.constant dense<0.000000e+00> : vector<16x8xf32>
    %1102 = tpu.matmul %1092, %1101, %cst_447 {dimension_numbers = #tpu.dot_dimension_numbers<[1], [0], [0], [1], [0, 0, 1, 1], [], []>} : vector<16x32xbf16>, vector<32x8xbf16>, vector<16x8xf32> -> vector<16x8xf32>
    %1103 = vector.shape_cast %1096 : vector<16x8xf32> to vector<2x8x8xf32>
    %1104 = arith.truncf %1103 : vector<2x8x8xf32> to vector<2x8x8xbf16>
    %1105 = vector.shape_cast %1099 : vector<16x8xf32> to vector<2x8x8xf32>
    %1106 = arith.truncf %1105 : vector<2x8x8xf32> to vector<2x8x8xbf16>
    %1107 = vector.shape_cast %1102 : vector<16x8xf32> to vector<2x8x8xf32>
    %1108 = arith.truncf %1107 : vector<2x8x8xf32> to vector<2x8x8xbf16>
    "tpu.trace_start"() <{level = 10 : i32, message = "bqd,bkd->bqk"}> : () -> ()
    %cst_448 = arith.constant dense<0.000000e+00> : vector<2x8x8xf32>
    %1109 = tpu.matmul %1104, %1106, %cst_448 {dimension_numbers = #tpu.dot_dimension_numbers<[2], [2], [1], [1], [0, 0, 0, 1, 1, 1], [0], [0]>} : vector<2x8x8xbf16>, vector<2x8x8xbf16>, vector<2x8x8xf32> -> vector<2x8x8xf32>
    "tpu.trace_stop"() : () -> ()
    %1110 = arith.addf %1109, %1057 : vector<2x8x8xf32>
    %cst_449 = arith.constant dense<0xFF800000> : vector<2x8xf32>
    %1111 = vector.multi_reduction <maximumf>, %1110, %cst_449 [2] : vector<2x8x8xf32> to vector<2x8xf32>
    %1112 = vector.shape_cast %1111 : vector<2x8xf32> to vector<2x8x1xf32>
    %1113 = vector.broadcast %1112 : vector<2x8x1xf32> to vector<2x8x8xf32>
    %1114 = arith.subf %1110, %1113 : vector<2x8x8xf32>
    %1115 = math.exp %1114 : vector<2x8x8xf32>
    %cst_450 = arith.constant dense<0.000000e+00> : vector<2x8xf32>
    %1116 = vector.multi_reduction <add>, %1115, %cst_450 [2] : vector<2x8x8xf32> to vector<2x8xf32>
    %1117 = vector.shape_cast %1116 : vector<2x8xf32> to vector<2x8x1xf32>
    %1118 = tpu.reciprocal %1117 {approx = true} : vector<2x8x1xf32> -> vector<2x8x1xf32>
    %1119 = vector.broadcast %1118 : vector<2x8x1xf32> to vector<2x8x8xf32>
    %1120 = arith.mulf %1115, %1119 : vector<2x8x8xf32>
    %1121 = arith.truncf %1120 : vector<2x8x8xf32> to vector<2x8x8xbf16>
    "tpu.trace_start"() <{level = 10 : i32, message = "bqk,bkd->bqd"}> : () -> ()
    %cst_451 = arith.constant dense<0.000000e+00> : vector<2x8x8xf32>
    %1122 = tpu.matmul %1121, %1108, %cst_451 {dimension_numbers = #tpu.dot_dimension_numbers<[2], [1], [1], [2], [0, 0, 0, 1, 1, 2], [0], [0]>} : vector<2x8x8xbf16>, vector<2x8x8xbf16>, vector<2x8x8xf32> -> vector<2x8x8xf32>
    "tpu.trace_stop"() : () -> ()
    %1123 = vector.shape_cast %1122 : vector<2x8x8xf32> to vector<16x8xf32>
    %1124 = arith.truncf %1123 : vector<16x8xf32> to vector<16x8xbf16>
    %1125 = vector.extract_strided_slice %1090 {offsets = [0, 0, 0], sizes = [1, 8, 32], strides = [1, 1, 1]} : vector<4x8x32xbf16> to vector<1x8x32xbf16>
    %1126 = vector.shape_cast %1125 : vector<1x8x32xbf16> to vector<8x32xbf16>
    %cst_452 = arith.constant dense<0.000000e+00> : vector<16x32xf32>
    %1127 = tpu.matmul %1124, %1126, %cst_452 {dimension_numbers = #tpu.dot_dimension_numbers<[1], [0], [0], [1], [0, 0, 1, 1], [], []>} : vector<16x8xbf16>, vector<8x32xbf16>, vector<16x32xf32> -> vector<16x32xf32>
    %1128 = arith.addf %1093, %1127 : vector<16x32xf32>
    %1129 = vector.extract_strided_slice %1084 {offsets = [1, 0, 0], sizes = [1, 32, 8], strides = [1, 1, 1]} : vector<4x32x8xbf16> to vector<1x32x8xbf16>
    %1130 = vector.shape_cast %1129 : vector<1x32x8xbf16> to vector<32x8xbf16>
    %cst_453 = arith.constant dense<0.000000e+00> : vector<16x8xf32>
    %1131 = tpu.matmul %1091, %1130, %cst_453 {dimension_numbers = #tpu.dot_dimension_numbers<[1], [0], [0], [1], [0, 0, 1, 1], [], []>} : vector<16x32xbf16>, vector<32x8xbf16>, vector<16x8xf32> -> vector<16x8xf32>
    %1132 = vector.extract_strided_slice %1086 {offsets = [1, 0, 0], sizes = [1, 32, 8], strides = [1, 1, 1]} : vector<4x32x8xbf16> to vector<1x32x8xbf16>
    %1133 = vector.shape_cast %1132 : vector<1x32x8xbf16> to vector<32x8xbf16>
    %cst_454 = arith.constant dense<0.000000e+00> : vector<16x8xf32>
    %1134 = tpu.matmul %1092, %1133, %cst_454 {dimension_numbers = #tpu.dot_dimension_numbers<[1], [0], [0], [1], [0, 0, 1, 1], [], []>} : vector<16x32xbf16>, vector<32x8xbf16>, vector<16x8xf32> -> vector<16x8xf32>
    %1135 = vector.extract_strided_slice %1088 {offsets = [1, 0, 0], sizes = [1, 32, 8], strides = [1, 1, 1]} : vector<4x32x8xbf16> to vector<1x32x8xbf16>
    %1136 = vector.shape_cast %1135 : vector<1x32x8xbf16> to vector<32x8xbf16>
    %cst_455 = arith.constant dense<0.000000e+00> : vector<16x8xf32>
    %1137 = tpu.matmul %1092, %1136, %cst_455 {dimension_numbers = #tpu.dot_dimension_numbers<[1], [0], [0], [1], [0, 0, 1, 1], [], []>} : vector<16x32xbf16>, vector<32x8xbf16>, vector<16x8xf32> -> vector<16x8xf32>
    %1138 = vector.shape_cast %1131 : vector<16x8xf32> to vector<2x8x8xf32>
    %1139 = arith.truncf %1138 : vector<2x8x8xf32> to vector<2x8x8xbf16>
    %1140 = vector.shape_cast %1134 : vector<16x8xf32> to vector<2x8x8xf32>
    %1141 = arith.truncf %1140 : vector<2x8x8xf32> to vector<2x8x8xbf16>
    %1142 = vector.shape_cast %1137 : vector<16x8xf32> to vector<2x8x8xf32>
    %1143 = arith.truncf %1142 : vector<2x8x8xf32> to vector<2x8x8xbf16>
    "tpu.trace_start"() <{level = 10 : i32, message = "bqd,bkd->bqk"}> : () -> ()
    %cst_456 = arith.constant dense<0.000000e+00> : vector<2x8x8xf32>
    %1144 = tpu.matmul %1139, %1141, %cst_456 {dimension_numbers = #tpu.dot_dimension_numbers<[2], [2], [1], [1], [0, 0, 0, 1, 1, 1], [0], [0]>} : vector<2x8x8xbf16>, vector<2x8x8xbf16>, vector<2x8x8xf32> -> vector<2x8x8xf32>
    "tpu.trace_stop"() : () -> ()
    %1145 = arith.addf %1144, %1057 : vector<2x8x8xf32>
    %cst_457 = arith.constant dense<0xFF800000> : vector<2x8xf32>
    %1146 = vector.multi_reduction <maximumf>, %1145, %cst_457 [2] : vector<2x8x8xf32> to vector<2x8xf32>
    %1147 = vector.shape_cast %1146 : vector<2x8xf32> to vector<2x8x1xf32>
    %1148 = vector.broadcast %1147 : vector<2x8x1xf32> to vector<2x8x8xf32>
    %1149 = arith.subf %1145, %1148 : vector<2x8x8xf32>
    %1150 = math.exp %1149 : vector<2x8x8xf32>
    %cst_458 = arith.constant dense<0.000000e+00> : vector<2x8xf32>
    %1151 = vector.multi_reduction <add>, %1150, %cst_458 [2] : vector<2x8x8xf32> to vector<2x8xf32>
    %1152 = vector.shape_cast %1151 : vector<2x8xf32> to vector<2x8x1xf32>
    %1153 = tpu.reciprocal %1152 {approx = true} : vector<2x8x1xf32> -> vector<2x8x1xf32>
    %1154 = vector.broadcast %1153 : vector<2x8x1xf32> to vector<2x8x8xf32>
    %1155 = arith.mulf %1150, %1154 : vector<2x8x8xf32>
    %1156 = arith.truncf %1155 : vector<2x8x8xf32> to vector<2x8x8xbf16>
    "tpu.trace_start"() <{level = 10 : i32, message = "bqk,bkd->bqd"}> : () -> ()
    %cst_459 = arith.constant dense<0.000000e+00> : vector<2x8x8xf32>
    %1157 = tpu.matmul %1156, %1143, %cst_459 {dimension_numbers = #tpu.dot_dimension_numbers<[2], [1], [1], [2], [0, 0, 0, 1, 1, 2], [0], [0]>} : vector<2x8x8xbf16>, vector<2x8x8xbf16>, vector<2x8x8xf32> -> vector<2x8x8xf32>
    "tpu.trace_stop"() : () -> ()
    %1158 = vector.shape_cast %1157 : vector<2x8x8xf32> to vector<16x8xf32>
    %1159 = arith.truncf %1158 : vector<16x8xf32> to vector<16x8xbf16>
    %1160 = vector.extract_strided_slice %1090 {offsets = [1, 0, 0], sizes = [1, 8, 32], strides = [1, 1, 1]} : vector<4x8x32xbf16> to vector<1x8x32xbf16>
    %1161 = vector.shape_cast %1160 : vector<1x8x32xbf16> to vector<8x32xbf16>
    %cst_460 = arith.constant dense<0.000000e+00> : vector<16x32xf32>
    %1162 = tpu.matmul %1159, %1161, %cst_460 {dimension_numbers = #tpu.dot_dimension_numbers<[1], [0], [0], [1], [0, 0, 1, 1], [], []>} : vector<16x8xbf16>, vector<8x32xbf16>, vector<16x32xf32> -> vector<16x32xf32>
    %1163 = arith.addf %1128, %1162 : vector<16x32xf32>
    %1164 = vector.extract_strided_slice %1084 {offsets = [2, 0, 0], sizes = [1, 32, 8], strides = [1, 1, 1]} : vector<4x32x8xbf16> to vector<1x32x8xbf16>
    %1165 = vector.shape_cast %1164 : vector<1x32x8xbf16> to vector<32x8xbf16>
    %cst_461 = arith.constant dense<0.000000e+00> : vector<16x8xf32>
    %1166 = tpu.matmul %1091, %1165, %cst_461 {dimension_numbers = #tpu.dot_dimension_numbers<[1], [0], [0], [1], [0, 0, 1, 1], [], []>} : vector<16x32xbf16>, vector<32x8xbf16>, vector<16x8xf32> -> vector<16x8xf32>
    %1167 = vector.extract_strided_slice %1086 {offsets = [2, 0, 0], sizes = [1, 32, 8], strides = [1, 1, 1]} : vector<4x32x8xbf16> to vector<1x32x8xbf16>
    %1168 = vector.shape_cast %1167 : vector<1x32x8xbf16> to vector<32x8xbf16>
    %cst_462 = arith.constant dense<0.000000e+00> : vector<16x8xf32>
    %1169 = tpu.matmul %1092, %1168, %cst_462 {dimension_numbers = #tpu.dot_dimension_numbers<[1], [0], [0], [1], [0, 0, 1, 1], [], []>} : vector<16x32xbf16>, vector<32x8xbf16>, vector<16x8xf32> -> vector<16x8xf32>
    %1170 = vector.extract_strided_slice %1088 {offsets = [2, 0, 0], sizes = [1, 32, 8], strides = [1, 1, 1]} : vector<4x32x8xbf16> to vector<1x32x8xbf16>
    %1171 = vector.shape_cast %1170 : vector<1x32x8xbf16> to vector<32x8xbf16>
    %cst_463 = arith.constant dense<0.000000e+00> : vector<16x8xf32>
    %1172 = tpu.matmul %1092, %1171, %cst_463 {dimension_numbers = #tpu.dot_dimension_numbers<[1], [0], [0], [1], [0, 0, 1, 1], [], []>} : vector<16x32xbf16>, vector<32x8xbf16>, vector<16x8xf32> -> vector<16x8xf32>
    %1173 = vector.shape_cast %1166 : vector<16x8xf32> to vector<2x8x8xf32>
    %1174 = arith.truncf %1173 : vector<2x8x8xf32> to vector<2x8x8xbf16>
    %1175 = vector.shape_cast %1169 : vector<16x8xf32> to vector<2x8x8xf32>
    %1176 = arith.truncf %1175 : vector<2x8x8xf32> to vector<2x8x8xbf16>
    %1177 = vector.shape_cast %1172 : vector<16x8xf32> to vector<2x8x8xf32>
    %1178 = arith.truncf %1177 : vector<2x8x8xf32> to vector<2x8x8xbf16>
    "tpu.trace_start"() <{level = 10 : i32, message = "bqd,bkd->bqk"}> : () -> ()
    %cst_464 = arith.constant dense<0.000000e+00> : vector<2x8x8xf32>
    %1179 = tpu.matmul %1174, %1176, %cst_464 {dimension_numbers = #tpu.dot_dimension_numbers<[2], [2], [1], [1], [0, 0, 0, 1, 1, 1], [0], [0]>} : vector<2x8x8xbf16>, vector<2x8x8xbf16>, vector<2x8x8xf32> -> vector<2x8x8xf32>
    "tpu.trace_stop"() : () -> ()
    %1180 = arith.addf %1179, %1057 : vector<2x8x8xf32>
    %cst_465 = arith.constant dense<0xFF800000> : vector<2x8xf32>
    %1181 = vector.multi_reduction <maximumf>, %1180, %cst_465 [2] : vector<2x8x8xf32> to vector<2x8xf32>
    %1182 = vector.shape_cast %1181 : vector<2x8xf32> to vector<2x8x1xf32>
    %1183 = vector.broadcast %1182 : vector<2x8x1xf32> to vector<2x8x8xf32>
    %1184 = arith.subf %1180, %1183 : vector<2x8x8xf32>
    %1185 = math.exp %1184 : vector<2x8x8xf32>
    %cst_466 = arith.constant dense<0.000000e+00> : vector<2x8xf32>
    %1186 = vector.multi_reduction <add>, %1185, %cst_466 [2] : vector<2x8x8xf32> to vector<2x8xf32>
    %1187 = vector.shape_cast %1186 : vector<2x8xf32> to vector<2x8x1xf32>
    %1188 = tpu.reciprocal %1187 {approx = true} : vector<2x8x1xf32> -> vector<2x8x1xf32>
    %1189 = vector.broadcast %1188 : vector<2x8x1xf32> to vector<2x8x8xf32>
    %1190 = arith.mulf %1185, %1189 : vector<2x8x8xf32>
    %1191 = arith.truncf %1190 : vector<2x8x8xf32> to vector<2x8x8xbf16>
    "tpu.trace_start"() <{level = 10 : i32, message = "bqk,bkd->bqd"}> : () -> ()
    %cst_467 = arith.constant dense<0.000000e+00> : vector<2x8x8xf32>
    %1192 = tpu.matmul %1191, %1178, %cst_467 {dimension_numbers = #tpu.dot_dimension_numbers<[2], [1], [1], [2], [0, 0, 0, 1, 1, 2], [0], [0]>} : vector<2x8x8xbf16>, vector<2x8x8xbf16>, vector<2x8x8xf32> -> vector<2x8x8xf32>
    "tpu.trace_stop"() : () -> ()
    %1193 = vector.shape_cast %1192 : vector<2x8x8xf32> to vector<16x8xf32>
    %1194 = arith.truncf %1193 : vector<16x8xf32> to vector<16x8xbf16>
    %1195 = vector.extract_strided_slice %1090 {offsets = [2, 0, 0], sizes = [1, 8, 32], strides = [1, 1, 1]} : vector<4x8x32xbf16> to vector<1x8x32xbf16>
    %1196 = vector.shape_cast %1195 : vector<1x8x32xbf16> to vector<8x32xbf16>
    %cst_468 = arith.constant dense<0.000000e+00> : vector<16x32xf32>
    %1197 = tpu.matmul %1194, %1196, %cst_468 {dimension_numbers = #tpu.dot_dimension_numbers<[1], [0], [0], [1], [0, 0, 1, 1], [], []>} : vector<16x8xbf16>, vector<8x32xbf16>, vector<16x32xf32> -> vector<16x32xf32>
    %1198 = arith.addf %1163, %1197 : vector<16x32xf32>
    %1199 = vector.extract_strided_slice %1084 {offsets = [3, 0, 0], sizes = [1, 32, 8], strides = [1, 1, 1]} : vector<4x32x8xbf16> to vector<1x32x8xbf16>
    %1200 = vector.shape_cast %1199 : vector<1x32x8xbf16> to vector<32x8xbf16>
    %cst_469 = arith.constant dense<0.000000e+00> : vector<16x8xf32>
    %1201 = tpu.matmul %1091, %1200, %cst_469 {dimension_numbers = #tpu.dot_dimension_numbers<[1], [0], [0], [1], [0, 0, 1, 1], [], []>} : vector<16x32xbf16>, vector<32x8xbf16>, vector<16x8xf32> -> vector<16x8xf32>
    %1202 = vector.extract_strided_slice %1086 {offsets = [3, 0, 0], sizes = [1, 32, 8], strides = [1, 1, 1]} : vector<4x32x8xbf16> to vector<1x32x8xbf16>
    %1203 = vector.shape_cast %1202 : vector<1x32x8xbf16> to vector<32x8xbf16>
    %cst_470 = arith.constant dense<0.000000e+00> : vector<16x8xf32>
    %1204 = tpu.matmul %1092, %1203, %cst_470 {dimension_numbers = #tpu.dot_dimension_numbers<[1], [0], [0], [1], [0, 0, 1, 1], [], []>} : vector<16x32xbf16>, vector<32x8xbf16>, vector<16x8xf32> -> vector<16x8xf32>
    %1205 = vector.extract_strided_slice %1088 {offsets = [3, 0, 0], sizes = [1, 32, 8], strides = [1, 1, 1]} : vector<4x32x8xbf16> to vector<1x32x8xbf16>
    %1206 = vector.shape_cast %1205 : vector<1x32x8xbf16> to vector<32x8xbf16>
    %cst_471 = arith.constant dense<0.000000e+00> : vector<16x8xf32>
    %1207 = tpu.matmul %1092, %1206, %cst_471 {dimension_numbers = #tpu.dot_dimension_numbers<[1], [0], [0], [1], [0, 0, 1, 1], [], []>} : vector<16x32xbf16>, vector<32x8xbf16>, vector<16x8xf32> -> vector<16x8xf32>
    %1208 = vector.shape_cast %1201 : vector<16x8xf32> to vector<2x8x8xf32>
    %1209 = arith.truncf %1208 : vector<2x8x8xf32> to vector<2x8x8xbf16>
    %1210 = vector.shape_cast %1204 : vector<16x8xf32> to vector<2x8x8xf32>
    %1211 = arith.truncf %1210 : vector<2x8x8xf32> to vector<2x8x8xbf16>
    %1212 = vector.shape_cast %1207 : vector<16x8xf32> to vector<2x8x8xf32>
    %1213 = arith.truncf %1212 : vector<2x8x8xf32> to vector<2x8x8xbf16>
    "tpu.trace_start"() <{level = 10 : i32, message = "bqd,bkd->bqk"}> : () -> ()
    %cst_472 = arith.constant dense<0.000000e+00> : vector<2x8x8xf32>
    %1214 = tpu.matmul %1209, %1211, %cst_472 {dimension_numbers = #tpu.dot_dimension_numbers<[2], [2], [1], [1], [0, 0, 0, 1, 1, 1], [0], [0]>} : vector<2x8x8xbf16>, vector<2x8x8xbf16>, vector<2x8x8xf32> -> vector<2x8x8xf32>
    "tpu.trace_stop"() : () -> ()
    %1215 = arith.addf %1214, %1057 : vector<2x8x8xf32>
    %cst_473 = arith.constant dense<0xFF800000> : vector<2x8xf32>
    %1216 = vector.multi_reduction <maximumf>, %1215, %cst_473 [2] : vector<2x8x8xf32> to vector<2x8xf32>
    %1217 = vector.shape_cast %1216 : vector<2x8xf32> to vector<2x8x1xf32>
    %1218 = vector.broadcast %1217 : vector<2x8x1xf32> to vector<2x8x8xf32>
    %1219 = arith.subf %1215, %1218 : vector<2x8x8xf32>
    %1220 = math.exp %1219 : vector<2x8x8xf32>
    %cst_474 = arith.constant dense<0.000000e+00> : vector<2x8xf32>
    %1221 = vector.multi_reduction <add>, %1220, %cst_474 [2] : vector<2x8x8xf32> to vector<2x8xf32>
    %1222 = vector.shape_cast %1221 : vector<2x8xf32> to vector<2x8x1xf32>
    %1223 = tpu.reciprocal %1222 {approx = true} : vector<2x8x1xf32> -> vector<2x8x1xf32>
    %1224 = vector.broadcast %1223 : vector<2x8x1xf32> to vector<2x8x8xf32>
    %1225 = arith.mulf %1220, %1224 : vector<2x8x8xf32>
    %1226 = arith.truncf %1225 : vector<2x8x8xf32> to vector<2x8x8xbf16>
    "tpu.trace_start"() <{level = 10 : i32, message = "bqk,bkd->bqd"}> : () -> ()
    %cst_475 = arith.constant dense<0.000000e+00> : vector<2x8x8xf32>
    %1227 = tpu.matmul %1226, %1213, %cst_475 {dimension_numbers = #tpu.dot_dimension_numbers<[2], [1], [1], [2], [0, 0, 0, 1, 1, 2], [0], [0]>} : vector<2x8x8xbf16>, vector<2x8x8xbf16>, vector<2x8x8xf32> -> vector<2x8x8xf32>
    "tpu.trace_stop"() : () -> ()
    %1228 = vector.shape_cast %1227 : vector<2x8x8xf32> to vector<16x8xf32>
    %1229 = arith.truncf %1228 : vector<16x8xf32> to vector<16x8xbf16>
    %1230 = vector.extract_strided_slice %1090 {offsets = [3, 0, 0], sizes = [1, 8, 32], strides = [1, 1, 1]} : vector<4x8x32xbf16> to vector<1x8x32xbf16>
    %1231 = vector.shape_cast %1230 : vector<1x8x32xbf16> to vector<8x32xbf16>
    %cst_476 = arith.constant dense<0.000000e+00> : vector<16x32xf32>
    %1232 = tpu.matmul %1229, %1231, %cst_476 {dimension_numbers = #tpu.dot_dimension_numbers<[1], [0], [0], [1], [0, 0, 1, 1], [], []>} : vector<16x8xbf16>, vector<8x32xbf16>, vector<16x32xf32> -> vector<16x32xf32>
    %1233 = arith.addf %1198, %1232 : vector<16x32xf32>
    %1234 = arith.addf %1058, %1233 : vector<16x32xf32>
    %c3_477 = arith.constant 3 : index
    %c0_478 = arith.constant 0 : index
    %c0_479 = arith.constant 0 : index
    %1235 = vector.load %arg35[%c3_477, %c0_478, %c0_479] : memref<4x1x32xf32, #tpu.memory_space<vmem>>, vector<1x1x32xf32>
    %1236 = vector.shape_cast %1235 : vector<1x1x32xf32> to vector<1x32xf32>
    %c3_480 = arith.constant 3 : index
    %c0_481 = arith.constant 0 : index
    %c0_482 = arith.constant 0 : index
    %1237 = vector.load %arg34[%c3_480, %c0_481, %c0_482] : memref<4x1x32xf32, #tpu.memory_space<vmem>>, vector<1x1x32xf32>
    %1238 = vector.shape_cast %1237 : vector<1x1x32xf32> to vector<1x32xf32>
    %cst_483 = arith.constant dense<0.000000e+00> : vector<16xf32>
    %1239 = vector.multi_reduction <add>, %1234, %cst_483 [1] : vector<16x32xf32> to vector<16xf32>
    %1240 = vector.shape_cast %1239 : vector<16xf32> to vector<16x1xf32>
    %cst_484 = arith.constant 3.200000e+01 : f32
    %1241 = vector.broadcast %cst_484 : f32 to vector<16x1xf32>
    %1242 = arith.divf %1240, %1241 : vector<16x1xf32>
    %1243 = vector.broadcast %1242 : vector<16x1xf32> to vector<16x32xf32>
    %1244 = arith.subf %1234, %1243 : vector<16x32xf32>
    %1245 = arith.mulf %1244, %1244 : vector<16x32xf32>
    %cst_485 = arith.constant dense<0.000000e+00> : vector<16xf32>
    %1246 = vector.multi_reduction <add>, %1245, %cst_485 [1] : vector<16x32xf32> to vector<16xf32>
    %1247 = vector.shape_cast %1246 : vector<16xf32> to vector<16x1xf32>
    %cst_486 = arith.constant 3.200000e+01 : f32
    %1248 = vector.broadcast %cst_486 : f32 to vector<16x1xf32>
    %1249 = arith.divf %1247, %1248 : vector<16x1xf32>
    %cst_487 = arith.constant 9.99999997E-7 : f32
    %1250 = vector.broadcast %cst_487 : f32 to vector<16x1xf32>
    %1251 = arith.addf %1249, %1250 : vector<16x1xf32>
    %1252 = math.rsqrt %1251 : vector<16x1xf32>
    %1253 = vector.broadcast %1252 : vector<16x1xf32> to vector<16x32xf32>
    %1254 = arith.mulf %1244, %1253 : vector<16x32xf32>
    %1255 = vector.broadcast %1236 : vector<1x32xf32> to vector<16x32xf32>
    %1256 = arith.mulf %1254, %1255 : vector<16x32xf32>
    %1257 = vector.broadcast %1238 : vector<1x32xf32> to vector<16x32xf32>
    %1258 = arith.addf %1256, %1257 : vector<16x32xf32>
    %c3_488 = arith.constant 3 : index
    %c0_489 = arith.constant 0 : index
    %c0_490 = arith.constant 0 : index
    %1259 = vector.load %arg36[%c3_488, %c0_489, %c0_490] : memref<4x32x64xbf16, #tpu.memory_space<vmem>>, vector<1x32x64xbf16>
    %1260 = vector.shape_cast %1259 : vector<1x32x64xbf16> to vector<32x64xbf16>
    %c3_491 = arith.constant 3 : index
    %c0_492 = arith.constant 0 : index
    %c0_493 = arith.constant 0 : index
    %1261 = vector.load %arg30[%c3_491, %c0_492, %c0_493] : memref<4x1x64xf32, #tpu.memory_space<vmem>>, vector<1x1x64xf32>
    %1262 = vector.shape_cast %1261 : vector<1x1x64xf32> to vector<1x64xf32>
    %c3_494 = arith.constant 3 : index
    %c0_495 = arith.constant 0 : index
    %c0_496 = arith.constant 0 : index
    %1263 = vector.load %arg37[%c3_494, %c0_495, %c0_496] : memref<4x64x32xbf16, #tpu.memory_space<vmem>>, vector<1x64x32xbf16>
    %1264 = vector.shape_cast %1263 : vector<1x64x32xbf16> to vector<64x32xbf16>
    %c3_497 = arith.constant 3 : index
    %c0_498 = arith.constant 0 : index
    %c0_499 = arith.constant 0 : index
    %1265 = vector.load %arg31[%c3_497, %c0_498, %c0_499] : memref<4x1x32xf32, #tpu.memory_space<vmem>>, vector<1x1x32xf32>
    %1266 = vector.shape_cast %1265 : vector<1x1x32xf32> to vector<1x32xf32>
    %1267 = arith.truncf %1258 : vector<16x32xf32> to vector<16x32xbf16>
    %cst_500 = arith.constant dense<0.000000e+00> : vector<16x64xf32>
    %1268 = tpu.matmul %1267, %1260, %cst_500 {dimension_numbers = #tpu.dot_dimension_numbers<[1], [0], [0], [1], [0, 0, 1, 1], [], []>} : vector<16x32xbf16>, vector<32x64xbf16>, vector<16x64xf32> -> vector<16x64xf32>
    %1269 = vector.broadcast %1262 : vector<1x64xf32> to vector<16x64xf32>
    %1270 = arith.addf %1268, %1269 : vector<16x64xf32>
    %cst_501 = arith.constant 0.000000e+00 : f32
    %1271 = vector.broadcast %cst_501 : f32 to vector<16x64xf32>
    %1272 = arith.maximumf %1270, %1271 : vector<16x64xf32>
    %1273 = arith.truncf %1272 : vector<16x64xf32> to vector<16x64xbf16>
    %cst_502 = arith.constant dense<0.000000e+00> : vector<16x32xf32>
    %1274 = tpu.matmul %1273, %1264, %cst_502 {dimension_numbers = #tpu.dot_dimension_numbers<[1], [0], [0], [1], [0, 0, 1, 1], [], []>} : vector<16x64xbf16>, vector<64x32xbf16>, vector<16x32xf32> -> vector<16x32xf32>
    %1275 = vector.broadcast %1266 : vector<1x32xf32> to vector<16x32xf32>
    %1276 = arith.addf %1274, %1275 : vector<16x32xf32>
    %1277 = arith.addf %1234, %1276 : vector<16x32xf32>
    %c0_503 = arith.constant 0 : index
    %c0_504 = arith.constant 0 : index
    %c0_505 = arith.constant 0 : index
    %1278 = vector.load %arg7[%c0_503, %c0_504, %c0_505] : memref<2x8x8xf32, #tpu.memory_space<vmem>>, vector<2x8x8xf32>
    %c0_506 = arith.constant 0 : index
    %c0_507 = arith.constant 0 : index
    %c0_508 = arith.constant 0 : index
    %c0_509 = arith.constant 0 : index
    %1279 = vector.load %arg28[%c0_506, %c0_507, %c0_508, %c0_509] : memref<1x4x32x8xbf16, #tpu.memory_space<vmem>>, vector<1x4x32x8xbf16>
    %1280 = vector.shape_cast %1279 : vector<1x4x32x8xbf16> to vector<4x32x8xbf16>
    %c0_510 = arith.constant 0 : index
    %c0_511 = arith.constant 0 : index
    %c0_512 = arith.constant 0 : index
    %c0_513 = arith.constant 0 : index
    %1281 = vector.load %arg26[%c0_510, %c0_511, %c0_512, %c0_513] : memref<1x4x32x8xbf16, #tpu.memory_space<vmem>>, vector<1x4x32x8xbf16>
    %1282 = vector.shape_cast %1281 : vector<1x4x32x8xbf16> to vector<4x32x8xbf16>
    %c0_514 = arith.constant 0 : index
    %c0_515 = arith.constant 0 : index
    %c0_516 = arith.constant 0 : index
    %c0_517 = arith.constant 0 : index
    %1283 = vector.load %arg29[%c0_514, %c0_515, %c0_516, %c0_517] : memref<1x4x32x8xbf16, #tpu.memory_space<vmem>>, vector<1x4x32x8xbf16>
    %1284 = vector.shape_cast %1283 : vector<1x4x32x8xbf16> to vector<4x32x8xbf16>
    %c0_518 = arith.constant 0 : index
    %c0_519 = arith.constant 0 : index
    %c0_520 = arith.constant 0 : index
    %c0_521 = arith.constant 0 : index
    %1285 = vector.load %arg27[%c0_518, %c0_519, %c0_520, %c0_521] : memref<1x4x8x32xbf16, #tpu.memory_space<vmem>>, vector<1x4x8x32xbf16>
    %1286 = vector.shape_cast %1285 : vector<1x4x8x32xbf16> to vector<4x8x32xbf16>
    %1287 = arith.truncf %1056 : vector<16x32xf32> to vector<16x32xbf16>
    %1288 = arith.truncf %1277 : vector<16x32xf32> to vector<16x32xbf16>
    %cst_522 = arith.constant 0.000000e+00 : f32
    %1289 = vector.broadcast %cst_522 : f32 to vector<16x32xf32>
    %1290 = vector.extract_strided_slice %1280 {offsets = [0, 0, 0], sizes = [1, 32, 8], strides = [1, 1, 1]} : vector<4x32x8xbf16> to vector<1x32x8xbf16>
    %1291 = vector.shape_cast %1290 : vector<1x32x8xbf16> to vector<32x8xbf16>
    %cst_523 = arith.constant dense<0.000000e+00> : vector<16x8xf32>
    %1292 = tpu.matmul %1287, %1291, %cst_523 {dimension_numbers = #tpu.dot_dimension_numbers<[1], [0], [0], [1], [0, 0, 1, 1], [], []>} : vector<16x32xbf16>, vector<32x8xbf16>, vector<16x8xf32> -> vector<16x8xf32>
    %1293 = vector.extract_strided_slice %1282 {offsets = [0, 0, 0], sizes = [1, 32, 8], strides = [1, 1, 1]} : vector<4x32x8xbf16> to vector<1x32x8xbf16>
    %1294 = vector.shape_cast %1293 : vector<1x32x8xbf16> to vector<32x8xbf16>
    %cst_524 = arith.constant dense<0.000000e+00> : vector<16x8xf32>
    %1295 = tpu.matmul %1288, %1294, %cst_524 {dimension_numbers = #tpu.dot_dimension_numbers<[1], [0], [0], [1], [0, 0, 1, 1], [], []>} : vector<16x32xbf16>, vector<32x8xbf16>, vector<16x8xf32> -> vector<16x8xf32>
    %1296 = vector.extract_strided_slice %1284 {offsets = [0, 0, 0], sizes = [1, 32, 8], strides = [1, 1, 1]} : vector<4x32x8xbf16> to vector<1x32x8xbf16>
    %1297 = vector.shape_cast %1296 : vector<1x32x8xbf16> to vector<32x8xbf16>
    %cst_525 = arith.constant dense<0.000000e+00> : vector<16x8xf32>
    %1298 = tpu.matmul %1288, %1297, %cst_525 {dimension_numbers = #tpu.dot_dimension_numbers<[1], [0], [0], [1], [0, 0, 1, 1], [], []>} : vector<16x32xbf16>, vector<32x8xbf16>, vector<16x8xf32> -> vector<16x8xf32>
    %1299 = vector.shape_cast %1292 : vector<16x8xf32> to vector<2x8x8xf32>
    %1300 = arith.truncf %1299 : vector<2x8x8xf32> to vector<2x8x8xbf16>
    %1301 = vector.shape_cast %1295 : vector<16x8xf32> to vector<2x8x8xf32>
    %1302 = arith.truncf %1301 : vector<2x8x8xf32> to vector<2x8x8xbf16>
    %1303 = vector.shape_cast %1298 : vector<16x8xf32> to vector<2x8x8xf32>
    %1304 = arith.truncf %1303 : vector<2x8x8xf32> to vector<2x8x8xbf16>
    "tpu.trace_start"() <{level = 10 : i32, message = "bqd,bkd->bqk"}> : () -> ()
    %cst_526 = arith.constant dense<0.000000e+00> : vector<2x8x8xf32>
    %1305 = tpu.matmul %1300, %1302, %cst_526 {dimension_numbers = #tpu.dot_dimension_numbers<[2], [2], [1], [1], [0, 0, 0, 1, 1, 1], [0], [0]>} : vector<2x8x8xbf16>, vector<2x8x8xbf16>, vector<2x8x8xf32> -> vector<2x8x8xf32>
    "tpu.trace_stop"() : () -> ()
    %1306 = arith.addf %1305, %1278 : vector<2x8x8xf32>
    %cst_527 = arith.constant dense<0xFF800000> : vector<2x8xf32>
    %1307 = vector.multi_reduction <maximumf>, %1306, %cst_527 [2] : vector<2x8x8xf32> to vector<2x8xf32>
    %1308 = vector.shape_cast %1307 : vector<2x8xf32> to vector<2x8x1xf32>
    %1309 = vector.broadcast %1308 : vector<2x8x1xf32> to vector<2x8x8xf32>
    %1310 = arith.subf %1306, %1309 : vector<2x8x8xf32>
    %1311 = math.exp %1310 : vector<2x8x8xf32>
    %cst_528 = arith.constant dense<0.000000e+00> : vector<2x8xf32>
    %1312 = vector.multi_reduction <add>, %1311, %cst_528 [2] : vector<2x8x8xf32> to vector<2x8xf32>
    %1313 = vector.shape_cast %1312 : vector<2x8xf32> to vector<2x8x1xf32>
    %1314 = tpu.reciprocal %1313 {approx = true} : vector<2x8x1xf32> -> vector<2x8x1xf32>
    %1315 = vector.broadcast %1314 : vector<2x8x1xf32> to vector<2x8x8xf32>
    %1316 = arith.mulf %1311, %1315 : vector<2x8x8xf32>
    %1317 = arith.truncf %1316 : vector<2x8x8xf32> to vector<2x8x8xbf16>
    "tpu.trace_start"() <{level = 10 : i32, message = "bqk,bkd->bqd"}> : () -> ()
    %cst_529 = arith.constant dense<0.000000e+00> : vector<2x8x8xf32>
    %1318 = tpu.matmul %1317, %1304, %cst_529 {dimension_numbers = #tpu.dot_dimension_numbers<[2], [1], [1], [2], [0, 0, 0, 1, 1, 2], [0], [0]>} : vector<2x8x8xbf16>, vector<2x8x8xbf16>, vector<2x8x8xf32> -> vector<2x8x8xf32>
    "tpu.trace_stop"() : () -> ()
    %1319 = vector.shape_cast %1318 : vector<2x8x8xf32> to vector<16x8xf32>
    %1320 = arith.truncf %1319 : vector<16x8xf32> to vector<16x8xbf16>
    %1321 = vector.extract_strided_slice %1286 {offsets = [0, 0, 0], sizes = [1, 8, 32], strides = [1, 1, 1]} : vector<4x8x32xbf16> to vector<1x8x32xbf16>
    %1322 = vector.shape_cast %1321 : vector<1x8x32xbf16> to vector<8x32xbf16>
    %cst_530 = arith.constant dense<0.000000e+00> : vector<16x32xf32>
    %1323 = tpu.matmul %1320, %1322, %cst_530 {dimension_numbers = #tpu.dot_dimension_numbers<[1], [0], [0], [1], [0, 0, 1, 1], [], []>} : vector<16x8xbf16>, vector<8x32xbf16>, vector<16x32xf32> -> vector<16x32xf32>
    %1324 = arith.addf %1289, %1323 : vector<16x32xf32>
    %1325 = vector.extract_strided_slice %1280 {offsets = [1, 0, 0], sizes = [1, 32, 8], strides = [1, 1, 1]} : vector<4x32x8xbf16> to vector<1x32x8xbf16>
    %1326 = vector.shape_cast %1325 : vector<1x32x8xbf16> to vector<32x8xbf16>
    %cst_531 = arith.constant dense<0.000000e+00> : vector<16x8xf32>
    %1327 = tpu.matmul %1287, %1326, %cst_531 {dimension_numbers = #tpu.dot_dimension_numbers<[1], [0], [0], [1], [0, 0, 1, 1], [], []>} : vector<16x32xbf16>, vector<32x8xbf16>, vector<16x8xf32> -> vector<16x8xf32>
    %1328 = vector.extract_strided_slice %1282 {offsets = [1, 0, 0], sizes = [1, 32, 8], strides = [1, 1, 1]} : vector<4x32x8xbf16> to vector<1x32x8xbf16>
    %1329 = vector.shape_cast %1328 : vector<1x32x8xbf16> to vector<32x8xbf16>
    %cst_532 = arith.constant dense<0.000000e+00> : vector<16x8xf32>
    %1330 = tpu.matmul %1288, %1329, %cst_532 {dimension_numbers = #tpu.dot_dimension_numbers<[1], [0], [0], [1], [0, 0, 1, 1], [], []>} : vector<16x32xbf16>, vector<32x8xbf16>, vector<16x8xf32> -> vector<16x8xf32>
    %1331 = vector.extract_strided_slice %1284 {offsets = [1, 0, 0], sizes = [1, 32, 8], strides = [1, 1, 1]} : vector<4x32x8xbf16> to vector<1x32x8xbf16>
    %1332 = vector.shape_cast %1331 : vector<1x32x8xbf16> to vector<32x8xbf16>
    %cst_533 = arith.constant dense<0.000000e+00> : vector<16x8xf32>
    %1333 = tpu.matmul %1288, %1332, %cst_533 {dimension_numbers = #tpu.dot_dimension_numbers<[1], [0], [0], [1], [0, 0, 1, 1], [], []>} : vector<16x32xbf16>, vector<32x8xbf16>, vector<16x8xf32> -> vector<16x8xf32>
    %1334 = vector.shape_cast %1327 : vector<16x8xf32> to vector<2x8x8xf32>
    %1335 = arith.truncf %1334 : vector<2x8x8xf32> to vector<2x8x8xbf16>
    %1336 = vector.shape_cast %1330 : vector<16x8xf32> to vector<2x8x8xf32>
    %1337 = arith.truncf %1336 : vector<2x8x8xf32> to vector<2x8x8xbf16>
    %1338 = vector.shape_cast %1333 : vector<16x8xf32> to vector<2x8x8xf32>
    %1339 = arith.truncf %1338 : vector<2x8x8xf32> to vector<2x8x8xbf16>
    "tpu.trace_start"() <{level = 10 : i32, message = "bqd,bkd->bqk"}> : () -> ()
    %cst_534 = arith.constant dense<0.000000e+00> : vector<2x8x8xf32>
    %1340 = tpu.matmul %1335, %1337, %cst_534 {dimension_numbers = #tpu.dot_dimension_numbers<[2], [2], [1], [1], [0, 0, 0, 1, 1, 1], [0], [0]>} : vector<2x8x8xbf16>, vector<2x8x8xbf16>, vector<2x8x8xf32> -> vector<2x8x8xf32>
    "tpu.trace_stop"() : () -> ()
    %1341 = arith.addf %1340, %1278 : vector<2x8x8xf32>
    %cst_535 = arith.constant dense<0xFF800000> : vector<2x8xf32>
    %1342 = vector.multi_reduction <maximumf>, %1341, %cst_535 [2] : vector<2x8x8xf32> to vector<2x8xf32>
    %1343 = vector.shape_cast %1342 : vector<2x8xf32> to vector<2x8x1xf32>
    %1344 = vector.broadcast %1343 : vector<2x8x1xf32> to vector<2x8x8xf32>
    %1345 = arith.subf %1341, %1344 : vector<2x8x8xf32>
    %1346 = math.exp %1345 : vector<2x8x8xf32>
    %cst_536 = arith.constant dense<0.000000e+00> : vector<2x8xf32>
    %1347 = vector.multi_reduction <add>, %1346, %cst_536 [2] : vector<2x8x8xf32> to vector<2x8xf32>
    %1348 = vector.shape_cast %1347 : vector<2x8xf32> to vector<2x8x1xf32>
    %1349 = tpu.reciprocal %1348 {approx = true} : vector<2x8x1xf32> -> vector<2x8x1xf32>
    %1350 = vector.broadcast %1349 : vector<2x8x1xf32> to vector<2x8x8xf32>
    %1351 = arith.mulf %1346, %1350 : vector<2x8x8xf32>
    %1352 = arith.truncf %1351 : vector<2x8x8xf32> to vector<2x8x8xbf16>
    "tpu.trace_start"() <{level = 10 : i32, message = "bqk,bkd->bqd"}> : () -> ()
    %cst_537 = arith.constant dense<0.000000e+00> : vector<2x8x8xf32>
    %1353 = tpu.matmul %1352, %1339, %cst_537 {dimension_numbers = #tpu.dot_dimension_numbers<[2], [1], [1], [2], [0, 0, 0, 1, 1, 2], [0], [0]>} : vector<2x8x8xbf16>, vector<2x8x8xbf16>, vector<2x8x8xf32> -> vector<2x8x8xf32>
    "tpu.trace_stop"() : () -> ()
    %1354 = vector.shape_cast %1353 : vector<2x8x8xf32> to vector<16x8xf32>
    %1355 = arith.truncf %1354 : vector<16x8xf32> to vector<16x8xbf16>
    %1356 = vector.extract_strided_slice %1286 {offsets = [1, 0, 0], sizes = [1, 8, 32], strides = [1, 1, 1]} : vector<4x8x32xbf16> to vector<1x8x32xbf16>
    %1357 = vector.shape_cast %1356 : vector<1x8x32xbf16> to vector<8x32xbf16>
    %cst_538 = arith.constant dense<0.000000e+00> : vector<16x32xf32>
    %1358 = tpu.matmul %1355, %1357, %cst_538 {dimension_numbers = #tpu.dot_dimension_numbers<[1], [0], [0], [1], [0, 0, 1, 1], [], []>} : vector<16x8xbf16>, vector<8x32xbf16>, vector<16x32xf32> -> vector<16x32xf32>
    %1359 = arith.addf %1324, %1358 : vector<16x32xf32>
    %1360 = vector.extract_strided_slice %1280 {offsets = [2, 0, 0], sizes = [1, 32, 8], strides = [1, 1, 1]} : vector<4x32x8xbf16> to vector<1x32x8xbf16>
    %1361 = vector.shape_cast %1360 : vector<1x32x8xbf16> to vector<32x8xbf16>
    %cst_539 = arith.constant dense<0.000000e+00> : vector<16x8xf32>
    %1362 = tpu.matmul %1287, %1361, %cst_539 {dimension_numbers = #tpu.dot_dimension_numbers<[1], [0], [0], [1], [0, 0, 1, 1], [], []>} : vector<16x32xbf16>, vector<32x8xbf16>, vector<16x8xf32> -> vector<16x8xf32>
    %1363 = vector.extract_strided_slice %1282 {offsets = [2, 0, 0], sizes = [1, 32, 8], strides = [1, 1, 1]} : vector<4x32x8xbf16> to vector<1x32x8xbf16>
    %1364 = vector.shape_cast %1363 : vector<1x32x8xbf16> to vector<32x8xbf16>
    %cst_540 = arith.constant dense<0.000000e+00> : vector<16x8xf32>
    %1365 = tpu.matmul %1288, %1364, %cst_540 {dimension_numbers = #tpu.dot_dimension_numbers<[1], [0], [0], [1], [0, 0, 1, 1], [], []>} : vector<16x32xbf16>, vector<32x8xbf16>, vector<16x8xf32> -> vector<16x8xf32>
    %1366 = vector.extract_strided_slice %1284 {offsets = [2, 0, 0], sizes = [1, 32, 8], strides = [1, 1, 1]} : vector<4x32x8xbf16> to vector<1x32x8xbf16>
    %1367 = vector.shape_cast %1366 : vector<1x32x8xbf16> to vector<32x8xbf16>
    %cst_541 = arith.constant dense<0.000000e+00> : vector<16x8xf32>
    %1368 = tpu.matmul %1288, %1367, %cst_541 {dimension_numbers = #tpu.dot_dimension_numbers<[1], [0], [0], [1], [0, 0, 1, 1], [], []>} : vector<16x32xbf16>, vector<32x8xbf16>, vector<16x8xf32> -> vector<16x8xf32>
    %1369 = vector.shape_cast %1362 : vector<16x8xf32> to vector<2x8x8xf32>
    %1370 = arith.truncf %1369 : vector<2x8x8xf32> to vector<2x8x8xbf16>
    %1371 = vector.shape_cast %1365 : vector<16x8xf32> to vector<2x8x8xf32>
    %1372 = arith.truncf %1371 : vector<2x8x8xf32> to vector<2x8x8xbf16>
    %1373 = vector.shape_cast %1368 : vector<16x8xf32> to vector<2x8x8xf32>
    %1374 = arith.truncf %1373 : vector<2x8x8xf32> to vector<2x8x8xbf16>
    "tpu.trace_start"() <{level = 10 : i32, message = "bqd,bkd->bqk"}> : () -> ()
    %cst_542 = arith.constant dense<0.000000e+00> : vector<2x8x8xf32>
    %1375 = tpu.matmul %1370, %1372, %cst_542 {dimension_numbers = #tpu.dot_dimension_numbers<[2], [2], [1], [1], [0, 0, 0, 1, 1, 1], [0], [0]>} : vector<2x8x8xbf16>, vector<2x8x8xbf16>, vector<2x8x8xf32> -> vector<2x8x8xf32>
    "tpu.trace_stop"() : () -> ()
    %1376 = arith.addf %1375, %1278 : vector<2x8x8xf32>
    %cst_543 = arith.constant dense<0xFF800000> : vector<2x8xf32>
    %1377 = vector.multi_reduction <maximumf>, %1376, %cst_543 [2] : vector<2x8x8xf32> to vector<2x8xf32>
    %1378 = vector.shape_cast %1377 : vector<2x8xf32> to vector<2x8x1xf32>
    %1379 = vector.broadcast %1378 : vector<2x8x1xf32> to vector<2x8x8xf32>
    %1380 = arith.subf %1376, %1379 : vector<2x8x8xf32>
    %1381 = math.exp %1380 : vector<2x8x8xf32>
    %cst_544 = arith.constant dense<0.000000e+00> : vector<2x8xf32>
    %1382 = vector.multi_reduction <add>, %1381, %cst_544 [2] : vector<2x8x8xf32> to vector<2x8xf32>
    %1383 = vector.shape_cast %1382 : vector<2x8xf32> to vector<2x8x1xf32>
    %1384 = tpu.reciprocal %1383 {approx = true} : vector<2x8x1xf32> -> vector<2x8x1xf32>
    %1385 = vector.broadcast %1384 : vector<2x8x1xf32> to vector<2x8x8xf32>
    %1386 = arith.mulf %1381, %1385 : vector<2x8x8xf32>
    %1387 = arith.truncf %1386 : vector<2x8x8xf32> to vector<2x8x8xbf16>
    "tpu.trace_start"() <{level = 10 : i32, message = "bqk,bkd->bqd"}> : () -> ()
    %cst_545 = arith.constant dense<0.000000e+00> : vector<2x8x8xf32>
    %1388 = tpu.matmul %1387, %1374, %cst_545 {dimension_numbers = #tpu.dot_dimension_numbers<[2], [1], [1], [2], [0, 0, 0, 1, 1, 2], [0], [0]>} : vector<2x8x8xbf16>, vector<2x8x8xbf16>, vector<2x8x8xf32> -> vector<2x8x8xf32>
    "tpu.trace_stop"() : () -> ()
    %1389 = vector.shape_cast %1388 : vector<2x8x8xf32> to vector<16x8xf32>
    %1390 = arith.truncf %1389 : vector<16x8xf32> to vector<16x8xbf16>
    %1391 = vector.extract_strided_slice %1286 {offsets = [2, 0, 0], sizes = [1, 8, 32], strides = [1, 1, 1]} : vector<4x8x32xbf16> to vector<1x8x32xbf16>
    %1392 = vector.shape_cast %1391 : vector<1x8x32xbf16> to vector<8x32xbf16>
    %cst_546 = arith.constant dense<0.000000e+00> : vector<16x32xf32>
    %1393 = tpu.matmul %1390, %1392, %cst_546 {dimension_numbers = #tpu.dot_dimension_numbers<[1], [0], [0], [1], [0, 0, 1, 1], [], []>} : vector<16x8xbf16>, vector<8x32xbf16>, vector<16x32xf32> -> vector<16x32xf32>
    %1394 = arith.addf %1359, %1393 : vector<16x32xf32>
    %1395 = vector.extract_strided_slice %1280 {offsets = [3, 0, 0], sizes = [1, 32, 8], strides = [1, 1, 1]} : vector<4x32x8xbf16> to vector<1x32x8xbf16>
    %1396 = vector.shape_cast %1395 : vector<1x32x8xbf16> to vector<32x8xbf16>
    %cst_547 = arith.constant dense<0.000000e+00> : vector<16x8xf32>
    %1397 = tpu.matmul %1287, %1396, %cst_547 {dimension_numbers = #tpu.dot_dimension_numbers<[1], [0], [0], [1], [0, 0, 1, 1], [], []>} : vector<16x32xbf16>, vector<32x8xbf16>, vector<16x8xf32> -> vector<16x8xf32>
    %1398 = vector.extract_strided_slice %1282 {offsets = [3, 0, 0], sizes = [1, 32, 8], strides = [1, 1, 1]} : vector<4x32x8xbf16> to vector<1x32x8xbf16>
    %1399 = vector.shape_cast %1398 : vector<1x32x8xbf16> to vector<32x8xbf16>
    %cst_548 = arith.constant dense<0.000000e+00> : vector<16x8xf32>
    %1400 = tpu.matmul %1288, %1399, %cst_548 {dimension_numbers = #tpu.dot_dimension_numbers<[1], [0], [0], [1], [0, 0, 1, 1], [], []>} : vector<16x32xbf16>, vector<32x8xbf16>, vector<16x8xf32> -> vector<16x8xf32>
    %1401 = vector.extract_strided_slice %1284 {offsets = [3, 0, 0], sizes = [1, 32, 8], strides = [1, 1, 1]} : vector<4x32x8xbf16> to vector<1x32x8xbf16>
    %1402 = vector.shape_cast %1401 : vector<1x32x8xbf16> to vector<32x8xbf16>
    %cst_549 = arith.constant dense<0.000000e+00> : vector<16x8xf32>
    %1403 = tpu.matmul %1288, %1402, %cst_549 {dimension_numbers = #tpu.dot_dimension_numbers<[1], [0], [0], [1], [0, 0, 1, 1], [], []>} : vector<16x32xbf16>, vector<32x8xbf16>, vector<16x8xf32> -> vector<16x8xf32>
    %1404 = vector.shape_cast %1397 : vector<16x8xf32> to vector<2x8x8xf32>
    %1405 = arith.truncf %1404 : vector<2x8x8xf32> to vector<2x8x8xbf16>
    %1406 = vector.shape_cast %1400 : vector<16x8xf32> to vector<2x8x8xf32>
    %1407 = arith.truncf %1406 : vector<2x8x8xf32> to vector<2x8x8xbf16>
    %1408 = vector.shape_cast %1403 : vector<16x8xf32> to vector<2x8x8xf32>
    %1409 = arith.truncf %1408 : vector<2x8x8xf32> to vector<2x8x8xbf16>
    "tpu.trace_start"() <{level = 10 : i32, message = "bqd,bkd->bqk"}> : () -> ()
    %cst_550 = arith.constant dense<0.000000e+00> : vector<2x8x8xf32>
    %1410 = tpu.matmul %1405, %1407, %cst_550 {dimension_numbers = #tpu.dot_dimension_numbers<[2], [2], [1], [1], [0, 0, 0, 1, 1, 1], [0], [0]>} : vector<2x8x8xbf16>, vector<2x8x8xbf16>, vector<2x8x8xf32> -> vector<2x8x8xf32>
    "tpu.trace_stop"() : () -> ()
    %1411 = arith.addf %1410, %1278 : vector<2x8x8xf32>
    %cst_551 = arith.constant dense<0xFF800000> : vector<2x8xf32>
    %1412 = vector.multi_reduction <maximumf>, %1411, %cst_551 [2] : vector<2x8x8xf32> to vector<2x8xf32>
    %1413 = vector.shape_cast %1412 : vector<2x8xf32> to vector<2x8x1xf32>
    %1414 = vector.broadcast %1413 : vector<2x8x1xf32> to vector<2x8x8xf32>
    %1415 = arith.subf %1411, %1414 : vector<2x8x8xf32>
    %1416 = math.exp %1415 : vector<2x8x8xf32>
    %cst_552 = arith.constant dense<0.000000e+00> : vector<2x8xf32>
    %1417 = vector.multi_reduction <add>, %1416, %cst_552 [2] : vector<2x8x8xf32> to vector<2x8xf32>
    %1418 = vector.shape_cast %1417 : vector<2x8xf32> to vector<2x8x1xf32>
    %1419 = tpu.reciprocal %1418 {approx = true} : vector<2x8x1xf32> -> vector<2x8x1xf32>
    %1420 = vector.broadcast %1419 : vector<2x8x1xf32> to vector<2x8x8xf32>
    %1421 = arith.mulf %1416, %1420 : vector<2x8x8xf32>
    %1422 = arith.truncf %1421 : vector<2x8x8xf32> to vector<2x8x8xbf16>
    "tpu.trace_start"() <{level = 10 : i32, message = "bqk,bkd->bqd"}> : () -> ()
    %cst_553 = arith.constant dense<0.000000e+00> : vector<2x8x8xf32>
    %1423 = tpu.matmul %1422, %1409, %cst_553 {dimension_numbers = #tpu.dot_dimension_numbers<[2], [1], [1], [2], [0, 0, 0, 1, 1, 2], [0], [0]>} : vector<2x8x8xbf16>, vector<2x8x8xbf16>, vector<2x8x8xf32> -> vector<2x8x8xf32>
    "tpu.trace_stop"() : () -> ()
    %1424 = vector.shape_cast %1423 : vector<2x8x8xf32> to vector<16x8xf32>
    %1425 = arith.truncf %1424 : vector<16x8xf32> to vector<16x8xbf16>
    %1426 = vector.extract_strided_slice %1286 {offsets = [3, 0, 0], sizes = [1, 8, 32], strides = [1, 1, 1]} : vector<4x8x32xbf16> to vector<1x8x32xbf16>
    %1427 = vector.shape_cast %1426 : vector<1x8x32xbf16> to vector<8x32xbf16>
    %cst_554 = arith.constant dense<0.000000e+00> : vector<16x32xf32>
    %1428 = tpu.matmul %1425, %1427, %cst_554 {dimension_numbers = #tpu.dot_dimension_numbers<[1], [0], [0], [1], [0, 0, 1, 1], [], []>} : vector<16x8xbf16>, vector<8x32xbf16>, vector<16x32xf32> -> vector<16x32xf32>
    %1429 = arith.addf %1394, %1428 : vector<16x32xf32>
    %1430 = arith.truncf %1429 : vector<16x32xf32> to vector<16x32xbf16>
    %c0_555 = arith.constant 0 : index
    %c0_556 = arith.constant 0 : index
    %1431 = vector.load %arg43[%c0_555, %c0_556] : memref<32x128xbf16, #tpu.memory_space<vmem>>, vector<32x128xbf16>
    %cst_557 = arith.constant dense<0.000000e+00> : vector<16x128xf32>
    %1432 = tpu.matmul %1430, %1431, %cst_557 {dimension_numbers = #tpu.dot_dimension_numbers<[1], [0], [0], [1], [0, 0, 1, 1], [], []>} : vector<16x32xbf16>, vector<32x128xbf16>, vector<16x128xf32> -> vector<16x128xf32>
    %c0_558 = arith.constant 0 : index
    %c0_559 = arith.constant 0 : index
    %1433 = vector.load %arg42[%c0_558, %c0_559] : memref<1x128xf32, #tpu.memory_space<vmem>>, vector<1x128xf32>
    %1434 = vector.broadcast %1433 : vector<1x128xf32> to vector<16x128xf32>
    %1435 = arith.addf %1432, %1434 : vector<16x128xf32>
    %c0_560 = arith.constant 0 : index
    %c0_561 = arith.constant 0 : index
    %1436 = vector.load %arg44[%c0_560, %c0_561] : memref<16x128xf32, #tpu.memory_space<vmem>>, vector<16x128xf32>
    tpu.vector_store %arg44[%c0_560, %c0_561], %1435 {strides = array<i32>} : memref<16x128xf32, #tpu.memory_space<vmem>>, vector<16x128xf32>,
    return
  }
}

</mosaic_0001>

<llo_original>
// kernel: glossification_forward.1
$region0: #{glossification_forward.1}
  #allocation0 [shape = 'u32[]', space=smem, size = 0x4, offset = 0x4, fixed_abs, tag = 'smem constant byte address 0x4 - core index']
  #allocation1 [shape = 'u32[72,128]{1,0:T(1,128)}', space=vmem, size = 0x9000, scoped, tag = 'internal scratch']
  %s0 = inlined_call_operand.smem [shape: u32[45], index: -1, kind: input, shape index: {}]
  %s1 = sld [smem:[%s0]]
  %s2 = scalar_lea.smem %s0, 1
  %s3 = sld [smem:[%s2]]
  %s4 = scalar_lea.smem %s0, 2
  %s5 = sld [smem:[%s4]]
  %s6 = scalar_lea.smem %s0, 3
  %s7 = sld [smem:[%s6]]
  %s8 = scalar_lea.smem %s0, 4
  %s9 = sld [smem:[%s8]]
  %s10 = scalar_lea.smem %s0, 5
  %s11 = sld [smem:[%s10]]
  %s12 = scalar_lea.smem %s0, 6
  %s13 = sld [smem:[%s12]]
  %s14 = scalar_lea.smem %s0, 7
  %s15 = sld [smem:[%s14]]
  %s16 = scalar_lea.smem %s0, 8
  %s17 = sld [smem:[%s16]]
  %s18 = scalar_lea.smem %s0, 9
  %s19 = sld [smem:[%s18]]
  %s20 = scalar_lea.smem %s0, 10
  %s21 = sld [smem:[%s20]]
  %s22 = scalar_lea.smem %s0, 11
  %s23 = sld [smem:[%s22]]
  %s24 = scalar_lea.smem %s0, 12
  %s25 = sld [smem:[%s24]]
  %s26 = scalar_lea.smem %s0, 13
  %s27 = sld [smem:[%s26]]
  %s28 = scalar_lea.smem %s0, 14
  %s29 = sld [smem:[%s28]]
  %s30 = scalar_lea.smem %s0, 15
  %s31 = sld [smem:[%s30]]
  %s32 = scalar_lea.smem %s0, 16
  %s33 = sld [smem:[%s32]]
  %s34 = scalar_lea.smem %s0, 17
  %s35 = sld [smem:[%s34]]
  %s36 = scalar_lea.smem %s0, 18
  %s37 = sld [smem:[%s36]]
  %s38 = scalar_lea.smem %s0, 19
  %s39 = sld [smem:[%s38]]
  %s40 = scalar_lea.smem %s0, 20
  %s41 = sld [smem:[%s40]]
  %s42 = scalar_lea.smem %s0, 21
  %s43 = sld [smem:[%s42]]
  %s44 = scalar_lea.smem %s0, 22
  %s45 = sld [smem:[%s44]]
  %s46 = scalar_lea.smem %s0, 23
  %s47 = sld [smem:[%s46]]
  %s48 = scalar_lea.smem %s0, 24
  %s49 = sld [smem:[%s48]]
  %s50 = scalar_lea.smem %s0, 25
  %s51 = sld [smem:[%s50]]
  %s52 = scalar_lea.smem %s0, 26
  %s53 = sld [smem:[%s52]]
  %s54 = scalar_lea.smem %s0, 27
  %s55 = sld [smem:[%s54]]
  %s56 = scalar_lea.smem %s0, 28
  %s57 = sld [smem:[%s56]]
  %s58 = scalar_lea.smem %s0, 29
  %s59 = sld [smem:[%s58]]
  %s60 = scalar_lea.smem %s0, 30
  %s61 = sld [smem:[%s60]]
  %s62 = scalar_lea.smem %s0, 31
  %s63 = sld [smem:[%s62]]
  %s64 = scalar_lea.smem %s0, 32
  %s65 = sld [smem:[%s64]]
  %s66 = scalar_lea.smem %s0, 33
  %s67 = sld [smem:[%s66]]
  %s68 = scalar_lea.smem %s0, 34
  %s69 = sld [smem:[%s68]]
  %s70 = scalar_lea.smem %s0, 35
  %s71 = sld [smem:[%s70]]
  %s72 = scalar_lea.smem %s0, 36
  %s73 = sld [smem:[%s72]]
  %s74 = scalar_lea.smem %s0, 37
  %s75 = sld [smem:[%s74]]
  %s76 = scalar_lea.smem %s0, 38
  %s77 = sld [smem:[%s76]]
  %s78 = scalar_lea.smem %s0, 39
  %s79 = sld [smem:[%s78]]
  %s80 = scalar_lea.smem %s0, 40
  %s81 = sld [smem:[%s80]]
  %s82 = scalar_lea.smem %s0, 41
  %s83 = sld [smem:[%s82]]
  %s84 = scalar_lea.smem %s0, 42
  %s85 = sld [smem:[%s84]]
  %s86 = scalar_lea.smem %s0, 43
  %s87 = sld [smem:[%s86]]
  %s88 = scalar_lea.smem %s0, 44
  %s89 = sld [smem:[%s88]]
  %s90 = sld [smem:[#allocation0]]
  $region186: #{glossification_forward.1} parent=0
    _
  %s92 = ssub.s32 1, %s90
  %s93 = scalar_select 0, %s92, %s90
  // Predicated region
  $region2: #{glossification_forward.1} parent=0 // pred_check
    _
  $region3: #{glossification_forward.1} parent=0 // pred_check_branch
    %95 = sbr.rel (0) target = $region5
  $region4: #{glossification_forward.1} parent=0 // pred_region
    _
  $region5: #{glossification_forward.1} parent=0 // pred_fallthru
    _
  // Predicated region
  $region6: #{glossification_forward.1} parent=0 // pred_check
    _
  $region7: #{glossification_forward.1} parent=0 // pred_check_branch
    %97 = sbr.rel (0) target = $region9
  $region8: #{glossification_forward.1} parent=0 // pred_region
    _
  $region9: #{glossification_forward.1} parent=0 // pred_fallthru
    _
  // Predicated region
  $region10: #{glossification_forward.1} parent=0 // pred_check
    _
  $region11: #{glossification_forward.1} parent=0 // pred_check_branch
    %99 = sbr.rel (0) target = $region13
  $region12: #{glossification_forward.1} parent=0 // pred_region
    _
  $region13: #{glossification_forward.1} parent=0 // pred_fallthru
    _
  // Predicated region
  $region14: #{glossification_forward.1} parent=0 // pred_check
    _
  $region15: #{glossification_forward.1} parent=0 // pred_check_branch
    %101 = sbr.rel (0) target = $region17
  $region16: #{glossification_forward.1} parent=0 // pred_region
    _
  $region17: #{glossification_forward.1} parent=0 // pred_fallthru
    _
  // Predicated region
  $region18: #{glossification_forward.1} parent=0 // pred_check
    _
  $region19: #{glossification_forward.1} parent=0 // pred_check_branch
    %103 = sbr.rel (0) target = $region21
  $region20: #{glossification_forward.1} parent=0 // pred_region
    _
  $region21: #{glossification_forward.1} parent=0 // pred_fallthru
    _
  // Predicated region
  $region22: #{glossification_forward.1} parent=0 // pred_check
    _
  $region23: #{glossification_forward.1} parent=0 // pred_check_branch
    %105 = sbr.rel (0) target = $region25
  $region24: #{glossification_forward.1} parent=0 // pred_region
    _
  $region25: #{glossification_forward.1} parent=0 // pred_fallthru
    _
  // Predicated region
  $region26: #{glossification_forward.1} parent=0 // pred_check
    _
  $region27: #{glossification_forward.1} parent=0 // pred_check_branch
    %107 = sbr.rel (0) target = $region29
  $region28: #{glossification_forward.1} parent=0 // pred_region
    _
  $region29: #{glossification_forward.1} parent=0 // pred_fallthru
    _
  // Predicated region
  $region30: #{glossification_forward.1} parent=0 // pred_check
    _
  $region31: #{glossification_forward.1} parent=0 // pred_check_branch
    %109 = sbr.rel (0) target = $region33
  $region32: #{glossification_forward.1} parent=0 // pred_region
    _
  $region33: #{glossification_forward.1} parent=0 // pred_fallthru
    _
  // Predicated region
  $region34: #{glossification_forward.1} parent=0 // pred_check
    _
  $region35: #{glossification_forward.1} parent=0 // pred_check_branch
    %111 = sbr.rel (0) target = $region37
  $region36: #{glossification_forward.1} parent=0 // pred_region
    _
  $region37: #{glossification_forward.1} parent=0 // pred_fallthru
    _
  // Predicated region
  $region38: #{glossification_forward.1} parent=0 // pred_check
    _
  $region39: #{glossification_forward.1} parent=0 // pred_check_branch
    %113 = sbr.rel (0) target = $region41
  $region40: #{glossification_forward.1} parent=0 // pred_region
    _
  $region41: #{glossification_forward.1} parent=0 // pred_fallthru
    _
  // Predicated region
  $region42: #{glossification_forward.1} parent=0 // pred_check
    _
  $region43: #{glossification_forward.1} parent=0 // pred_check_branch
    %115 = sbr.rel (0) target = $region45
  $region44: #{glossification_forward.1} parent=0 // pred_region
    _
  $region45: #{glossification_forward.1} parent=0 // pred_fallthru
    _
  // Predicated region
  $region46: #{glossification_forward.1} parent=0 // pred_check
    _
  $region47: #{glossification_forward.1} parent=0 // pred_check_branch
    %117 = sbr.rel (0) target = $region49
  $region48: #{glossification_forward.1} parent=0 // pred_region
    _
  $region49: #{glossification_forward.1} parent=0 // pred_fallthru
    _
  // Predicated region
  $region50: #{glossification_forward.1} parent=0 // pred_check
    _
  $region51: #{glossification_forward.1} parent=0 // pred_check_branch
    %119 = sbr.rel (0) target = $region53
  $region52: #{glossification_forward.1} parent=0 // pred_region
    _
  $region53: #{glossification_forward.1} parent=0 // pred_fallthru
    _
  // Predicated region
  $region54: #{glossification_forward.1} parent=0 // pred_check
    _
  $region55: #{glossification_forward.1} parent=0 // pred_check_branch
    %121 = sbr.rel (0) target = $region57
  $region56: #{glossification_forward.1} parent=0 // pred_region
    _
  $region57: #{glossification_forward.1} parent=0 // pred_fallthru
    _
  // Predicated region
  $region58: #{glossification_forward.1} parent=0 // pred_check
    _
  $region59: #{glossification_forward.1} parent=0 // pred_check_branch
    %123 = sbr.rel (0) target = $region61
  $region60: #{glossification_forward.1} parent=0 // pred_region
    _
  $region61: #{glossification_forward.1} parent=0 // pred_fallthru
    _
  // Predicated region
  $region62: #{glossification_forward.1} parent=0 // pred_check
    _
  $region63: #{glossification_forward.1} parent=0 // pred_check_branch
    %125 = sbr.rel (0) target = $region65
  $region64: #{glossification_forward.1} parent=0 // pred_region
    _
  $region65: #{glossification_forward.1} parent=0 // pred_fallthru
    _
  // Predicated region
  $region66: #{glossification_forward.1} parent=0 // pred_check
    _
  $region67: #{glossification_forward.1} parent=0 // pred_check_branch
    %127 = sbr.rel (0) target = $region69
  $region68: #{glossification_forward.1} parent=0 // pred_region
    _
  $region69: #{glossification_forward.1} parent=0 // pred_fallthru
    _
  // Predicated region
  $region70: #{glossification_forward.1} parent=0 // pred_check
    _
  $region71: #{glossification_forward.1} parent=0 // pred_check_branch
    %129 = sbr.rel (0) target = $region73
  $region72: #{glossification_forward.1} parent=0 // pred_region
    _
  $region73: #{glossification_forward.1} parent=0 // pred_fallthru
    _
  // Predicated region
  $region74: #{glossification_forward.1} parent=0 // pred_check
    _
  $region75: #{glossification_forward.1} parent=0 // pred_check_branch
    %131 = sbr.rel (0) target = $region77
  $region76: #{glossification_forward.1} parent=0 // pred_region
    _
  $region77: #{glossification_forward.1} parent=0 // pred_fallthru
    _
  // Predicated region
  $region78: #{glossification_forward.1} parent=0 // pred_check
    _
  $region79: #{glossification_forward.1} parent=0 // pred_check_branch
    %133 = sbr.rel (0) target = $region81
  $region80: #{glossification_forward.1} parent=0 // pred_region
    _
  $region81: #{glossification_forward.1} parent=0 // pred_fallthru
    _
  // Predicated region
  $region82: #{glossification_forward.1} parent=0 // pred_check
    _
  $region83: #{glossification_forward.1} parent=0 // pred_check_branch
    %135 = sbr.rel (0) target = $region85
  $region84: #{glossification_forward.1} parent=0 // pred_region
    _
  $region85: #{glossification_forward.1} parent=0 // pred_fallthru
    _
  // Predicated region
  $region86: #{glossification_forward.1} parent=0 // pred_check
    _
  $region87: #{glossification_forward.1} parent=0 // pred_check_branch
    %137 = sbr.rel (0) target = $region89
  $region88: #{glossification_forward.1} parent=0 // pred_region
    _
  $region89: #{glossification_forward.1} parent=0 // pred_fallthru
    _
  // Predicated region
  $region90: #{glossification_forward.1} parent=0 // pred_check
    _
  $region91: #{glossification_forward.1} parent=0 // pred_check_branch
    %139 = sbr.rel (0) target = $region93
  $region92: #{glossification_forward.1} parent=0 // pred_region
    _
  $region93: #{glossification_forward.1} parent=0 // pred_fallthru
    _
  // Predicated region
  $region94: #{glossification_forward.1} parent=0 // pred_check
    _
  $region95: #{glossification_forward.1} parent=0 // pred_check_branch
    %141 = sbr.rel (0) target = $region97
  $region96: #{glossification_forward.1} parent=0 // pred_region
    _
  $region97: #{glossification_forward.1} parent=0 // pred_fallthru
    _
  // Predicated region
  $region98: #{glossification_forward.1} parent=0 // pred_check
    _
  $region99: #{glossification_forward.1} parent=0 // pred_check_branch
    %143 = sbr.rel (0) target = $region101
  $region100: #{glossification_forward.1} parent=0 // pred_region
    _
  $region101: #{glossification_forward.1} parent=0 // pred_fallthru
    _
  // Predicated region
  $region102: #{glossification_forward.1} parent=0 // pred_check
    _
  $region103: #{glossification_forward.1} parent=0 // pred_check_branch
    %145 = sbr.rel (0) target = $region105
  $region104: #{glossification_forward.1} parent=0 // pred_region
    _
  $region105: #{glossification_forward.1} parent=0 // pred_fallthru
    _
  // Predicated region
  $region106: #{glossification_forward.1} parent=0 // pred_check
    _
  $region107: #{glossification_forward.1} parent=0 // pred_check_branch
    %147 = sbr.rel (0) target = $region109
  $region108: #{glossification_forward.1} parent=0 // pred_region
    _
  $region109: #{glossification_forward.1} parent=0 // pred_fallthru
    _
  // Predicated region
  $region110: #{glossification_forward.1} parent=0 // pred_check
    _
  $region111: #{glossification_forward.1} parent=0 // pred_check_branch
    %149 = sbr.rel (0) target = $region113
  $region112: #{glossification_forward.1} parent=0 // pred_region
    _
  $region113: #{glossification_forward.1} parent=0 // pred_fallthru
    _
  // Predicated region
  $region114: #{glossification_forward.1} parent=0 // pred_check
    _
  $region115: #{glossification_forward.1} parent=0 // pred_check_branch
    %151 = sbr.rel (0) target = $region117
  $region116: #{glossification_forward.1} parent=0 // pred_region
    _
  $region117: #{glossification_forward.1} parent=0 // pred_fallthru
    _
  // Predicated region
  $region118: #{glossification_forward.1} parent=0 // pred_check
    _
  $region119: #{glossification_forward.1} parent=0 // pred_check_branch
    %153 = sbr.rel (0) target = $region121
  $region120: #{glossification_forward.1} parent=0 // pred_region
    _
  $region121: #{glossification_forward.1} parent=0 // pred_fallthru
    _
  // Predicated region
  $region122: #{glossification_forward.1} parent=0 // pred_check
    _
  $region123: #{glossification_forward.1} parent=0 // pred_check_branch
    %155 = sbr.rel (0) target = $region125
  $region124: #{glossification_forward.1} parent=0 // pred_region
    _
  $region125: #{glossification_forward.1} parent=0 // pred_fallthru
    _
  // Predicated region
  $region126: #{glossification_forward.1} parent=0 // pred_check
    _
  $region127: #{glossification_forward.1} parent=0 // pred_check_branch
    %157 = sbr.rel (0) target = $region129
  $region128: #{glossification_forward.1} parent=0 // pred_region
    _
  $region129: #{glossification_forward.1} parent=0 // pred_fallthru
    _
  // Predicated region
  $region130: #{glossification_forward.1} parent=0 // pred_check
    _
  $region131: #{glossification_forward.1} parent=0 // pred_check_branch
    %159 = sbr.rel (0) target = $region133
  $region132: #{glossification_forward.1} parent=0 // pred_region
    _
  $region133: #{glossification_forward.1} parent=0 // pred_fallthru
    _
  // Predicated region
  $region134: #{glossification_forward.1} parent=0 // pred_check
    _
  $region135: #{glossification_forward.1} parent=0 // pred_check_branch
    %161 = sbr.rel (0) target = $region137
  $region136: #{glossification_forward.1} parent=0 // pred_region
    _
  $region137: #{glossification_forward.1} parent=0 // pred_fallthru
    _
  // Predicated region
  $region138: #{glossification_forward.1} parent=0 // pred_check
    _
  $region139: #{glossification_forward.1} parent=0 // pred_check_branch
    %163 = sbr.rel (0) target = $region141
  $region140: #{glossification_forward.1} parent=0 // pred_region
    _
  $region141: #{glossification_forward.1} parent=0 // pred_fallthru
    _
  // Predicated region
  $region142: #{glossification_forward.1} parent=0 // pred_check
    _
  $region143: #{glossification_forward.1} parent=0 // pred_check_branch
    %165 = sbr.rel (0) target = $region145
  $region144: #{glossification_forward.1} parent=0 // pred_region
    _
  $region145: #{glossification_forward.1} parent=0 // pred_fallthru
    _
  // Predicated region
  $region146: #{glossification_forward.1} parent=0 // pred_check
    _
  $region147: #{glossification_forward.1} parent=0 // pred_check_branch
    %167 = sbr.rel (0) target = $region149
  $region148: #{glossification_forward.1} parent=0 // pred_region
    _
  $region149: #{glossification_forward.1} parent=0 // pred_fallthru
    _
  // Predicated region
  $region150: #{glossification_forward.1} parent=0 // pred_check
    _
  $region151: #{glossification_forward.1} parent=0 // pred_check_branch
    %169 = sbr.rel (0) target = $region153
  $region152: #{glossification_forward.1} parent=0 // pred_region
    _
  $region153: #{glossification_forward.1} parent=0 // pred_fallthru
    _
  // Predicated region
  $region154: #{glossification_forward.1} parent=0 // pred_check
    _
  $region155: #{glossification_forward.1} parent=0 // pred_check_branch
    %171 = sbr.rel (0) target = $region157
  $region156: #{glossification_forward.1} parent=0 // pred_region
    _
  $region157: #{glossification_forward.1} parent=0 // pred_fallthru
    _
  // Predicated region
  $region158: #{glossification_forward.1} parent=0 // pred_check
    _
  $region159: #{glossification_forward.1} parent=0 // pred_check_branch
    %173 = sbr.rel (0) target = $region161
  $region160: #{glossification_forward.1} parent=0 // pred_region
    _
  $region161: #{glossification_forward.1} parent=0 // pred_fallthru
    _
  // Predicated region
  $region162: #{glossification_forward.1} parent=0 // pred_check
    _
  $region163: #{glossification_forward.1} parent=0 // pred_check_branch
    %175 = sbr.rel (0) target = $region165
  $region164: #{glossification_forward.1} parent=0 // pred_region
    _
  $region165: #{glossification_forward.1} parent=0 // pred_fallthru
    _
  // Predicated region
  $region166: #{glossification_forward.1} parent=0 // pred_check
    _
  $region167: #{glossification_forward.1} parent=0 // pred_check_branch
    %177 = sbr.rel (0) target = $region169
  $region168: #{glossification_forward.1} parent=0 // pred_region
    _
  $region169: #{glossification_forward.1} parent=0 // pred_fallthru
    _
  // Predicated region
  $region170: #{glossification_forward.1} parent=0 // pred_check
    _
  $region171: #{glossification_forward.1} parent=0 // pred_check_branch
    %179 = sbr.rel (0) target = $region173
  $region172: #{glossification_forward.1} parent=0 // pred_region
    _
  $region173: #{glossification_forward.1} parent=0 // pred_fallthru
    _
  // Predicated region
  $region174: #{glossification_forward.1} parent=0 // pred_check
    _
  $region175: #{glossification_forward.1} parent=0 // pred_check_branch
    %181 = sbr.rel (0) target = $region177
  $region176: #{glossification_forward.1} parent=0 // pred_region
    _
  $region177: #{glossification_forward.1} parent=0 // pred_fallthru
    _
  %v183 = vld [vmem:[%s7] sm:$0xff]
  %v184 = vld [vmem:[%s7 + $0x8] sm:$0xff]
  %v185 = vld [vmem:[%s1] sm:$0xff]
  %v186 = vld [vmem:[%s1 + $0x8] sm:$0xff]
  %v187 = vld [vmem:[%s67] sm:$0x1]
  %v188 = vld [vmem:[%s65] sm:$0x1]
  %vm189 = vcmask 261120
  %v190 = vsel %vm189, %v185, 0.0
  %191 = vadd.xlane.f32.xlu0 %v190
  %v192 = vpop.xlane.xlu0 %191
  %v193 = vsel %vm189, %v186, 0.0
  %194 = vadd.xlane.f32.xlu0 %v193
  %v195 = vpop.xlane.xlu0 %194
  %v196 = vrcp.pop 32.0
  %v197 = vmul.f32 32.0, %v196
  %v198 = vsub.f32 1.0, %v197
  %v199 = vmul.f32 %v196, %v198
  %v200 = vadd.f32 %v196, %v199
  %vm201 = vweird.f32 %v196
  %v202 = vsel %vm201, %v196, %v200
  %v203 = vmul.f32 %v192, %v202
  %v204 = vmul.f32 %v195, %v202
  %v205 = vsub.f32 %v185, %v203
  %v206 = vsub.f32 %v186, %v204
  %v207 = vmul.f32 %v205, %v205
  %v208 = vmul.f32 %v206, %v206
  %v209 = vsel %vm189, %v207, 0.0
  %210 = vadd.xlane.f32.xlu0 %v209
  %v211 = vpop.xlane.xlu0 %210
  %v212 = vsel %vm189, %v208, 0.0
  %213 = vadd.xlane.f32.xlu0 %v212
  %v214 = vpop.xlane.xlu0 %213
  %v215 = vmul.f32 %v211, %v202
  %v216 = vmul.f32 %v214, %v202
  %v217 = vadd.f32 %v215, 1e-06
  %v218 = vadd.f32 %v216, 1e-06
  %v219 = vrsqrt.pop %v217
  %v220 = vmul.f32 %v219, %v217
  %v221 = vmul.f32 %v220, %v219
  %v222 = vmul.f32 0.5, %v221
  %v223 = vsub.f32 1.5, %v222
  %v224 = vmul.f32 %v219, %v223
  %vm225 = vweird.f32 %v217
  %vm226 = vweird.f32 %v219
  %vm227 = vmor %vm225, %vm226
  %v228 = vsel %vm227, %v219, %v224
  %v229 = vrsqrt.pop %v218
  %v230 = vmul.f32 %v229, %v218
  %v231 = vmul.f32 %v230, %v229
  %v232 = vmul.f32 0.5, %v231
  %v233 = vsub.f32 1.5, %v232
  %v234 = vmul.f32 %v229, %v233
  %vm235 = vweird.f32 %v218
  %vm236 = vweird.f32 %v229
  %vm237 = vmor %vm235, %vm236
  %v238 = vsel %vm237, %v229, %v234
  %v239 = vmul.f32 %v205, %v228
  %v240 = vmul.f32 %v206, %v238
  %v242 = vperm.slane %v187, 0
  %v244 = vmul.f32 %v239, %v242
  %v245 = vmul.f32 %v240, %v242
  %v247 = vperm.slane %v188, 0
  %v249 = vadd.f32 %v244, %v247
  %v250 = vadd.f32 %v245, %v247
  %v251 = vld [vmem:[%s81] sm:$0xf]
  %v252 = vld [vmem:[%s81 + $0x4] sm:$0xf]
  %v253 = vld [vmem:[%s81 + $0x8] sm:$0xf]
  %v254 = vld [vmem:[%s81 + $0xc] sm:$0xf]
  %v255 = vld [vmem:[%s81 + $0x10] sm:$0xf]
  %v256 = vld [vmem:[%s81 + $0x14] sm:$0xf]
  %v257 = vld [vmem:[%s81 + $0x18] sm:$0xf]
  %v258 = vld [vmem:[%s81 + $0x1c] sm:$0xf]
  %v259 = vld [vmem:[%s81 + $0x20] sm:$0xf]
  %v260 = vld [vmem:[%s81 + $0x24] sm:$0xf]
  %v261 = vld [vmem:[%s81 + $0x28] sm:$0xf]
  %v262 = vld [vmem:[%s81 + $0x2c] sm:$0xf]
  %v263 = vld [vmem:[%s81 + $0x30] sm:$0xf]
  %v264 = vld [vmem:[%s81 + $0x34] sm:$0xf]
  %v265 = vld [vmem:[%s81 + $0x38] sm:$0xf]
  %v266 = vld [vmem:[%s81 + $0x3c] sm:$0xf]
  %v267 = vld [vmem:[%s77] sm:$0xf]
  %v268 = vld [vmem:[%s77 + $0x4] sm:$0xf]
  %v269 = vld [vmem:[%s77 + $0x8] sm:$0xf]
  %v270 = vld [vmem:[%s77 + $0xc] sm:$0xf]
  %v271 = vld [vmem:[%s77 + $0x10] sm:$0xf]
  %v272 = vld [vmem:[%s77 + $0x14] sm:$0xf]
  %v273 = vld [vmem:[%s77 + $0x18] sm:$0xf]
  %v274 = vld [vmem:[%s77 + $0x1c] sm:$0xf]
  %v275 = vld [vmem:[%s77 + $0x20] sm:$0xf]
  %v276 = vld [vmem:[%s77 + $0x24] sm:$0xf]
  %v277 = vld [vmem:[%s77 + $0x28] sm:$0xf]
  %v278 = vld [vmem:[%s77 + $0x2c] sm:$0xf]
  %v279 = vld [vmem:[%s77 + $0x30] sm:$0xf]
  %v280 = vld [vmem:[%s77 + $0x34] sm:$0xf]
  %v281 = vld [vmem:[%s77 + $0x38] sm:$0xf]
  %v282 = vld [vmem:[%s77 + $0x3c] sm:$0xf]
  %v283 = vld [vmem:[%s83] sm:$0xf]
  %v284 = vld [vmem:[%s83 + $0x4] sm:$0xf]
  %v285 = vld [vmem:[%s83 + $0x8] sm:$0xf]
  %v286 = vld [vmem:[%s83 + $0xc] sm:$0xf]
  %v287 = vld [vmem:[%s83 + $0x10] sm:$0xf]
  %v288 = vld [vmem:[%s83 + $0x14] sm:$0xf]
  %v289 = vld [vmem:[%s83 + $0x18] sm:$0xf]
  %v290 = vld [vmem:[%s83 + $0x1c] sm:$0xf]
  %v291 = vld [vmem:[%s83 + $0x20] sm:$0xf]
  %v292 = vld [vmem:[%s83 + $0x24] sm:$0xf]
  %v293 = vld [vmem:[%s83 + $0x28] sm:$0xf]
  %v294 = vld [vmem:[%s83 + $0x2c] sm:$0xf]
  %v295 = vld [vmem:[%s83 + $0x30] sm:$0xf]
  %v296 = vld [vmem:[%s83 + $0x34] sm:$0xf]
  %v297 = vld [vmem:[%s83 + $0x38] sm:$0xf]
  %v298 = vld [vmem:[%s83 + $0x3c] sm:$0xf]
  %v299 = vld [vmem:[%s79] sm:$0xf]
  %v300 = vld [vmem:[%s79 + $0x4] sm:$0xf]
  %v301 = vld [vmem:[%s79 + $0x8] sm:$0xf]
  %v302 = vld [vmem:[%s79 + $0xc] sm:$0xf]
  %v303 = vpack.c.bf16 %v250, %v249
  %v308 = vunpack.c.l.b16 %v251
  %v309 = vunpack.c.l.b16 %v252
  %v310 = vunpack.c.l.b16 %v253
  %v311 = vunpack.c.l.b16 %v254
  %v312 = vpack.c.b16 %v309, %v308
  %v313 = vpack.c.b16 %v311, %v310
  %v317 = vsel %vm189, %v303, 0
  %319 = vmatpush.bf16.msra.mxu0 0
  %320 = vmatpush.bf16.msra.mxu0 0
  %321 = vmatpush.bf16.msra.mxu0 0
  %322 = vmatpush.bf16.msra.mxu0 0
  %323 = vmatpush.bf16.msra.mxu0 0
  %324 = vmatpush.bf16.msra.mxu0 0
  %325 = vmatpush.bf16.msra.mxu0 %v313
  %326 = vmatpush.bf16.msra.mxu0 %v312
  %327 = vmatmul.bf16.gmra.mxu0 %v317
  %v328 = vpop.f32.mrf.mxu0
  %v329 = vadd.f32 0.0, %v328
  %v330 = vpop.f32.mrf.mxu0
  %v331 = vadd.f32 0.0, %v330
  %332 = vdwg.mxu0
  %v337 = vunpack.c.l.b16 %v267
  %v338 = vunpack.c.l.b16 %v268
  %v339 = vunpack.c.l.b16 %v269
  %v340 = vunpack.c.l.b16 %v270
  %v341 = vpack.c.b16 %v338, %v337
  %v342 = vpack.c.b16 %v340, %v339
  %345 = vmatpush.bf16.msra.mxu0 0
  %346 = vmatpush.bf16.msra.mxu0 0
  %347 = vmatpush.bf16.msra.mxu0 0
  %348 = vmatpush.bf16.msra.mxu0 0
  %349 = vmatpush.bf16.msra.mxu0 0
  %350 = vmatpush.bf16.msra.mxu0 0
  %351 = vmatpush.bf16.msra.mxu0 %v342
  %352 = vmatpush.bf16.msra.mxu0 %v341
  %353 = vmatmul.bf16.gmra.mxu0 %v317
  %v354 = vpop.f32.mrf.mxu0
  %v355 = vadd.f32 0.0, %v354
  %v356 = vpop.f32.mrf.mxu0
  %v357 = vadd.f32 0.0, %v356
  %358 = vdwg.mxu0
  %v363 = vunpack.c.l.b16 %v283
  %v364 = vunpack.c.l.b16 %v284
  %v365 = vunpack.c.l.b16 %v285
  %v366 = vunpack.c.l.b16 %v286
  %v367 = vpack.c.b16 %v364, %v363
  %v368 = vpack.c.b16 %v366, %v365
  %371 = vmatpush.bf16.msra.mxu0 0
  %372 = vmatpush.bf16.msra.mxu0 0
  %373 = vmatpush.bf16.msra.mxu0 0
  %374 = vmatpush.bf16.msra.mxu0 0
  %375 = vmatpush.bf16.msra.mxu0 0
  %376 = vmatpush.bf16.msra.mxu0 0
  %377 = vmatpush.bf16.msra.mxu0 %v368
  %378 = vmatpush.bf16.msra.mxu0 %v367
  %379 = vmatmul.bf16.gmra.mxu0 %v317
  %v380 = vpop.f32.mrf.mxu0
  %v381 = vadd.f32 0.0, %v380
  %v382 = vpop.f32.mrf.mxu0
  %v383 = vadd.f32 0.0, %v382
  %384 = vdwg.mxu0
  %v385 = vpack.c.bf16 %v329, %v329
  %v386 = vpack.c.bf16 %v331, %v331
  %v387 = vpack.c.bf16 %v355, %v355
  %v388 = vpack.c.bf16 %v357, %v357
  %v389 = vpack.c.bf16 %v381, %v381
  %v390 = vpack.c.bf16 %v383, %v383
  %vm391 = vcmask 64512
  %v393 = vsel %vm391, %v385, 0
  %v396 = vsel %vm391, %v387, 0
  %398 = vmatpush.bf16.xpose.msra.mxu0 0
  %399 = vmatpush.bf16.xpose.msra.mxu0 0
  %400 = vmatpush.bf16.xpose.msra.mxu0 0
  %401 = vmatpush.bf16.xpose.msra.mxu0 0
  %402 = vmatpush.bf16.xpose.msra.mxu0 0
  %403 = vmatpush.bf16.xpose.msra.mxu0 0
  %404 = vmatpush.bf16.xpose.msra.mxu0 0
  %405 = vmatpush.bf16.xpose.msra.mxu0 %v396
  %406 = vmatmul.bf16.gmra.mxu0 %v393
  %v407 = vpop.f32.mrf.mxu0
  %v408 = vadd.f32 %v183, %v407
  %v409 = vpop.f32.mrf.mxu0
  %410 = vdwg.mxu0
  %v412 = vsel %vm391, %v386, 0
  %v415 = vsel %vm391, %v388, 0
  %417 = vmatpush.bf16.xpose.msra.mxu0 0
  %418 = vmatpush.bf16.xpose.msra.mxu0 0
  %419 = vmatpush.bf16.xpose.msra.mxu0 0
  %420 = vmatpush.bf16.xpose.msra.mxu0 0
  %421 = vmatpush.bf16.xpose.msra.mxu0 0
  %422 = vmatpush.bf16.xpose.msra.mxu0 0
  %423 = vmatpush.bf16.xpose.msra.mxu0 0
  %424 = vmatpush.bf16.xpose.msra.mxu0 %v415
  %425 = vmatmul.bf16.gmra.mxu0 %v412
  %v426 = vpop.f32.mrf.mxu0
  %v427 = vadd.f32 %v184, %v426
  %v428 = vpop.f32.mrf.mxu0
  %429 = vdwg.mxu0
  %v430 = vsel %vm391, %v408, -inf
  %431 = vmax.xlane.f32.xlu0 %v430
  %v432 = vpop.xlane.xlu0 %431
  %v433 = vsel %vm391, %v427, -inf
  %434 = vmax.xlane.f32.xlu0 %v433
  %v435 = vpop.xlane.xlu0 %434
  %v436 = vsub.f32 %v408, %v432
  %v437 = vsub.f32 %v427, %v435
  %v438 = vmul.f32 %v436, 1.442695
  %v439 = vpow.pop %v438
  %v440 = vmul.f32 %v437, 1.442695
  %v441 = vpow.pop %v440
  %v442 = vsel %vm391, %v439, 0.0
  %443 = vadd.xlane.f32.xlu0 %v442
  %v444 = vpop.xlane.xlu0 %443
  %v445 = vsel %vm391, %v441, 0.0
  %446 = vadd.xlane.f32.xlu0 %v445
  %v447 = vpop.xlane.xlu0 %446
  %v448 = vrcp.pop %v444
  %v449 = vrcp.pop %v447
  %v450 = vmul.f32 %v439, %v448
  %v451 = vmul.f32 %v441, %v449
  %v452 = vpack.c.bf16 %v450, %v450
  %v453 = vpack.c.bf16 %v451, %v451
  %v455 = vsel %vm391, %v452, 0
  %vm457 = vcmask 1043456
  %v459 = vsel %vm457, %v389, 0
  %461 = vmatpush.bf16.msra.mxu0 0
  %462 = vmatpush.bf16.msra.mxu0 0
  %463 = vmatpush.bf16.msra.mxu0 0
  %464 = vmatpush.bf16.msra.mxu0 0
  %465 = vmatpush.bf16.msra.mxu0 0
  %466 = vmatpush.bf16.msra.mxu0 0
  %467 = vmatpush.bf16.msra.mxu0 0
  %468 = vmatpush.bf16.msra.mxu0 %v459
  %469 = vmatmul.bf16.gmra.mxu0 %v455
  %v470 = vpop.f32.mrf.mxu0
  %v471 = vadd.f32 0.0, %v470
  %v472 = vpop.f32.mrf.mxu0
  %473 = vdwg.mxu0
  %v475 = vsel %vm391, %v453, 0
  %v478 = vsel %vm457, %v390, 0
  %480 = vmatpush.bf16.msra.mxu0 0
  %481 = vmatpush.bf16.msra.mxu0 0
  %482 = vmatpush.bf16.msra.mxu0 0
  %483 = vmatpush.bf16.msra.mxu0 0
  %484 = vmatpush.bf16.msra.mxu0 0
  %485 = vmatpush.bf16.msra.mxu0 0
  %486 = vmatpush.bf16.msra.mxu0 0
  %487 = vmatpush.bf16.msra.mxu0 %v478
  %488 = vmatmul.bf16.gmra.mxu0 %v475
  %v489 = vpop.f32.mrf.mxu0
  %v490 = vadd.f32 0.0, %v489
  %v491 = vpop.f32.mrf.mxu0
  %492 = vdwg.mxu0
  %v493 = vpack.c.bf16 %v490, %v471
  %v498 = vunpack.c.l.b16 %v255
  %v499 = vunpack.c.l.b16 %v256
  %v500 = vunpack.c.l.b16 %v257
  %v501 = vunpack.c.l.b16 %v258
  %v502 = vpack.c.b16 %v499, %v498
  %v503 = vpack.c.b16 %v501, %v500
  %506 = vmatpush.bf16.msra.mxu0 0
  %507 = vmatpush.bf16.msra.mxu0 0
  %508 = vmatpush.bf16.msra.mxu0 0
  %509 = vmatpush.bf16.msra.mxu0 0
  %510 = vmatpush.bf16.msra.mxu0 0
  %511 = vmatpush.bf16.msra.mxu0 0
  %512 = vmatpush.bf16.msra.mxu0 %v503
  %513 = vmatpush.bf16.msra.mxu0 %v502
  %514 = vmatmul.bf16.gmra.mxu0 %v317
  %v515 = vpop.f32.mrf.mxu0
  %v516 = vadd.f32 0.0, %v515
  %v517 = vpop.f32.mrf.mxu0
  %v518 = vadd.f32 0.0, %v517
  %519 = vdwg.mxu0
  %v524 = vunpack.c.l.b16 %v271
  %v525 = vunpack.c.l.b16 %v272
  %v526 = vunpack.c.l.b16 %v273
  %v527 = vunpack.c.l.b16 %v274
  %v528 = vpack.c.b16 %v525, %v524
  %v529 = vpack.c.b16 %v527, %v526
  %532 = vmatpush.bf16.msra.mxu0 0
  %533 = vmatpush.bf16.msra.mxu0 0
  %534 = vmatpush.bf16.msra.mxu0 0
  %535 = vmatpush.bf16.msra.mxu0 0
  %536 = vmatpush.bf16.msra.mxu0 0
  %537 = vmatpush.bf16.msra.mxu0 0
  %538 = vmatpush.bf16.msra.mxu0 %v529
  %539 = vmatpush.bf16.msra.mxu0 %v528
  %540 = vmatmul.bf16.gmra.mxu0 %v317
  %v541 = vpop.f32.mrf.mxu0
  %v542 = vadd.f32 0.0, %v541
  %v543 = vpop.f32.mrf.mxu0
  %v544 = vadd.f32 0.0, %v543
  %545 = vdwg.mxu0
  %v550 = vunpack.c.l.b16 %v287
  %v551 = vunpack.c.l.b16 %v288
  %v552 = vunpack.c.l.b16 %v289
  %v553 = vunpack.c.l.b16 %v290
  %v554 = vpack.c.b16 %v551, %v550
  %v555 = vpack.c.b16 %v553, %v552
  %558 = vmatpush.bf16.msra.mxu0 0
  %559 = vmatpush.bf16.msra.mxu0 0
  %560 = vmatpush.bf16.msra.mxu0 0
  %561 = vmatpush.bf16.msra.mxu0 0
  %562 = vmatpush.bf16.msra.mxu0 0
  %563 = vmatpush.bf16.msra.mxu0 0
  %564 = vmatpush.bf16.msra.mxu0 %v555
  %565 = vmatpush.bf16.msra.mxu0 %v554
  %566 = vmatmul.bf16.gmra.mxu0 %v317
  %v567 = vpop.f32.mrf.mxu0
  %v568 = vadd.f32 0.0, %v567
  %v569 = vpop.f32.mrf.mxu0
  %v570 = vadd.f32 0.0, %v569
  %571 = vdwg.mxu0
  %v572 = vpack.c.bf16 %v516, %v516
  %v573 = vpack.c.bf16 %v518, %v518
  %v574 = vpack.c.bf16 %v542, %v542
  %v575 = vpack.c.bf16 %v544, %v544
  %v576 = vpack.c.bf16 %v568, %v568
  %v577 = vpack.c.bf16 %v570, %v570
  %v579 = vsel %vm391, %v572, 0
  %v582 = vsel %vm391, %v574, 0
  %584 = vmatpush.bf16.xpose.msra.mxu0 0
  %585 = vmatpush.bf16.xpose.msra.mxu0 0
  %586 = vmatpush.bf16.xpose.msra.mxu0 0
  %587 = vmatpush.bf16.xpose.msra.mxu0 0
  %588 = vmatpush.bf16.xpose.msra.mxu0 0
  %589 = vmatpush.bf16.xpose.msra.mxu0 0
  %590 = vmatpush.bf16.xpose.msra.mxu0 0
  %591 = vmatpush.bf16.xpose.msra.mxu0 %v582
  %592 = vmatmul.bf16.gmra.mxu0 %v579
  %v593 = vpop.f32.mrf.mxu0
  %v594 = vadd.f32 %v183, %v593
  %v595 = vpop.f32.mrf.mxu0
  %596 = vdwg.mxu0
  %v598 = vsel %vm391, %v573, 0
  %v601 = vsel %vm391, %v575, 0
  %603 = vmatpush.bf16.xpose.msra.mxu0 0
  %604 = vmatpush.bf16.xpose.msra.mxu0 0
  %605 = vmatpush.bf16.xpose.msra.mxu0 0
  %606 = vmatpush.bf16.xpose.msra.mxu0 0
  %607 = vmatpush.bf16.xpose.msra.mxu0 0
  %608 = vmatpush.bf16.xpose.msra.mxu0 0
  %609 = vmatpush.bf16.xpose.msra.mxu0 0
  %610 = vmatpush.bf16.xpose.msra.mxu0 %v601
  %611 = vmatmul.bf16.gmra.mxu0 %v598
  %v612 = vpop.f32.mrf.mxu0
  %v613 = vadd.f32 %v184, %v612
  %v614 = vpop.f32.mrf.mxu0
  %615 = vdwg.mxu0
  %v616 = vsel %vm391, %v594, -inf
  %617 = vmax.xlane.f32.xlu0 %v616
  %v618 = vpop.xlane.xlu0 %617
  %v619 = vsel %vm391, %v613, -inf
  %620 = vmax.xlane.f32.xlu0 %v619
  %v621 = vpop.xlane.xlu0 %620
  %v622 = vsub.f32 %v594, %v618
  %v623 = vsub.f32 %v613, %v621
  %v624 = vmul.f32 %v622, 1.442695
  %v625 = vpow.pop %v624
  %v626 = vmul.f32 %v623, 1.442695
  %v627 = vpow.pop %v626
  %v628 = vsel %vm391, %v625, 0.0
  %629 = vadd.xlane.f32.xlu0 %v628
  %v630 = vpop.xlane.xlu0 %629
  %v631 = vsel %vm391, %v627, 0.0
  %632 = vadd.xlane.f32.xlu0 %v631
  %v633 = vpop.xlane.xlu0 %632
  %v634 = vrcp.pop %v630
  %v635 = vrcp.pop %v633
  %v636 = vmul.f32 %v625, %v634
  %v637 = vmul.f32 %v627, %v635
  %v638 = vpack.c.bf16 %v636, %v636
  %v639 = vpack.c.bf16 %v637, %v637
  %v641 = vsel %vm391, %v638, 0
  %v644 = vsel %vm457, %v576, 0
  %646 = vmatpush.bf16.msra.mxu0 0
  %647 = vmatpush.bf16.msra.mxu0 0
  %648 = vmatpush.bf16.msra.mxu0 0
  %649 = vmatpush.bf16.msra.mxu0 0
  %650 = vmatpush.bf16.msra.mxu0 0
  %651 = vmatpush.bf16.msra.mxu0 0
  %652 = vmatpush.bf16.msra.mxu0 0
  %653 = vmatpush.bf16.msra.mxu0 %v644
  %654 = vmatmul.bf16.gmra.mxu0 %v641
  %v655 = vpop.f32.mrf.mxu0
  %v656 = vadd.f32 0.0, %v655
  %v657 = vpop.f32.mrf.mxu0
  %658 = vdwg.mxu0
  %v660 = vsel %vm391, %v639, 0
  %v663 = vsel %vm457, %v577, 0
  %665 = vmatpush.bf16.msra.mxu0 0
  %666 = vmatpush.bf16.msra.mxu0 0
  %667 = vmatpush.bf16.msra.mxu0 0
  %668 = vmatpush.bf16.msra.mxu0 0
  %669 = vmatpush.bf16.msra.mxu0 0
  %670 = vmatpush.bf16.msra.mxu0 0
  %671 = vmatpush.bf16.msra.mxu0 0
  %672 = vmatpush.bf16.msra.mxu0 %v663
  %673 = vmatmul.bf16.gmra.mxu0 %v660
  %v674 = vpop.f32.mrf.mxu0
  %v675 = vadd.f32 0.0, %v674
  %v676 = vpop.f32.mrf.mxu0
  %677 = vdwg.mxu0
  %v678 = vpack.c.bf16 %v675, %v656
  %v680 = vsel %vm391, %v678, 0
  %v683 = vsel %vm457, %v300, 0
  %685 = vmatpush.bf16.msra.mxu0 0
  %686 = vmatpush.bf16.msra.mxu0 0
  %687 = vmatpush.bf16.msra.mxu0 0
  %688 = vmatpush.bf16.msra.mxu0 0
  %689 = vmatpush.bf16.msra.mxu0 0
  %690 = vmatpush.bf16.msra.mxu0 0
  %691 = vmatpush.bf16.msra.mxu0 0
  %692 = vmatpush.bf16.msra.mxu0 %v683
  %693 = vmatmul.bf16.gmra.mxu0 %v680
  %v694 = vpop.f32.mrf.mxu0
  %v695 = vadd.f32 0.0, %v694
  %v696 = vpop.f32.mrf.mxu0
  %v697 = vadd.f32 0.0, %v696
  %698 = vdwg.mxu0
  %v700 = vsel %vm391, %v493, 0
  %v703 = vsel %vm457, %v299, 0
  %705 = vmatpush.bf16.msra.mxu0 0
  %706 = vmatpush.bf16.msra.mxu0 0
  %707 = vmatpush.bf16.msra.mxu0 0
  %708 = vmatpush.bf16.msra.mxu0 0
  %709 = vmatpush.bf16.msra.mxu0 0
  %710 = vmatpush.bf16.msra.mxu0 0
  %711 = vmatpush.bf16.msra.mxu0 0
  %712 = vmatpush.bf16.msra.mxu0 %v703
  %713 = vmatmul.bf16.gmra.mxu0 %v700
  %v714 = vpop.f32.mrf.mxu0
  %v715 = vadd.f32 %v695, %v714
  %v716 = vpop.f32.mrf.mxu0
  %v717 = vadd.f32 %v697, %v716
  %718 = vdwg.mxu0
  %v723 = vunpack.c.l.b16 %v259
  %v724 = vunpack.c.l.b16 %v260
  %v725 = vunpack.c.l.b16 %v261
  %v726 = vunpack.c.l.b16 %v262
  %v727 = vpack.c.b16 %v724, %v723
  %v728 = vpack.c.b16 %v726, %v725
  %731 = vmatpush.bf16.msra.mxu0 0
  %732 = vmatpush.bf16.msra.mxu0 0
  %733 = vmatpush.bf16.msra.mxu0 0
  %734 = vmatpush.bf16.msra.mxu0 0
  %735 = vmatpush.bf16.msra.mxu0 0
  %736 = vmatpush.bf16.msra.mxu0 0
  %737 = vmatpush.bf16.msra.mxu0 %v728
  %738 = vmatpush.bf16.msra.mxu0 %v727
  %739 = vmatmul.bf16.gmra.mxu0 %v317
  %v740 = vpop.f32.mrf.mxu0
  %v741 = vadd.f32 0.0, %v740
  %v742 = vpop.f32.mrf.mxu0
  %v743 = vadd.f32 0.0, %v742
  %744 = vdwg.mxu0
  %v749 = vunpack.c.l.b16 %v275
  %v750 = vunpack.c.l.b16 %v276
  %v751 = vunpack.c.l.b16 %v277
  %v752 = vunpack.c.l.b16 %v278
  %v753 = vpack.c.b16 %v750, %v749
  %v754 = vpack.c.b16 %v752, %v751
  %757 = vmatpush.bf16.msra.mxu0 0
  %758 = vmatpush.bf16.msra.mxu0 0
  %759 = vmatpush.bf16.msra.mxu0 0
  %760 = vmatpush.bf16.msra.mxu0 0
  %761 = vmatpush.bf16.msra.mxu0 0
  %762 = vmatpush.bf16.msra.mxu0 0
  %763 = vmatpush.bf16.msra.mxu0 %v754
  %764 = vmatpush.bf16.msra.mxu0 %v753
  %765 = vmatmul.bf16.gmra.mxu0 %v317
  %v766 = vpop.f32.mrf.mxu0
  %v767 = vadd.f32 0.0, %v766
  %v768 = vpop.f32.mrf.mxu0
  %v769 = vadd.f32 0.0, %v768
  %770 = vdwg.mxu0
  %v775 = vunpack.c.l.b16 %v291
  %v776 = vunpack.c.l.b16 %v292
  %v777 = vunpack.c.l.b16 %v293
  %v778 = vunpack.c.l.b16 %v294
  %v779 = vpack.c.b16 %v776, %v775
  %v780 = vpack.c.b16 %v778, %v777
  %783 = vmatpush.bf16.msra.mxu0 0
  %784 = vmatpush.bf16.msra.mxu0 0
  %785 = vmatpush.bf16.msra.mxu0 0
  %786 = vmatpush.bf16.msra.mxu0 0
  %787 = vmatpush.bf16.msra.mxu0 0
  %788 = vmatpush.bf16.msra.mxu0 0
  %789 = vmatpush.bf16.msra.mxu0 %v780
  %790 = vmatpush.bf16.msra.mxu0 %v779
  %791 = vmatmul.bf16.gmra.mxu0 %v317
  %v792 = vpop.f32.mrf.mxu0
  %v793 = vadd.f32 0.0, %v792
  %v794 = vpop.f32.mrf.mxu0
  %v795 = vadd.f32 0.0, %v794
  %796 = vdwg.mxu0
  %v797 = vpack.c.bf16 %v741, %v741
  %v798 = vpack.c.bf16 %v743, %v743
  %v799 = vpack.c.bf16 %v767, %v767
  %v800 = vpack.c.bf16 %v769, %v769
  %v801 = vpack.c.bf16 %v793, %v793
  %v802 = vpack.c.bf16 %v795, %v795
  %v804 = vsel %vm391, %v797, 0
  %v807 = vsel %vm391, %v799, 0
  %809 = vmatpush.bf16.xpose.msra.mxu0 0
  %810 = vmatpush.bf16.xpose.msra.mxu0 0
  %811 = vmatpush.bf16.xpose.msra.mxu0 0
  %812 = vmatpush.bf16.xpose.msra.mxu0 0
  %813 = vmatpush.bf16.xpose.msra.mxu0 0
  %814 = vmatpush.bf16.xpose.msra.mxu0 0
  %815 = vmatpush.bf16.xpose.msra.mxu0 0
  %816 = vmatpush.bf16.xpose.msra.mxu0 %v807
  %817 = vmatmul.bf16.gmra.mxu0 %v804
  %v818 = vpop.f32.mrf.mxu0
  %v819 = vadd.f32 %v183, %v818
  %v820 = vpop.f32.mrf.mxu0
  %821 = vdwg.mxu0
  %v823 = vsel %vm391, %v798, 0
  %v826 = vsel %vm391, %v800, 0
  %828 = vmatpush.bf16.xpose.msra.mxu0 0
  %829 = vmatpush.bf16.xpose.msra.mxu0 0
  %830 = vmatpush.bf16.xpose.msra.mxu0 0
  %831 = vmatpush.bf16.xpose.msra.mxu0 0
  %832 = vmatpush.bf16.xpose.msra.mxu0 0
  %833 = vmatpush.bf16.xpose.msra.mxu0 0
  %834 = vmatpush.bf16.xpose.msra.mxu0 0
  %835 = vmatpush.bf16.xpose.msra.mxu0 %v826
  %836 = vmatmul.bf16.gmra.mxu0 %v823
  %v837 = vpop.f32.mrf.mxu0
  %v838 = vadd.f32 %v184, %v837
  %v839 = vpop.f32.mrf.mxu0
  %840 = vdwg.mxu0
  %v841 = vsel %vm391, %v819, -inf
  %842 = vmax.xlane.f32.xlu0 %v841
  %v843 = vpop.xlane.xlu0 %842
  %v844 = vsel %vm391, %v838, -inf
  %845 = vmax.xlane.f32.xlu0 %v844
  %v846 = vpop.xlane.xlu0 %845
  %v847 = vsub.f32 %v819, %v843
  %v848 = vsub.f32 %v838, %v846
  %v849 = vmul.f32 %v847, 1.442695
  %v850 = vpow.pop %v849
  %v851 = vmul.f32 %v848, 1.442695
  %v852 = vpow.pop %v851
  %v853 = vsel %vm391, %v850, 0.0
  %854 = vadd.xlane.f32.xlu0 %v853
  %v855 = vpop.xlane.xlu0 %854
  %v856 = vsel %vm391, %v852, 0.0
  %857 = vadd.xlane.f32.xlu0 %v856
  %v858 = vpop.xlane.xlu0 %857
  %v859 = vrcp.pop %v855
  %v860 = vrcp.pop %v858
  %v861 = vmul.f32 %v850, %v859
  %v862 = vmul.f32 %v852, %v860
  %v863 = vpack.c.bf16 %v861, %v861
  %v864 = vpack.c.bf16 %v862, %v862
  %v866 = vsel %vm391, %v863, 0
  %v869 = vsel %vm457, %v801, 0
  %871 = vmatpush.bf16.msra.mxu0 0
  %872 = vmatpush.bf16.msra.mxu0 0
  %873 = vmatpush.bf16.msra.mxu0 0
  %874 = vmatpush.bf16.msra.mxu0 0
  %875 = vmatpush.bf16.msra.mxu0 0
  %876 = vmatpush.bf16.msra.mxu0 0
  %877 = vmatpush.bf16.msra.mxu0 0
  %878 = vmatpush.bf16.msra.mxu0 %v869
  %879 = vmatmul.bf16.gmra.mxu0 %v866
  %v880 = vpop.f32.mrf.mxu0
  %v881 = vadd.f32 0.0, %v880
  %v882 = vpop.f32.mrf.mxu0
  %883 = vdwg.mxu0
  %v885 = vsel %vm391, %v864, 0
  %v888 = vsel %vm457, %v802, 0
  %890 = vmatpush.bf16.msra.mxu0 0
  %891 = vmatpush.bf16.msra.mxu0 0
  %892 = vmatpush.bf16.msra.mxu0 0
  %893 = vmatpush.bf16.msra.mxu0 0
  %894 = vmatpush.bf16.msra.mxu0 0
  %895 = vmatpush.bf16.msra.mxu0 0
  %896 = vmatpush.bf16.msra.mxu0 0
  %897 = vmatpush.bf16.msra.mxu0 %v888
  %898 = vmatmul.bf16.gmra.mxu0 %v885
  %v899 = vpop.f32.mrf.mxu0
  %v900 = vadd.f32 0.0, %v899
  %v901 = vpop.f32.mrf.mxu0
  %902 = vdwg.mxu0
  %v903 = vpack.c.bf16 %v900, %v881
  %v905 = vsel %vm391, %v903, 0
  %v908 = vsel %vm457, %v301, 0
  %910 = vmatpush.bf16.msra.mxu0 0
  %911 = vmatpush.bf16.msra.mxu0 0
  %912 = vmatpush.bf16.msra.mxu0 0
  %913 = vmatpush.bf16.msra.mxu0 0
  %914 = vmatpush.bf16.msra.mxu0 0
  %915 = vmatpush.bf16.msra.mxu0 0
  %916 = vmatpush.bf16.msra.mxu0 0
  %917 = vmatpush.bf16.msra.mxu0 %v908
  %918 = vmatmul.bf16.gmra.mxu0 %v905
  %v919 = vpop.f32.mrf.mxu0
  %v920 = vadd.f32 0.0, %v919
  %v921 = vpop.f32.mrf.mxu0
  %v922 = vadd.f32 0.0, %v921
  %923 = vdwg.mxu0
  %v924 = vadd.f32 %v715, %v920
  %v925 = vadd.f32 %v717, %v922
  %v930 = vunpack.c.l.b16 %v263
  %v931 = vunpack.c.l.b16 %v264
  %v932 = vunpack.c.l.b16 %v265
  %v933 = vunpack.c.l.b16 %v266
  %v934 = vpack.c.b16 %v931, %v930
  %v935 = vpack.c.b16 %v933, %v932
  %938 = vmatpush.bf16.msra.mxu0 0
  %939 = vmatpush.bf16.msra.mxu0 0
  %940 = vmatpush.bf16.msra.mxu0 0
  %941 = vmatpush.bf16.msra.mxu0 0
  %942 = vmatpush.bf16.msra.mxu0 0
  %943 = vmatpush.bf16.msra.mxu0 0
  %944 = vmatpush.bf16.msra.mxu0 %v935
  %945 = vmatpush.bf16.msra.mxu0 %v934
  %946 = vmatmul.bf16.gmra.mxu0 %v317
  %v947 = vpop.f32.mrf.mxu0
  %v948 = vadd.f32 0.0, %v947
  %v949 = vpop.f32.mrf.mxu0
  %v950 = vadd.f32 0.0, %v949
  %951 = vdwg.mxu0
  %v956 = vunpack.c.l.b16 %v279
  %v957 = vunpack.c.l.b16 %v280
  %v958 = vunpack.c.l.b16 %v281
  %v959 = vunpack.c.l.b16 %v282
  %v960 = vpack.c.b16 %v957, %v956
  %v961 = vpack.c.b16 %v959, %v958
  %964 = vmatpush.bf16.msra.mxu0 0
  %965 = vmatpush.bf16.msra.mxu0 0
  %966 = vmatpush.bf16.msra.mxu0 0
  %967 = vmatpush.bf16.msra.mxu0 0
  %968 = vmatpush.bf16.msra.mxu0 0
  %969 = vmatpush.bf16.msra.mxu0 0
  %970 = vmatpush.bf16.msra.mxu0 %v961
  %971 = vmatpush.bf16.msra.mxu0 %v960
  %972 = vmatmul.bf16.gmra.mxu0 %v317
  %v973 = vpop.f32.mrf.mxu0
  %v974 = vadd.f32 0.0, %v973
  %v975 = vpop.f32.mrf.mxu0
  %v976 = vadd.f32 0.0, %v975
  %977 = vdwg.mxu0
  %v982 = vunpack.c.l.b16 %v295
  %v983 = vunpack.c.l.b16 %v296
  %v984 = vunpack.c.l.b16 %v297
  %v985 = vunpack.c.l.b16 %v298
  %v986 = vpack.c.b16 %v983, %v982
  %v987 = vpack.c.b16 %v985, %v984
  %990 = vmatpush.bf16.msra.mxu0 0
  %991 = vmatpush.bf16.msra.mxu0 0
  %992 = vmatpush.bf16.msra.mxu0 0
  %993 = vmatpush.bf16.msra.mxu0 0
  %994 = vmatpush.bf16.msra.mxu0 0
  %995 = vmatpush.bf16.msra.mxu0 0
  %996 = vmatpush.bf16.msra.mxu0 %v987
  %997 = vmatpush.bf16.msra.mxu0 %v986
  %998 = vmatmul.bf16.gmra.mxu0 %v317
  %v999 = vpop.f32.mrf.mxu0
  %v1000 = vadd.f32 0.0, %v999
  %v1001 = vpop.f32.mrf.mxu0
  %v1002 = vadd.f32 0.0, %v1001
  %1003 = vdwg.mxu0
  %v1004 = vpack.c.bf16 %v948, %v948
  %v1005 = vpack.c.bf16 %v950, %v950
  %v1006 = vpack.c.bf16 %v974, %v974
  %v1007 = vpack.c.bf16 %v976, %v976
  %v1008 = vpack.c.bf16 %v1000, %v1000
  %v1009 = vpack.c.bf16 %v1002, %v1002
  %v1011 = vsel %vm391, %v1004, 0
  %v1014 = vsel %vm391, %v1006, 0
  %1016 = vmatpush.bf16.xpose.msra.mxu0 0
  %1017 = vmatpush.bf16.xpose.msra.mxu0 0
  %1018 = vmatpush.bf16.xpose.msra.mxu0 0
  %1019 = vmatpush.bf16.xpose.msra.mxu0 0
  %1020 = vmatpush.bf16.xpose.msra.mxu0 0
  %1021 = vmatpush.bf16.xpose.msra.mxu0 0
  %1022 = vmatpush.bf16.xpose.msra.mxu0 0
  %1023 = vmatpush.bf16.xpose.msra.mxu0 %v1014
  %1024 = vmatmul.bf16.gmra.mxu0 %v1011
  %v1025 = vpop.f32.mrf.mxu0
  %v1026 = vadd.f32 %v183, %v1025
  %v1027 = vpop.f32.mrf.mxu0
  %1028 = vdwg.mxu0
  %v1030 = vsel %vm391, %v1005, 0
  %v1033 = vsel %vm391, %v1007, 0
  %1035 = vmatpush.bf16.xpose.msra.mxu0 0
  %1036 = vmatpush.bf16.xpose.msra.mxu0 0
  %1037 = vmatpush.bf16.xpose.msra.mxu0 0
  %1038 = vmatpush.bf16.xpose.msra.mxu0 0
  %1039 = vmatpush.bf16.xpose.msra.mxu0 0
  %1040 = vmatpush.bf16.xpose.msra.mxu0 0
  %1041 = vmatpush.bf16.xpose.msra.mxu0 0
  %1042 = vmatpush.bf16.xpose.msra.mxu0 %v1033
  %1043 = vmatmul.bf16.gmra.mxu0 %v1030
  %v1044 = vpop.f32.mrf.mxu0
  %v1045 = vadd.f32 %v184, %v1044
  %v1046 = vpop.f32.mrf.mxu0
  %1047 = vdwg.mxu0
  %v1048 = vsel %vm391, %v1026, -inf
  %1049 = vmax.xlane.f32.xlu0 %v1048
  %v1050 = vpop.xlane.xlu0 %1049
  %v1051 = vsel %vm391, %v1045, -inf
  %1052 = vmax.xlane.f32.xlu0 %v1051
  %v1053 = vpop.xlane.xlu0 %1052
  %v1054 = vsub.f32 %v1026, %v1050
  %v1055 = vsub.f32 %v1045, %v1053
  %v1056 = vmul.f32 %v1054, 1.442695
  %v1057 = vpow.pop %v1056
  %v1058 = vmul.f32 %v1055, 1.442695
  %v1059 = vpow.pop %v1058
  %v1060 = vsel %vm391, %v1057, 0.0
  %1061 = vadd.xlane.f32.xlu0 %v1060
  %v1062 = vpop.xlane.xlu0 %1061
  %v1063 = vsel %vm391, %v1059, 0.0
  %1064 = vadd.xlane.f32.xlu0 %v1063
  %v1065 = vpop.xlane.xlu0 %1064
  %v1066 = vrcp.pop %v1062
  %v1067 = vrcp.pop %v1065
  %v1068 = vmul.f32 %v1057, %v1066
  %v1069 = vmul.f32 %v1059, %v1067
  %v1070 = vpack.c.bf16 %v1068, %v1068
  %v1071 = vpack.c.bf16 %v1069, %v1069
  %v1073 = vsel %vm391, %v1070, 0
  %v1076 = vsel %vm457, %v1008, 0
  %1078 = vmatpush.bf16.msra.mxu0 0
  %1079 = vmatpush.bf16.msra.mxu0 0
  %1080 = vmatpush.bf16.msra.mxu0 0
  %1081 = vmatpush.bf16.msra.mxu0 0
  %1082 = vmatpush.bf16.msra.mxu0 0
  %1083 = vmatpush.bf16.msra.mxu0 0
  %1084 = vmatpush.bf16.msra.mxu0 0
  %1085 = vmatpush.bf16.msra.mxu0 %v1076
  %1086 = vmatmul.bf16.gmra.mxu0 %v1073
  %v1087 = vpop.f32.mrf.mxu0
  %v1088 = vadd.f32 0.0, %v1087
  %v1089 = vpop.f32.mrf.mxu0
  %1090 = vdwg.mxu0
  %v1092 = vsel %vm391, %v1071, 0
  %v1095 = vsel %vm457, %v1009, 0
  %1097 = vmatpush.bf16.msra.mxu0 0
  %1098 = vmatpush.bf16.msra.mxu0 0
  %1099 = vmatpush.bf16.msra.mxu0 0
  %1100 = vmatpush.bf16.msra.mxu0 0
  %1101 = vmatpush.bf16.msra.mxu0 0
  %1102 = vmatpush.bf16.msra.mxu0 0
  %1103 = vmatpush.bf16.msra.mxu0 0
  %1104 = vmatpush.bf16.msra.mxu0 %v1095
  %1105 = vmatmul.bf16.gmra.mxu0 %v1092
  %v1106 = vpop.f32.mrf.mxu0
  %v1107 = vadd.f32 0.0, %v1106
  %v1108 = vpop.f32.mrf.mxu0
  %1109 = vdwg.mxu0
  %v1110 = vpack.c.bf16 %v1107, %v1088
  %v1112 = vsel %vm391, %v1110, 0
  %v1115 = vsel %vm457, %v302, 0
  %1117 = vmatpush.bf16.msra.mxu0 0
  %1118 = vmatpush.bf16.msra.mxu0 0
  %1119 = vmatpush.bf16.msra.mxu0 0
  %1120 = vmatpush.bf16.msra.mxu0 0
  %1121 = vmatpush.bf16.msra.mxu0 0
  %1122 = vmatpush.bf16.msra.mxu0 0
  %1123 = vmatpush.bf16.msra.mxu0 0
  %1124 = vmatpush.bf16.msra.mxu0 %v1115
  %1125 = vmatmul.bf16.gmra.mxu0 %v1112
  %v1126 = vpop.f32.mrf.mxu0
  %v1127 = vadd.f32 0.0, %v1126
  %v1128 = vpop.f32.mrf.mxu0
  %v1129 = vadd.f32 0.0, %v1128
  %1130 = vdwg.mxu0
  %v1131 = vadd.f32 %v924, %v1127
  %v1132 = vadd.f32 %v925, %v1129
  %v1133 = vadd.f32 %v185, %v1131
  %v1134 = vadd.f32 %v186, %v1132
  %v1135 = vld [vmem:[%s71] sm:$0x1]
  %v1136 = vld [vmem:[%s69] sm:$0x1]
  %v1137 = vsel %vm189, %v1133, 0.0
  %1138 = vadd.xlane.f32.xlu0 %v1137
  %v1139 = vpop.xlane.xlu0 %1138
  %v1140 = vsel %vm189, %v1134, 0.0
  %1141 = vadd.xlane.f32.xlu0 %v1140
  %v1142 = vpop.xlane.xlu0 %1141
  %v1143 = vmul.f32 %v1139, %v202
  %v1144 = vmul.f32 %v1142, %v202
  %v1145 = vsub.f32 %v1133, %v1143
  %v1146 = vsub.f32 %v1134, %v1144
  %v1147 = vmul.f32 %v1145, %v1145
  %v1148 = vmul.f32 %v1146, %v1146
  %v1149 = vsel %vm189, %v1147, 0.0
  %1150 = vadd.xlane.f32.xlu0 %v1149
  %v1151 = vpop.xlane.xlu0 %1150
  %v1152 = vsel %vm189, %v1148, 0.0
  %1153 = vadd.xlane.f32.xlu0 %v1152
  %v1154 = vpop.xlane.xlu0 %1153
  %v1155 = vmul.f32 %v1151, %v202
  %v1156 = vmul.f32 %v1154, %v202
  %v1157 = vadd.f32 %v1155, 1e-06
  %v1158 = vadd.f32 %v1156, 1e-06
  %v1159 = vrsqrt.pop %v1157
  %v1160 = vmul.f32 %v1159, %v1157
  %v1161 = vmul.f32 %v1160, %v1159
  %v1162 = vmul.f32 0.5, %v1161
  %v1163 = vsub.f32 1.5, %v1162
  %v1164 = vmul.f32 %v1159, %v1163
  %vm1165 = vweird.f32 %v1157
  %vm1166 = vweird.f32 %v1159
  %vm1167 = vmor %vm1165, %vm1166
  %v1168 = vsel %vm1167, %v1159, %v1164
  %v1169 = vrsqrt.pop %v1158
  %v1170 = vmul.f32 %v1169, %v1158
  %v1171 = vmul.f32 %v1170, %v1169
  %v1172 = vmul.f32 0.5, %v1171
  %v1173 = vsub.f32 1.5, %v1172
  %v1174 = vmul.f32 %v1169, %v1173
  %vm1175 = vweird.f32 %v1158
  %vm1176 = vweird.f32 %v1169
  %vm1177 = vmor %vm1175, %vm1176
  %v1178 = vsel %vm1177, %v1169, %v1174
  %v1179 = vmul.f32 %v1145, %v1168
  %v1180 = vmul.f32 %v1146, %v1178
  %v1182 = vperm.slane %v1135, 0
  %v1184 = vmul.f32 %v1179, %v1182
  %v1185 = vmul.f32 %v1180, %v1182
  %v1187 = vperm.slane %v1136, 0
  %v1189 = vadd.f32 %v1184, %v1187
  %v1190 = vadd.f32 %v1185, %v1187
  %v1191 = vld [vmem:[%s73] sm:$0xf]
  %v1192 = vld [vmem:[%s73 + $0x4] sm:$0xf]
  %v1193 = vld [vmem:[%s73 + $0x8] sm:$0xf]
  %v1194 = vld [vmem:[%s73 + $0xc] sm:$0xf]
  %v1195 = vld [vmem:[%s61] sm:$0x1]
  %v1196 = vld [vmem:[%s75] sm:$0xf]
  %v1197 = vld [vmem:[%s75 + $0x4] sm:$0xf]
  %v1198 = vld [vmem:[%s75 + $0x8] sm:$0xf]
  %v1199 = vld [vmem:[%s75 + $0xc] sm:$0xf]
  %v1200 = vld [vmem:[%s75 + $0x10] sm:$0xf]
  %v1201 = vld [vmem:[%s75 + $0x14] sm:$0xf]
  %v1202 = vld [vmem:[%s75 + $0x18] sm:$0xf]
  %v1203 = vld [vmem:[%s75 + $0x1c] sm:$0xf]
  %v1204 = vld [vmem:[%s63] sm:$0x1]
  %v1205 = vpack.c.bf16 %v1190, %v1189
  %v1207 = vperm.slane %v1195, 0
  %v1213 = vunpack.c.l.b16 %v1191
  %v1214 = vunpack.c.l.b16 %v1192
  %v1215 = vunpack.c.l.b16 %v1193
  %v1216 = vunpack.c.l.b16 %v1194
  %v1217 = vpack.c.b16 %v1214, %v1213
  %v1218 = vpack.c.b16 %v1216, %v1215
  %v1222 = vsel %vm189, %v1205, 0
  %1224 = vmatpush.bf16.msra.mxu0 0
  %1225 = vmatpush.bf16.msra.mxu0 0
  %1226 = vmatpush.bf16.msra.mxu0 0
  %1227 = vmatpush.bf16.msra.mxu0 0
  %1228 = vmatpush.bf16.msra.mxu0 0
  %1229 = vmatpush.bf16.msra.mxu0 0
  %1230 = vmatpush.bf16.msra.mxu0 %v1218
  %1231 = vmatpush.bf16.msra.mxu0 %v1217
  %1232 = vmatmul.bf16.gmra.mxu0 %v1222
  %v1233 = vpop.f32.mrf.mxu0
  %v1234 = vadd.f32 %v1207, %v1233
  %v1235 = vpop.f32.mrf.mxu0
  %v1236 = vadd.f32 %v1207, %v1235
  %1237 = vdwg.mxu0
  %v1238 = vmax.f32 %v1234, 0.0
  %v1239 = vmax.f32 %v1236, 0.0
  %v1240 = vpack.c.bf16 %v1239, %v1238
  %v1242 = vperm.slane %v1204, 0
  %v1252 = vunpack.c.l.b16 %v1196
  %v1253 = vunpack.c.l.b16 %v1197
  %v1254 = vunpack.c.l.b16 %v1198
  %v1255 = vunpack.c.l.b16 %v1199
  %v1256 = vunpack.c.l.b16 %v1200
  %v1257 = vunpack.c.l.b16 %v1201
  %v1258 = vunpack.c.l.b16 %v1202
  %v1259 = vunpack.c.l.b16 %v1203
  %v1260 = vpack.c.b16 %v1253, %v1252
  %v1261 = vpack.c.b16 %v1255, %v1254
  %v1262 = vpack.c.b16 %v1257, %v1256
  %v1263 = vpack.c.b16 %v1259, %v1258
  %vm1268 = vcmask 523264
  %v1270 = vsel %vm1268, %v1240, 0
  %1272 = vmatpush.bf16.msra.mxu0 0
  %1273 = vmatpush.bf16.msra.mxu0 0
  %1274 = vmatpush.bf16.msra.mxu0 0
  %1275 = vmatpush.bf16.msra.mxu0 0
  %1276 = vmatpush.bf16.msra.mxu0 %v1263
  %1277 = vmatpush.bf16.msra.mxu0 %v1262
  %1278 = vmatpush.bf16.msra.mxu0 %v1261
  %1279 = vmatpush.bf16.msra.mxu0 %v1260
  %1280 = vmatmul.bf16.gmra.mxu0 %v1270
  %v1281 = vpop.f32.mrf.mxu0
  %v1282 = vadd.f32 %v1242, %v1281
  %v1283 = vpop.f32.mrf.mxu0
  %v1284 = vadd.f32 %v1242, %v1283
  %1285 = vdwg.mxu0
  %v1286 = vadd.f32 %v1133, %v1282
  %v1287 = vadd.f32 %v1134, %v1284
  %s1288 = scalar_lea.vmem %s67, 1
  %v1289 = vld [vmem:[%s1288] sm:$0x1]
  %s1290 = scalar_lea.vmem %s65, 1
  %v1291 = vld [vmem:[%s1290] sm:$0x1]
  %v1292 = vsel %vm189, %v1286, 0.0
  %1293 = vadd.xlane.f32.xlu0 %v1292
  %v1294 = vpop.xlane.xlu0 %1293
  %v1295 = vsel %vm189, %v1287, 0.0
  %1296 = vadd.xlane.f32.xlu0 %v1295
  %v1297 = vpop.xlane.xlu0 %1296
  %v1298 = vmul.f32 %v1294, %v202
  %v1299 = vmul.f32 %v1297, %v202
  %v1300 = vsub.f32 %v1286, %v1298
  %v1301 = vsub.f32 %v1287, %v1299
  %v1302 = vmul.f32 %v1300, %v1300
  %v1303 = vmul.f32 %v1301, %v1301
  %v1304 = vsel %vm189, %v1302, 0.0
  %1305 = vadd.xlane.f32.xlu0 %v1304
  %v1306 = vpop.xlane.xlu0 %1305
  %v1307 = vsel %vm189, %v1303, 0.0
  %1308 = vadd.xlane.f32.xlu0 %v1307
  %v1309 = vpop.xlane.xlu0 %1308
  %v1310 = vmul.f32 %v1306, %v202
  %v1311 = vmul.f32 %v1309, %v202
  %v1312 = vadd.f32 %v1310, 1e-06
  %v1313 = vadd.f32 %v1311, 1e-06
  %v1314 = vrsqrt.pop %v1312
  %v1315 = vmul.f32 %v1314, %v1312
  %v1316 = vmul.f32 %v1315, %v1314
  %v1317 = vmul.f32 0.5, %v1316
  %v1318 = vsub.f32 1.5, %v1317
  %v1319 = vmul.f32 %v1314, %v1318
  %vm1320 = vweird.f32 %v1312
  %vm1321 = vweird.f32 %v1314
  %vm1322 = vmor %vm1320, %vm1321
  %v1323 = vsel %vm1322, %v1314, %v1319
  %v1324 = vrsqrt.pop %v1313
  %v1325 = vmul.f32 %v1324, %v1313
  %v1326 = vmul.f32 %v1325, %v1324
  %v1327 = vmul.f32 0.5, %v1326
  %v1328 = vsub.f32 1.5, %v1327
  %v1329 = vmul.f32 %v1324, %v1328
  %vm1330 = vweird.f32 %v1313
  %vm1331 = vweird.f32 %v1324
  %vm1332 = vmor %vm1330, %vm1331
  %v1333 = vsel %vm1332, %v1324, %v1329
  %v1334 = vmul.f32 %v1300, %v1323
  %v1335 = vmul.f32 %v1301, %v1333
  %v1337 = vperm.slane %v1289, 0
  %v1339 = vmul.f32 %v1334, %v1337
  %v1340 = vmul.f32 %v1335, %v1337
  %v1342 = vperm.slane %v1291, 0
  %v1344 = vadd.f32 %v1339, %v1342
  %v1345 = vadd.f32 %v1340, %v1342
  %s1346 = scalar_lea.vmem %s81, 64
  %v1347 = vld [vmem:[%s1346] sm:$0xf]
  %v1348 = vld [vmem:[%s1346 + $0x4] sm:$0xf]
  %v1349 = vld [vmem:[%s1346 + $0x8] sm:$0xf]
  %v1350 = vld [vmem:[%s1346 + $0xc] sm:$0xf]
  %v1351 = vld [vmem:[%s1346 + $0x10] sm:$0xf]
  %v1352 = vld [vmem:[%s1346 + $0x14] sm:$0xf]
  %v1353 = vld [vmem:[%s1346 + $0x18] sm:$0xf]
  %v1354 = vld [vmem:[%s1346 + $0x1c] sm:$0xf]
  %v1355 = vld [vmem:[%s1346 + $0x20] sm:$0xf]
  %v1356 = vld [vmem:[%s1346 + $0x24] sm:$0xf]
  %v1357 = vld [vmem:[%s1346 + $0x28] sm:$0xf]
  %v1358 = vld [vmem:[%s1346 + $0x2c] sm:$0xf]
  %v1359 = vld [vmem:[%s1346 + $0x30] sm:$0xf]
  %v1360 = vld [vmem:[%s1346 + $0x34] sm:$0xf]
  %v1361 = vld [vmem:[%s1346 + $0x38] sm:$0xf]
  %v1362 = vld [vmem:[%s1346 + $0x3c] sm:$0xf]
  %s1363 = scalar_lea.vmem %s77, 64
  %v1364 = vld [vmem:[%s1363] sm:$0xf]
  %v1365 = vld [vmem:[%s1363 + $0x4] sm:$0xf]
  %v1366 = vld [vmem:[%s1363 + $0x8] sm:$0xf]
  %v1367 = vld [vmem:[%s1363 + $0xc] sm:$0xf]
  %v1368 = vld [vmem:[%s1363 + $0x10] sm:$0xf]
  %v1369 = vld [vmem:[%s1363 + $0x14] sm:$0xf]
  %v1370 = vld [vmem:[%s1363 + $0x18] sm:$0xf]
  %v1371 = vld [vmem:[%s1363 + $0x1c] sm:$0xf]
  %v1372 = vld [vmem:[%s1363 + $0x20] sm:$0xf]
  %v1373 = vld [vmem:[%s1363 + $0x24] sm:$0xf]
  %v1374 = vld [vmem:[%s1363 + $0x28] sm:$0xf]
  %v1375 = vld [vmem:[%s1363 + $0x2c] sm:$0xf]
  %v1376 = vld [vmem:[%s1363 + $0x30] sm:$0xf]
  %v1377 = vld [vmem:[%s1363 + $0x34] sm:$0xf]
  %v1378 = vld [vmem:[%s1363 + $0x38] sm:$0xf]
  %v1379 = vld [vmem:[%s1363 + $0x3c] sm:$0xf]
  %s1380 = scalar_lea.vmem %s83, 64
  %v1381 = vld [vmem:[%s1380] sm:$0xf]
  %v1382 = vld [vmem:[%s1380 + $0x4] sm:$0xf]
  %v1383 = vld [vmem:[%s1380 + $0x8] sm:$0xf]
  %v1384 = vld [vmem:[%s1380 + $0xc] sm:$0xf]
  %v1385 = vld [vmem:[%s1380 + $0x10] sm:$0xf]
  %v1386 = vld [vmem:[%s1380 + $0x14] sm:$0xf]
  %v1387 = vld [vmem:[%s1380 + $0x18] sm:$0xf]
  %v1388 = vld [vmem:[%s1380 + $0x1c] sm:$0xf]
  %v1389 = vld [vmem:[%s1380 + $0x20] sm:$0xf]
  %v1390 = vld [vmem:[%s1380 + $0x24] sm:$0xf]
  %v1391 = vld [vmem:[%s1380 + $0x28] sm:$0xf]
  %v1392 = vld [vmem:[%s1380 + $0x2c] sm:$0xf]
  %v1393 = vld [vmem:[%s1380 + $0x30] sm:$0xf]
  %v1394 = vld [vmem:[%s1380 + $0x34] sm:$0xf]
  %v1395 = vld [vmem:[%s1380 + $0x38] sm:$0xf]
  %v1396 = vld [vmem:[%s1380 + $0x3c] sm:$0xf]
  %s1397 = scalar_lea.vmem %s79, 16
  %v1398 = vld [vmem:[%s1397] sm:$0xf]
  %v1399 = vld [vmem:[%s1397 + $0x4] sm:$0xf]
  %v1400 = vld [vmem:[%s1397 + $0x8] sm:$0xf]
  %v1401 = vld [vmem:[%s1397 + $0xc] sm:$0xf]
  %v1402 = vpack.c.bf16 %v1345, %v1344
  %v1407 = vunpack.c.l.b16 %v1347
  %v1408 = vunpack.c.l.b16 %v1348
  %v1409 = vunpack.c.l.b16 %v1349
  %v1410 = vunpack.c.l.b16 %v1350
  %v1411 = vpack.c.b16 %v1408, %v1407
  %v1412 = vpack.c.b16 %v1410, %v1409
  %v1416 = vsel %vm189, %v1402, 0
  %1418 = vmatpush.bf16.msra.mxu0 0
  %1419 = vmatpush.bf16.msra.mxu0 0
  %1420 = vmatpush.bf16.msra.mxu0 0
  %1421 = vmatpush.bf16.msra.mxu0 0
  %1422 = vmatpush.bf16.msra.mxu0 0
  %1423 = vmatpush.bf16.msra.mxu0 0
  %1424 = vmatpush.bf16.msra.mxu0 %v1412
  %1425 = vmatpush.bf16.msra.mxu0 %v1411
  %1426 = vmatmul.bf16.gmra.mxu0 %v1416
  %v1427 = vpop.f32.mrf.mxu0
  %v1428 = vadd.f32 0.0, %v1427
  %v1429 = vpop.f32.mrf.mxu0
  %v1430 = vadd.f32 0.0, %v1429
  %1431 = vdwg.mxu0
  %v1436 = vunpack.c.l.b16 %v1364
  %v1437 = vunpack.c.l.b16 %v1365
  %v1438 = vunpack.c.l.b16 %v1366
  %v1439 = vunpack.c.l.b16 %v1367
  %v1440 = vpack.c.b16 %v1437, %v1436
  %v1441 = vpack.c.b16 %v1439, %v1438
  %1444 = vmatpush.bf16.msra.mxu0 0
  %1445 = vmatpush.bf16.msra.mxu0 0
  %1446 = vmatpush.bf16.msra.mxu0 0
  %1447 = vmatpush.bf16.msra.mxu0 0
  %1448 = vmatpush.bf16.msra.mxu0 0
  %1449 = vmatpush.bf16.msra.mxu0 0
  %1450 = vmatpush.bf16.msra.mxu0 %v1441
  %1451 = vmatpush.bf16.msra.mxu0 %v1440
  %1452 = vmatmul.bf16.gmra.mxu0 %v1416
  %v1453 = vpop.f32.mrf.mxu0
  %v1454 = vadd.f32 0.0, %v1453
  %v1455 = vpop.f32.mrf.mxu0
  %v1456 = vadd.f32 0.0, %v1455
  %1457 = vdwg.mxu0
  %v1462 = vunpack.c.l.b16 %v1381
  %v1463 = vunpack.c.l.b16 %v1382
  %v1464 = vunpack.c.l.b16 %v1383
  %v1465 = vunpack.c.l.b16 %v1384
  %v1466 = vpack.c.b16 %v1463, %v1462
  %v1467 = vpack.c.b16 %v1465, %v1464
  %1470 = vmatpush.bf16.msra.mxu0 0
  %1471 = vmatpush.bf16.msra.mxu0 0
  %1472 = vmatpush.bf16.msra.mxu0 0
  %1473 = vmatpush.bf16.msra.mxu0 0
  %1474 = vmatpush.bf16.msra.mxu0 0
  %1475 = vmatpush.bf16.msra.mxu0 0
  %1476 = vmatpush.bf16.msra.mxu0 %v1467
  %1477 = vmatpush.bf16.msra.mxu0 %v1466
  %1478 = vmatmul.bf16.gmra.mxu0 %v1416
  %v1479 = vpop.f32.mrf.mxu0
  %v1480 = vadd.f32 0.0, %v1479
  %v1481 = vpop.f32.mrf.mxu0
  %v1482 = vadd.f32 0.0, %v1481
  %1483 = vdwg.mxu0
  %v1484 = vpack.c.bf16 %v1428, %v1428
  %v1485 = vpack.c.bf16 %v1430, %v1430
  %v1486 = vpack.c.bf16 %v1454, %v1454
  %v1487 = vpack.c.bf16 %v1456, %v1456
  %v1488 = vpack.c.bf16 %v1480, %v1480
  %v1489 = vpack.c.bf16 %v1482, %v1482
  %v1491 = vsel %vm391, %v1484, 0
  %v1494 = vsel %vm391, %v1486, 0
  %1496 = vmatpush.bf16.xpose.msra.mxu0 0
  %1497 = vmatpush.bf16.xpose.msra.mxu0 0
  %1498 = vmatpush.bf16.xpose.msra.mxu0 0
  %1499 = vmatpush.bf16.xpose.msra.mxu0 0
  %1500 = vmatpush.bf16.xpose.msra.mxu0 0
  %1501 = vmatpush.bf16.xpose.msra.mxu0 0
  %1502 = vmatpush.bf16.xpose.msra.mxu0 0
  %1503 = vmatpush.bf16.xpose.msra.mxu0 %v1494
  %1504 = vmatmul.bf16.gmra.mxu0 %v1491
  %v1505 = vpop.f32.mrf.mxu0
  %v1506 = vadd.f32 %v183, %v1505
  %v1507 = vpop.f32.mrf.mxu0
  %1508 = vdwg.mxu0
  %v1510 = vsel %vm391, %v1485, 0
  %v1513 = vsel %vm391, %v1487, 0
  %1515 = vmatpush.bf16.xpose.msra.mxu0 0
  %1516 = vmatpush.bf16.xpose.msra.mxu0 0
  %1517 = vmatpush.bf16.xpose.msra.mxu0 0
  %1518 = vmatpush.bf16.xpose.msra.mxu0 0
  %1519 = vmatpush.bf16.xpose.msra.mxu0 0
  %1520 = vmatpush.bf16.xpose.msra.mxu0 0
  %1521 = vmatpush.bf16.xpose.msra.mxu0 0
  %1522 = vmatpush.bf16.xpose.msra.mxu0 %v1513
  %1523 = vmatmul.bf16.gmra.mxu0 %v1510
  %v1524 = vpop.f32.mrf.mxu0
  %v1525 = vadd.f32 %v184, %v1524
  %v1526 = vpop.f32.mrf.mxu0
  %1527 = vdwg.mxu0
  %v1528 = vsel %vm391, %v1506, -inf
  %1529 = vmax.xlane.f32.xlu0 %v1528
  %v1530 = vpop.xlane.xlu0 %1529
  %v1531 = vsel %vm391, %v1525, -inf
  %1532 = vmax.xlane.f32.xlu0 %v1531
  %v1533 = vpop.xlane.xlu0 %1532
  %v1534 = vsub.f32 %v1506, %v1530
  %v1535 = vsub.f32 %v1525, %v1533
  %v1536 = vmul.f32 %v1534, 1.442695
  %v1537 = vpow.pop %v1536
  %v1538 = vmul.f32 %v1535, 1.442695
  %v1539 = vpow.pop %v1538
  %v1540 = vsel %vm391, %v1537, 0.0
  %1541 = vadd.xlane.f32.xlu0 %v1540
  %v1542 = vpop.xlane.xlu0 %1541
  %v1543 = vsel %vm391, %v1539, 0.0
  %1544 = vadd.xlane.f32.xlu0 %v1543
  %v1545 = vpop.xlane.xlu0 %1544
  %v1546 = vrcp.pop %v1542
  %v1547 = vrcp.pop %v1545
  %v1548 = vmul.f32 %v1537, %v1546
  %v1549 = vmul.f32 %v1539, %v1547
  %v1550 = vpack.c.bf16 %v1548, %v1548
  %v1551 = vpack.c.bf16 %v1549, %v1549
  %v1553 = vsel %vm391, %v1550, 0
  %v1556 = vsel %vm457, %v1488, 0
  %1558 = vmatpush.bf16.msra.mxu0 0
  %1559 = vmatpush.bf16.msra.mxu0 0
  %1560 = vmatpush.bf16.msra.mxu0 0
  %1561 = vmatpush.bf16.msra.mxu0 0
  %1562 = vmatpush.bf16.msra.mxu0 0
  %1563 = vmatpush.bf16.msra.mxu0 0
  %1564 = vmatpush.bf16.msra.mxu0 0
  %1565 = vmatpush.bf16.msra.mxu0 %v1556
  %1566 = vmatmul.bf16.gmra.mxu0 %v1553
  %v1567 = vpop.f32.mrf.mxu0
  %v1568 = vadd.f32 0.0, %v1567
  %v1569 = vpop.f32.mrf.mxu0
  %1570 = vdwg.mxu0
  %v1572 = vsel %vm391, %v1551, 0
  %v1575 = vsel %vm457, %v1489, 0
  %1577 = vmatpush.bf16.msra.mxu0 0
  %1578 = vmatpush.bf16.msra.mxu0 0
  %1579 = vmatpush.bf16.msra.mxu0 0
  %1580 = vmatpush.bf16.msra.mxu0 0
  %1581 = vmatpush.bf16.msra.mxu0 0
  %1582 = vmatpush.bf16.msra.mxu0 0
  %1583 = vmatpush.bf16.msra.mxu0 0
  %1584 = vmatpush.bf16.msra.mxu0 %v1575
  %1585 = vmatmul.bf16.gmra.mxu0 %v1572
  %v1586 = vpop.f32.mrf.mxu0
  %v1587 = vadd.f32 0.0, %v1586
  %v1588 = vpop.f32.mrf.mxu0
  %1589 = vdwg.mxu0
  %v1590 = vpack.c.bf16 %v1587, %v1568
  %v1595 = vunpack.c.l.b16 %v1351
  %v1596 = vunpack.c.l.b16 %v1352
  %v1597 = vunpack.c.l.b16 %v1353
  %v1598 = vunpack.c.l.b16 %v1354
  %v1599 = vpack.c.b16 %v1596, %v1595
  %v1600 = vpack.c.b16 %v1598, %v1597
  %1603 = vmatpush.bf16.msra.mxu0 0
  %1604 = vmatpush.bf16.msra.mxu0 0
  %1605 = vmatpush.bf16.msra.mxu0 0
  %1606 = vmatpush.bf16.msra.mxu0 0
  %1607 = vmatpush.bf16.msra.mxu0 0
  %1608 = vmatpush.bf16.msra.mxu0 0
  %1609 = vmatpush.bf16.msra.mxu0 %v1600
  %1610 = vmatpush.bf16.msra.mxu0 %v1599
  %1611 = vmatmul.bf16.gmra.mxu0 %v1416
  %v1612 = vpop.f32.mrf.mxu0
  %v1613 = vadd.f32 0.0, %v1612
  %v1614 = vpop.f32.mrf.mxu0
  %v1615 = vadd.f32 0.0, %v1614
  %1616 = vdwg.mxu0
  %v1621 = vunpack.c.l.b16 %v1368
  %v1622 = vunpack.c.l.b16 %v1369
  %v1623 = vunpack.c.l.b16 %v1370
  %v1624 = vunpack.c.l.b16 %v1371
  %v1625 = vpack.c.b16 %v1622, %v1621
  %v1626 = vpack.c.b16 %v1624, %v1623
  %1629 = vmatpush.bf16.msra.mxu0 0
  %1630 = vmatpush.bf16.msra.mxu0 0
  %1631 = vmatpush.bf16.msra.mxu0 0
  %1632 = vmatpush.bf16.msra.mxu0 0
  %1633 = vmatpush.bf16.msra.mxu0 0
  %1634 = vmatpush.bf16.msra.mxu0 0
  %1635 = vmatpush.bf16.msra.mxu0 %v1626
  %1636 = vmatpush.bf16.msra.mxu0 %v1625
  %1637 = vmatmul.bf16.gmra.mxu0 %v1416
  %v1638 = vpop.f32.mrf.mxu0
  %v1639 = vadd.f32 0.0, %v1638
  %v1640 = vpop.f32.mrf.mxu0
  %v1641 = vadd.f32 0.0, %v1640
  %1642 = vdwg.mxu0
  %v1647 = vunpack.c.l.b16 %v1385
  %v1648 = vunpack.c.l.b16 %v1386
  %v1649 = vunpack.c.l.b16 %v1387
  %v1650 = vunpack.c.l.b16 %v1388
  %v1651 = vpack.c.b16 %v1648, %v1647
  %v1652 = vpack.c.b16 %v1650, %v1649
  %1655 = vmatpush.bf16.msra.mxu0 0
  %1656 = vmatpush.bf16.msra.mxu0 0
  %1657 = vmatpush.bf16.msra.mxu0 0
  %1658 = vmatpush.bf16.msra.mxu0 0
  %1659 = vmatpush.bf16.msra.mxu0 0
  %1660 = vmatpush.bf16.msra.mxu0 0
  %1661 = vmatpush.bf16.msra.mxu0 %v1652
  %1662 = vmatpush.bf16.msra.mxu0 %v1651
  %1663 = vmatmul.bf16.gmra.mxu0 %v1416
  %v1664 = vpop.f32.mrf.mxu0
  %v1665 = vadd.f32 0.0, %v1664
  %v1666 = vpop.f32.mrf.mxu0
  %v1667 = vadd.f32 0.0, %v1666
  %1668 = vdwg.mxu0
  %v1669 = vpack.c.bf16 %v1613, %v1613
  %v1670 = vpack.c.bf16 %v1615, %v1615
  %v1671 = vpack.c.bf16 %v1639, %v1639
  %v1672 = vpack.c.bf16 %v1641, %v1641
  %v1673 = vpack.c.bf16 %v1665, %v1665
  %v1674 = vpack.c.bf16 %v1667, %v1667
  %v1676 = vsel %vm391, %v1669, 0
  %v1679 = vsel %vm391, %v1671, 0
  %1681 = vmatpush.bf16.xpose.msra.mxu0 0
  %1682 = vmatpush.bf16.xpose.msra.mxu0 0
  %1683 = vmatpush.bf16.xpose.msra.mxu0 0
  %1684 = vmatpush.bf16.xpose.msra.mxu0 0
  %1685 = vmatpush.bf16.xpose.msra.mxu0 0
  %1686 = vmatpush.bf16.xpose.msra.mxu0 0
  %1687 = vmatpush.bf16.xpose.msra.mxu0 0
  %1688 = vmatpush.bf16.xpose.msra.mxu0 %v1679
  %1689 = vmatmul.bf16.gmra.mxu0 %v1676
  %v1690 = vpop.f32.mrf.mxu0
  %v1691 = vadd.f32 %v183, %v1690
  %v1692 = vpop.f32.mrf.mxu0
  %1693 = vdwg.mxu0
  %v1695 = vsel %vm391, %v1670, 0
  %v1698 = vsel %vm391, %v1672, 0
  %1700 = vmatpush.bf16.xpose.msra.mxu0 0
  %1701 = vmatpush.bf16.xpose.msra.mxu0 0
  %1702 = vmatpush.bf16.xpose.msra.mxu0 0
  %1703 = vmatpush.bf16.xpose.msra.mxu0 0
  %1704 = vmatpush.bf16.xpose.msra.mxu0 0
  %1705 = vmatpush.bf16.xpose.msra.mxu0 0
  %1706 = vmatpush.bf16.xpose.msra.mxu0 0
  %1707 = vmatpush.bf16.xpose.msra.mxu0 %v1698
  %1708 = vmatmul.bf16.gmra.mxu0 %v1695
  %v1709 = vpop.f32.mrf.mxu0
  %v1710 = vadd.f32 %v184, %v1709
  %v1711 = vpop.f32.mrf.mxu0
  %1712 = vdwg.mxu0
  %v1713 = vsel %vm391, %v1691, -inf
  %1714 = vmax.xlane.f32.xlu0 %v1713
  %v1715 = vpop.xlane.xlu0 %1714
  %v1716 = vsel %vm391, %v1710, -inf
  %1717 = vmax.xlane.f32.xlu0 %v1716
  %v1718 = vpop.xlane.xlu0 %1717
  %v1719 = vsub.f32 %v1691, %v1715
  %v1720 = vsub.f32 %v1710, %v1718
  %v1721 = vmul.f32 %v1719, 1.442695
  %v1722 = vpow.pop %v1721
  %v1723 = vmul.f32 %v1720, 1.442695
  %v1724 = vpow.pop %v1723
  %v1725 = vsel %vm391, %v1722, 0.0
  %1726 = vadd.xlane.f32.xlu0 %v1725
  %v1727 = vpop.xlane.xlu0 %1726
  %v1728 = vsel %vm391, %v1724, 0.0
  %1729 = vadd.xlane.f32.xlu0 %v1728
  %v1730 = vpop.xlane.xlu0 %1729
  %v1731 = vrcp.pop %v1727
  %v1732 = vrcp.pop %v1730
  %v1733 = vmul.f32 %v1722, %v1731
  %v1734 = vmul.f32 %v1724, %v1732
  %v1735 = vpack.c.bf16 %v1733, %v1733
  %v1736 = vpack.c.bf16 %v1734, %v1734
  %v1738 = vsel %vm391, %v1735, 0
  %v1741 = vsel %vm457, %v1673, 0
  %1743 = vmatpush.bf16.msra.mxu0 0
  %1744 = vmatpush.bf16.msra.mxu0 0
  %1745 = vmatpush.bf16.msra.mxu0 0
  %1746 = vmatpush.bf16.msra.mxu0 0
  %1747 = vmatpush.bf16.msra.mxu0 0
  %1748 = vmatpush.bf16.msra.mxu0 0
  %1749 = vmatpush.bf16.msra.mxu0 0
  %1750 = vmatpush.bf16.msra.mxu0 %v1741
  %1751 = vmatmul.bf16.gmra.mxu0 %v1738
  %v1752 = vpop.f32.mrf.mxu0
  %v1753 = vadd.f32 0.0, %v1752
  %v1754 = vpop.f32.mrf.mxu0
  %1755 = vdwg.mxu0
  %v1757 = vsel %vm391, %v1736, 0
  %v1760 = vsel %vm457, %v1674, 0
  %1762 = vmatpush.bf16.msra.mxu0 0
  %1763 = vmatpush.bf16.msra.mxu0 0
  %1764 = vmatpush.bf16.msra.mxu0 0
  %1765 = vmatpush.bf16.msra.mxu0 0
  %1766 = vmatpush.bf16.msra.mxu0 0
  %1767 = vmatpush.bf16.msra.mxu0 0
  %1768 = vmatpush.bf16.msra.mxu0 0
  %1769 = vmatpush.bf16.msra.mxu0 %v1760
  %1770 = vmatmul.bf16.gmra.mxu0 %v1757
  %v1771 = vpop.f32.mrf.mxu0
  %v1772 = vadd.f32 0.0, %v1771
  %v1773 = vpop.f32.mrf.mxu0
  %1774 = vdwg.mxu0
  %v1775 = vpack.c.bf16 %v1772, %v1753
  %v1777 = vsel %vm391, %v1775, 0
  %v1780 = vsel %vm457, %v1399, 0
  %1782 = vmatpush.bf16.msra.mxu0 0
  %1783 = vmatpush.bf16.msra.mxu0 0
  %1784 = vmatpush.bf16.msra.mxu0 0
  %1785 = vmatpush.bf16.msra.mxu0 0
  %1786 = vmatpush.bf16.msra.mxu0 0
  %1787 = vmatpush.bf16.msra.mxu0 0
  %1788 = vmatpush.bf16.msra.mxu0 0
  %1789 = vmatpush.bf16.msra.mxu0 %v1780
  %1790 = vmatmul.bf16.gmra.mxu0 %v1777
  %v1791 = vpop.f32.mrf.mxu0
  %v1792 = vadd.f32 0.0, %v1791
  %v1793 = vpop.f32.mrf.mxu0
  %v1794 = vadd.f32 0.0, %v1793
  %1795 = vdwg.mxu0
  %v1797 = vsel %vm391, %v1590, 0
  %v1800 = vsel %vm457, %v1398, 0
  %1802 = vmatpush.bf16.msra.mxu0 0
  %1803 = vmatpush.bf16.msra.mxu0 0
  %1804 = vmatpush.bf16.msra.mxu0 0
  %1805 = vmatpush.bf16.msra.mxu0 0
  %1806 = vmatpush.bf16.msra.mxu0 0
  %1807 = vmatpush.bf16.msra.mxu0 0
  %1808 = vmatpush.bf16.msra.mxu0 0
  %1809 = vmatpush.bf16.msra.mxu0 %v1800
  %1810 = vmatmul.bf16.gmra.mxu0 %v1797
  %v1811 = vpop.f32.mrf.mxu0
  %v1812 = vadd.f32 %v1792, %v1811
  %v1813 = vpop.f32.mrf.mxu0
  %v1814 = vadd.f32 %v1794, %v1813
  %1815 = vdwg.mxu0
  %v1820 = vunpack.c.l.b16 %v1355
  %v1821 = vunpack.c.l.b16 %v1356
  %v1822 = vunpack.c.l.b16 %v1357
  %v1823 = vunpack.c.l.b16 %v1358
  %v1824 = vpack.c.b16 %v1821, %v1820
  %v1825 = vpack.c.b16 %v1823, %v1822
  %1828 = vmatpush.bf16.msra.mxu0 0
  %1829 = vmatpush.bf16.msra.mxu0 0
  %1830 = vmatpush.bf16.msra.mxu0 0
  %1831 = vmatpush.bf16.msra.mxu0 0
  %1832 = vmatpush.bf16.msra.mxu0 0
  %1833 = vmatpush.bf16.msra.mxu0 0
  %1834 = vmatpush.bf16.msra.mxu0 %v1825
  %1835 = vmatpush.bf16.msra.mxu0 %v1824
  %1836 = vmatmul.bf16.gmra.mxu0 %v1416
  %v1837 = vpop.f32.mrf.mxu0
  %v1838 = vadd.f32 0.0, %v1837
  %v1839 = vpop.f32.mrf.mxu0
  %v1840 = vadd.f32 0.0, %v1839
  %1841 = vdwg.mxu0
  %v1846 = vunpack.c.l.b16 %v1372
  %v1847 = vunpack.c.l.b16 %v1373
  %v1848 = vunpack.c.l.b16 %v1374
  %v1849 = vunpack.c.l.b16 %v1375
  %v1850 = vpack.c.b16 %v1847, %v1846
  %v1851 = vpack.c.b16 %v1849, %v1848
  %1854 = vmatpush.bf16.msra.mxu0 0
  %1855 = vmatpush.bf16.msra.mxu0 0
  %1856 = vmatpush.bf16.msra.mxu0 0
  %1857 = vmatpush.bf16.msra.mxu0 0
  %1858 = vmatpush.bf16.msra.mxu0 0
  %1859 = vmatpush.bf16.msra.mxu0 0
  %1860 = vmatpush.bf16.msra.mxu0 %v1851
  %1861 = vmatpush.bf16.msra.mxu0 %v1850
  %1862 = vmatmul.bf16.gmra.mxu0 %v1416
  %v1863 = vpop.f32.mrf.mxu0
  %v1864 = vadd.f32 0.0, %v1863
  %v1865 = vpop.f32.mrf.mxu0
  %v1866 = vadd.f32 0.0, %v1865
  %1867 = vdwg.mxu0
  %v1872 = vunpack.c.l.b16 %v1389
  %v1873 = vunpack.c.l.b16 %v1390
  %v1874 = vunpack.c.l.b16 %v1391
  %v1875 = vunpack.c.l.b16 %v1392
  %v1876 = vpack.c.b16 %v1873, %v1872
  %v1877 = vpack.c.b16 %v1875, %v1874
  %1880 = vmatpush.bf16.msra.mxu0 0
  %1881 = vmatpush.bf16.msra.mxu0 0
  %1882 = vmatpush.bf16.msra.mxu0 0
  %1883 = vmatpush.bf16.msra.mxu0 0
  %1884 = vmatpush.bf16.msra.mxu0 0
  %1885 = vmatpush.bf16.msra.mxu0 0
  %1886 = vmatpush.bf16.msra.mxu0 %v1877
  %1887 = vmatpush.bf16.msra.mxu0 %v1876
  %1888 = vmatmul.bf16.gmra.mxu0 %v1416
  %v1889 = vpop.f32.mrf.mxu0
  %v1890 = vadd.f32 0.0, %v1889
  %v1891 = vpop.f32.mrf.mxu0
  %v1892 = vadd.f32 0.0, %v1891
  %1893 = vdwg.mxu0
  %v1894 = vpack.c.bf16 %v1838, %v1838
  %v1895 = vpack.c.bf16 %v1840, %v1840
  %v1896 = vpack.c.bf16 %v1864, %v1864
  %v1897 = vpack.c.bf16 %v1866, %v1866
  %v1898 = vpack.c.bf16 %v1890, %v1890
  %v1899 = vpack.c.bf16 %v1892, %v1892
  %v1901 = vsel %vm391, %v1894, 0
  %v1904 = vsel %vm391, %v1896, 0
  %1906 = vmatpush.bf16.xpose.msra.mxu0 0
  %1907 = vmatpush.bf16.xpose.msra.mxu0 0
  %1908 = vmatpush.bf16.xpose.msra.mxu0 0
  %1909 = vmatpush.bf16.xpose.msra.mxu0 0
  %1910 = vmatpush.bf16.xpose.msra.mxu0 0
  %1911 = vmatpush.bf16.xpose.msra.mxu0 0
  %1912 = vmatpush.bf16.xpose.msra.mxu0 0
  %1913 = vmatpush.bf16.xpose.msra.mxu0 %v1904
  %1914 = vmatmul.bf16.gmra.mxu0 %v1901
  %v1915 = vpop.f32.mrf.mxu0
  %v1916 = vadd.f32 %v183, %v1915
  %v1917 = vpop.f32.mrf.mxu0
  %1918 = vdwg.mxu0
  %v1920 = vsel %vm391, %v1895, 0
  %v1923 = vsel %vm391, %v1897, 0
  %1925 = vmatpush.bf16.xpose.msra.mxu0 0
  %1926 = vmatpush.bf16.xpose.msra.mxu0 0
  %1927 = vmatpush.bf16.xpose.msra.mxu0 0
  %1928 = vmatpush.bf16.xpose.msra.mxu0 0
  %1929 = vmatpush.bf16.xpose.msra.mxu0 0
  %1930 = vmatpush.bf16.xpose.msra.mxu0 0
  %1931 = vmatpush.bf16.xpose.msra.mxu0 0
  %1932 = vmatpush.bf16.xpose.msra.mxu0 %v1923
  %1933 = vmatmul.bf16.gmra.mxu0 %v1920
  %v1934 = vpop.f32.mrf.mxu0
  %v1935 = vadd.f32 %v184, %v1934
  %v1936 = vpop.f32.mrf.mxu0
  %1937 = vdwg.mxu0
  %v1938 = vsel %vm391, %v1916, -inf
  %1939 = vmax.xlane.f32.xlu0 %v1938
  %v1940 = vpop.xlane.xlu0 %1939
  %v1941 = vsel %vm391, %v1935, -inf
  %1942 = vmax.xlane.f32.xlu0 %v1941
  %v1943 = vpop.xlane.xlu0 %1942
  %v1944 = vsub.f32 %v1916, %v1940
  %v1945 = vsub.f32 %v1935, %v1943
  %v1946 = vmul.f32 %v1944, 1.442695
  %v1947 = vpow.pop %v1946
  %v1948 = vmul.f32 %v1945, 1.442695
  %v1949 = vpow.pop %v1948
  %v1950 = vsel %vm391, %v1947, 0.0
  %1951 = vadd.xlane.f32.xlu0 %v1950
  %v1952 = vpop.xlane.xlu0 %1951
  %v1953 = vsel %vm391, %v1949, 0.0
  %1954 = vadd.xlane.f32.xlu0 %v1953
  %v1955 = vpop.xlane.xlu0 %1954
  %v1956 = vrcp.pop %v1952
  %v1957 = vrcp.pop %v1955
  %v1958 = vmul.f32 %v1947, %v1956
  %v1959 = vmul.f32 %v1949, %v1957
  %v1960 = vpack.c.bf16 %v1958, %v1958
  %v1961 = vpack.c.bf16 %v1959, %v1959
  %v1963 = vsel %vm391, %v1960, 0
  %v1966 = vsel %vm457, %v1898, 0
  %1968 = vmatpush.bf16.msra.mxu0 0
  %1969 = vmatpush.bf16.msra.mxu0 0
  %1970 = vmatpush.bf16.msra.mxu0 0
  %1971 = vmatpush.bf16.msra.mxu0 0
  %1972 = vmatpush.bf16.msra.mxu0 0
  %1973 = vmatpush.bf16.msra.mxu0 0
  %1974 = vmatpush.bf16.msra.mxu0 0
  %1975 = vmatpush.bf16.msra.mxu0 %v1966
  %1976 = vmatmul.bf16.gmra.mxu0 %v1963
  %v1977 = vpop.f32.mrf.mxu0
  %v1978 = vadd.f32 0.0, %v1977
  %v1979 = vpop.f32.mrf.mxu0
  %1980 = vdwg.mxu0
  %v1982 = vsel %vm391, %v1961, 0
  %v1985 = vsel %vm457, %v1899, 0
  %1987 = vmatpush.bf16.msra.mxu0 0
  %1988 = vmatpush.bf16.msra.mxu0 0
  %1989 = vmatpush.bf16.msra.mxu0 0
  %1990 = vmatpush.bf16.msra.mxu0 0
  %1991 = vmatpush.bf16.msra.mxu0 0
  %1992 = vmatpush.bf16.msra.mxu0 0
  %1993 = vmatpush.bf16.msra.mxu0 0
  %1994 = vmatpush.bf16.msra.mxu0 %v1985
  %1995 = vmatmul.bf16.gmra.mxu0 %v1982
  %v1996 = vpop.f32.mrf.mxu0
  %v1997 = vadd.f32 0.0, %v1996
  %v1998 = vpop.f32.mrf.mxu0
  %1999 = vdwg.mxu0
  %v2000 = vpack.c.bf16 %v1997, %v1978
  %v2002 = vsel %vm391, %v2000, 0
  %v2005 = vsel %vm457, %v1400, 0
  %2007 = vmatpush.bf16.msra.mxu0 0
  %2008 = vmatpush.bf16.msra.mxu0 0
  %2009 = vmatpush.bf16.msra.mxu0 0
  %2010 = vmatpush.bf16.msra.mxu0 0
  %2011 = vmatpush.bf16.msra.mxu0 0
  %2012 = vmatpush.bf16.msra.mxu0 0
  %2013 = vmatpush.bf16.msra.mxu0 0
  %2014 = vmatpush.bf16.msra.mxu0 %v2005
  %2015 = vmatmul.bf16.gmra.mxu0 %v2002
  %v2016 = vpop.f32.mrf.mxu0
  %v2017 = vadd.f32 0.0, %v2016
  %v2018 = vpop.f32.mrf.mxu0
  %v2019 = vadd.f32 0.0, %v2018
  %2020 = vdwg.mxu0
  %v2021 = vadd.f32 %v1812, %v2017
  %v2022 = vadd.f32 %v1814, %v2019
  %v2027 = vunpack.c.l.b16 %v1359
  %v2028 = vunpack.c.l.b16 %v1360
  %v2029 = vunpack.c.l.b16 %v1361
  %v2030 = vunpack.c.l.b16 %v1362
  %v2031 = vpack.c.b16 %v2028, %v2027
  %v2032 = vpack.c.b16 %v2030, %v2029
  %2035 = vmatpush.bf16.msra.mxu0 0
  %2036 = vmatpush.bf16.msra.mxu0 0
  %2037 = vmatpush.bf16.msra.mxu0 0
  %2038 = vmatpush.bf16.msra.mxu0 0
  %2039 = vmatpush.bf16.msra.mxu0 0
  %2040 = vmatpush.bf16.msra.mxu0 0
  %2041 = vmatpush.bf16.msra.mxu0 %v2032
  %2042 = vmatpush.bf16.msra.mxu0 %v2031
  %2043 = vmatmul.bf16.gmra.mxu0 %v1416
  %v2044 = vpop.f32.mrf.mxu0
  %v2045 = vadd.f32 0.0, %v2044
  %v2046 = vpop.f32.mrf.mxu0
  %v2047 = vadd.f32 0.0, %v2046
  %2048 = vdwg.mxu0
  %v2053 = vunpack.c.l.b16 %v1376
  %v2054 = vunpack.c.l.b16 %v1377
  %v2055 = vunpack.c.l.b16 %v1378
  %v2056 = vunpack.c.l.b16 %v1379
  %v2057 = vpack.c.b16 %v2054, %v2053
  %v2058 = vpack.c.b16 %v2056, %v2055
  %2061 = vmatpush.bf16.msra.mxu0 0
  %2062 = vmatpush.bf16.msra.mxu0 0
  %2063 = vmatpush.bf16.msra.mxu0 0
  %2064 = vmatpush.bf16.msra.mxu0 0
  %2065 = vmatpush.bf16.msra.mxu0 0
  %2066 = vmatpush.bf16.msra.mxu0 0
  %2067 = vmatpush.bf16.msra.mxu0 %v2058
  %2068 = vmatpush.bf16.msra.mxu0 %v2057
  %2069 = vmatmul.bf16.gmra.mxu0 %v1416
  %v2070 = vpop.f32.mrf.mxu0
  %v2071 = vadd.f32 0.0, %v2070
  %v2072 = vpop.f32.mrf.mxu0
  %v2073 = vadd.f32 0.0, %v2072
  %2074 = vdwg.mxu0
  %v2079 = vunpack.c.l.b16 %v1393
  %v2080 = vunpack.c.l.b16 %v1394
  %v2081 = vunpack.c.l.b16 %v1395
  %v2082 = vunpack.c.l.b16 %v1396
  %v2083 = vpack.c.b16 %v2080, %v2079
  %v2084 = vpack.c.b16 %v2082, %v2081
  %2087 = vmatpush.bf16.msra.mxu0 0
  %2088 = vmatpush.bf16.msra.mxu0 0
  %2089 = vmatpush.bf16.msra.mxu0 0
  %2090 = vmatpush.bf16.msra.mxu0 0
  %2091 = vmatpush.bf16.msra.mxu0 0
  %2092 = vmatpush.bf16.msra.mxu0 0
  %2093 = vmatpush.bf16.msra.mxu0 %v2084
  %2094 = vmatpush.bf16.msra.mxu0 %v2083
  %2095 = vmatmul.bf16.gmra.mxu0 %v1416
  %v2096 = vpop.f32.mrf.mxu0
  %v2097 = vadd.f32 0.0, %v2096
  %v2098 = vpop.f32.mrf.mxu0
  %v2099 = vadd.f32 0.0, %v2098
  %2100 = vdwg.mxu0
  %v2101 = vpack.c.bf16 %v2045, %v2045
  %v2102 = vpack.c.bf16 %v2047, %v2047
  %v2103 = vpack.c.bf16 %v2071, %v2071
  %v2104 = vpack.c.bf16 %v2073, %v2073
  %v2105 = vpack.c.bf16 %v2097, %v2097
  %v2106 = vpack.c.bf16 %v2099, %v2099
  %v2108 = vsel %vm391, %v2101, 0
  %v2111 = vsel %vm391, %v2103, 0
  %2113 = vmatpush.bf16.xpose.msra.mxu0 0
  %2114 = vmatpush.bf16.xpose.msra.mxu0 0
  %2115 = vmatpush.bf16.xpose.msra.mxu0 0
  %2116 = vmatpush.bf16.xpose.msra.mxu0 0
  %2117 = vmatpush.bf16.xpose.msra.mxu0 0
  %2118 = vmatpush.bf16.xpose.msra.mxu0 0
  %2119 = vmatpush.bf16.xpose.msra.mxu0 0
  %2120 = vmatpush.bf16.xpose.msra.mxu0 %v2111
  %2121 = vmatmul.bf16.gmra.mxu0 %v2108
  %v2122 = vpop.f32.mrf.mxu0
  %v2123 = vadd.f32 %v183, %v2122
  %v2124 = vpop.f32.mrf.mxu0
  %2125 = vdwg.mxu0
  %v2127 = vsel %vm391, %v2102, 0
  %v2130 = vsel %vm391, %v2104, 0
  %2132 = vmatpush.bf16.xpose.msra.mxu0 0
  %2133 = vmatpush.bf16.xpose.msra.mxu0 0
  %2134 = vmatpush.bf16.xpose.msra.mxu0 0
  %2135 = vmatpush.bf16.xpose.msra.mxu0 0
  %2136 = vmatpush.bf16.xpose.msra.mxu0 0
  %2137 = vmatpush.bf16.xpose.msra.mxu0 0
  %2138 = vmatpush.bf16.xpose.msra.mxu0 0
  %2139 = vmatpush.bf16.xpose.msra.mxu0 %v2130
  %2140 = vmatmul.bf16.gmra.mxu0 %v2127
  %v2141 = vpop.f32.mrf.mxu0
  %v2142 = vadd.f32 %v184, %v2141
  %v2143 = vpop.f32.mrf.mxu0
  %2144 = vdwg.mxu0
  %v2145 = vsel %vm391, %v2123, -inf
  %2146 = vmax.xlane.f32.xlu0 %v2145
  %v2147 = vpop.xlane.xlu0 %2146
  %v2148 = vsel %vm391, %v2142, -inf
  %2149 = vmax.xlane.f32.xlu0 %v2148
  %v2150 = vpop.xlane.xlu0 %2149
  %v2151 = vsub.f32 %v2123, %v2147
  %v2152 = vsub.f32 %v2142, %v2150
  %v2153 = vmul.f32 %v2151, 1.442695
  %v2154 = vpow.pop %v2153
  %v2155 = vmul.f32 %v2152, 1.442695
  %v2156 = vpow.pop %v2155
  %v2157 = vsel %vm391, %v2154, 0.0
  %2158 = vadd.xlane.f32.xlu0 %v2157
  %v2159 = vpop.xlane.xlu0 %2158
  %v2160 = vsel %vm391, %v2156, 0.0
  %2161 = vadd.xlane.f32.xlu0 %v2160
  %v2162 = vpop.xlane.xlu0 %2161
  %v2163 = vrcp.pop %v2159
  %v2164 = vrcp.pop %v2162
  %v2165 = vmul.f32 %v2154, %v2163
  %v2166 = vmul.f32 %v2156, %v2164
  %v2167 = vpack.c.bf16 %v2165, %v2165
  %v2168 = vpack.c.bf16 %v2166, %v2166
  %v2170 = vsel %vm391, %v2167, 0
  %v2173 = vsel %vm457, %v2105, 0
  %2175 = vmatpush.bf16.msra.mxu0 0
  %2176 = vmatpush.bf16.msra.mxu0 0
  %2177 = vmatpush.bf16.msra.mxu0 0
  %2178 = vmatpush.bf16.msra.mxu0 0
  %2179 = vmatpush.bf16.msra.mxu0 0
  %2180 = vmatpush.bf16.msra.mxu0 0
  %2181 = vmatpush.bf16.msra.mxu0 0
  %2182 = vmatpush.bf16.msra.mxu0 %v2173
  %2183 = vmatmul.bf16.gmra.mxu0 %v2170
  %v2184 = vpop.f32.mrf.mxu0
  %v2185 = vadd.f32 0.0, %v2184
  %v2186 = vpop.f32.mrf.mxu0
  %2187 = vdwg.mxu0
  %v2189 = vsel %vm391, %v2168, 0
  %v2192 = vsel %vm457, %v2106, 0
  %2194 = vmatpush.bf16.msra.mxu0 0
  %2195 = vmatpush.bf16.msra.mxu0 0
  %2196 = vmatpush.bf16.msra.mxu0 0
  %2197 = vmatpush.bf16.msra.mxu0 0
  %2198 = vmatpush.bf16.msra.mxu0 0
  %2199 = vmatpush.bf16.msra.mxu0 0
  %2200 = vmatpush.bf16.msra.mxu0 0
  %2201 = vmatpush.bf16.msra.mxu0 %v2192
  %2202 = vmatmul.bf16.gmra.mxu0 %v2189
  %v2203 = vpop.f32.mrf.mxu0
  %v2204 = vadd.f32 0.0, %v2203
  %v2205 = vpop.f32.mrf.mxu0
  %2206 = vdwg.mxu0
  %v2207 = vpack.c.bf16 %v2204, %v2185
  %v2209 = vsel %vm391, %v2207, 0
  %v2212 = vsel %vm457, %v1401, 0
  %2214 = vmatpush.bf16.msra.mxu0 0
  %2215 = vmatpush.bf16.msra.mxu0 0
  %2216 = vmatpush.bf16.msra.mxu0 0
  %2217 = vmatpush.bf16.msra.mxu0 0
  %2218 = vmatpush.bf16.msra.mxu0 0
  %2219 = vmatpush.bf16.msra.mxu0 0
  %2220 = vmatpush.bf16.msra.mxu0 0
  %2221 = vmatpush.bf16.msra.mxu0 %v2212
  %2222 = vmatmul.bf16.gmra.mxu0 %v2209
  %v2223 = vpop.f32.mrf.mxu0
  %v2224 = vadd.f32 0.0, %v2223
  %v2225 = vpop.f32.mrf.mxu0
  %v2226 = vadd.f32 0.0, %v2225
  %2227 = vdwg.mxu0
  %v2228 = vadd.f32 %v2021, %v2224
  %v2229 = vadd.f32 %v2022, %v2226
  %v2230 = vadd.f32 %v1286, %v2228
  %v2231 = vadd.f32 %v1287, %v2229
  %s2232 = scalar_lea.vmem %s71, 1
  %v2233 = vld [vmem:[%s2232] sm:$0x1]
  %s2234 = scalar_lea.vmem %s69, 1
  %v2235 = vld [vmem:[%s2234] sm:$0x1]
  %v2236 = vsel %vm189, %v2230, 0.0
  %2237 = vadd.xlane.f32.xlu0 %v2236
  %v2238 = vpop.xlane.xlu0 %2237
  %v2239 = vsel %vm189, %v2231, 0.0
  %2240 = vadd.xlane.f32.xlu0 %v2239
  %v2241 = vpop.xlane.xlu0 %2240
  %v2242 = vmul.f32 %v2238, %v202
  %v2243 = vmul.f32 %v2241, %v202
  %v2244 = vsub.f32 %v2230, %v2242
  %v2245 = vsub.f32 %v2231, %v2243
  %v2246 = vmul.f32 %v2244, %v2244
  %v2247 = vmul.f32 %v2245, %v2245
  %v2248 = vsel %vm189, %v2246, 0.0
  %2249 = vadd.xlane.f32.xlu0 %v2248
  %v2250 = vpop.xlane.xlu0 %2249
  %v2251 = vsel %vm189, %v2247, 0.0
  %2252 = vadd.xlane.f32.xlu0 %v2251
  %v2253 = vpop.xlane.xlu0 %2252
  %v2254 = vmul.f32 %v2250, %v202
  %v2255 = vmul.f32 %v2253, %v202
  %v2256 = vadd.f32 %v2254, 1e-06
  %v2257 = vadd.f32 %v2255, 1e-06
  %v2258 = vrsqrt.pop %v2256
  %v2259 = vmul.f32 %v2258, %v2256
  %v2260 = vmul.f32 %v2259, %v2258
  %v2261 = vmul.f32 0.5, %v2260
  %v2262 = vsub.f32 1.5, %v2261
  %v2263 = vmul.f32 %v2258, %v2262
  %vm2264 = vweird.f32 %v2256
  %vm2265 = vweird.f32 %v2258
  %vm2266 = vmor %vm2264, %vm2265
  %v2267 = vsel %vm2266, %v2258, %v2263
  %v2268 = vrsqrt.pop %v2257
  %v2269 = vmul.f32 %v2268, %v2257
  %v2270 = vmul.f32 %v2269, %v2268
  %v2271 = vmul.f32 0.5, %v2270
  %v2272 = vsub.f32 1.5, %v2271
  %v2273 = vmul.f32 %v2268, %v2272
  %vm2274 = vweird.f32 %v2257
  %vm2275 = vweird.f32 %v2268
  %vm2276 = vmor %vm2274, %vm2275
  %v2277 = vsel %vm2276, %v2268, %v2273
  %v2278 = vmul.f32 %v2244, %v2267
  %v2279 = vmul.f32 %v2245, %v2277
  %v2281 = vperm.slane %v2233, 0
  %v2283 = vmul.f32 %v2278, %v2281
  %v2284 = vmul.f32 %v2279, %v2281
  %v2286 = vperm.slane %v2235, 0
  %v2288 = vadd.f32 %v2283, %v2286
  %v2289 = vadd.f32 %v2284, %v2286
  %s2290 = scalar_lea.vmem %s73, 16
  %v2291 = vld [vmem:[%s2290] sm:$0xf]
  %v2292 = vld [vmem:[%s2290 + $0x4] sm:$0xf]
  %v2293 = vld [vmem:[%s2290 + $0x8] sm:$0xf]
  %v2294 = vld [vmem:[%s2290 + $0xc] sm:$0xf]
  %s2295 = scalar_lea.vmem %s61, 1
  %v2296 = vld [vmem:[%s2295] sm:$0x1]
  %s2297 = scalar_lea.vmem %s75, 32
  %v2298 = vld [vmem:[%s2297] sm:$0xf]
  %v2299 = vld [vmem:[%s2297 + $0x4] sm:$0xf]
  %v2300 = vld [vmem:[%s2297 + $0x8] sm:$0xf]
  %v2301 = vld [vmem:[%s2297 + $0xc] sm:$0xf]
  %v2302 = vld [vmem:[%s2297 + $0x10] sm:$0xf]
  %v2303 = vld [vmem:[%s2297 + $0x14] sm:$0xf]
  %v2304 = vld [vmem:[%s2297 + $0x18] sm:$0xf]
  %v2305 = vld [vmem:[%s2297 + $0x1c] sm:$0xf]
  %s2306 = scalar_lea.vmem %s63, 1
  %v2307 = vld [vmem:[%s2306] sm:$0x1]
  %v2308 = vpack.c.bf16 %v2289, %v2288
  %v2310 = vperm.slane %v2296, 0
  %v2316 = vunpack.c.l.b16 %v2291
  %v2317 = vunpack.c.l.b16 %v2292
  %v2318 = vunpack.c.l.b16 %v2293
  %v2319 = vunpack.c.l.b16 %v2294
  %v2320 = vpack.c.b16 %v2317, %v2316
  %v2321 = vpack.c.b16 %v2319, %v2318
  %v2325 = vsel %vm189, %v2308, 0
  %2327 = vmatpush.bf16.msra.mxu0 0
  %2328 = vmatpush.bf16.msra.mxu0 0
  %2329 = vmatpush.bf16.msra.mxu0 0
  %2330 = vmatpush.bf16.msra.mxu0 0
  %2331 = vmatpush.bf16.msra.mxu0 0
  %2332 = vmatpush.bf16.msra.mxu0 0
  %2333 = vmatpush.bf16.msra.mxu0 %v2321
  %2334 = vmatpush.bf16.msra.mxu0 %v2320
  %2335 = vmatmul.bf16.gmra.mxu0 %v2325
  %v2336 = vpop.f32.mrf.mxu0
  %v2337 = vadd.f32 %v2310, %v2336
  %v2338 = vpop.f32.mrf.mxu0
  %v2339 = vadd.f32 %v2310, %v2338
  %2340 = vdwg.mxu0
  %v2341 = vmax.f32 %v2337, 0.0
  %v2342 = vmax.f32 %v2339, 0.0
  %v2343 = vpack.c.bf16 %v2342, %v2341
  %v2345 = vperm.slane %v2307, 0
  %v2355 = vunpack.c.l.b16 %v2298
  %v2356 = vunpack.c.l.b16 %v2299
  %v2357 = vunpack.c.l.b16 %v2300
  %v2358 = vunpack.c.l.b16 %v2301
  %v2359 = vunpack.c.l.b16 %v2302
  %v2360 = vunpack.c.l.b16 %v2303
  %v2361 = vunpack.c.l.b16 %v2304
  %v2362 = vunpack.c.l.b16 %v2305
  %v2363 = vpack.c.b16 %v2356, %v2355
  %v2364 = vpack.c.b16 %v2358, %v2357
  %v2365 = vpack.c.b16 %v2360, %v2359
  %v2366 = vpack.c.b16 %v2362, %v2361
  %v2372 = vsel %vm1268, %v2343, 0
  %2374 = vmatpush.bf16.msra.mxu0 0
  %2375 = vmatpush.bf16.msra.mxu0 0
  %2376 = vmatpush.bf16.msra.mxu0 0
  %2377 = vmatpush.bf16.msra.mxu0 0
  %2378 = vmatpush.bf16.msra.mxu0 %v2366
  %2379 = vmatpush.bf16.msra.mxu0 %v2365
  %2380 = vmatpush.bf16.msra.mxu0 %v2364
  %2381 = vmatpush.bf16.msra.mxu0 %v2363
  %2382 = vmatmul.bf16.gmra.mxu0 %v2372
  %v2383 = vpop.f32.mrf.mxu0
  %v2384 = vadd.f32 %v2345, %v2383
  %v2385 = vpop.f32.mrf.mxu0
  %v2386 = vadd.f32 %v2345, %v2385
  %2387 = vdwg.mxu0
  %v2388 = vadd.f32 %v2230, %v2384
  %v2389 = vadd.f32 %v2231, %v2386
  %s2390 = scalar_lea.vmem %s67, 2
  %v2391 = vld [vmem:[%s2390] sm:$0x1]
  %s2392 = scalar_lea.vmem %s65, 2
  %v2393 = vld [vmem:[%s2392] sm:$0x1]
  %v2394 = vsel %vm189, %v2388, 0.0
  %2395 = vadd.xlane.f32.xlu0 %v2394
  %v2396 = vpop.xlane.xlu0 %2395
  %v2397 = vsel %vm189, %v2389, 0.0
  %2398 = vadd.xlane.f32.xlu0 %v2397
  %v2399 = vpop.xlane.xlu0 %2398
  %v2400 = vmul.f32 %v2396, %v202
  %v2401 = vmul.f32 %v2399, %v202
  %v2402 = vsub.f32 %v2388, %v2400
  %v2403 = vsub.f32 %v2389, %v2401
  %v2404 = vmul.f32 %v2402, %v2402
  %v2405 = vmul.f32 %v2403, %v2403
  %v2406 = vsel %vm189, %v2404, 0.0
  %2407 = vadd.xlane.f32.xlu0 %v2406
  %v2408 = vpop.xlane.xlu0 %2407
  %v2409 = vsel %vm189, %v2405, 0.0
  %2410 = vadd.xlane.f32.xlu0 %v2409
  %v2411 = vpop.xlane.xlu0 %2410
  %v2412 = vmul.f32 %v2408, %v202
  %v2413 = vmul.f32 %v2411, %v202
  %v2414 = vadd.f32 %v2412, 1e-06
  %v2415 = vadd.f32 %v2413, 1e-06
  %v2416 = vrsqrt.pop %v2414
  %v2417 = vmul.f32 %v2416, %v2414
  %v2418 = vmul.f32 %v2417, %v2416
  %v2419 = vmul.f32 0.5, %v2418
  %v2420 = vsub.f32 1.5, %v2419
  %v2421 = vmul.f32 %v2416, %v2420
  %vm2422 = vweird.f32 %v2414
  %vm2423 = vweird.f32 %v2416
  %vm2424 = vmor %vm2422, %vm2423
  %v2425 = vsel %vm2424, %v2416, %v2421
  %v2426 = vrsqrt.pop %v2415
  %v2427 = vmul.f32 %v2426, %v2415
  %v2428 = vmul.f32 %v2427, %v2426
  %v2429 = vmul.f32 0.5, %v2428
  %v2430 = vsub.f32 1.5, %v2429
  %v2431 = vmul.f32 %v2426, %v2430
  %vm2432 = vweird.f32 %v2415
  %vm2433 = vweird.f32 %v2426
  %vm2434 = vmor %vm2432, %vm2433
  %v2435 = vsel %vm2434, %v2426, %v2431
  %v2436 = vmul.f32 %v2402, %v2425
  %v2437 = vmul.f32 %v2403, %v2435
  %v2439 = vperm.slane %v2391, 0
  %v2441 = vmul.f32 %v2436, %v2439
  %v2442 = vmul.f32 %v2437, %v2439
  %v2444 = vperm.slane %v2393, 0
  %v2446 = vadd.f32 %v2441, %v2444
  %v2447 = vadd.f32 %v2442, %v2444
  %s2448 = scalar_lea.vmem %s81, 128
  %v2449 = vld [vmem:[%s2448] sm:$0xf]
  %v2450 = vld [vmem:[%s2448 + $0x4] sm:$0xf]
  %v2451 = vld [vmem:[%s2448 + $0x8] sm:$0xf]
  %v2452 = vld [vmem:[%s2448 + $0xc] sm:$0xf]
  %v2453 = vld [vmem:[%s2448 + $0x10] sm:$0xf]
  %v2454 = vld [vmem:[%s2448 + $0x14] sm:$0xf]
  %v2455 = vld [vmem:[%s2448 + $0x18] sm:$0xf]
  %v2456 = vld [vmem:[%s2448 + $0x1c] sm:$0xf]
  %v2457 = vld [vmem:[%s2448 + $0x20] sm:$0xf]
  %v2458 = vld [vmem:[%s2448 + $0x24] sm:$0xf]
  %v2459 = vld [vmem:[%s2448 + $0x28] sm:$0xf]
  %v2460 = vld [vmem:[%s2448 + $0x2c] sm:$0xf]
  %v2461 = vld [vmem:[%s2448 + $0x30] sm:$0xf]
  %v2462 = vld [vmem:[%s2448 + $0x34] sm:$0xf]
  %v2463 = vld [vmem:[%s2448 + $0x38] sm:$0xf]
  %v2464 = vld [vmem:[%s2448 + $0x3c] sm:$0xf]
  %s2465 = scalar_lea.vmem %s77, 128
  %v2466 = vld [vmem:[%s2465] sm:$0xf]
  %v2467 = vld [vmem:[%s2465 + $0x4] sm:$0xf]
  %v2468 = vld [vmem:[%s2465 + $0x8] sm:$0xf]
  %v2469 = vld [vmem:[%s2465 + $0xc] sm:$0xf]
  %v2470 = vld [vmem:[%s2465 + $0x10] sm:$0xf]
  %v2471 = vld [vmem:[%s2465 + $0x14] sm:$0xf]
  %v2472 = vld [vmem:[%s2465 + $0x18] sm:$0xf]
  %v2473 = vld [vmem:[%s2465 + $0x1c] sm:$0xf]
  %v2474 = vld [vmem:[%s2465 + $0x20] sm:$0xf]
  %v2475 = vld [vmem:[%s2465 + $0x24] sm:$0xf]
  %v2476 = vld [vmem:[%s2465 + $0x28] sm:$0xf]
  %v2477 = vld [vmem:[%s2465 + $0x2c] sm:$0xf]
  %v2478 = vld [vmem:[%s2465 + $0x30] sm:$0xf]
  %v2479 = vld [vmem:[%s2465 + $0x34] sm:$0xf]
  %v2480 = vld [vmem:[%s2465 + $0x38] sm:$0xf]
  %v2481 = vld [vmem:[%s2465 + $0x3c] sm:$0xf]
  %s2482 = scalar_lea.vmem %s83, 128
  %v2483 = vld [vmem:[%s2482] sm:$0xf]
  %v2484 = vld [vmem:[%s2482 + $0x4] sm:$0xf]
  %v2485 = vld [vmem:[%s2482 + $0x8] sm:$0xf]
  %v2486 = vld [vmem:[%s2482 + $0xc] sm:$0xf]
  %v2487 = vld [vmem:[%s2482 + $0x10] sm:$0xf]
  %v2488 = vld [vmem:[%s2482 + $0x14] sm:$0xf]
  %v2489 = vld [vmem:[%s2482 + $0x18] sm:$0xf]
  %v2490 = vld [vmem:[%s2482 + $0x1c] sm:$0xf]
  %v2491 = vld [vmem:[%s2482 + $0x20] sm:$0xf]
  %v2492 = vld [vmem:[%s2482 + $0x24] sm:$0xf]
  %v2493 = vld [vmem:[%s2482 + $0x28] sm:$0xf]
  %v2494 = vld [vmem:[%s2482 + $0x2c] sm:$0xf]
  %v2495 = vld [vmem:[%s2482 + $0x30] sm:$0xf]
  %v2496 = vld [vmem:[%s2482 + $0x34] sm:$0xf]
  %v2497 = vld [vmem:[%s2482 + $0x38] sm:$0xf]
  %v2498 = vld [vmem:[%s2482 + $0x3c] sm:$0xf]
  %s2499 = scalar_lea.vmem %s79, 32
  %v2500 = vld [vmem:[%s2499] sm:$0xf]
  %v2501 = vld [vmem:[%s2499 + $0x4] sm:$0xf]
  %v2502 = vld [vmem:[%s2499 + $0x8] sm:$0xf]
  %v2503 = vld [vmem:[%s2499 + $0xc] sm:$0xf]
  %v2504 = vpack.c.bf16 %v2447, %v2446
  %v2509 = vunpack.c.l.b16 %v2449
  %v2510 = vunpack.c.l.b16 %v2450
  %v2511 = vunpack.c.l.b16 %v2451
  %v2512 = vunpack.c.l.b16 %v2452
  %v2513 = vpack.c.b16 %v2510, %v2509
  %v2514 = vpack.c.b16 %v2512, %v2511
  %v2518 = vsel %vm189, %v2504, 0
  %2520 = vmatpush.bf16.msra.mxu0 0
  %2521 = vmatpush.bf16.msra.mxu0 0
  %2522 = vmatpush.bf16.msra.mxu0 0
  %2523 = vmatpush.bf16.msra.mxu0 0
  %2524 = vmatpush.bf16.msra.mxu0 0
  %2525 = vmatpush.bf16.msra.mxu0 0
  %2526 = vmatpush.bf16.msra.mxu0 %v2514
  %2527 = vmatpush.bf16.msra.mxu0 %v2513
  %2528 = vmatmul.bf16.gmra.mxu0 %v2518
  %v2529 = vpop.f32.mrf.mxu0
  %v2530 = vadd.f32 0.0, %v2529
  %v2531 = vpop.f32.mrf.mxu0
  %v2532 = vadd.f32 0.0, %v2531
  %2533 = vdwg.mxu0
  %v2538 = vunpack.c.l.b16 %v2466
  %v2539 = vunpack.c.l.b16 %v2467
  %v2540 = vunpack.c.l.b16 %v2468
  %v2541 = vunpack.c.l.b16 %v2469
  %v2542 = vpack.c.b16 %v2539, %v2538
  %v2543 = vpack.c.b16 %v2541, %v2540
  %2546 = vmatpush.bf16.msra.mxu0 0
  %2547 = vmatpush.bf16.msra.mxu0 0
  %2548 = vmatpush.bf16.msra.mxu0 0
  %2549 = vmatpush.bf16.msra.mxu0 0
  %2550 = vmatpush.bf16.msra.mxu0 0
  %2551 = vmatpush.bf16.msra.mxu0 0
  %2552 = vmatpush.bf16.msra.mxu0 %v2543
  %2553 = vmatpush.bf16.msra.mxu0 %v2542
  %2554 = vmatmul.bf16.gmra.mxu0 %v2518
  %v2555 = vpop.f32.mrf.mxu0
  %v2556 = vadd.f32 0.0, %v2555
  %v2557 = vpop.f32.mrf.mxu0
  %v2558 = vadd.f32 0.0, %v2557
  %2559 = vdwg.mxu0
  %v2564 = vunpack.c.l.b16 %v2483
  %v2565 = vunpack.c.l.b16 %v2484
  %v2566 = vunpack.c.l.b16 %v2485
  %v2567 = vunpack.c.l.b16 %v2486
  %v2568 = vpack.c.b16 %v2565, %v2564
  %v2569 = vpack.c.b16 %v2567, %v2566
  %2572 = vmatpush.bf16.msra.mxu0 0
  %2573 = vmatpush.bf16.msra.mxu0 0
  %2574 = vmatpush.bf16.msra.mxu0 0
  %2575 = vmatpush.bf16.msra.mxu0 0
  %2576 = vmatpush.bf16.msra.mxu0 0
  %2577 = vmatpush.bf16.msra.mxu0 0
  %2578 = vmatpush.bf16.msra.mxu0 %v2569
  %2579 = vmatpush.bf16.msra.mxu0 %v2568
  %2580 = vmatmul.bf16.gmra.mxu0 %v2518
  %v2581 = vpop.f32.mrf.mxu0
  %v2582 = vadd.f32 0.0, %v2581
  %v2583 = vpop.f32.mrf.mxu0
  %v2584 = vadd.f32 0.0, %v2583
  %2585 = vdwg.mxu0
  %v2586 = vpack.c.bf16 %v2530, %v2530
  %v2587 = vpack.c.bf16 %v2532, %v2532
  %v2588 = vpack.c.bf16 %v2556, %v2556
  %v2589 = vpack.c.bf16 %v2558, %v2558
  %v2590 = vpack.c.bf16 %v2582, %v2582
  %v2591 = vpack.c.bf16 %v2584, %v2584
  %v2593 = vsel %vm391, %v2586, 0
  %v2596 = vsel %vm391, %v2588, 0
  %2598 = vmatpush.bf16.xpose.msra.mxu0 0
  %2599 = vmatpush.bf16.xpose.msra.mxu0 0
  %2600 = vmatpush.bf16.xpose.msra.mxu0 0
  %2601 = vmatpush.bf16.xpose.msra.mxu0 0
  %2602 = vmatpush.bf16.xpose.msra.mxu0 0
  %2603 = vmatpush.bf16.xpose.msra.mxu0 0
  %2604 = vmatpush.bf16.xpose.msra.mxu0 0
  %2605 = vmatpush.bf16.xpose.msra.mxu0 %v2596
  %2606 = vmatmul.bf16.gmra.mxu0 %v2593
  %v2607 = vpop.f32.mrf.mxu0
  %v2608 = vadd.f32 %v183, %v2607
  %v2609 = vpop.f32.mrf.mxu0
  %2610 = vdwg.mxu0
  %v2612 = vsel %vm391, %v2587, 0
  %v2615 = vsel %vm391, %v2589, 0
  %2617 = vmatpush.bf16.xpose.msra.mxu0 0
  %2618 = vmatpush.bf16.xpose.msra.mxu0 0
  %2619 = vmatpush.bf16.xpose.msra.mxu0 0
  %2620 = vmatpush.bf16.xpose.msra.mxu0 0
  %2621 = vmatpush.bf16.xpose.msra.mxu0 0
  %2622 = vmatpush.bf16.xpose.msra.mxu0 0
  %2623 = vmatpush.bf16.xpose.msra.mxu0 0
  %2624 = vmatpush.bf16.xpose.msra.mxu0 %v2615
  %2625 = vmatmul.bf16.gmra.mxu0 %v2612
  %v2626 = vpop.f32.mrf.mxu0
  %v2627 = vadd.f32 %v184, %v2626
  %v2628 = vpop.f32.mrf.mxu0
  %2629 = vdwg.mxu0
  %v2630 = vsel %vm391, %v2608, -inf
  %2631 = vmax.xlane.f32.xlu0 %v2630
  %v2632 = vpop.xlane.xlu0 %2631
  %v2633 = vsel %vm391, %v2627, -inf
  %2634 = vmax.xlane.f32.xlu0 %v2633
  %v2635 = vpop.xlane.xlu0 %2634
  %v2636 = vsub.f32 %v2608, %v2632
  %v2637 = vsub.f32 %v2627, %v2635
  %v2638 = vmul.f32 %v2636, 1.442695
  %v2639 = vpow.pop %v2638
  %v2640 = vmul.f32 %v2637, 1.442695
  %v2641 = vpow.pop %v2640
  %v2642 = vsel %vm391, %v2639, 0.0
  %2643 = vadd.xlane.f32.xlu0 %v2642
  %v2644 = vpop.xlane.xlu0 %2643
  %v2645 = vsel %vm391, %v2641, 0.0
  %2646 = vadd.xlane.f32.xlu0 %v2645
  %v2647 = vpop.xlane.xlu0 %2646
  %v2648 = vrcp.pop %v2644
  %v2649 = vrcp.pop %v2647
  %v2650 = vmul.f32 %v2639, %v2648
  %v2651 = vmul.f32 %v2641, %v2649
  %v2652 = vpack.c.bf16 %v2650, %v2650
  %v2653 = vpack.c.bf16 %v2651, %v2651
  %v2655 = vsel %vm391, %v2652, 0
  %v2658 = vsel %vm457, %v2590, 0
  %2660 = vmatpush.bf16.msra.mxu0 0
  %2661 = vmatpush.bf16.msra.mxu0 0
  %2662 = vmatpush.bf16.msra.mxu0 0
  %2663 = vmatpush.bf16.msra.mxu0 0
  %2664 = vmatpush.bf16.msra.mxu0 0
  %2665 = vmatpush.bf16.msra.mxu0 0
  %2666 = vmatpush.bf16.msra.mxu0 0
  %2667 = vmatpush.bf16.msra.mxu0 %v2658
  %2668 = vmatmul.bf16.gmra.mxu0 %v2655
  %v2669 = vpop.f32.mrf.mxu0
  %v2670 = vadd.f32 0.0, %v2669
  %v2671 = vpop.f32.mrf.mxu0
  %2672 = vdwg.mxu0
  %v2674 = vsel %vm391, %v2653, 0
  %v2677 = vsel %vm457, %v2591, 0
  %2679 = vmatpush.bf16.msra.mxu0 0
  %2680 = vmatpush.bf16.msra.mxu0 0
  %2681 = vmatpush.bf16.msra.mxu0 0
  %2682 = vmatpush.bf16.msra.mxu0 0
  %2683 = vmatpush.bf16.msra.mxu0 0
  %2684 = vmatpush.bf16.msra.mxu0 0
  %2685 = vmatpush.bf16.msra.mxu0 0
  %2686 = vmatpush.bf16.msra.mxu0 %v2677
  %2687 = vmatmul.bf16.gmra.mxu0 %v2674
  %v2688 = vpop.f32.mrf.mxu0
  %v2689 = vadd.f32 0.0, %v2688
  %v2690 = vpop.f32.mrf.mxu0
  %2691 = vdwg.mxu0
  %v2692 = vpack.c.bf16 %v2689, %v2670
  %v2697 = vunpack.c.l.b16 %v2453
  %v2698 = vunpack.c.l.b16 %v2454
  %v2699 = vunpack.c.l.b16 %v2455
  %v2700 = vunpack.c.l.b16 %v2456
  %v2701 = vpack.c.b16 %v2698, %v2697
  %v2702 = vpack.c.b16 %v2700, %v2699
  %2705 = vmatpush.bf16.msra.mxu0 0
  %2706 = vmatpush.bf16.msra.mxu0 0
  %2707 = vmatpush.bf16.msra.mxu0 0
  %2708 = vmatpush.bf16.msra.mxu0 0
  %2709 = vmatpush.bf16.msra.mxu0 0
  %2710 = vmatpush.bf16.msra.mxu0 0
  %2711 = vmatpush.bf16.msra.mxu0 %v2702
  %2712 = vmatpush.bf16.msra.mxu0 %v2701
  %2713 = vmatmul.bf16.gmra.mxu0 %v2518
  %v2714 = vpop.f32.mrf.mxu0
  %v2715 = vadd.f32 0.0, %v2714
  %v2716 = vpop.f32.mrf.mxu0
  %v2717 = vadd.f32 0.0, %v2716
  %2718 = vdwg.mxu0
  %v2723 = vunpack.c.l.b16 %v2470
  %v2724 = vunpack.c.l.b16 %v2471
  %v2725 = vunpack.c.l.b16 %v2472
  %v2726 = vunpack.c.l.b16 %v2473
  %v2727 = vpack.c.b16 %v2724, %v2723
  %v2728 = vpack.c.b16 %v2726, %v2725
  %2731 = vmatpush.bf16.msra.mxu0 0
  %2732 = vmatpush.bf16.msra.mxu0 0
  %2733 = vmatpush.bf16.msra.mxu0 0
  %2734 = vmatpush.bf16.msra.mxu0 0
  %2735 = vmatpush.bf16.msra.mxu0 0
  %2736 = vmatpush.bf16.msra.mxu0 0
  %2737 = vmatpush.bf16.msra.mxu0 %v2728
  %2738 = vmatpush.bf16.msra.mxu0 %v2727
  %2739 = vmatmul.bf16.gmra.mxu0 %v2518
  %v2740 = vpop.f32.mrf.mxu0
  %v2741 = vadd.f32 0.0, %v2740
  %v2742 = vpop.f32.mrf.mxu0
  %v2743 = vadd.f32 0.0, %v2742
  %2744 = vdwg.mxu0
  %v2749 = vunpack.c.l.b16 %v2487
  %v2750 = vunpack.c.l.b16 %v2488
  %v2751 = vunpack.c.l.b16 %v2489
  %v2752 = vunpack.c.l.b16 %v2490
  %v2753 = vpack.c.b16 %v2750, %v2749
  %v2754 = vpack.c.b16 %v2752, %v2751
  %2757 = vmatpush.bf16.msra.mxu0 0
  %2758 = vmatpush.bf16.msra.mxu0 0
  %2759 = vmatpush.bf16.msra.mxu0 0
  %2760 = vmatpush.bf16.msra.mxu0 0
  %2761 = vmatpush.bf16.msra.mxu0 0
  %2762 = vmatpush.bf16.msra.mxu0 0
  %2763 = vmatpush.bf16.msra.mxu0 %v2754
  %2764 = vmatpush.bf16.msra.mxu0 %v2753
  %2765 = vmatmul.bf16.gmra.mxu0 %v2518
  %v2766 = vpop.f32.mrf.mxu0
  %v2767 = vadd.f32 0.0, %v2766
  %v2768 = vpop.f32.mrf.mxu0
  %v2769 = vadd.f32 0.0, %v2768
  %2770 = vdwg.mxu0
  %v2771 = vpack.c.bf16 %v2715, %v2715
  %v2772 = vpack.c.bf16 %v2717, %v2717
  %v2773 = vpack.c.bf16 %v2741, %v2741
  %v2774 = vpack.c.bf16 %v2743, %v2743
  %v2775 = vpack.c.bf16 %v2767, %v2767
  %v2776 = vpack.c.bf16 %v2769, %v2769
  %v2778 = vsel %vm391, %v2771, 0
  %v2781 = vsel %vm391, %v2773, 0
  %2783 = vmatpush.bf16.xpose.msra.mxu0 0
  %2784 = vmatpush.bf16.xpose.msra.mxu0 0
  %2785 = vmatpush.bf16.xpose.msra.mxu0 0
  %2786 = vmatpush.bf16.xpose.msra.mxu0 0
  %2787 = vmatpush.bf16.xpose.msra.mxu0 0
  %2788 = vmatpush.bf16.xpose.msra.mxu0 0
  %2789 = vmatpush.bf16.xpose.msra.mxu0 0
  %2790 = vmatpush.bf16.xpose.msra.mxu0 %v2781
  %2791 = vmatmul.bf16.gmra.mxu0 %v2778
  %v2792 = vpop.f32.mrf.mxu0
  %v2793 = vadd.f32 %v183, %v2792
  %v2794 = vpop.f32.mrf.mxu0
  %2795 = vdwg.mxu0
  %v2797 = vsel %vm391, %v2772, 0
  %v2800 = vsel %vm391, %v2774, 0
  %2802 = vmatpush.bf16.xpose.msra.mxu0 0
  %2803 = vmatpush.bf16.xpose.msra.mxu0 0
  %2804 = vmatpush.bf16.xpose.msra.mxu0 0
  %2805 = vmatpush.bf16.xpose.msra.mxu0 0
  %2806 = vmatpush.bf16.xpose.msra.mxu0 0
  %2807 = vmatpush.bf16.xpose.msra.mxu0 0
  %2808 = vmatpush.bf16.xpose.msra.mxu0 0
  %2809 = vmatpush.bf16.xpose.msra.mxu0 %v2800
  %2810 = vmatmul.bf16.gmra.mxu0 %v2797
  %v2811 = vpop.f32.mrf.mxu0
  %v2812 = vadd.f32 %v184, %v2811
  %v2813 = vpop.f32.mrf.mxu0
  %2814 = vdwg.mxu0
  %v2815 = vsel %vm391, %v2793, -inf
  %2816 = vmax.xlane.f32.xlu0 %v2815
  %v2817 = vpop.xlane.xlu0 %2816
  %v2818 = vsel %vm391, %v2812, -inf
  %2819 = vmax.xlane.f32.xlu0 %v2818
  %v2820 = vpop.xlane.xlu0 %2819
  %v2821 = vsub.f32 %v2793, %v2817
  %v2822 = vsub.f32 %v2812, %v2820
  %v2823 = vmul.f32 %v2821, 1.442695
  %v2824 = vpow.pop %v2823
  %v2825 = vmul.f32 %v2822, 1.442695
  %v2826 = vpow.pop %v2825
  %v2827 = vsel %vm391, %v2824, 0.0
  %2828 = vadd.xlane.f32.xlu0 %v2827
  %v2829 = vpop.xlane.xlu0 %2828
  %v2830 = vsel %vm391, %v2826, 0.0
  %2831 = vadd.xlane.f32.xlu0 %v2830
  %v2832 = vpop.xlane.xlu0 %2831
  %v2833 = vrcp.pop %v2829
  %v2834 = vrcp.pop %v2832
  %v2835 = vmul.f32 %v2824, %v2833
  %v2836 = vmul.f32 %v2826, %v2834
  %v2837 = vpack.c.bf16 %v2835, %v2835
  %v2838 = vpack.c.bf16 %v2836, %v2836
  %v2840 = vsel %vm391, %v2837, 0
  %v2843 = vsel %vm457, %v2775, 0
  %2845 = vmatpush.bf16.msra.mxu0 0
  %2846 = vmatpush.bf16.msra.mxu0 0
  %2847 = vmatpush.bf16.msra.mxu0 0
  %2848 = vmatpush.bf16.msra.mxu0 0
  %2849 = vmatpush.bf16.msra.mxu0 0
  %2850 = vmatpush.bf16.msra.mxu0 0
  %2851 = vmatpush.bf16.msra.mxu0 0
  %2852 = vmatpush.bf16.msra.mxu0 %v2843
  %2853 = vmatmul.bf16.gmra.mxu0 %v2840
  %v2854 = vpop.f32.mrf.mxu0
  %v2855 = vadd.f32 0.0, %v2854
  %v2856 = vpop.f32.mrf.mxu0
  %2857 = vdwg.mxu0
  %v2859 = vsel %vm391, %v2838, 0
  %v2862 = vsel %vm457, %v2776, 0
  %2864 = vmatpush.bf16.msra.mxu0 0
  %2865 = vmatpush.bf16.msra.mxu0 0
  %2866 = vmatpush.bf16.msra.mxu0 0
  %2867 = vmatpush.bf16.msra.mxu0 0
  %2868 = vmatpush.bf16.msra.mxu0 0
  %2869 = vmatpush.bf16.msra.mxu0 0
  %2870 = vmatpush.bf16.msra.mxu0 0
  %2871 = vmatpush.bf16.msra.mxu0 %v2862
  %2872 = vmatmul.bf16.gmra.mxu0 %v2859
  %v2873 = vpop.f32.mrf.mxu0
  %v2874 = vadd.f32 0.0, %v2873
  %v2875 = vpop.f32.mrf.mxu0
  %2876 = vdwg.mxu0
  %v2877 = vpack.c.bf16 %v2874, %v2855
  %v2879 = vsel %vm391, %v2877, 0
  %v2882 = vsel %vm457, %v2501, 0
  %2884 = vmatpush.bf16.msra.mxu0 0
  %2885 = vmatpush.bf16.msra.mxu0 0
  %2886 = vmatpush.bf16.msra.mxu0 0
  %2887 = vmatpush.bf16.msra.mxu0 0
  %2888 = vmatpush.bf16.msra.mxu0 0
  %2889 = vmatpush.bf16.msra.mxu0 0
  %2890 = vmatpush.bf16.msra.mxu0 0
  %2891 = vmatpush.bf16.msra.mxu0 %v2882
  %2892 = vmatmul.bf16.gmra.mxu0 %v2879
  %v2893 = vpop.f32.mrf.mxu0
  %v2894 = vadd.f32 0.0, %v2893
  %v2895 = vpop.f32.mrf.mxu0
  %v2896 = vadd.f32 0.0, %v2895
  %2897 = vdwg.mxu0
  %v2899 = vsel %vm391, %v2692, 0
  %v2902 = vsel %vm457, %v2500, 0
  %2904 = vmatpush.bf16.msra.mxu0 0
  %2905 = vmatpush.bf16.msra.mxu0 0
  %2906 = vmatpush.bf16.msra.mxu0 0
  %2907 = vmatpush.bf16.msra.mxu0 0
  %2908 = vmatpush.bf16.msra.mxu0 0
  %2909 = vmatpush.bf16.msra.mxu0 0
  %2910 = vmatpush.bf16.msra.mxu0 0
  %2911 = vmatpush.bf16.msra.mxu0 %v2902
  %2912 = vmatmul.bf16.gmra.mxu0 %v2899
  %v2913 = vpop.f32.mrf.mxu0
  %v2914 = vadd.f32 %v2894, %v2913
  %v2915 = vpop.f32.mrf.mxu0
  %v2916 = vadd.f32 %v2896, %v2915
  %2917 = vdwg.mxu0
  %v2922 = vunpack.c.l.b16 %v2457
  %v2923 = vunpack.c.l.b16 %v2458
  %v2924 = vunpack.c.l.b16 %v2459
  %v2925 = vunpack.c.l.b16 %v2460
  %v2926 = vpack.c.b16 %v2923, %v2922
  %v2927 = vpack.c.b16 %v2925, %v2924
  %2930 = vmatpush.bf16.msra.mxu0 0
  %2931 = vmatpush.bf16.msra.mxu0 0
  %2932 = vmatpush.bf16.msra.mxu0 0
  %2933 = vmatpush.bf16.msra.mxu0 0
  %2934 = vmatpush.bf16.msra.mxu0 0
  %2935 = vmatpush.bf16.msra.mxu0 0
  %2936 = vmatpush.bf16.msra.mxu0 %v2927
  %2937 = vmatpush.bf16.msra.mxu0 %v2926
  %2938 = vmatmul.bf16.gmra.mxu0 %v2518
  %v2939 = vpop.f32.mrf.mxu0
  %v2940 = vadd.f32 0.0, %v2939
  %v2941 = vpop.f32.mrf.mxu0
  %v2942 = vadd.f32 0.0, %v2941
  %2943 = vdwg.mxu0
  %v2948 = vunpack.c.l.b16 %v2474
  %v2949 = vunpack.c.l.b16 %v2475
  %v2950 = vunpack.c.l.b16 %v2476
  %v2951 = vunpack.c.l.b16 %v2477
  %v2952 = vpack.c.b16 %v2949, %v2948
  %v2953 = vpack.c.b16 %v2951, %v2950
  %2956 = vmatpush.bf16.msra.mxu0 0
  %2957 = vmatpush.bf16.msra.mxu0 0
  %2958 = vmatpush.bf16.msra.mxu0 0
  %2959 = vmatpush.bf16.msra.mxu0 0
  %2960 = vmatpush.bf16.msra.mxu0 0
  %2961 = vmatpush.bf16.msra.mxu0 0
  %2962 = vmatpush.bf16.msra.mxu0 %v2953
  %2963 = vmatpush.bf16.msra.mxu0 %v2952
  %2964 = vmatmul.bf16.gmra.mxu0 %v2518
  %v2965 = vpop.f32.mrf.mxu0
  %v2966 = vadd.f32 0.0, %v2965
  %v2967 = vpop.f32.mrf.mxu0
  %v2968 = vadd.f32 0.0, %v2967
  %2969 = vdwg.mxu0
  %v2974 = vunpack.c.l.b16 %v2491
  %v2975 = vunpack.c.l.b16 %v2492
  %v2976 = vunpack.c.l.b16 %v2493
  %v2977 = vunpack.c.l.b16 %v2494
  %v2978 = vpack.c.b16 %v2975, %v2974
  %v2979 = vpack.c.b16 %v2977, %v2976
  %2982 = vmatpush.bf16.msra.mxu0 0
  %2983 = vmatpush.bf16.msra.mxu0 0
  %2984 = vmatpush.bf16.msra.mxu0 0
  %2985 = vmatpush.bf16.msra.mxu0 0
  %2986 = vmatpush.bf16.msra.mxu0 0
  %2987 = vmatpush.bf16.msra.mxu0 0
  %2988 = vmatpush.bf16.msra.mxu0 %v2979
  %2989 = vmatpush.bf16.msra.mxu0 %v2978
  %2990 = vmatmul.bf16.gmra.mxu0 %v2518
  %v2991 = vpop.f32.mrf.mxu0
  %v2992 = vadd.f32 0.0, %v2991
  %v2993 = vpop.f32.mrf.mxu0
  %v2994 = vadd.f32 0.0, %v2993
  %2995 = vdwg.mxu0
  %v2996 = vpack.c.bf16 %v2940, %v2940
  %v2997 = vpack.c.bf16 %v2942, %v2942
  %v2998 = vpack.c.bf16 %v2966, %v2966
  %v2999 = vpack.c.bf16 %v2968, %v2968
  %v3000 = vpack.c.bf16 %v2992, %v2992
  %v3001 = vpack.c.bf16 %v2994, %v2994
  %v3003 = vsel %vm391, %v2996, 0
  %v3006 = vsel %vm391, %v2998, 0
  %3008 = vmatpush.bf16.xpose.msra.mxu0 0
  %3009 = vmatpush.bf16.xpose.msra.mxu0 0
  %3010 = vmatpush.bf16.xpose.msra.mxu0 0
  %3011 = vmatpush.bf16.xpose.msra.mxu0 0
  %3012 = vmatpush.bf16.xpose.msra.mxu0 0
  %3013 = vmatpush.bf16.xpose.msra.mxu0 0
  %3014 = vmatpush.bf16.xpose.msra.mxu0 0
  %3015 = vmatpush.bf16.xpose.msra.mxu0 %v3006
  %3016 = vmatmul.bf16.gmra.mxu0 %v3003
  %v3017 = vpop.f32.mrf.mxu0
  %v3018 = vadd.f32 %v183, %v3017
  %v3019 = vpop.f32.mrf.mxu0
  %3020 = vdwg.mxu0
  %v3022 = vsel %vm391, %v2997, 0
  %v3025 = vsel %vm391, %v2999, 0
  %3027 = vmatpush.bf16.xpose.msra.mxu0 0
  %3028 = vmatpush.bf16.xpose.msra.mxu0 0
  %3029 = vmatpush.bf16.xpose.msra.mxu0 0
  %3030 = vmatpush.bf16.xpose.msra.mxu0 0
  %3031 = vmatpush.bf16.xpose.msra.mxu0 0
  %3032 = vmatpush.bf16.xpose.msra.mxu0 0
  %3033 = vmatpush.bf16.xpose.msra.mxu0 0
  %3034 = vmatpush.bf16.xpose.msra.mxu0 %v3025
  %3035 = vmatmul.bf16.gmra.mxu0 %v3022
  %v3036 = vpop.f32.mrf.mxu0
  %v3037 = vadd.f32 %v184, %v3036
  %v3038 = vpop.f32.mrf.mxu0
  %3039 = vdwg.mxu0
  %v3040 = vsel %vm391, %v3018, -inf
  %3041 = vmax.xlane.f32.xlu0 %v3040
  %v3042 = vpop.xlane.xlu0 %3041
  %v3043 = vsel %vm391, %v3037, -inf
  %3044 = vmax.xlane.f32.xlu0 %v3043
  %v3045 = vpop.xlane.xlu0 %3044
  %v3046 = vsub.f32 %v3018, %v3042
  %v3047 = vsub.f32 %v3037, %v3045
  %v3048 = vmul.f32 %v3046, 1.442695
  %v3049 = vpow.pop %v3048
  %v3050 = vmul.f32 %v3047, 1.442695
  %v3051 = vpow.pop %v3050
  %v3052 = vsel %vm391, %v3049, 0.0
  %3053 = vadd.xlane.f32.xlu0 %v3052
  %v3054 = vpop.xlane.xlu0 %3053
  %v3055 = vsel %vm391, %v3051, 0.0
  %3056 = vadd.xlane.f32.xlu0 %v3055
  %v3057 = vpop.xlane.xlu0 %3056
  %v3058 = vrcp.pop %v3054
  %v3059 = vrcp.pop %v3057
  %v3060 = vmul.f32 %v3049, %v3058
  %v3061 = vmul.f32 %v3051, %v3059
  %v3062 = vpack.c.bf16 %v3060, %v3060
  %v3063 = vpack.c.bf16 %v3061, %v3061
  %v3065 = vsel %vm391, %v3062, 0
  %v3068 = vsel %vm457, %v3000, 0
  %3070 = vmatpush.bf16.msra.mxu0 0
  %3071 = vmatpush.bf16.msra.mxu0 0
  %3072 = vmatpush.bf16.msra.mxu0 0
  %3073 = vmatpush.bf16.msra.mxu0 0
  %3074 = vmatpush.bf16.msra.mxu0 0
  %3075 = vmatpush.bf16.msra.mxu0 0
  %3076 = vmatpush.bf16.msra.mxu0 0
  %3077 = vmatpush.bf16.msra.mxu0 %v3068
  %3078 = vmatmul.bf16.gmra.mxu0 %v3065
  %v3079 = vpop.f32.mrf.mxu0
  %v3080 = vadd.f32 0.0, %v3079
  %v3081 = vpop.f32.mrf.mxu0
  %3082 = vdwg.mxu0
  %v3084 = vsel %vm391, %v3063, 0
  %v3087 = vsel %vm457, %v3001, 0
  %3089 = vmatpush.bf16.msra.mxu0 0
  %3090 = vmatpush.bf16.msra.mxu0 0
  %3091 = vmatpush.bf16.msra.mxu0 0
  %3092 = vmatpush.bf16.msra.mxu0 0
  %3093 = vmatpush.bf16.msra.mxu0 0
  %3094 = vmatpush.bf16.msra.mxu0 0
  %3095 = vmatpush.bf16.msra.mxu0 0
  %3096 = vmatpush.bf16.msra.mxu0 %v3087
  %3097 = vmatmul.bf16.gmra.mxu0 %v3084
  %v3098 = vpop.f32.mrf.mxu0
  %v3099 = vadd.f32 0.0, %v3098
  %v3100 = vpop.f32.mrf.mxu0
  %3101 = vdwg.mxu0
  %v3102 = vpack.c.bf16 %v3099, %v3080
  %v3104 = vsel %vm391, %v3102, 0
  %v3107 = vsel %vm457, %v2502, 0
  %3109 = vmatpush.bf16.msra.mxu0 0
  %3110 = vmatpush.bf16.msra.mxu0 0
  %3111 = vmatpush.bf16.msra.mxu0 0
  %3112 = vmatpush.bf16.msra.mxu0 0
  %3113 = vmatpush.bf16.msra.mxu0 0
  %3114 = vmatpush.bf16.msra.mxu0 0
  %3115 = vmatpush.bf16.msra.mxu0 0
  %3116 = vmatpush.bf16.msra.mxu0 %v3107
  %3117 = vmatmul.bf16.gmra.mxu0 %v3104
  %v3118 = vpop.f32.mrf.mxu0
  %v3119 = vadd.f32 0.0, %v3118
  %v3120 = vpop.f32.mrf.mxu0
  %v3121 = vadd.f32 0.0, %v3120
  %3122 = vdwg.mxu0
  %v3123 = vadd.f32 %v2914, %v3119
  %v3124 = vadd.f32 %v2916, %v3121
  %v3129 = vunpack.c.l.b16 %v2461
  %v3130 = vunpack.c.l.b16 %v2462
  %v3131 = vunpack.c.l.b16 %v2463
  %v3132 = vunpack.c.l.b16 %v2464
  %v3133 = vpack.c.b16 %v3130, %v3129
  %v3134 = vpack.c.b16 %v3132, %v3131
  %3137 = vmatpush.bf16.msra.mxu0 0
  %3138 = vmatpush.bf16.msra.mxu0 0
  %3139 = vmatpush.bf16.msra.mxu0 0
  %3140 = vmatpush.bf16.msra.mxu0 0
  %3141 = vmatpush.bf16.msra.mxu0 0
  %3142 = vmatpush.bf16.msra.mxu0 0
  %3143 = vmatpush.bf16.msra.mxu0 %v3134
  %3144 = vmatpush.bf16.msra.mxu0 %v3133
  %3145 = vmatmul.bf16.gmra.mxu0 %v2518
  %v3146 = vpop.f32.mrf.mxu0
  %v3147 = vadd.f32 0.0, %v3146
  %v3148 = vpop.f32.mrf.mxu0
  %v3149 = vadd.f32 0.0, %v3148
  %3150 = vdwg.mxu0
  %v3155 = vunpack.c.l.b16 %v2478
  %v3156 = vunpack.c.l.b16 %v2479
  %v3157 = vunpack.c.l.b16 %v2480
  %v3158 = vunpack.c.l.b16 %v2481
  %v3159 = vpack.c.b16 %v3156, %v3155
  %v3160 = vpack.c.b16 %v3158, %v3157
  %3163 = vmatpush.bf16.msra.mxu0 0
  %3164 = vmatpush.bf16.msra.mxu0 0
  %3165 = vmatpush.bf16.msra.mxu0 0
  %3166 = vmatpush.bf16.msra.mxu0 0
  %3167 = vmatpush.bf16.msra.mxu0 0
  %3168 = vmatpush.bf16.msra.mxu0 0
  %3169 = vmatpush.bf16.msra.mxu0 %v3160
  %3170 = vmatpush.bf16.msra.mxu0 %v3159
  %3171 = vmatmul.bf16.gmra.mxu0 %v2518
  %v3172 = vpop.f32.mrf.mxu0
  %v3173 = vadd.f32 0.0, %v3172
  %v3174 = vpop.f32.mrf.mxu0
  %v3175 = vadd.f32 0.0, %v3174
  %3176 = vdwg.mxu0
  %v3181 = vunpack.c.l.b16 %v2495
  %v3182 = vunpack.c.l.b16 %v2496
  %v3183 = vunpack.c.l.b16 %v2497
  %v3184 = vunpack.c.l.b16 %v2498
  %v3185 = vpack.c.b16 %v3182, %v3181
  %v3186 = vpack.c.b16 %v3184, %v3183
  %3189 = vmatpush.bf16.msra.mxu0 0
  %3190 = vmatpush.bf16.msra.mxu0 0
  %3191 = vmatpush.bf16.msra.mxu0 0
  %3192 = vmatpush.bf16.msra.mxu0 0
  %3193 = vmatpush.bf16.msra.mxu0 0
  %3194 = vmatpush.bf16.msra.mxu0 0
  %3195 = vmatpush.bf16.msra.mxu0 %v3186
  %3196 = vmatpush.bf16.msra.mxu0 %v3185
  %3197 = vmatmul.bf16.gmra.mxu0 %v2518
  %v3198 = vpop.f32.mrf.mxu0
  %v3199 = vadd.f32 0.0, %v3198
  %v3200 = vpop.f32.mrf.mxu0
  %v3201 = vadd.f32 0.0, %v3200
  %3202 = vdwg.mxu0
  %v3203 = vpack.c.bf16 %v3147, %v3147
  %v3204 = vpack.c.bf16 %v3149, %v3149
  %v3205 = vpack.c.bf16 %v3173, %v3173
  %v3206 = vpack.c.bf16 %v3175, %v3175
  %v3207 = vpack.c.bf16 %v3199, %v3199
  %v3208 = vpack.c.bf16 %v3201, %v3201
  %v3210 = vsel %vm391, %v3203, 0
  %v3213 = vsel %vm391, %v3205, 0
  %3215 = vmatpush.bf16.xpose.msra.mxu0 0
  %3216 = vmatpush.bf16.xpose.msra.mxu0 0
  %3217 = vmatpush.bf16.xpose.msra.mxu0 0
  %3218 = vmatpush.bf16.xpose.msra.mxu0 0
  %3219 = vmatpush.bf16.xpose.msra.mxu0 0
  %3220 = vmatpush.bf16.xpose.msra.mxu0 0
  %3221 = vmatpush.bf16.xpose.msra.mxu0 0
  %3222 = vmatpush.bf16.xpose.msra.mxu0 %v3213
  %3223 = vmatmul.bf16.gmra.mxu0 %v3210
  %v3224 = vpop.f32.mrf.mxu0
  %v3225 = vadd.f32 %v183, %v3224
  %v3226 = vpop.f32.mrf.mxu0
  %3227 = vdwg.mxu0
  %v3229 = vsel %vm391, %v3204, 0
  %v3232 = vsel %vm391, %v3206, 0
  %3234 = vmatpush.bf16.xpose.msra.mxu0 0
  %3235 = vmatpush.bf16.xpose.msra.mxu0 0
  %3236 = vmatpush.bf16.xpose.msra.mxu0 0
  %3237 = vmatpush.bf16.xpose.msra.mxu0 0
  %3238 = vmatpush.bf16.xpose.msra.mxu0 0
  %3239 = vmatpush.bf16.xpose.msra.mxu0 0
  %3240 = vmatpush.bf16.xpose.msra.mxu0 0
  %3241 = vmatpush.bf16.xpose.msra.mxu0 %v3232
  %3242 = vmatmul.bf16.gmra.mxu0 %v3229
  %v3243 = vpop.f32.mrf.mxu0
  %v3244 = vadd.f32 %v184, %v3243
  %v3245 = vpop.f32.mrf.mxu0
  %3246 = vdwg.mxu0
  %v3247 = vsel %vm391, %v3225, -inf
  %3248 = vmax.xlane.f32.xlu0 %v3247
  %v3249 = vpop.xlane.xlu0 %3248
  %v3250 = vsel %vm391, %v3244, -inf
  %3251 = vmax.xlane.f32.xlu0 %v3250
  %v3252 = vpop.xlane.xlu0 %3251
  %v3253 = vsub.f32 %v3225, %v3249
  %v3254 = vsub.f32 %v3244, %v3252
  %v3255 = vmul.f32 %v3253, 1.442695
  %v3256 = vpow.pop %v3255
  %v3257 = vmul.f32 %v3254, 1.442695
  %v3258 = vpow.pop %v3257
  %v3259 = vsel %vm391, %v3256, 0.0
  %3260 = vadd.xlane.f32.xlu0 %v3259
  %v3261 = vpop.xlane.xlu0 %3260
  %v3262 = vsel %vm391, %v3258, 0.0
  %3263 = vadd.xlane.f32.xlu0 %v3262
  %v3264 = vpop.xlane.xlu0 %3263
  %v3265 = vrcp.pop %v3261
  %v3266 = vrcp.pop %v3264
  %v3267 = vmul.f32 %v3256, %v3265
  %v3268 = vmul.f32 %v3258, %v3266
  %v3269 = vpack.c.bf16 %v3267, %v3267
  %v3270 = vpack.c.bf16 %v3268, %v3268
  %v3272 = vsel %vm391, %v3269, 0
  %v3275 = vsel %vm457, %v3207, 0
  %3277 = vmatpush.bf16.msra.mxu0 0
  %3278 = vmatpush.bf16.msra.mxu0 0
  %3279 = vmatpush.bf16.msra.mxu0 0
  %3280 = vmatpush.bf16.msra.mxu0 0
  %3281 = vmatpush.bf16.msra.mxu0 0
  %3282 = vmatpush.bf16.msra.mxu0 0
  %3283 = vmatpush.bf16.msra.mxu0 0
  %3284 = vmatpush.bf16.msra.mxu0 %v3275
  %3285 = vmatmul.bf16.gmra.mxu0 %v3272
  %v3286 = vpop.f32.mrf.mxu0
  %v3287 = vadd.f32 0.0, %v3286
  %v3288 = vpop.f32.mrf.mxu0
  %3289 = vdwg.mxu0
  %v3291 = vsel %vm391, %v3270, 0
  %v3294 = vsel %vm457, %v3208, 0
  %3296 = vmatpush.bf16.msra.mxu0 0
  %3297 = vmatpush.bf16.msra.mxu0 0
  %3298 = vmatpush.bf16.msra.mxu0 0
  %3299 = vmatpush.bf16.msra.mxu0 0
  %3300 = vmatpush.bf16.msra.mxu0 0
  %3301 = vmatpush.bf16.msra.mxu0 0
  %3302 = vmatpush.bf16.msra.mxu0 0
  %3303 = vmatpush.bf16.msra.mxu0 %v3294
  %3304 = vmatmul.bf16.gmra.mxu0 %v3291
  %v3305 = vpop.f32.mrf.mxu0
  %v3306 = vadd.f32 0.0, %v3305
  %v3307 = vpop.f32.mrf.mxu0
  %3308 = vdwg.mxu0
  %v3309 = vpack.c.bf16 %v3306, %v3287
  %v3311 = vsel %vm391, %v3309, 0
  %v3314 = vsel %vm457, %v2503, 0
  %3316 = vmatpush.bf16.msra.mxu0 0
  %3317 = vmatpush.bf16.msra.mxu0 0
  %3318 = vmatpush.bf16.msra.mxu0 0
  %3319 = vmatpush.bf16.msra.mxu0 0
  %3320 = vmatpush.bf16.msra.mxu0 0
  %3321 = vmatpush.bf16.msra.mxu0 0
  %3322 = vmatpush.bf16.msra.mxu0 0
  %3323 = vmatpush.bf16.msra.mxu0 %v3314
  %3324 = vmatmul.bf16.gmra.mxu0 %v3311
  %v3325 = vpop.f32.mrf.mxu0
  %v3326 = vadd.f32 0.0, %v3325
  %v3327 = vpop.f32.mrf.mxu0
  %v3328 = vadd.f32 0.0, %v3327
  %3329 = vdwg.mxu0
  %v3330 = vadd.f32 %v3123, %v3326
  %v3331 = vadd.f32 %v3124, %v3328
  %v3332 = vadd.f32 %v2388, %v3330
  %v3333 = vadd.f32 %v2389, %v3331
  %s3334 = scalar_lea.vmem %s71, 2
  %v3335 = vld [vmem:[%s3334] sm:$0x1]
  %s3336 = scalar_lea.vmem %s69, 2
  %v3337 = vld [vmem:[%s3336] sm:$0x1]
  %v3338 = vsel %vm189, %v3332, 0.0
  %3339 = vadd.xlane.f32.xlu0 %v3338
  %v3340 = vpop.xlane.xlu0 %3339
  %v3341 = vsel %vm189, %v3333, 0.0
  %3342 = vadd.xlane.f32.xlu0 %v3341
  %v3343 = vpop.xlane.xlu0 %3342
  %v3344 = vmul.f32 %v3340, %v202
  %v3345 = vmul.f32 %v3343, %v202
  %v3346 = vsub.f32 %v3332, %v3344
  %v3347 = vsub.f32 %v3333, %v3345
  %v3348 = vmul.f32 %v3346, %v3346
  %v3349 = vmul.f32 %v3347, %v3347
  %v3350 = vsel %vm189, %v3348, 0.0
  %3351 = vadd.xlane.f32.xlu0 %v3350
  %v3352 = vpop.xlane.xlu0 %3351
  %v3353 = vsel %vm189, %v3349, 0.0
  %3354 = vadd.xlane.f32.xlu0 %v3353
  %v3355 = vpop.xlane.xlu0 %3354
  %v3356 = vmul.f32 %v3352, %v202
  %v3357 = vmul.f32 %v3355, %v202
  %v3358 = vadd.f32 %v3356, 1e-06
  %v3359 = vadd.f32 %v3357, 1e-06
  %v3360 = vrsqrt.pop %v3358
  %v3361 = vmul.f32 %v3360, %v3358
  %v3362 = vmul.f32 %v3361, %v3360
  %v3363 = vmul.f32 0.5, %v3362
  %v3364 = vsub.f32 1.5, %v3363
  %v3365 = vmul.f32 %v3360, %v3364
  %vm3366 = vweird.f32 %v3358
  %vm3367 = vweird.f32 %v3360
  %vm3368 = vmor %vm3366, %vm3367
  %v3369 = vsel %vm3368, %v3360, %v3365
  %v3370 = vrsqrt.pop %v3359
  %v3371 = vmul.f32 %v3370, %v3359
  %v3372 = vmul.f32 %v3371, %v3370
  %v3373 = vmul.f32 0.5, %v3372
  %v3374 = vsub.f32 1.5, %v3373
  %v3375 = vmul.f32 %v3370, %v3374
  %vm3376 = vweird.f32 %v3359
  %vm3377 = vweird.f32 %v3370
  %vm3378 = vmor %vm3376, %vm3377
  %v3379 = vsel %vm3378, %v3370, %v3375
  %v3380 = vmul.f32 %v3346, %v3369
  %v3381 = vmul.f32 %v3347, %v3379
  %v3383 = vperm.slane %v3335, 0
  %v3385 = vmul.f32 %v3380, %v3383
  %v3386 = vmul.f32 %v3381, %v3383
  %v3388 = vperm.slane %v3337, 0
  %v3390 = vadd.f32 %v3385, %v3388
  %v3391 = vadd.f32 %v3386, %v3388
  %s3392 = scalar_lea.vmem %s73, 32
  %v3393 = vld [vmem:[%s3392] sm:$0xf]
  %v3394 = vld [vmem:[%s3392 + $0x4] sm:$0xf]
  %v3395 = vld [vmem:[%s3392 + $0x8] sm:$0xf]
  %v3396 = vld [vmem:[%s3392 + $0xc] sm:$0xf]
  %s3397 = scalar_lea.vmem %s61, 2
  %v3398 = vld [vmem:[%s3397] sm:$0x1]
  %s3399 = scalar_lea.vmem %s75, 64
  %v3400 = vld [vmem:[%s3399] sm:$0xf]
  %v3401 = vld [vmem:[%s3399 + $0x4] sm:$0xf]
  %v3402 = vld [vmem:[%s3399 + $0x8] sm:$0xf]
  %v3403 = vld [vmem:[%s3399 + $0xc] sm:$0xf]
  %v3404 = vld [vmem:[%s3399 + $0x10] sm:$0xf]
  %v3405 = vld [vmem:[%s3399 + $0x14] sm:$0xf]
  %v3406 = vld [vmem:[%s3399 + $0x18] sm:$0xf]
  %v3407 = vld [vmem:[%s3399 + $0x1c] sm:$0xf]
  %s3408 = scalar_lea.vmem %s63, 2
  %v3409 = vld [vmem:[%s3408] sm:$0x1]
  %v3410 = vpack.c.bf16 %v3391, %v3390
  %v3412 = vperm.slane %v3398, 0
  %v3418 = vunpack.c.l.b16 %v3393
  %v3419 = vunpack.c.l.b16 %v3394
  %v3420 = vunpack.c.l.b16 %v3395
  %v3421 = vunpack.c.l.b16 %v3396
  %v3422 = vpack.c.b16 %v3419, %v3418
  %v3423 = vpack.c.b16 %v3421, %v3420
  %v3427 = vsel %vm189, %v3410, 0
  %3429 = vmatpush.bf16.msra.mxu0 0
  %3430 = vmatpush.bf16.msra.mxu0 0
  %3431 = vmatpush.bf16.msra.mxu0 0
  %3432 = vmatpush.bf16.msra.mxu0 0
  %3433 = vmatpush.bf16.msra.mxu0 0
  %3434 = vmatpush.bf16.msra.mxu0 0
  %3435 = vmatpush.bf16.msra.mxu0 %v3423
  %3436 = vmatpush.bf16.msra.mxu0 %v3422
  %3437 = vmatmul.bf16.gmra.mxu0 %v3427
  %v3438 = vpop.f32.mrf.mxu0
  %v3439 = vadd.f32 %v3412, %v3438
  %v3440 = vpop.f32.mrf.mxu0
  %v3441 = vadd.f32 %v3412, %v3440
  %3442 = vdwg.mxu0
  %v3443 = vmax.f32 %v3439, 0.0
  %v3444 = vmax.f32 %v3441, 0.0
  %v3445 = vpack.c.bf16 %v3444, %v3443
  %v3447 = vperm.slane %v3409, 0
  %v3457 = vunpack.c.l.b16 %v3400
  %v3458 = vunpack.c.l.b16 %v3401
  %v3459 = vunpack.c.l.b16 %v3402
  %v3460 = vunpack.c.l.b16 %v3403
  %v3461 = vunpack.c.l.b16 %v3404
  %v3462 = vunpack.c.l.b16 %v3405
  %v3463 = vunpack.c.l.b16 %v3406
  %v3464 = vunpack.c.l.b16 %v3407
  %v3465 = vpack.c.b16 %v3458, %v3457
  %v3466 = vpack.c.b16 %v3460, %v3459
  %v3467 = vpack.c.b16 %v3462, %v3461
  %v3468 = vpack.c.b16 %v3464, %v3463
  %v3474 = vsel %vm1268, %v3445, 0
  %3476 = vmatpush.bf16.msra.mxu0 0
  %3477 = vmatpush.bf16.msra.mxu0 0
  %3478 = vmatpush.bf16.msra.mxu0 0
  %3479 = vmatpush.bf16.msra.mxu0 0
  %3480 = vmatpush.bf16.msra.mxu0 %v3468
  %3481 = vmatpush.bf16.msra.mxu0 %v3467
  %3482 = vmatpush.bf16.msra.mxu0 %v3466
  %3483 = vmatpush.bf16.msra.mxu0 %v3465
  %3484 = vmatmul.bf16.gmra.mxu0 %v3474
  %v3485 = vpop.f32.mrf.mxu0
  %v3486 = vadd.f32 %v3447, %v3485
  %v3487 = vpop.f32.mrf.mxu0
  %v3488 = vadd.f32 %v3447, %v3487
  %3489 = vdwg.mxu0
  %v3490 = vadd.f32 %v3332, %v3486
  %v3491 = vadd.f32 %v3333, %v3488
  %v3492 = vld [vmem:[%s9] sm:$0xff]
  %v3493 = vld [vmem:[%s9 + $0x8] sm:$0xff]
  %v3494 = vld [vmem:[%s11] sm:$0xff]
  %v3495 = vld [vmem:[%s11 + $0x8] sm:$0xff]
  %v3496 = vld [vmem:[%s3] sm:$0xff]
  %v3497 = vld [vmem:[%s3 + $0x8] sm:$0xff]
  %v3498 = vld [vmem:[%s31] sm:$0x1]
  %v3499 = vld [vmem:[%s29] sm:$0x1]
  %v3500 = vsel %vm189, %v3496, 0.0
  %3501 = vadd.xlane.f32.xlu0 %v3500
  %v3502 = vpop.xlane.xlu0 %3501
  %v3503 = vsel %vm189, %v3497, 0.0
  %3504 = vadd.xlane.f32.xlu0 %v3503
  %v3505 = vpop.xlane.xlu0 %3504
  %v3506 = vmul.f32 %v3502, %v202
  %v3507 = vmul.f32 %v3505, %v202
  %v3508 = vsub.f32 %v3496, %v3506
  %v3509 = vsub.f32 %v3497, %v3507
  %v3510 = vmul.f32 %v3508, %v3508
  %v3511 = vmul.f32 %v3509, %v3509
  %v3512 = vsel %vm189, %v3510, 0.0
  %3513 = vadd.xlane.f32.xlu0 %v3512
  %v3514 = vpop.xlane.xlu0 %3513
  %v3515 = vsel %vm189, %v3511, 0.0
  %3516 = vadd.xlane.f32.xlu0 %v3515
  %v3517 = vpop.xlane.xlu0 %3516
  %v3518 = vmul.f32 %v3514, %v202
  %v3519 = vmul.f32 %v3517, %v202
  %v3520 = vadd.f32 %v3518, 1e-06
  %v3521 = vadd.f32 %v3519, 1e-06
  %v3522 = vrsqrt.pop %v3520
  %v3523 = vmul.f32 %v3522, %v3520
  %v3524 = vmul.f32 %v3523, %v3522
  %v3525 = vmul.f32 0.5, %v3524
  %v3526 = vsub.f32 1.5, %v3525
  %v3527 = vmul.f32 %v3522, %v3526
  %vm3528 = vweird.f32 %v3520
  %vm3529 = vweird.f32 %v3522
  %vm3530 = vmor %vm3528, %vm3529
  %v3531 = vsel %vm3530, %v3522, %v3527
  %v3532 = vrsqrt.pop %v3521
  %v3533 = vmul.f32 %v3532, %v3521
  %v3534 = vmul.f32 %v3533, %v3532
  %v3535 = vmul.f32 0.5, %v3534
  %v3536 = vsub.f32 1.5, %v3535
  %v3537 = vmul.f32 %v3532, %v3536
  %vm3538 = vweird.f32 %v3521
  %vm3539 = vweird.f32 %v3532
  %vm3540 = vmor %vm3538, %vm3539
  %v3541 = vsel %vm3540, %v3532, %v3537
  %v3542 = vmul.f32 %v3508, %v3531
  %v3543 = vmul.f32 %v3509, %v3541
  %v3545 = vperm.slane %v3498, 0
  %v3547 = vmul.f32 %v3542, %v3545
  %v3548 = vmul.f32 %v3543, %v3545
  %v3550 = vperm.slane %v3499, 0
  %v3552 = vadd.f32 %v3547, %v3550
  %v3553 = vadd.f32 %v3548, %v3550
  %v3554 = vld [vmem:[%s45] sm:$0xf]
  %v3555 = vld [vmem:[%s45 + $0x4] sm:$0xf]
  %v3556 = vld [vmem:[%s45 + $0x8] sm:$0xf]
  %v3557 = vld [vmem:[%s45 + $0xc] sm:$0xf]
  %v3558 = vld [vmem:[%s45 + $0x10] sm:$0xf]
  %v3559 = vld [vmem:[%s45 + $0x14] sm:$0xf]
  %v3560 = vld [vmem:[%s45 + $0x18] sm:$0xf]
  %v3561 = vld [vmem:[%s45 + $0x1c] sm:$0xf]
  %v3562 = vld [vmem:[%s45 + $0x20] sm:$0xf]
  %v3563 = vld [vmem:[%s45 + $0x24] sm:$0xf]
  %v3564 = vld [vmem:[%s45 + $0x28] sm:$0xf]
  %v3565 = vld [vmem:[%s45 + $0x2c] sm:$0xf]
  %v3566 = vld [vmem:[%s45 + $0x30] sm:$0xf]
  %v3567 = vld [vmem:[%s45 + $0x34] sm:$0xf]
  %v3568 = vld [vmem:[%s45 + $0x38] sm:$0xf]
  %v3569 = vld [vmem:[%s45 + $0x3c] sm:$0xf]
  %v3570 = vld [vmem:[%s41] sm:$0xf]
  %v3571 = vld [vmem:[%s41 + $0x4] sm:$0xf]
  %v3572 = vld [vmem:[%s41 + $0x8] sm:$0xf]
  %v3573 = vld [vmem:[%s41 + $0xc] sm:$0xf]
  %v3574 = vld [vmem:[%s41 + $0x10] sm:$0xf]
  %v3575 = vld [vmem:[%s41 + $0x14] sm:$0xf]
  %v3576 = vld [vmem:[%s41 + $0x18] sm:$0xf]
  %v3577 = vld [vmem:[%s41 + $0x1c] sm:$0xf]
  %v3578 = vld [vmem:[%s41 + $0x20] sm:$0xf]
  %v3579 = vld [vmem:[%s41 + $0x24] sm:$0xf]
  %v3580 = vld [vmem:[%s41 + $0x28] sm:$0xf]
  %v3581 = vld [vmem:[%s41 + $0x2c] sm:$0xf]
  %v3582 = vld [vmem:[%s41 + $0x30] sm:$0xf]
  %v3583 = vld [vmem:[%s41 + $0x34] sm:$0xf]
  %v3584 = vld [vmem:[%s41 + $0x38] sm:$0xf]
  %v3585 = vld [vmem:[%s41 + $0x3c] sm:$0xf]
  %v3586 = vld [vmem:[%s47] sm:$0xf]
  %v3587 = vld [vmem:[%s47 + $0x4] sm:$0xf]
  %v3588 = vld [vmem:[%s47 + $0x8] sm:$0xf]
  %v3589 = vld [vmem:[%s47 + $0xc] sm:$0xf]
  %v3590 = vld [vmem:[%s47 + $0x10] sm:$0xf]
  %v3591 = vld [vmem:[%s47 + $0x14] sm:$0xf]
  %v3592 = vld [vmem:[%s47 + $0x18] sm:$0xf]
  %v3593 = vld [vmem:[%s47 + $0x1c] sm:$0xf]
  %v3594 = vld [vmem:[%s47 + $0x20] sm:$0xf]
  %v3595 = vld [vmem:[%s47 + $0x24] sm:$0xf]
  %v3596 = vld [vmem:[%s47 + $0x28] sm:$0xf]
  %v3597 = vld [vmem:[%s47 + $0x2c] sm:$0xf]
  %v3598 = vld [vmem:[%s47 + $0x30] sm:$0xf]
  %v3599 = vld [vmem:[%s47 + $0x34] sm:$0xf]
  %v3600 = vld [vmem:[%s47 + $0x38] sm:$0xf]
  %v3601 = vld [vmem:[%s47 + $0x3c] sm:$0xf]
  %v3602 = vld [vmem:[%s43] sm:$0xf]
  %v3603 = vld [vmem:[%s43 + $0x4] sm:$0xf]
  %v3604 = vld [vmem:[%s43 + $0x8] sm:$0xf]
  %v3605 = vld [vmem:[%s43 + $0xc] sm:$0xf]
  %v3606 = vpack.c.bf16 %v3553, %v3552
  %v3611 = vunpack.c.l.b16 %v3554
  %v3612 = vunpack.c.l.b16 %v3555
  %v3613 = vunpack.c.l.b16 %v3556
  %v3614 = vunpack.c.l.b16 %v3557
  %v3615 = vpack.c.b16 %v3612, %v3611
  %v3616 = vpack.c.b16 %v3614, %v3613
  %v3620 = vsel %vm189, %v3606, 0
  %3622 = vmatpush.bf16.msra.mxu0 0
  %3623 = vmatpush.bf16.msra.mxu0 0
  %3624 = vmatpush.bf16.msra.mxu0 0
  %3625 = vmatpush.bf16.msra.mxu0 0
  %3626 = vmatpush.bf16.msra.mxu0 0
  %3627 = vmatpush.bf16.msra.mxu0 0
  %3628 = vmatpush.bf16.msra.mxu0 %v3616
  %3629 = vmatpush.bf16.msra.mxu0 %v3615
  %3630 = vmatmul.bf16.gmra.mxu0 %v3620
  %v3631 = vpop.f32.mrf.mxu0
  %v3632 = vadd.f32 0.0, %v3631
  %v3633 = vpop.f32.mrf.mxu0
  %v3634 = vadd.f32 0.0, %v3633
  %3635 = vdwg.mxu0
  %v3640 = vunpack.c.l.b16 %v3570
  %v3641 = vunpack.c.l.b16 %v3571
  %v3642 = vunpack.c.l.b16 %v3572
  %v3643 = vunpack.c.l.b16 %v3573
  %v3644 = vpack.c.b16 %v3641, %v3640
  %v3645 = vpack.c.b16 %v3643, %v3642
  %3648 = vmatpush.bf16.msra.mxu0 0
  %3649 = vmatpush.bf16.msra.mxu0 0
  %3650 = vmatpush.bf16.msra.mxu0 0
  %3651 = vmatpush.bf16.msra.mxu0 0
  %3652 = vmatpush.bf16.msra.mxu0 0
  %3653 = vmatpush.bf16.msra.mxu0 0
  %3654 = vmatpush.bf16.msra.mxu0 %v3645
  %3655 = vmatpush.bf16.msra.mxu0 %v3644
  %3656 = vmatmul.bf16.gmra.mxu0 %v3620
  %v3657 = vpop.f32.mrf.mxu0
  %v3658 = vadd.f32 0.0, %v3657
  %v3659 = vpop.f32.mrf.mxu0
  %v3660 = vadd.f32 0.0, %v3659
  %3661 = vdwg.mxu0
  %v3666 = vunpack.c.l.b16 %v3586
  %v3667 = vunpack.c.l.b16 %v3587
  %v3668 = vunpack.c.l.b16 %v3588
  %v3669 = vunpack.c.l.b16 %v3589
  %v3670 = vpack.c.b16 %v3667, %v3666
  %v3671 = vpack.c.b16 %v3669, %v3668
  %3674 = vmatpush.bf16.msra.mxu0 0
  %3675 = vmatpush.bf16.msra.mxu0 0
  %3676 = vmatpush.bf16.msra.mxu0 0
  %3677 = vmatpush.bf16.msra.mxu0 0
  %3678 = vmatpush.bf16.msra.mxu0 0
  %3679 = vmatpush.bf16.msra.mxu0 0
  %3680 = vmatpush.bf16.msra.mxu0 %v3671
  %3681 = vmatpush.bf16.msra.mxu0 %v3670
  %3682 = vmatmul.bf16.gmra.mxu0 %v3620
  %v3683 = vpop.f32.mrf.mxu0
  %v3684 = vadd.f32 0.0, %v3683
  %v3685 = vpop.f32.mrf.mxu0
  %v3686 = vadd.f32 0.0, %v3685
  %3687 = vdwg.mxu0
  %v3688 = vpack.c.bf16 %v3632, %v3632
  %v3689 = vpack.c.bf16 %v3634, %v3634
  %v3690 = vpack.c.bf16 %v3658, %v3658
  %v3691 = vpack.c.bf16 %v3660, %v3660
  %v3692 = vpack.c.bf16 %v3684, %v3684
  %v3693 = vpack.c.bf16 %v3686, %v3686
  %v3695 = vsel %vm391, %v3688, 0
  %v3698 = vsel %vm391, %v3690, 0
  %3700 = vmatpush.bf16.xpose.msra.mxu0 0
  %3701 = vmatpush.bf16.xpose.msra.mxu0 0
  %3702 = vmatpush.bf16.xpose.msra.mxu0 0
  %3703 = vmatpush.bf16.xpose.msra.mxu0 0
  %3704 = vmatpush.bf16.xpose.msra.mxu0 0
  %3705 = vmatpush.bf16.xpose.msra.mxu0 0
  %3706 = vmatpush.bf16.xpose.msra.mxu0 0
  %3707 = vmatpush.bf16.xpose.msra.mxu0 %v3698
  %3708 = vmatmul.bf16.gmra.mxu0 %v3695
  %v3709 = vpop.f32.mrf.mxu0
  %v3710 = vadd.f32 %v3492, %v3709
  %v3711 = vpop.f32.mrf.mxu0
  %3712 = vdwg.mxu0
  %v3714 = vsel %vm391, %v3689, 0
  %v3717 = vsel %vm391, %v3691, 0
  %3719 = vmatpush.bf16.xpose.msra.mxu0 0
  %3720 = vmatpush.bf16.xpose.msra.mxu0 0
  %3721 = vmatpush.bf16.xpose.msra.mxu0 0
  %3722 = vmatpush.bf16.xpose.msra.mxu0 0
  %3723 = vmatpush.bf16.xpose.msra.mxu0 0
  %3724 = vmatpush.bf16.xpose.msra.mxu0 0
  %3725 = vmatpush.bf16.xpose.msra.mxu0 0
  %3726 = vmatpush.bf16.xpose.msra.mxu0 %v3717
  %3727 = vmatmul.bf16.gmra.mxu0 %v3714
  %v3728 = vpop.f32.mrf.mxu0
  %v3729 = vadd.f32 %v3493, %v3728
  %v3730 = vpop.f32.mrf.mxu0
  %3731 = vdwg.mxu0
  %v3732 = vsel %vm391, %v3710, -inf
  %3733 = vmax.xlane.f32.xlu0 %v3732
  %v3734 = vpop.xlane.xlu0 %3733
  %v3735 = vsel %vm391, %v3729, -inf
  %3736 = vmax.xlane.f32.xlu0 %v3735
  %v3737 = vpop.xlane.xlu0 %3736
  %v3738 = vsub.f32 %v3710, %v3734
  %v3739 = vsub.f32 %v3729, %v3737
  %v3740 = vmul.f32 %v3738, 1.442695
  %v3741 = vpow.pop %v3740
  %v3742 = vmul.f32 %v3739, 1.442695
  %v3743 = vpow.pop %v3742
  %v3744 = vsel %vm391, %v3741, 0.0
  %3745 = vadd.xlane.f32.xlu0 %v3744
  %v3746 = vpop.xlane.xlu0 %3745
  %v3747 = vsel %vm391, %v3743, 0.0
  %3748 = vadd.xlane.f32.xlu0 %v3747
  %v3749 = vpop.xlane.xlu0 %3748
  %v3750 = vrcp.pop %v3746
  %v3751 = vrcp.pop %v3749
  %v3752 = vmul.f32 %v3741, %v3750
  %v3753 = vmul.f32 %v3743, %v3751
  %v3754 = vpack.c.bf16 %v3752, %v3752
  %v3755 = vpack.c.bf16 %v3753, %v3753
  %v3757 = vsel %vm391, %v3754, 0
  %v3760 = vsel %vm457, %v3692, 0
  %3762 = vmatpush.bf16.msra.mxu0 0
  %3763 = vmatpush.bf16.msra.mxu0 0
  %3764 = vmatpush.bf16.msra.mxu0 0
  %3765 = vmatpush.bf16.msra.mxu0 0
  %3766 = vmatpush.bf16.msra.mxu0 0
  %3767 = vmatpush.bf16.msra.mxu0 0
  %3768 = vmatpush.bf16.msra.mxu0 0
  %3769 = vmatpush.bf16.msra.mxu0 %v3760
  %3770 = vmatmul.bf16.gmra.mxu0 %v3757
  %v3771 = vpop.f32.mrf.mxu0
  %v3772 = vadd.f32 0.0, %v3771
  %v3773 = vpop.f32.mrf.mxu0
  %3774 = vdwg.mxu0
  %v3776 = vsel %vm391, %v3755, 0
  %v3779 = vsel %vm457, %v3693, 0
  %3781 = vmatpush.bf16.msra.mxu0 0
  %3782 = vmatpush.bf16.msra.mxu0 0
  %3783 = vmatpush.bf16.msra.mxu0 0
  %3784 = vmatpush.bf16.msra.mxu0 0
  %3785 = vmatpush.bf16.msra.mxu0 0
  %3786 = vmatpush.bf16.msra.mxu0 0
  %3787 = vmatpush.bf16.msra.mxu0 0
  %3788 = vmatpush.bf16.msra.mxu0 %v3779
  %3789 = vmatmul.bf16.gmra.mxu0 %v3776
  %v3790 = vpop.f32.mrf.mxu0
  %v3791 = vadd.f32 0.0, %v3790
  %v3792 = vpop.f32.mrf.mxu0
  %3793 = vdwg.mxu0
  %v3794 = vpack.c.bf16 %v3791, %v3772
  %v3799 = vunpack.c.l.b16 %v3558
  %v3800 = vunpack.c.l.b16 %v3559
  %v3801 = vunpack.c.l.b16 %v3560
  %v3802 = vunpack.c.l.b16 %v3561
  %v3803 = vpack.c.b16 %v3800, %v3799
  %v3804 = vpack.c.b16 %v3802, %v3801
  %3807 = vmatpush.bf16.msra.mxu0 0
  %3808 = vmatpush.bf16.msra.mxu0 0
  %3809 = vmatpush.bf16.msra.mxu0 0
  %3810 = vmatpush.bf16.msra.mxu0 0
  %3811 = vmatpush.bf16.msra.mxu0 0
  %3812 = vmatpush.bf16.msra.mxu0 0
  %3813 = vmatpush.bf16.msra.mxu0 %v3804
  %3814 = vmatpush.bf16.msra.mxu0 %v3803
  %3815 = vmatmul.bf16.gmra.mxu0 %v3620
  %v3816 = vpop.f32.mrf.mxu0
  %v3817 = vadd.f32 0.0, %v3816
  %v3818 = vpop.f32.mrf.mxu0
  %v3819 = vadd.f32 0.0, %v3818
  %3820 = vdwg.mxu0
  %v3825 = vunpack.c.l.b16 %v3574
  %v3826 = vunpack.c.l.b16 %v3575
  %v3827 = vunpack.c.l.b16 %v3576
  %v3828 = vunpack.c.l.b16 %v3577
  %v3829 = vpack.c.b16 %v3826, %v3825
  %v3830 = vpack.c.b16 %v3828, %v3827
  %3833 = vmatpush.bf16.msra.mxu0 0
  %3834 = vmatpush.bf16.msra.mxu0 0
  %3835 = vmatpush.bf16.msra.mxu0 0
  %3836 = vmatpush.bf16.msra.mxu0 0
  %3837 = vmatpush.bf16.msra.mxu0 0
  %3838 = vmatpush.bf16.msra.mxu0 0
  %3839 = vmatpush.bf16.msra.mxu0 %v3830
  %3840 = vmatpush.bf16.msra.mxu0 %v3829
  %3841 = vmatmul.bf16.gmra.mxu0 %v3620
  %v3842 = vpop.f32.mrf.mxu0
  %v3843 = vadd.f32 0.0, %v3842
  %v3844 = vpop.f32.mrf.mxu0
  %v3845 = vadd.f32 0.0, %v3844
  %3846 = vdwg.mxu0
  %v3851 = vunpack.c.l.b16 %v3590
  %v3852 = vunpack.c.l.b16 %v3591
  %v3853 = vunpack.c.l.b16 %v3592
  %v3854 = vunpack.c.l.b16 %v3593
  %v3855 = vpack.c.b16 %v3852, %v3851
  %v3856 = vpack.c.b16 %v3854, %v3853
  %3859 = vmatpush.bf16.msra.mxu0 0
  %3860 = vmatpush.bf16.msra.mxu0 0
  %3861 = vmatpush.bf16.msra.mxu0 0
  %3862 = vmatpush.bf16.msra.mxu0 0
  %3863 = vmatpush.bf16.msra.mxu0 0
  %3864 = vmatpush.bf16.msra.mxu0 0
  %3865 = vmatpush.bf16.msra.mxu0 %v3856
  %3866 = vmatpush.bf16.msra.mxu0 %v3855
  %3867 = vmatmul.bf16.gmra.mxu0 %v3620
  %v3868 = vpop.f32.mrf.mxu0
  %v3869 = vadd.f32 0.0, %v3868
  %v3870 = vpop.f32.mrf.mxu0
  %v3871 = vadd.f32 0.0, %v3870
  %3872 = vdwg.mxu0
  %v3873 = vpack.c.bf16 %v3817, %v3817
  %v3874 = vpack.c.bf16 %v3819, %v3819
  %v3875 = vpack.c.bf16 %v3843, %v3843
  %v3876 = vpack.c.bf16 %v3845, %v3845
  %v3877 = vpack.c.bf16 %v3869, %v3869
  %v3878 = vpack.c.bf16 %v3871, %v3871
  %v3880 = vsel %vm391, %v3873, 0
  %v3883 = vsel %vm391, %v3875, 0
  %3885 = vmatpush.bf16.xpose.msra.mxu0 0
  %3886 = vmatpush.bf16.xpose.msra.mxu0 0
  %3887 = vmatpush.bf16.xpose.msra.mxu0 0
  %3888 = vmatpush.bf16.xpose.msra.mxu0 0
  %3889 = vmatpush.bf16.xpose.msra.mxu0 0
  %3890 = vmatpush.bf16.xpose.msra.mxu0 0
  %3891 = vmatpush.bf16.xpose.msra.mxu0 0
  %3892 = vmatpush.bf16.xpose.msra.mxu0 %v3883
  %3893 = vmatmul.bf16.gmra.mxu0 %v3880
  %v3894 = vpop.f32.mrf.mxu0
  %v3895 = vadd.f32 %v3492, %v3894
  %v3896 = vpop.f32.mrf.mxu0
  %3897 = vdwg.mxu0
  %v3899 = vsel %vm391, %v3874, 0
  %v3902 = vsel %vm391, %v3876, 0
  %3904 = vmatpush.bf16.xpose.msra.mxu0 0
  %3905 = vmatpush.bf16.xpose.msra.mxu0 0
  %3906 = vmatpush.bf16.xpose.msra.mxu0 0
  %3907 = vmatpush.bf16.xpose.msra.mxu0 0
  %3908 = vmatpush.bf16.xpose.msra.mxu0 0
  %3909 = vmatpush.bf16.xpose.msra.mxu0 0
  %3910 = vmatpush.bf16.xpose.msra.mxu0 0
  %3911 = vmatpush.bf16.xpose.msra.mxu0 %v3902
  %3912 = vmatmul.bf16.gmra.mxu0 %v3899
  %v3913 = vpop.f32.mrf.mxu0
  %v3914 = vadd.f32 %v3493, %v3913
  %v3915 = vpop.f32.mrf.mxu0
  %3916 = vdwg.mxu0
  %v3917 = vsel %vm391, %v3895, -inf
  %3918 = vmax.xlane.f32.xlu0 %v3917
  %v3919 = vpop.xlane.xlu0 %3918
  %v3920 = vsel %vm391, %v3914, -inf
  %3921 = vmax.xlane.f32.xlu0 %v3920
  %v3922 = vpop.xlane.xlu0 %3921
  %v3923 = vsub.f32 %v3895, %v3919
  %v3924 = vsub.f32 %v3914, %v3922
  %v3925 = vmul.f32 %v3923, 1.442695
  %v3926 = vpow.pop %v3925
  %v3927 = vmul.f32 %v3924, 1.442695
  %v3928 = vpow.pop %v3927
  %v3929 = vsel %vm391, %v3926, 0.0
  %3930 = vadd.xlane.f32.xlu0 %v3929
  %v3931 = vpop.xlane.xlu0 %3930
  %v3932 = vsel %vm391, %v3928, 0.0
  %3933 = vadd.xlane.f32.xlu0 %v3932
  %v3934 = vpop.xlane.xlu0 %3933
  %v3935 = vrcp.pop %v3931
  %v3936 = vrcp.pop %v3934
  %v3937 = vmul.f32 %v3926, %v3935
  %v3938 = vmul.f32 %v3928, %v3936
  %v3939 = vpack.c.bf16 %v3937, %v3937
  %v3940 = vpack.c.bf16 %v3938, %v3938
  %v3942 = vsel %vm391, %v3939, 0
  %v3945 = vsel %vm457, %v3877, 0
  %3947 = vmatpush.bf16.msra.mxu0 0
  %3948 = vmatpush.bf16.msra.mxu0 0
  %3949 = vmatpush.bf16.msra.mxu0 0
  %3950 = vmatpush.bf16.msra.mxu0 0
  %3951 = vmatpush.bf16.msra.mxu0 0
  %3952 = vmatpush.bf16.msra.mxu0 0
  %3953 = vmatpush.bf16.msra.mxu0 0
  %3954 = vmatpush.bf16.msra.mxu0 %v3945
  %3955 = vmatmul.bf16.gmra.mxu0 %v3942
  %v3956 = vpop.f32.mrf.mxu0
  %v3957 = vadd.f32 0.0, %v3956
  %v3958 = vpop.f32.mrf.mxu0
  %3959 = vdwg.mxu0
  %v3961 = vsel %vm391, %v3940, 0
  %v3964 = vsel %vm457, %v3878, 0
  %3966 = vmatpush.bf16.msra.mxu0 0
  %3967 = vmatpush.bf16.msra.mxu0 0
  %3968 = vmatpush.bf16.msra.mxu0 0
  %3969 = vmatpush.bf16.msra.mxu0 0
  %3970 = vmatpush.bf16.msra.mxu0 0
  %3971 = vmatpush.bf16.msra.mxu0 0
  %3972 = vmatpush.bf16.msra.mxu0 0
  %3973 = vmatpush.bf16.msra.mxu0 %v3964
  %3974 = vmatmul.bf16.gmra.mxu0 %v3961
  %v3975 = vpop.f32.mrf.mxu0
  %v3976 = vadd.f32 0.0, %v3975
  %v3977 = vpop.f32.mrf.mxu0
  %3978 = vdwg.mxu0
  %v3979 = vpack.c.bf16 %v3976, %v3957
  %v3981 = vsel %vm391, %v3979, 0
  %v3984 = vsel %vm457, %v3603, 0
  %3986 = vmatpush.bf16.msra.mxu0 0
  %3987 = vmatpush.bf16.msra.mxu0 0
  %3988 = vmatpush.bf16.msra.mxu0 0
  %3989 = vmatpush.bf16.msra.mxu0 0
  %3990 = vmatpush.bf16.msra.mxu0 0
  %3991 = vmatpush.bf16.msra.mxu0 0
  %3992 = vmatpush.bf16.msra.mxu0 0
  %3993 = vmatpush.bf16.msra.mxu0 %v3984
  %3994 = vmatmul.bf16.gmra.mxu0 %v3981
  %v3995 = vpop.f32.mrf.mxu0
  %v3996 = vadd.f32 0.0, %v3995
  %v3997 = vpop.f32.mrf.mxu0
  %v3998 = vadd.f32 0.0, %v3997
  %3999 = vdwg.mxu0
  %v4001 = vsel %vm391, %v3794, 0
  %v4004 = vsel %vm457, %v3602, 0
  %4006 = vmatpush.bf16.msra.mxu0 0
  %4007 = vmatpush.bf16.msra.mxu0 0
  %4008 = vmatpush.bf16.msra.mxu0 0
  %4009 = vmatpush.bf16.msra.mxu0 0
  %4010 = vmatpush.bf16.msra.mxu0 0
  %4011 = vmatpush.bf16.msra.mxu0 0
  %4012 = vmatpush.bf16.msra.mxu0 0
  %4013 = vmatpush.bf16.msra.mxu0 %v4004
  %4014 = vmatmul.bf16.gmra.mxu0 %v4001
  %v4015 = vpop.f32.mrf.mxu0
  %v4016 = vadd.f32 %v3996, %v4015
  %v4017 = vpop.f32.mrf.mxu0
  %v4018 = vadd.f32 %v3998, %v4017
  %4019 = vdwg.mxu0
  %v4024 = vunpack.c.l.b16 %v3562
  %v4025 = vunpack.c.l.b16 %v3563
  %v4026 = vunpack.c.l.b16 %v3564
  %v4027 = vunpack.c.l.b16 %v3565
  %v4028 = vpack.c.b16 %v4025, %v4024
  %v4029 = vpack.c.b16 %v4027, %v4026
  %4032 = vmatpush.bf16.msra.mxu0 0
  %4033 = vmatpush.bf16.msra.mxu0 0
  %4034 = vmatpush.bf16.msra.mxu0 0
  %4035 = vmatpush.bf16.msra.mxu0 0
  %4036 = vmatpush.bf16.msra.mxu0 0
  %4037 = vmatpush.bf16.msra.mxu0 0
  %4038 = vmatpush.bf16.msra.mxu0 %v4029
  %4039 = vmatpush.bf16.msra.mxu0 %v4028
  %4040 = vmatmul.bf16.gmra.mxu0 %v3620
  %v4041 = vpop.f32.mrf.mxu0
  %v4042 = vadd.f32 0.0, %v4041
  %v4043 = vpop.f32.mrf.mxu0
  %v4044 = vadd.f32 0.0, %v4043
  %4045 = vdwg.mxu0
  %v4050 = vunpack.c.l.b16 %v3578
  %v4051 = vunpack.c.l.b16 %v3579
  %v4052 = vunpack.c.l.b16 %v3580
  %v4053 = vunpack.c.l.b16 %v3581
  %v4054 = vpack.c.b16 %v4051, %v4050
  %v4055 = vpack.c.b16 %v4053, %v4052
  %4058 = vmatpush.bf16.msra.mxu0 0
  %4059 = vmatpush.bf16.msra.mxu0 0
  %4060 = vmatpush.bf16.msra.mxu0 0
  %4061 = vmatpush.bf16.msra.mxu0 0
  %4062 = vmatpush.bf16.msra.mxu0 0
  %4063 = vmatpush.bf16.msra.mxu0 0
  %4064 = vmatpush.bf16.msra.mxu0 %v4055
  %4065 = vmatpush.bf16.msra.mxu0 %v4054
  %4066 = vmatmul.bf16.gmra.mxu0 %v3620
  %v4067 = vpop.f32.mrf.mxu0
  %v4068 = vadd.f32 0.0, %v4067
  %v4069 = vpop.f32.mrf.mxu0
  %v4070 = vadd.f32 0.0, %v4069
  %4071 = vdwg.mxu0
  %v4076 = vunpack.c.l.b16 %v3594
  %v4077 = vunpack.c.l.b16 %v3595
  %v4078 = vunpack.c.l.b16 %v3596
  %v4079 = vunpack.c.l.b16 %v3597
  %v4080 = vpack.c.b16 %v4077, %v4076
  %v4081 = vpack.c.b16 %v4079, %v4078
  %4084 = vmatpush.bf16.msra.mxu0 0
  %4085 = vmatpush.bf16.msra.mxu0 0
  %4086 = vmatpush.bf16.msra.mxu0 0
  %4087 = vmatpush.bf16.msra.mxu0 0
  %4088 = vmatpush.bf16.msra.mxu0 0
  %4089 = vmatpush.bf16.msra.mxu0 0
  %4090 = vmatpush.bf16.msra.mxu0 %v4081
  %4091 = vmatpush.bf16.msra.mxu0 %v4080
  %4092 = vmatmul.bf16.gmra.mxu0 %v3620
  %v4093 = vpop.f32.mrf.mxu0
  %v4094 = vadd.f32 0.0, %v4093
  %v4095 = vpop.f32.mrf.mxu0
  %v4096 = vadd.f32 0.0, %v4095
  %4097 = vdwg.mxu0
  %v4098 = vpack.c.bf16 %v4042, %v4042
  %v4099 = vpack.c.bf16 %v4044, %v4044
  %v4100 = vpack.c.bf16 %v4068, %v4068
  %v4101 = vpack.c.bf16 %v4070, %v4070
  %v4102 = vpack.c.bf16 %v4094, %v4094
  %v4103 = vpack.c.bf16 %v4096, %v4096
  %v4105 = vsel %vm391, %v4098, 0
  %v4108 = vsel %vm391, %v4100, 0
  %4110 = vmatpush.bf16.xpose.msra.mxu0 0
  %4111 = vmatpush.bf16.xpose.msra.mxu0 0
  %4112 = vmatpush.bf16.xpose.msra.mxu0 0
  %4113 = vmatpush.bf16.xpose.msra.mxu0 0
  %4114 = vmatpush.bf16.xpose.msra.mxu0 0
  %4115 = vmatpush.bf16.xpose.msra.mxu0 0
  %4116 = vmatpush.bf16.xpose.msra.mxu0 0
  %4117 = vmatpush.bf16.xpose.msra.mxu0 %v4108
  %4118 = vmatmul.bf16.gmra.mxu0 %v4105
  %v4119 = vpop.f32.mrf.mxu0
  %v4120 = vadd.f32 %v3492, %v4119
  %v4121 = vpop.f32.mrf.mxu0
  %4122 = vdwg.mxu0
  %v4124 = vsel %vm391, %v4099, 0
  %v4127 = vsel %vm391, %v4101, 0
  %4129 = vmatpush.bf16.xpose.msra.mxu0 0
  %4130 = vmatpush.bf16.xpose.msra.mxu0 0
  %4131 = vmatpush.bf16.xpose.msra.mxu0 0
  %4132 = vmatpush.bf16.xpose.msra.mxu0 0
  %4133 = vmatpush.bf16.xpose.msra.mxu0 0
  %4134 = vmatpush.bf16.xpose.msra.mxu0 0
  %4135 = vmatpush.bf16.xpose.msra.mxu0 0
  %4136 = vmatpush.bf16.xpose.msra.mxu0 %v4127
  %4137 = vmatmul.bf16.gmra.mxu0 %v4124
  %v4138 = vpop.f32.mrf.mxu0
  %v4139 = vadd.f32 %v3493, %v4138
  %v4140 = vpop.f32.mrf.mxu0
  %4141 = vdwg.mxu0
  %v4142 = vsel %vm391, %v4120, -inf
  %4143 = vmax.xlane.f32.xlu0 %v4142
  %v4144 = vpop.xlane.xlu0 %4143
  %v4145 = vsel %vm391, %v4139, -inf
  %4146 = vmax.xlane.f32.xlu0 %v4145
  %v4147 = vpop.xlane.xlu0 %4146
  %v4148 = vsub.f32 %v4120, %v4144
  %v4149 = vsub.f32 %v4139, %v4147
  %v4150 = vmul.f32 %v4148, 1.442695
  %v4151 = vpow.pop %v4150
  %v4152 = vmul.f32 %v4149, 1.442695
  %v4153 = vpow.pop %v4152
  %v4154 = vsel %vm391, %v4151, 0.0
  %4155 = vadd.xlane.f32.xlu0 %v4154
  %v4156 = vpop.xlane.xlu0 %4155
  %v4157 = vsel %vm391, %v4153, 0.0
  %4158 = vadd.xlane.f32.xlu0 %v4157
  %v4159 = vpop.xlane.xlu0 %4158
  %v4160 = vrcp.pop %v4156
  %v4161 = vrcp.pop %v4159
  %v4162 = vmul.f32 %v4151, %v4160
  %v4163 = vmul.f32 %v4153, %v4161
  %v4164 = vpack.c.bf16 %v4162, %v4162
  %v4165 = vpack.c.bf16 %v4163, %v4163
  %v4167 = vsel %vm391, %v4164, 0
  %v4170 = vsel %vm457, %v4102, 0
  %4172 = vmatpush.bf16.msra.mxu0 0
  %4173 = vmatpush.bf16.msra.mxu0 0
  %4174 = vmatpush.bf16.msra.mxu0 0
  %4175 = vmatpush.bf16.msra.mxu0 0
  %4176 = vmatpush.bf16.msra.mxu0 0
  %4177 = vmatpush.bf16.msra.mxu0 0
  %4178 = vmatpush.bf16.msra.mxu0 0
  %4179 = vmatpush.bf16.msra.mxu0 %v4170
  %4180 = vmatmul.bf16.gmra.mxu0 %v4167
  %v4181 = vpop.f32.mrf.mxu0
  %v4182 = vadd.f32 0.0, %v4181
  %v4183 = vpop.f32.mrf.mxu0
  %4184 = vdwg.mxu0
  %v4186 = vsel %vm391, %v4165, 0
  %v4189 = vsel %vm457, %v4103, 0
  %4191 = vmatpush.bf16.msra.mxu0 0
  %4192 = vmatpush.bf16.msra.mxu0 0
  %4193 = vmatpush.bf16.msra.mxu0 0
  %4194 = vmatpush.bf16.msra.mxu0 0
  %4195 = vmatpush.bf16.msra.mxu0 0
  %4196 = vmatpush.bf16.msra.mxu0 0
  %4197 = vmatpush.bf16.msra.mxu0 0
  %4198 = vmatpush.bf16.msra.mxu0 %v4189
  %4199 = vmatmul.bf16.gmra.mxu0 %v4186
  %v4200 = vpop.f32.mrf.mxu0
  %v4201 = vadd.f32 0.0, %v4200
  %v4202 = vpop.f32.mrf.mxu0
  %4203 = vdwg.mxu0
  %v4204 = vpack.c.bf16 %v4201, %v4182
  %v4206 = vsel %vm391, %v4204, 0
  %v4209 = vsel %vm457, %v3604, 0
  %4211 = vmatpush.bf16.msra.mxu0 0
  %4212 = vmatpush.bf16.msra.mxu0 0
  %4213 = vmatpush.bf16.msra.mxu0 0
  %4214 = vmatpush.bf16.msra.mxu0 0
  %4215 = vmatpush.bf16.msra.mxu0 0
  %4216 = vmatpush.bf16.msra.mxu0 0
  %4217 = vmatpush.bf16.msra.mxu0 0
  %4218 = vmatpush.bf16.msra.mxu0 %v4209
  %4219 = vmatmul.bf16.gmra.mxu0 %v4206
  %v4220 = vpop.f32.mrf.mxu0
  %v4221 = vadd.f32 0.0, %v4220
  %v4222 = vpop.f32.mrf.mxu0
  %v4223 = vadd.f32 0.0, %v4222
  %4224 = vdwg.mxu0
  %v4225 = vadd.f32 %v4016, %v4221
  %v4226 = vadd.f32 %v4018, %v4223
  %v4231 = vunpack.c.l.b16 %v3566
  %v4232 = vunpack.c.l.b16 %v3567
  %v4233 = vunpack.c.l.b16 %v3568
  %v4234 = vunpack.c.l.b16 %v3569
  %v4235 = vpack.c.b16 %v4232, %v4231
  %v4236 = vpack.c.b16 %v4234, %v4233
  %4239 = vmatpush.bf16.msra.mxu0 0
  %4240 = vmatpush.bf16.msra.mxu0 0
  %4241 = vmatpush.bf16.msra.mxu0 0
  %4242 = vmatpush.bf16.msra.mxu0 0
  %4243 = vmatpush.bf16.msra.mxu0 0
  %4244 = vmatpush.bf16.msra.mxu0 0
  %4245 = vmatpush.bf16.msra.mxu0 %v4236
  %4246 = vmatpush.bf16.msra.mxu0 %v4235
  %4247 = vmatmul.bf16.gmra.mxu0 %v3620
  %v4248 = vpop.f32.mrf.mxu0
  %v4249 = vadd.f32 0.0, %v4248
  %v4250 = vpop.f32.mrf.mxu0
  %v4251 = vadd.f32 0.0, %v4250
  %4252 = vdwg.mxu0
  %v4257 = vunpack.c.l.b16 %v3582
  %v4258 = vunpack.c.l.b16 %v3583
  %v4259 = vunpack.c.l.b16 %v3584
  %v4260 = vunpack.c.l.b16 %v3585
  %v4261 = vpack.c.b16 %v4258, %v4257
  %v4262 = vpack.c.b16 %v4260, %v4259
  %4265 = vmatpush.bf16.msra.mxu0 0
  %4266 = vmatpush.bf16.msra.mxu0 0
  %4267 = vmatpush.bf16.msra.mxu0 0
  %4268 = vmatpush.bf16.msra.mxu0 0
  %4269 = vmatpush.bf16.msra.mxu0 0
  %4270 = vmatpush.bf16.msra.mxu0 0
  %4271 = vmatpush.bf16.msra.mxu0 %v4262
  %4272 = vmatpush.bf16.msra.mxu0 %v4261
  %4273 = vmatmul.bf16.gmra.mxu0 %v3620
  %v4274 = vpop.f32.mrf.mxu0
  %v4275 = vadd.f32 0.0, %v4274
  %v4276 = vpop.f32.mrf.mxu0
  %v4277 = vadd.f32 0.0, %v4276
  %4278 = vdwg.mxu0
  %v4283 = vunpack.c.l.b16 %v3598
  %v4284 = vunpack.c.l.b16 %v3599
  %v4285 = vunpack.c.l.b16 %v3600
  %v4286 = vunpack.c.l.b16 %v3601
  %v4287 = vpack.c.b16 %v4284, %v4283
  %v4288 = vpack.c.b16 %v4286, %v4285
  %4291 = vmatpush.bf16.msra.mxu0 0
  %4292 = vmatpush.bf16.msra.mxu0 0
  %4293 = vmatpush.bf16.msra.mxu0 0
  %4294 = vmatpush.bf16.msra.mxu0 0
  %4295 = vmatpush.bf16.msra.mxu0 0
  %4296 = vmatpush.bf16.msra.mxu0 0
  %4297 = vmatpush.bf16.msra.mxu0 %v4288
  %4298 = vmatpush.bf16.msra.mxu0 %v4287
  %4299 = vmatmul.bf16.gmra.mxu0 %v3620
  %v4300 = vpop.f32.mrf.mxu0
  %v4301 = vadd.f32 0.0, %v4300
  %v4302 = vpop.f32.mrf.mxu0
  %v4303 = vadd.f32 0.0, %v4302
  %4304 = vdwg.mxu0
  %v4305 = vpack.c.bf16 %v4249, %v4249
  %v4306 = vpack.c.bf16 %v4251, %v4251
  %v4307 = vpack.c.bf16 %v4275, %v4275
  %v4308 = vpack.c.bf16 %v4277, %v4277
  %v4309 = vpack.c.bf16 %v4301, %v4301
  %v4310 = vpack.c.bf16 %v4303, %v4303
  %v4312 = vsel %vm391, %v4305, 0
  %v4315 = vsel %vm391, %v4307, 0
  %4317 = vmatpush.bf16.xpose.msra.mxu0 0
  %4318 = vmatpush.bf16.xpose.msra.mxu0 0
  %4319 = vmatpush.bf16.xpose.msra.mxu0 0
  %4320 = vmatpush.bf16.xpose.msra.mxu0 0
  %4321 = vmatpush.bf16.xpose.msra.mxu0 0
  %4322 = vmatpush.bf16.xpose.msra.mxu0 0
  %4323 = vmatpush.bf16.xpose.msra.mxu0 0
  %4324 = vmatpush.bf16.xpose.msra.mxu0 %v4315
  %4325 = vmatmul.bf16.gmra.mxu0 %v4312
  %v4326 = vpop.f32.mrf.mxu0
  %v4327 = vadd.f32 %v3492, %v4326
  %v4328 = vpop.f32.mrf.mxu0
  %4329 = vdwg.mxu0
  %v4331 = vsel %vm391, %v4306, 0
  %v4334 = vsel %vm391, %v4308, 0
  %4336 = vmatpush.bf16.xpose.msra.mxu0 0
  %4337 = vmatpush.bf16.xpose.msra.mxu0 0
  %4338 = vmatpush.bf16.xpose.msra.mxu0 0
  %4339 = vmatpush.bf16.xpose.msra.mxu0 0
  %4340 = vmatpush.bf16.xpose.msra.mxu0 0
  %4341 = vmatpush.bf16.xpose.msra.mxu0 0
  %4342 = vmatpush.bf16.xpose.msra.mxu0 0
  %4343 = vmatpush.bf16.xpose.msra.mxu0 %v4334
  %4344 = vmatmul.bf16.gmra.mxu0 %v4331
  %v4345 = vpop.f32.mrf.mxu0
  %v4346 = vadd.f32 %v3493, %v4345
  %v4347 = vpop.f32.mrf.mxu0
  %4348 = vdwg.mxu0
  %v4349 = vsel %vm391, %v4327, -inf
  %4350 = vmax.xlane.f32.xlu0 %v4349
  %v4351 = vpop.xlane.xlu0 %4350
  %v4352 = vsel %vm391, %v4346, -inf
  %4353 = vmax.xlane.f32.xlu0 %v4352
  %v4354 = vpop.xlane.xlu0 %4353
  %v4355 = vsub.f32 %v4327, %v4351
  %v4356 = vsub.f32 %v4346, %v4354
  %v4357 = vmul.f32 %v4355, 1.442695
  %v4358 = vpow.pop %v4357
  %v4359 = vmul.f32 %v4356, 1.442695
  %v4360 = vpow.pop %v4359
  %v4361 = vsel %vm391, %v4358, 0.0
  %4362 = vadd.xlane.f32.xlu0 %v4361
  %v4363 = vpop.xlane.xlu0 %4362
  %v4364 = vsel %vm391, %v4360, 0.0
  %4365 = vadd.xlane.f32.xlu0 %v4364
  %v4366 = vpop.xlane.xlu0 %4365
  %v4367 = vrcp.pop %v4363
  %v4368 = vrcp.pop %v4366
  %v4369 = vmul.f32 %v4358, %v4367
  %v4370 = vmul.f32 %v4360, %v4368
  %v4371 = vpack.c.bf16 %v4369, %v4369
  %v4372 = vpack.c.bf16 %v4370, %v4370
  %v4374 = vsel %vm391, %v4371, 0
  %v4377 = vsel %vm457, %v4309, 0
  %4379 = vmatpush.bf16.msra.mxu0 0
  %4380 = vmatpush.bf16.msra.mxu0 0
  %4381 = vmatpush.bf16.msra.mxu0 0
  %4382 = vmatpush.bf16.msra.mxu0 0
  %4383 = vmatpush.bf16.msra.mxu0 0
  %4384 = vmatpush.bf16.msra.mxu0 0
  %4385 = vmatpush.bf16.msra.mxu0 0
  %4386 = vmatpush.bf16.msra.mxu0 %v4377
  %4387 = vmatmul.bf16.gmra.mxu0 %v4374
  %v4388 = vpop.f32.mrf.mxu0
  %v4389 = vadd.f32 0.0, %v4388
  %v4390 = vpop.f32.mrf.mxu0
  %4391 = vdwg.mxu0
  %v4393 = vsel %vm391, %v4372, 0
  %v4396 = vsel %vm457, %v4310, 0
  %4398 = vmatpush.bf16.msra.mxu0 0
  %4399 = vmatpush.bf16.msra.mxu0 0
  %4400 = vmatpush.bf16.msra.mxu0 0
  %4401 = vmatpush.bf16.msra.mxu0 0
  %4402 = vmatpush.bf16.msra.mxu0 0
  %4403 = vmatpush.bf16.msra.mxu0 0
  %4404 = vmatpush.bf16.msra.mxu0 0
  %4405 = vmatpush.bf16.msra.mxu0 %v4396
  %4406 = vmatmul.bf16.gmra.mxu0 %v4393
  %v4407 = vpop.f32.mrf.mxu0
  %v4408 = vadd.f32 0.0, %v4407
  %v4409 = vpop.f32.mrf.mxu0
  %4410 = vdwg.mxu0
  %v4411 = vpack.c.bf16 %v4408, %v4389
  %v4413 = vsel %vm391, %v4411, 0
  %v4416 = vsel %vm457, %v3605, 0
  %4418 = vmatpush.bf16.msra.mxu0 0
  %4419 = vmatpush.bf16.msra.mxu0 0
  %4420 = vmatpush.bf16.msra.mxu0 0
  %4421 = vmatpush.bf16.msra.mxu0 0
  %4422 = vmatpush.bf16.msra.mxu0 0
  %4423 = vmatpush.bf16.msra.mxu0 0
  %4424 = vmatpush.bf16.msra.mxu0 0
  %4425 = vmatpush.bf16.msra.mxu0 %v4416
  %4426 = vmatmul.bf16.gmra.mxu0 %v4413
  %v4427 = vpop.f32.mrf.mxu0
  %v4428 = vadd.f32 0.0, %v4427
  %v4429 = vpop.f32.mrf.mxu0
  %v4430 = vadd.f32 0.0, %v4429
  %4431 = vdwg.mxu0
  %v4432 = vadd.f32 %v4225, %v4428
  %v4433 = vadd.f32 %v4226, %v4430
  %v4434 = vadd.f32 %v3496, %v4432
  %v4435 = vadd.f32 %v3497, %v4433
  %v4436 = vld [vmem:[%s35] sm:$0x1]
  %v4437 = vld [vmem:[%s33] sm:$0x1]
  %v4438 = vsel %vm189, %v4434, 0.0
  %4439 = vadd.xlane.f32.xlu0 %v4438
  %v4440 = vpop.xlane.xlu0 %4439
  %v4441 = vsel %vm189, %v4435, 0.0
  %4442 = vadd.xlane.f32.xlu0 %v4441
  %v4443 = vpop.xlane.xlu0 %4442
  %v4444 = vmul.f32 %v4440, %v202
  %v4445 = vmul.f32 %v4443, %v202
  %v4446 = vsub.f32 %v4434, %v4444
  %v4447 = vsub.f32 %v4435, %v4445
  %v4448 = vmul.f32 %v4446, %v4446
  %v4449 = vmul.f32 %v4447, %v4447
  %v4450 = vsel %vm189, %v4448, 0.0
  %4451 = vadd.xlane.f32.xlu0 %v4450
  %v4452 = vpop.xlane.xlu0 %4451
  %v4453 = vsel %vm189, %v4449, 0.0
  %4454 = vadd.xlane.f32.xlu0 %v4453
  %v4455 = vpop.xlane.xlu0 %4454
  %v4456 = vmul.f32 %v4452, %v202
  %v4457 = vmul.f32 %v4455, %v202
  %v4458 = vadd.f32 %v4456, 1e-06
  %v4459 = vadd.f32 %v4457, 1e-06
  %v4460 = vrsqrt.pop %v4458
  %v4461 = vmul.f32 %v4460, %v4458
  %v4462 = vmul.f32 %v4461, %v4460
  %v4463 = vmul.f32 0.5, %v4462
  %v4464 = vsub.f32 1.5, %v4463
  %v4465 = vmul.f32 %v4460, %v4464
  %vm4466 = vweird.f32 %v4458
  %vm4467 = vweird.f32 %v4460
  %vm4468 = vmor %vm4466, %vm4467
  %v4469 = vsel %vm4468, %v4460, %v4465
  %v4470 = vrsqrt.pop %v4459
  %v4471 = vmul.f32 %v4470, %v4459
  %v4472 = vmul.f32 %v4471, %v4470
  %v4473 = vmul.f32 0.5, %v4472
  %v4474 = vsub.f32 1.5, %v4473
  %v4475 = vmul.f32 %v4470, %v4474
  %vm4476 = vweird.f32 %v4459
  %vm4477 = vweird.f32 %v4470
  %vm4478 = vmor %vm4476, %vm4477
  %v4479 = vsel %vm4478, %v4470, %v4475
  %v4480 = vmul.f32 %v4446, %v4469
  %v4481 = vmul.f32 %v4447, %v4479
  %v4483 = vperm.slane %v4436, 0
  %v4485 = vmul.f32 %v4480, %v4483
  %v4486 = vmul.f32 %v4481, %v4483
  %v4488 = vperm.slane %v4437, 0
  %v4490 = vadd.f32 %v4485, %v4488
  %v4491 = vadd.f32 %v4486, %v4488
  %v4492 = vld [vmem:[%s25] sm:$0xf]
  %v4493 = vld [vmem:[%s25 + $0x4] sm:$0xf]
  %v4494 = vld [vmem:[%s25 + $0x8] sm:$0xf]
  %v4495 = vld [vmem:[%s25 + $0xc] sm:$0xf]
  %v4496 = vld [vmem:[%s25 + $0x10] sm:$0xf]
  %v4497 = vld [vmem:[%s25 + $0x14] sm:$0xf]
  %v4498 = vld [vmem:[%s25 + $0x18] sm:$0xf]
  %v4499 = vld [vmem:[%s25 + $0x1c] sm:$0xf]
  %v4500 = vld [vmem:[%s25 + $0x20] sm:$0xf]
  %v4501 = vld [vmem:[%s25 + $0x24] sm:$0xf]
  %v4502 = vld [vmem:[%s25 + $0x28] sm:$0xf]
  %v4503 = vld [vmem:[%s25 + $0x2c] sm:$0xf]
  %v4504 = vld [vmem:[%s25 + $0x30] sm:$0xf]
  %v4505 = vld [vmem:[%s25 + $0x34] sm:$0xf]
  %v4506 = vld [vmem:[%s25 + $0x38] sm:$0xf]
  %v4507 = vld [vmem:[%s25 + $0x3c] sm:$0xf]
  %v4508 = vld [vmem:[%s21] sm:$0xf]
  %v4509 = vld [vmem:[%s21 + $0x4] sm:$0xf]
  %v4510 = vld [vmem:[%s21 + $0x8] sm:$0xf]
  %v4511 = vld [vmem:[%s21 + $0xc] sm:$0xf]
  %v4512 = vld [vmem:[%s21 + $0x10] sm:$0xf]
  %v4513 = vld [vmem:[%s21 + $0x14] sm:$0xf]
  %v4514 = vld [vmem:[%s21 + $0x18] sm:$0xf]
  %v4515 = vld [vmem:[%s21 + $0x1c] sm:$0xf]
  %v4516 = vld [vmem:[%s21 + $0x20] sm:$0xf]
  %v4517 = vld [vmem:[%s21 + $0x24] sm:$0xf]
  %v4518 = vld [vmem:[%s21 + $0x28] sm:$0xf]
  %v4519 = vld [vmem:[%s21 + $0x2c] sm:$0xf]
  %v4520 = vld [vmem:[%s21 + $0x30] sm:$0xf]
  %v4521 = vld [vmem:[%s21 + $0x34] sm:$0xf]
  %v4522 = vld [vmem:[%s21 + $0x38] sm:$0xf]
  %v4523 = vld [vmem:[%s21 + $0x3c] sm:$0xf]
  %v4524 = vld [vmem:[%s27] sm:$0xf]
  %v4525 = vld [vmem:[%s27 + $0x4] sm:$0xf]
  %v4526 = vld [vmem:[%s27 + $0x8] sm:$0xf]
  %v4527 = vld [vmem:[%s27 + $0xc] sm:$0xf]
  %v4528 = vld [vmem:[%s27 + $0x10] sm:$0xf]
  %v4529 = vld [vmem:[%s27 + $0x14] sm:$0xf]
  %v4530 = vld [vmem:[%s27 + $0x18] sm:$0xf]
  %v4531 = vld [vmem:[%s27 + $0x1c] sm:$0xf]
  %v4532 = vld [vmem:[%s27 + $0x20] sm:$0xf]
  %v4533 = vld [vmem:[%s27 + $0x24] sm:$0xf]
  %v4534 = vld [vmem:[%s27 + $0x28] sm:$0xf]
  %v4535 = vld [vmem:[%s27 + $0x2c] sm:$0xf]
  %v4536 = vld [vmem:[%s27 + $0x30] sm:$0xf]
  %v4537 = vld [vmem:[%s27 + $0x34] sm:$0xf]
  %v4538 = vld [vmem:[%s27 + $0x38] sm:$0xf]
  %v4539 = vld [vmem:[%s27 + $0x3c] sm:$0xf]
  %v4540 = vld [vmem:[%s23] sm:$0xf]
  %v4541 = vld [vmem:[%s23 + $0x4] sm:$0xf]
  %v4542 = vld [vmem:[%s23 + $0x8] sm:$0xf]
  %v4543 = vld [vmem:[%s23 + $0xc] sm:$0xf]
  %v4544 = vpack.c.bf16 %v4491, %v4490
  %v4545 = vpack.c.bf16 %v3491, %v3490
  %v4550 = vunpack.c.l.b16 %v4492
  %v4551 = vunpack.c.l.b16 %v4493
  %v4552 = vunpack.c.l.b16 %v4494
  %v4553 = vunpack.c.l.b16 %v4495
  %v4554 = vpack.c.b16 %v4551, %v4550
  %v4555 = vpack.c.b16 %v4553, %v4552
  %v4559 = vsel %vm189, %v4544, 0
  %4561 = vmatpush.bf16.msra.mxu0 0
  %4562 = vmatpush.bf16.msra.mxu0 0
  %4563 = vmatpush.bf16.msra.mxu0 0
  %4564 = vmatpush.bf16.msra.mxu0 0
  %4565 = vmatpush.bf16.msra.mxu0 0
  %4566 = vmatpush.bf16.msra.mxu0 0
  %4567 = vmatpush.bf16.msra.mxu0 %v4555
  %4568 = vmatpush.bf16.msra.mxu0 %v4554
  %4569 = vmatmul.bf16.gmra.mxu0 %v4559
  %v4570 = vpop.f32.mrf.mxu0
  %v4571 = vadd.f32 0.0, %v4570
  %v4572 = vpop.f32.mrf.mxu0
  %v4573 = vadd.f32 0.0, %v4572
  %4574 = vdwg.mxu0
  %v4579 = vunpack.c.l.b16 %v4508
  %v4580 = vunpack.c.l.b16 %v4509
  %v4581 = vunpack.c.l.b16 %v4510
  %v4582 = vunpack.c.l.b16 %v4511
  %v4583 = vpack.c.b16 %v4580, %v4579
  %v4584 = vpack.c.b16 %v4582, %v4581
  %v4588 = vsel %vm189, %v4545, 0
  %4590 = vmatpush.bf16.msra.mxu0 0
  %4591 = vmatpush.bf16.msra.mxu0 0
  %4592 = vmatpush.bf16.msra.mxu0 0
  %4593 = vmatpush.bf16.msra.mxu0 0
  %4594 = vmatpush.bf16.msra.mxu0 0
  %4595 = vmatpush.bf16.msra.mxu0 0
  %4596 = vmatpush.bf16.msra.mxu0 %v4584
  %4597 = vmatpush.bf16.msra.mxu0 %v4583
  %4598 = vmatmul.bf16.gmra.mxu0 %v4588
  %v4599 = vpop.f32.mrf.mxu0
  %v4600 = vadd.f32 0.0, %v4599
  %v4601 = vpop.f32.mrf.mxu0
  %v4602 = vadd.f32 0.0, %v4601
  %4603 = vdwg.mxu0
  %v4608 = vunpack.c.l.b16 %v4524
  %v4609 = vunpack.c.l.b16 %v4525
  %v4610 = vunpack.c.l.b16 %v4526
  %v4611 = vunpack.c.l.b16 %v4527
  %v4612 = vpack.c.b16 %v4609, %v4608
  %v4613 = vpack.c.b16 %v4611, %v4610
  %4616 = vmatpush.bf16.msra.mxu0 0
  %4617 = vmatpush.bf16.msra.mxu0 0
  %4618 = vmatpush.bf16.msra.mxu0 0
  %4619 = vmatpush.bf16.msra.mxu0 0
  %4620 = vmatpush.bf16.msra.mxu0 0
  %4621 = vmatpush.bf16.msra.mxu0 0
  %4622 = vmatpush.bf16.msra.mxu0 %v4613
  %4623 = vmatpush.bf16.msra.mxu0 %v4612
  %4624 = vmatmul.bf16.gmra.mxu0 %v4588
  %v4625 = vpop.f32.mrf.mxu0
  %v4626 = vadd.f32 0.0, %v4625
  %v4627 = vpop.f32.mrf.mxu0
  %v4628 = vadd.f32 0.0, %v4627
  %4629 = vdwg.mxu0
  %v4630 = vpack.c.bf16 %v4571, %v4571
  %v4631 = vpack.c.bf16 %v4573, %v4573
  %v4632 = vpack.c.bf16 %v4600, %v4600
  %v4633 = vpack.c.bf16 %v4602, %v4602
  %v4634 = vpack.c.bf16 %v4626, %v4626
  %v4635 = vpack.c.bf16 %v4628, %v4628
  %v4637 = vsel %vm391, %v4630, 0
  %v4640 = vsel %vm391, %v4632, 0
  %4642 = vmatpush.bf16.xpose.msra.mxu0 0
  %4643 = vmatpush.bf16.xpose.msra.mxu0 0
  %4644 = vmatpush.bf16.xpose.msra.mxu0 0
  %4645 = vmatpush.bf16.xpose.msra.mxu0 0
  %4646 = vmatpush.bf16.xpose.msra.mxu0 0
  %4647 = vmatpush.bf16.xpose.msra.mxu0 0
  %4648 = vmatpush.bf16.xpose.msra.mxu0 0
  %4649 = vmatpush.bf16.xpose.msra.mxu0 %v4640
  %4650 = vmatmul.bf16.gmra.mxu0 %v4637
  %v4651 = vpop.f32.mrf.mxu0
  %v4652 = vadd.f32 %v3494, %v4651
  %v4653 = vpop.f32.mrf.mxu0
  %4654 = vdwg.mxu0
  %v4656 = vsel %vm391, %v4631, 0
  %v4659 = vsel %vm391, %v4633, 0
  %4661 = vmatpush.bf16.xpose.msra.mxu0 0
  %4662 = vmatpush.bf16.xpose.msra.mxu0 0
  %4663 = vmatpush.bf16.xpose.msra.mxu0 0
  %4664 = vmatpush.bf16.xpose.msra.mxu0 0
  %4665 = vmatpush.bf16.xpose.msra.mxu0 0
  %4666 = vmatpush.bf16.xpose.msra.mxu0 0
  %4667 = vmatpush.bf16.xpose.msra.mxu0 0
  %4668 = vmatpush.bf16.xpose.msra.mxu0 %v4659
  %4669 = vmatmul.bf16.gmra.mxu0 %v4656
  %v4670 = vpop.f32.mrf.mxu0
  %v4671 = vadd.f32 %v3495, %v4670
  %v4672 = vpop.f32.mrf.mxu0
  %4673 = vdwg.mxu0
  %v4674 = vsel %vm391, %v4652, -inf
  %4675 = vmax.xlane.f32.xlu0 %v4674
  %v4676 = vpop.xlane.xlu0 %4675
  %v4677 = vsel %vm391, %v4671, -inf
  %4678 = vmax.xlane.f32.xlu0 %v4677
  %v4679 = vpop.xlane.xlu0 %4678
  %v4680 = vsub.f32 %v4652, %v4676
  %v4681 = vsub.f32 %v4671, %v4679
  %v4682 = vmul.f32 %v4680, 1.442695
  %v4683 = vpow.pop %v4682
  %v4684 = vmul.f32 %v4681, 1.442695
  %v4685 = vpow.pop %v4684
  %v4686 = vsel %vm391, %v4683, 0.0
  %4687 = vadd.xlane.f32.xlu0 %v4686
  %v4688 = vpop.xlane.xlu0 %4687
  %v4689 = vsel %vm391, %v4685, 0.0
  %4690 = vadd.xlane.f32.xlu0 %v4689
  %v4691 = vpop.xlane.xlu0 %4690
  %v4692 = vrcp.pop %v4688
  %v4693 = vrcp.pop %v4691
  %v4694 = vmul.f32 %v4683, %v4692
  %v4695 = vmul.f32 %v4685, %v4693
  %v4696 = vpack.c.bf16 %v4694, %v4694
  %v4697 = vpack.c.bf16 %v4695, %v4695
  %v4699 = vsel %vm391, %v4696, 0
  %v4702 = vsel %vm457, %v4634, 0
  %4704 = vmatpush.bf16.msra.mxu0 0
  %4705 = vmatpush.bf16.msra.mxu0 0
  %4706 = vmatpush.bf16.msra.mxu0 0
  %4707 = vmatpush.bf16.msra.mxu0 0
  %4708 = vmatpush.bf16.msra.mxu0 0
  %4709 = vmatpush.bf16.msra.mxu0 0
  %4710 = vmatpush.bf16.msra.mxu0 0
  %4711 = vmatpush.bf16.msra.mxu0 %v4702
  %4712 = vmatmul.bf16.gmra.mxu0 %v4699
  %v4713 = vpop.f32.mrf.mxu0
  %v4714 = vadd.f32 0.0, %v4713
  %v4715 = vpop.f32.mrf.mxu0
  %4716 = vdwg.mxu0
  %v4718 = vsel %vm391, %v4697, 0
  %v4721 = vsel %vm457, %v4635, 0
  %4723 = vmatpush.bf16.msra.mxu0 0
  %4724 = vmatpush.bf16.msra.mxu0 0
  %4725 = vmatpush.bf16.msra.mxu0 0
  %4726 = vmatpush.bf16.msra.mxu0 0
  %4727 = vmatpush.bf16.msra.mxu0 0
  %4728 = vmatpush.bf16.msra.mxu0 0
  %4729 = vmatpush.bf16.msra.mxu0 0
  %4730 = vmatpush.bf16.msra.mxu0 %v4721
  %4731 = vmatmul.bf16.gmra.mxu0 %v4718
  %v4732 = vpop.f32.mrf.mxu0
  %v4733 = vadd.f32 0.0, %v4732
  %v4734 = vpop.f32.mrf.mxu0
  %4735 = vdwg.mxu0
  %v4736 = vpack.c.bf16 %v4733, %v4714
  %v4741 = vunpack.c.l.b16 %v4496
  %v4742 = vunpack.c.l.b16 %v4497
  %v4743 = vunpack.c.l.b16 %v4498
  %v4744 = vunpack.c.l.b16 %v4499
  %v4745 = vpack.c.b16 %v4742, %v4741
  %v4746 = vpack.c.b16 %v4744, %v4743
  %4749 = vmatpush.bf16.msra.mxu0 0
  %4750 = vmatpush.bf16.msra.mxu0 0
  %4751 = vmatpush.bf16.msra.mxu0 0
  %4752 = vmatpush.bf16.msra.mxu0 0
  %4753 = vmatpush.bf16.msra.mxu0 0
  %4754 = vmatpush.bf16.msra.mxu0 0
  %4755 = vmatpush.bf16.msra.mxu0 %v4746
  %4756 = vmatpush.bf16.msra.mxu0 %v4745
  %4757 = vmatmul.bf16.gmra.mxu0 %v4559
  %v4758 = vpop.f32.mrf.mxu0
  %v4759 = vadd.f32 0.0, %v4758
  %v4760 = vpop.f32.mrf.mxu0
  %v4761 = vadd.f32 0.0, %v4760
  %4762 = vdwg.mxu0
  %v4767 = vunpack.c.l.b16 %v4512
  %v4768 = vunpack.c.l.b16 %v4513
  %v4769 = vunpack.c.l.b16 %v4514
  %v4770 = vunpack.c.l.b16 %v4515
  %v4771 = vpack.c.b16 %v4768, %v4767
  %v4772 = vpack.c.b16 %v4770, %v4769
  %4775 = vmatpush.bf16.msra.mxu0 0
  %4776 = vmatpush.bf16.msra.mxu0 0
  %4777 = vmatpush.bf16.msra.mxu0 0
  %4778 = vmatpush.bf16.msra.mxu0 0
  %4779 = vmatpush.bf16.msra.mxu0 0
  %4780 = vmatpush.bf16.msra.mxu0 0
  %4781 = vmatpush.bf16.msra.mxu0 %v4772
  %4782 = vmatpush.bf16.msra.mxu0 %v4771
  %4783 = vmatmul.bf16.gmra.mxu0 %v4588
  %v4784 = vpop.f32.mrf.mxu0
  %v4785 = vadd.f32 0.0, %v4784
  %v4786 = vpop.f32.mrf.mxu0
  %v4787 = vadd.f32 0.0, %v4786
  %4788 = vdwg.mxu0
  %v4793 = vunpack.c.l.b16 %v4528
  %v4794 = vunpack.c.l.b16 %v4529
  %v4795 = vunpack.c.l.b16 %v4530
  %v4796 = vunpack.c.l.b16 %v4531
  %v4797 = vpack.c.b16 %v4794, %v4793
  %v4798 = vpack.c.b16 %v4796, %v4795
  %4801 = vmatpush.bf16.msra.mxu0 0
  %4802 = vmatpush.bf16.msra.mxu0 0
  %4803 = vmatpush.bf16.msra.mxu0 0
  %4804 = vmatpush.bf16.msra.mxu0 0
  %4805 = vmatpush.bf16.msra.mxu0 0
  %4806 = vmatpush.bf16.msra.mxu0 0
  %4807 = vmatpush.bf16.msra.mxu0 %v4798
  %4808 = vmatpush.bf16.msra.mxu0 %v4797
  %4809 = vmatmul.bf16.gmra.mxu0 %v4588
  %v4810 = vpop.f32.mrf.mxu0
  %v4811 = vadd.f32 0.0, %v4810
  %v4812 = vpop.f32.mrf.mxu0
  %v4813 = vadd.f32 0.0, %v4812
  %4814 = vdwg.mxu0
  %v4815 = vpack.c.bf16 %v4759, %v4759
  %v4816 = vpack.c.bf16 %v4761, %v4761
  %v4817 = vpack.c.bf16 %v4785, %v4785
  %v4818 = vpack.c.bf16 %v4787, %v4787
  %v4819 = vpack.c.bf16 %v4811, %v4811
  %v4820 = vpack.c.bf16 %v4813, %v4813
  %v4822 = vsel %vm391, %v4815, 0
  %v4825 = vsel %vm391, %v4817, 0
  %4827 = vmatpush.bf16.xpose.msra.mxu0 0
  %4828 = vmatpush.bf16.xpose.msra.mxu0 0
  %4829 = vmatpush.bf16.xpose.msra.mxu0 0
  %4830 = vmatpush.bf16.xpose.msra.mxu0 0
  %4831 = vmatpush.bf16.xpose.msra.mxu0 0
  %4832 = vmatpush.bf16.xpose.msra.mxu0 0
  %4833 = vmatpush.bf16.xpose.msra.mxu0 0
  %4834 = vmatpush.bf16.xpose.msra.mxu0 %v4825
  %4835 = vmatmul.bf16.gmra.mxu0 %v4822
  %v4836 = vpop.f32.mrf.mxu0
  %v4837 = vadd.f32 %v3494, %v4836
  %v4838 = vpop.f32.mrf.mxu0
  %4839 = vdwg.mxu0
  %v4841 = vsel %vm391, %v4816, 0
  %v4844 = vsel %vm391, %v4818, 0
  %4846 = vmatpush.bf16.xpose.msra.mxu0 0
  %4847 = vmatpush.bf16.xpose.msra.mxu0 0
  %4848 = vmatpush.bf16.xpose.msra.mxu0 0
  %4849 = vmatpush.bf16.xpose.msra.mxu0 0
  %4850 = vmatpush.bf16.xpose.msra.mxu0 0
  %4851 = vmatpush.bf16.xpose.msra.mxu0 0
  %4852 = vmatpush.bf16.xpose.msra.mxu0 0
  %4853 = vmatpush.bf16.xpose.msra.mxu0 %v4844
  %4854 = vmatmul.bf16.gmra.mxu0 %v4841
  %v4855 = vpop.f32.mrf.mxu0
  %v4856 = vadd.f32 %v3495, %v4855
  %v4857 = vpop.f32.mrf.mxu0
  %4858 = vdwg.mxu0
  %v4859 = vsel %vm391, %v4837, -inf
  %4860 = vmax.xlane.f32.xlu0 %v4859
  %v4861 = vpop.xlane.xlu0 %4860
  %v4862 = vsel %vm391, %v4856, -inf
  %4863 = vmax.xlane.f32.xlu0 %v4862
  %v4864 = vpop.xlane.xlu0 %4863
  %v4865 = vsub.f32 %v4837, %v4861
  %v4866 = vsub.f32 %v4856, %v4864
  %v4867 = vmul.f32 %v4865, 1.442695
  %v4868 = vpow.pop %v4867
  %v4869 = vmul.f32 %v4866, 1.442695
  %v4870 = vpow.pop %v4869
  %v4871 = vsel %vm391, %v4868, 0.0
  %4872 = vadd.xlane.f32.xlu0 %v4871
  %v4873 = vpop.xlane.xlu0 %4872
  %v4874 = vsel %vm391, %v4870, 0.0
  %4875 = vadd.xlane.f32.xlu0 %v4874
  %v4876 = vpop.xlane.xlu0 %4875
  %v4877 = vrcp.pop %v4873
  %v4878 = vrcp.pop %v4876
  %v4879 = vmul.f32 %v4868, %v4877
  %v4880 = vmul.f32 %v4870, %v4878
  %v4881 = vpack.c.bf16 %v4879, %v4879
  %v4882 = vpack.c.bf16 %v4880, %v4880
  %v4884 = vsel %vm391, %v4881, 0
  %v4887 = vsel %vm457, %v4819, 0
  %4889 = vmatpush.bf16.msra.mxu0 0
  %4890 = vmatpush.bf16.msra.mxu0 0
  %4891 = vmatpush.bf16.msra.mxu0 0
  %4892 = vmatpush.bf16.msra.mxu0 0
  %4893 = vmatpush.bf16.msra.mxu0 0
  %4894 = vmatpush.bf16.msra.mxu0 0
  %4895 = vmatpush.bf16.msra.mxu0 0
  %4896 = vmatpush.bf16.msra.mxu0 %v4887
  %4897 = vmatmul.bf16.gmra.mxu0 %v4884
  %v4898 = vpop.f32.mrf.mxu0
  %v4899 = vadd.f32 0.0, %v4898
  %v4900 = vpop.f32.mrf.mxu0
  %4901 = vdwg.mxu0
  %v4903 = vsel %vm391, %v4882, 0
  %v4906 = vsel %vm457, %v4820, 0
  %4908 = vmatpush.bf16.msra.mxu0 0
  %4909 = vmatpush.bf16.msra.mxu0 0
  %4910 = vmatpush.bf16.msra.mxu0 0
  %4911 = vmatpush.bf16.msra.mxu0 0
  %4912 = vmatpush.bf16.msra.mxu0 0
  %4913 = vmatpush.bf16.msra.mxu0 0
  %4914 = vmatpush.bf16.msra.mxu0 0
  %4915 = vmatpush.bf16.msra.mxu0 %v4906
  %4916 = vmatmul.bf16.gmra.mxu0 %v4903
  %v4917 = vpop.f32.mrf.mxu0
  %v4918 = vadd.f32 0.0, %v4917
  %v4919 = vpop.f32.mrf.mxu0
  %4920 = vdwg.mxu0
  %v4921 = vpack.c.bf16 %v4918, %v4899
  %v4923 = vsel %vm391, %v4921, 0
  %v4926 = vsel %vm457, %v4541, 0
  %4928 = vmatpush.bf16.msra.mxu0 0
  %4929 = vmatpush.bf16.msra.mxu0 0
  %4930 = vmatpush.bf16.msra.mxu0 0
  %4931 = vmatpush.bf16.msra.mxu0 0
  %4932 = vmatpush.bf16.msra.mxu0 0
  %4933 = vmatpush.bf16.msra.mxu0 0
  %4934 = vmatpush.bf16.msra.mxu0 0
  %4935 = vmatpush.bf16.msra.mxu0 %v4926
  %4936 = vmatmul.bf16.gmra.mxu0 %v4923
  %v4937 = vpop.f32.mrf.mxu0
  %v4938 = vadd.f32 0.0, %v4937
  %v4939 = vpop.f32.mrf.mxu0
  %v4940 = vadd.f32 0.0, %v4939
  %4941 = vdwg.mxu0
  %v4943 = vsel %vm391, %v4736, 0
  %v4946 = vsel %vm457, %v4540, 0
  %4948 = vmatpush.bf16.msra.mxu0 0
  %4949 = vmatpush.bf16.msra.mxu0 0
  %4950 = vmatpush.bf16.msra.mxu0 0
  %4951 = vmatpush.bf16.msra.mxu0 0
  %4952 = vmatpush.bf16.msra.mxu0 0
  %4953 = vmatpush.bf16.msra.mxu0 0
  %4954 = vmatpush.bf16.msra.mxu0 0
  %4955 = vmatpush.bf16.msra.mxu0 %v4946
  %4956 = vmatmul.bf16.gmra.mxu0 %v4943
  %v4957 = vpop.f32.mrf.mxu0
  %v4958 = vadd.f32 %v4938, %v4957
  %v4959 = vpop.f32.mrf.mxu0
  %v4960 = vadd.f32 %v4940, %v4959
  %4961 = vdwg.mxu0
  %v4966 = vunpack.c.l.b16 %v4500
  %v4967 = vunpack.c.l.b16 %v4501
  %v4968 = vunpack.c.l.b16 %v4502
  %v4969 = vunpack.c.l.b16 %v4503
  %v4970 = vpack.c.b16 %v4967, %v4966
  %v4971 = vpack.c.b16 %v4969, %v4968
  %4974 = vmatpush.bf16.msra.mxu0 0
  %4975 = vmatpush.bf16.msra.mxu0 0
  %4976 = vmatpush.bf16.msra.mxu0 0
  %4977 = vmatpush.bf16.msra.mxu0 0
  %4978 = vmatpush.bf16.msra.mxu0 0
  %4979 = vmatpush.bf16.msra.mxu0 0
  %4980 = vmatpush.bf16.msra.mxu0 %v4971
  %4981 = vmatpush.bf16.msra.mxu0 %v4970
  %4982 = vmatmul.bf16.gmra.mxu0 %v4559
  %v4983 = vpop.f32.mrf.mxu0
  %v4984 = vadd.f32 0.0, %v4983
  %v4985 = vpop.f32.mrf.mxu0
  %v4986 = vadd.f32 0.0, %v4985
  %4987 = vdwg.mxu0
  %v4992 = vunpack.c.l.b16 %v4516
  %v4993 = vunpack.c.l.b16 %v4517
  %v4994 = vunpack.c.l.b16 %v4518
  %v4995 = vunpack.c.l.b16 %v4519
  %v4996 = vpack.c.b16 %v4993, %v4992
  %v4997 = vpack.c.b16 %v4995, %v4994
  %5000 = vmatpush.bf16.msra.mxu0 0
  %5001 = vmatpush.bf16.msra.mxu0 0
  %5002 = vmatpush.bf16.msra.mxu0 0
  %5003 = vmatpush.bf16.msra.mxu0 0
  %5004 = vmatpush.bf16.msra.mxu0 0
  %5005 = vmatpush.bf16.msra.mxu0 0
  %5006 = vmatpush.bf16.msra.mxu0 %v4997
  %5007 = vmatpush.bf16.msra.mxu0 %v4996
  %5008 = vmatmul.bf16.gmra.mxu0 %v4588
  %v5009 = vpop.f32.mrf.mxu0
  %v5010 = vadd.f32 0.0, %v5009
  %v5011 = vpop.f32.mrf.mxu0
  %v5012 = vadd.f32 0.0, %v5011
  %5013 = vdwg.mxu0
  %v5018 = vunpack.c.l.b16 %v4532
  %v5019 = vunpack.c.l.b16 %v4533
  %v5020 = vunpack.c.l.b16 %v4534
  %v5021 = vunpack.c.l.b16 %v4535
  %v5022 = vpack.c.b16 %v5019, %v5018
  %v5023 = vpack.c.b16 %v5021, %v5020
  %5026 = vmatpush.bf16.msra.mxu0 0
  %5027 = vmatpush.bf16.msra.mxu0 0
  %5028 = vmatpush.bf16.msra.mxu0 0
  %5029 = vmatpush.bf16.msra.mxu0 0
  %5030 = vmatpush.bf16.msra.mxu0 0
  %5031 = vmatpush.bf16.msra.mxu0 0
  %5032 = vmatpush.bf16.msra.mxu0 %v5023
  %5033 = vmatpush.bf16.msra.mxu0 %v5022
  %5034 = vmatmul.bf16.gmra.mxu0 %v4588
  %v5035 = vpop.f32.mrf.mxu0
  %v5036 = vadd.f32 0.0, %v5035
  %v5037 = vpop.f32.mrf.mxu0
  %v5038 = vadd.f32 0.0, %v5037
  %5039 = vdwg.mxu0
  %v5040 = vpack.c.bf16 %v4984, %v4984
  %v5041 = vpack.c.bf16 %v4986, %v4986
  %v5042 = vpack.c.bf16 %v5010, %v5010
  %v5043 = vpack.c.bf16 %v5012, %v5012
  %v5044 = vpack.c.bf16 %v5036, %v5036
  %v5045 = vpack.c.bf16 %v5038, %v5038
  %v5047 = vsel %vm391, %v5040, 0
  %v5050 = vsel %vm391, %v5042, 0
  %5052 = vmatpush.bf16.xpose.msra.mxu0 0
  %5053 = vmatpush.bf16.xpose.msra.mxu0 0
  %5054 = vmatpush.bf16.xpose.msra.mxu0 0
  %5055 = vmatpush.bf16.xpose.msra.mxu0 0
  %5056 = vmatpush.bf16.xpose.msra.mxu0 0
  %5057 = vmatpush.bf16.xpose.msra.mxu0 0
  %5058 = vmatpush.bf16.xpose.msra.mxu0 0
  %5059 = vmatpush.bf16.xpose.msra.mxu0 %v5050
  %5060 = vmatmul.bf16.gmra.mxu0 %v5047
  %v5061 = vpop.f32.mrf.mxu0
  %v5062 = vadd.f32 %v3494, %v5061
  %v5063 = vpop.f32.mrf.mxu0
  %5064 = vdwg.mxu0
  %v5066 = vsel %vm391, %v5041, 0
  %v5069 = vsel %vm391, %v5043, 0
  %5071 = vmatpush.bf16.xpose.msra.mxu0 0
  %5072 = vmatpush.bf16.xpose.msra.mxu0 0
  %5073 = vmatpush.bf16.xpose.msra.mxu0 0
  %5074 = vmatpush.bf16.xpose.msra.mxu0 0
  %5075 = vmatpush.bf16.xpose.msra.mxu0 0
  %5076 = vmatpush.bf16.xpose.msra.mxu0 0
  %5077 = vmatpush.bf16.xpose.msra.mxu0 0
  %5078 = vmatpush.bf16.xpose.msra.mxu0 %v5069
  %5079 = vmatmul.bf16.gmra.mxu0 %v5066
  %v5080 = vpop.f32.mrf.mxu0
  %v5081 = vadd.f32 %v3495, %v5080
  %v5082 = vpop.f32.mrf.mxu0
  %5083 = vdwg.mxu0
  %v5084 = vsel %vm391, %v5062, -inf
  %5085 = vmax.xlane.f32.xlu0 %v5084
  %v5086 = vpop.xlane.xlu0 %5085
  %v5087 = vsel %vm391, %v5081, -inf
  %5088 = vmax.xlane.f32.xlu0 %v5087
  %v5089 = vpop.xlane.xlu0 %5088
  %v5090 = vsub.f32 %v5062, %v5086
  %v5091 = vsub.f32 %v5081, %v5089
  %v5092 = vmul.f32 %v5090, 1.442695
  %v5093 = vpow.pop %v5092
  %v5094 = vmul.f32 %v5091, 1.442695
  %v5095 = vpow.pop %v5094
  %v5096 = vsel %vm391, %v5093, 0.0
  %5097 = vadd.xlane.f32.xlu0 %v5096
  %v5098 = vpop.xlane.xlu0 %5097
  %v5099 = vsel %vm391, %v5095, 0.0
  %5100 = vadd.xlane.f32.xlu0 %v5099
  %v5101 = vpop.xlane.xlu0 %5100
  %v5102 = vrcp.pop %v5098
  %v5103 = vrcp.pop %v5101
  %v5104 = vmul.f32 %v5093, %v5102
  %v5105 = vmul.f32 %v5095, %v5103
  %v5106 = vpack.c.bf16 %v5104, %v5104
  %v5107 = vpack.c.bf16 %v5105, %v5105
  %v5109 = vsel %vm391, %v5106, 0
  %v5112 = vsel %vm457, %v5044, 0
  %5114 = vmatpush.bf16.msra.mxu0 0
  %5115 = vmatpush.bf16.msra.mxu0 0
  %5116 = vmatpush.bf16.msra.mxu0 0
  %5117 = vmatpush.bf16.msra.mxu0 0
  %5118 = vmatpush.bf16.msra.mxu0 0
  %5119 = vmatpush.bf16.msra.mxu0 0
  %5120 = vmatpush.bf16.msra.mxu0 0
  %5121 = vmatpush.bf16.msra.mxu0 %v5112
  %5122 = vmatmul.bf16.gmra.mxu0 %v5109
  %v5123 = vpop.f32.mrf.mxu0
  %v5124 = vadd.f32 0.0, %v5123
  %v5125 = vpop.f32.mrf.mxu0
  %5126 = vdwg.mxu0
  %v5128 = vsel %vm391, %v5107, 0
  %v5131 = vsel %vm457, %v5045, 0
  %5133 = vmatpush.bf16.msra.mxu0 0
  %5134 = vmatpush.bf16.msra.mxu0 0
  %5135 = vmatpush.bf16.msra.mxu0 0
  %5136 = vmatpush.bf16.msra.mxu0 0
  %5137 = vmatpush.bf16.msra.mxu0 0
  %5138 = vmatpush.bf16.msra.mxu0 0
  %5139 = vmatpush.bf16.msra.mxu0 0
  %5140 = vmatpush.bf16.msra.mxu0 %v5131
  %5141 = vmatmul.bf16.gmra.mxu0 %v5128
  %v5142 = vpop.f32.mrf.mxu0
  %v5143 = vadd.f32 0.0, %v5142
  %v5144 = vpop.f32.mrf.mxu0
  %5145 = vdwg.mxu0
  %v5146 = vpack.c.bf16 %v5143, %v5124
  %v5148 = vsel %vm391, %v5146, 0
  %v5151 = vsel %vm457, %v4542, 0
  %5153 = vmatpush.bf16.msra.mxu0 0
  %5154 = vmatpush.bf16.msra.mxu0 0
  %5155 = vmatpush.bf16.msra.mxu0 0
  %5156 = vmatpush.bf16.msra.mxu0 0
  %5157 = vmatpush.bf16.msra.mxu0 0
  %5158 = vmatpush.bf16.msra.mxu0 0
  %5159 = vmatpush.bf16.msra.mxu0 0
  %5160 = vmatpush.bf16.msra.mxu0 %v5151
  %5161 = vmatmul.bf16.gmra.mxu0 %v5148
  %v5162 = vpop.f32.mrf.mxu0
  %v5163 = vadd.f32 0.0, %v5162
  %v5164 = vpop.f32.mrf.mxu0
  %v5165 = vadd.f32 0.0, %v5164
  %5166 = vdwg.mxu0
  %v5167 = vadd.f32 %v4958, %v5163
  %v5168 = vadd.f32 %v4960, %v5165
  %v5173 = vunpack.c.l.b16 %v4504
  %v5174 = vunpack.c.l.b16 %v4505
  %v5175 = vunpack.c.l.b16 %v4506
  %v5176 = vunpack.c.l.b16 %v4507
  %v5177 = vpack.c.b16 %v5174, %v5173
  %v5178 = vpack.c.b16 %v5176, %v5175
  %5181 = vmatpush.bf16.msra.mxu0 0
  %5182 = vmatpush.bf16.msra.mxu0 0
  %5183 = vmatpush.bf16.msra.mxu0 0
  %5184 = vmatpush.bf16.msra.mxu0 0
  %5185 = vmatpush.bf16.msra.mxu0 0
  %5186 = vmatpush.bf16.msra.mxu0 0
  %5187 = vmatpush.bf16.msra.mxu0 %v5178
  %5188 = vmatpush.bf16.msra.mxu0 %v5177
  %5189 = vmatmul.bf16.gmra.mxu0 %v4559
  %v5190 = vpop.f32.mrf.mxu0
  %v5191 = vadd.f32 0.0, %v5190
  %v5192 = vpop.f32.mrf.mxu0
  %v5193 = vadd.f32 0.0, %v5192
  %5194 = vdwg.mxu0
  %v5199 = vunpack.c.l.b16 %v4520
  %v5200 = vunpack.c.l.b16 %v4521
  %v5201 = vunpack.c.l.b16 %v4522
  %v5202 = vunpack.c.l.b16 %v4523
  %v5203 = vpack.c.b16 %v5200, %v5199
  %v5204 = vpack.c.b16 %v5202, %v5201
  %5207 = vmatpush.bf16.msra.mxu0 0
  %5208 = vmatpush.bf16.msra.mxu0 0
  %5209 = vmatpush.bf16.msra.mxu0 0
  %5210 = vmatpush.bf16.msra.mxu0 0
  %5211 = vmatpush.bf16.msra.mxu0 0
  %5212 = vmatpush.bf16.msra.mxu0 0
  %5213 = vmatpush.bf16.msra.mxu0 %v5204
  %5214 = vmatpush.bf16.msra.mxu0 %v5203
  %5215 = vmatmul.bf16.gmra.mxu0 %v4588
  %v5216 = vpop.f32.mrf.mxu0
  %v5217 = vadd.f32 0.0, %v5216
  %v5218 = vpop.f32.mrf.mxu0
  %v5219 = vadd.f32 0.0, %v5218
  %5220 = vdwg.mxu0
  %v5225 = vunpack.c.l.b16 %v4536
  %v5226 = vunpack.c.l.b16 %v4537
  %v5227 = vunpack.c.l.b16 %v4538
  %v5228 = vunpack.c.l.b16 %v4539
  %v5229 = vpack.c.b16 %v5226, %v5225
  %v5230 = vpack.c.b16 %v5228, %v5227
  %5233 = vmatpush.bf16.msra.mxu0 0
  %5234 = vmatpush.bf16.msra.mxu0 0
  %5235 = vmatpush.bf16.msra.mxu0 0
  %5236 = vmatpush.bf16.msra.mxu0 0
  %5237 = vmatpush.bf16.msra.mxu0 0
  %5238 = vmatpush.bf16.msra.mxu0 0
  %5239 = vmatpush.bf16.msra.mxu0 %v5230
  %5240 = vmatpush.bf16.msra.mxu0 %v5229
  %5241 = vmatmul.bf16.gmra.mxu0 %v4588
  %v5242 = vpop.f32.mrf.mxu0
  %v5243 = vadd.f32 0.0, %v5242
  %v5244 = vpop.f32.mrf.mxu0
  %v5245 = vadd.f32 0.0, %v5244
  %5246 = vdwg.mxu0
  %v5247 = vpack.c.bf16 %v5191, %v5191
  %v5248 = vpack.c.bf16 %v5193, %v5193
  %v5249 = vpack.c.bf16 %v5217, %v5217
  %v5250 = vpack.c.bf16 %v5219, %v5219
  %v5251 = vpack.c.bf16 %v5243, %v5243
  %v5252 = vpack.c.bf16 %v5245, %v5245
  %v5254 = vsel %vm391, %v5247, 0
  %v5257 = vsel %vm391, %v5249, 0
  %5259 = vmatpush.bf16.xpose.msra.mxu0 0
  %5260 = vmatpush.bf16.xpose.msra.mxu0 0
  %5261 = vmatpush.bf16.xpose.msra.mxu0 0
  %5262 = vmatpush.bf16.xpose.msra.mxu0 0
  %5263 = vmatpush.bf16.xpose.msra.mxu0 0
  %5264 = vmatpush.bf16.xpose.msra.mxu0 0
  %5265 = vmatpush.bf16.xpose.msra.mxu0 0
  %5266 = vmatpush.bf16.xpose.msra.mxu0 %v5257
  %5267 = vmatmul.bf16.gmra.mxu0 %v5254
  %v5268 = vpop.f32.mrf.mxu0
  %v5269 = vadd.f32 %v3494, %v5268
  %v5270 = vpop.f32.mrf.mxu0
  %5271 = vdwg.mxu0
  %v5273 = vsel %vm391, %v5248, 0
  %v5276 = vsel %vm391, %v5250, 0
  %5278 = vmatpush.bf16.xpose.msra.mxu0 0
  %5279 = vmatpush.bf16.xpose.msra.mxu0 0
  %5280 = vmatpush.bf16.xpose.msra.mxu0 0
  %5281 = vmatpush.bf16.xpose.msra.mxu0 0
  %5282 = vmatpush.bf16.xpose.msra.mxu0 0
  %5283 = vmatpush.bf16.xpose.msra.mxu0 0
  %5284 = vmatpush.bf16.xpose.msra.mxu0 0
  %5285 = vmatpush.bf16.xpose.msra.mxu0 %v5276
  %5286 = vmatmul.bf16.gmra.mxu0 %v5273
  %v5287 = vpop.f32.mrf.mxu0
  %v5288 = vadd.f32 %v3495, %v5287
  %v5289 = vpop.f32.mrf.mxu0
  %5290 = vdwg.mxu0
  %v5291 = vsel %vm391, %v5269, -inf
  %5292 = vmax.xlane.f32.xlu0 %v5291
  %v5293 = vpop.xlane.xlu0 %5292
  %v5294 = vsel %vm391, %v5288, -inf
  %5295 = vmax.xlane.f32.xlu0 %v5294
  %v5296 = vpop.xlane.xlu0 %5295
  %v5297 = vsub.f32 %v5269, %v5293
  %v5298 = vsub.f32 %v5288, %v5296
  %v5299 = vmul.f32 %v5297, 1.442695
  %v5300 = vpow.pop %v5299
  %v5301 = vmul.f32 %v5298, 1.442695
  %v5302 = vpow.pop %v5301
  %v5303 = vsel %vm391, %v5300, 0.0
  %5304 = vadd.xlane.f32.xlu0 %v5303
  %v5305 = vpop.xlane.xlu0 %5304
  %v5306 = vsel %vm391, %v5302, 0.0
  %5307 = vadd.xlane.f32.xlu0 %v5306
  %v5308 = vpop.xlane.xlu0 %5307
  %v5309 = vrcp.pop %v5305
  %v5310 = vrcp.pop %v5308
  %v5311 = vmul.f32 %v5300, %v5309
  %v5312 = vmul.f32 %v5302, %v5310
  %v5313 = vpack.c.bf16 %v5311, %v5311
  %v5314 = vpack.c.bf16 %v5312, %v5312
  %v5316 = vsel %vm391, %v5313, 0
  %v5319 = vsel %vm457, %v5251, 0
  %5321 = vmatpush.bf16.msra.mxu0 0
  %5322 = vmatpush.bf16.msra.mxu0 0
  %5323 = vmatpush.bf16.msra.mxu0 0
  %5324 = vmatpush.bf16.msra.mxu0 0
  %5325 = vmatpush.bf16.msra.mxu0 0
  %5326 = vmatpush.bf16.msra.mxu0 0
  %5327 = vmatpush.bf16.msra.mxu0 0
  %5328 = vmatpush.bf16.msra.mxu0 %v5319
  %5329 = vmatmul.bf16.gmra.mxu0 %v5316
  %v5330 = vpop.f32.mrf.mxu0
  %v5331 = vadd.f32 0.0, %v5330
  %v5332 = vpop.f32.mrf.mxu0
  %5333 = vdwg.mxu0
  %v5335 = vsel %vm391, %v5314, 0
  %v5338 = vsel %vm457, %v5252, 0
  %5340 = vmatpush.bf16.msra.mxu0 0
  %5341 = vmatpush.bf16.msra.mxu0 0
  %5342 = vmatpush.bf16.msra.mxu0 0
  %5343 = vmatpush.bf16.msra.mxu0 0
  %5344 = vmatpush.bf16.msra.mxu0 0
  %5345 = vmatpush.bf16.msra.mxu0 0
  %5346 = vmatpush.bf16.msra.mxu0 0
  %5347 = vmatpush.bf16.msra.mxu0 %v5338
  %5348 = vmatmul.bf16.gmra.mxu0 %v5335
  %v5349 = vpop.f32.mrf.mxu0
  %v5350 = vadd.f32 0.0, %v5349
  %v5351 = vpop.f32.mrf.mxu0
  %5352 = vdwg.mxu0
  %v5353 = vpack.c.bf16 %v5350, %v5331
  %v5355 = vsel %vm391, %v5353, 0
  %v5358 = vsel %vm457, %v4543, 0
  %5360 = vmatpush.bf16.msra.mxu0 0
  %5361 = vmatpush.bf16.msra.mxu0 0
  %5362 = vmatpush.bf16.msra.mxu0 0
  %5363 = vmatpush.bf16.msra.mxu0 0
  %5364 = vmatpush.bf16.msra.mxu0 0
  %5365 = vmatpush.bf16.msra.mxu0 0
  %5366 = vmatpush.bf16.msra.mxu0 0
  %5367 = vmatpush.bf16.msra.mxu0 %v5358
  %5368 = vmatmul.bf16.gmra.mxu0 %v5355
  %v5369 = vpop.f32.mrf.mxu0
  %v5370 = vadd.f32 0.0, %v5369
  %v5371 = vpop.f32.mrf.mxu0
  %v5372 = vadd.f32 0.0, %v5371
  %5373 = vdwg.mxu0
  %v5374 = vadd.f32 %v5167, %v5370
  %v5375 = vadd.f32 %v5168, %v5372
  %v5376 = vadd.f32 %v4434, %v5374
  %v5377 = vadd.f32 %v4435, %v5375
  %v5378 = vld [vmem:[%s39] sm:$0x1]
  %v5379 = vld [vmem:[%s37] sm:$0x1]
  %v5380 = vsel %vm189, %v5376, 0.0
  %5381 = vadd.xlane.f32.xlu0 %v5380
  %v5382 = vpop.xlane.xlu0 %5381
  %v5383 = vsel %vm189, %v5377, 0.0
  %5384 = vadd.xlane.f32.xlu0 %v5383
  %v5385 = vpop.xlane.xlu0 %5384
  %v5386 = vmul.f32 %v5382, %v202
  %v5387 = vmul.f32 %v5385, %v202
  %v5388 = vsub.f32 %v5376, %v5386
  %v5389 = vsub.f32 %v5377, %v5387
  %v5390 = vmul.f32 %v5388, %v5388
  %v5391 = vmul.f32 %v5389, %v5389
  %v5392 = vsel %vm189, %v5390, 0.0
  %5393 = vadd.xlane.f32.xlu0 %v5392
  %v5394 = vpop.xlane.xlu0 %5393
  %v5395 = vsel %vm189, %v5391, 0.0
  %5396 = vadd.xlane.f32.xlu0 %v5395
  %v5397 = vpop.xlane.xlu0 %5396
  %v5398 = vmul.f32 %v5394, %v202
  %v5399 = vmul.f32 %v5397, %v202
  %v5400 = vadd.f32 %v5398, 1e-06
  %v5401 = vadd.f32 %v5399, 1e-06
  %v5402 = vrsqrt.pop %v5400
  %v5403 = vmul.f32 %v5402, %v5400
  %v5404 = vmul.f32 %v5403, %v5402
  %v5405 = vmul.f32 0.5, %v5404
  %v5406 = vsub.f32 1.5, %v5405
  %v5407 = vmul.f32 %v5402, %v5406
  %vm5408 = vweird.f32 %v5400
  %vm5409 = vweird.f32 %v5402
  %vm5410 = vmor %vm5408, %vm5409
  %v5411 = vsel %vm5410, %v5402, %v5407
  %v5412 = vrsqrt.pop %v5401
  %v5413 = vmul.f32 %v5412, %v5401
  %v5414 = vmul.f32 %v5413, %v5412
  %v5415 = vmul.f32 0.5, %v5414
  %v5416 = vsub.f32 1.5, %v5415
  %v5417 = vmul.f32 %v5412, %v5416
  %vm5418 = vweird.f32 %v5401
  %vm5419 = vweird.f32 %v5412
  %vm5420 = vmor %vm5418, %vm5419
  %v5421 = vsel %vm5420, %v5412, %v5417
  %v5422 = vmul.f32 %v5388, %v5411
  %v5423 = vmul.f32 %v5389, %v5421
  %v5425 = vperm.slane %v5378, 0
  %v5427 = vmul.f32 %v5422, %v5425
  %v5428 = vmul.f32 %v5423, %v5425
  %v5430 = vperm.slane %v5379, 0
  %v5432 = vadd.f32 %v5427, %v5430
  %v5433 = vadd.f32 %v5428, %v5430
  %v5434 = vld [vmem:[%s49] sm:$0xf]
  %v5435 = vld [vmem:[%s49 + $0x4] sm:$0xf]
  %v5436 = vld [vmem:[%s49 + $0x8] sm:$0xf]
  %v5437 = vld [vmem:[%s49 + $0xc] sm:$0xf]
  %v5438 = vld [vmem:[%s17] sm:$0x1]
  %v5439 = vld [vmem:[%s51] sm:$0xf]
  %v5440 = vld [vmem:[%s51 + $0x4] sm:$0xf]
  %v5441 = vld [vmem:[%s51 + $0x8] sm:$0xf]
  %v5442 = vld [vmem:[%s51 + $0xc] sm:$0xf]
  %v5443 = vld [vmem:[%s51 + $0x10] sm:$0xf]
  %v5444 = vld [vmem:[%s51 + $0x14] sm:$0xf]
  %v5445 = vld [vmem:[%s51 + $0x18] sm:$0xf]
  %v5446 = vld [vmem:[%s51 + $0x1c] sm:$0xf]
  %v5447 = vld [vmem:[%s19] sm:$0x1]
  %v5448 = vpack.c.bf16 %v5433, %v5432
  %v5450 = vperm.slane %v5438, 0
  %v5456 = vunpack.c.l.b16 %v5434
  %v5457 = vunpack.c.l.b16 %v5435
  %v5458 = vunpack.c.l.b16 %v5436
  %v5459 = vunpack.c.l.b16 %v5437
  %v5460 = vpack.c.b16 %v5457, %v5456
  %v5461 = vpack.c.b16 %v5459, %v5458
  %v5465 = vsel %vm189, %v5448, 0
  %5467 = vmatpush.bf16.msra.mxu0 0
  %5468 = vmatpush.bf16.msra.mxu0 0
  %5469 = vmatpush.bf16.msra.mxu0 0
  %5470 = vmatpush.bf16.msra.mxu0 0
  %5471 = vmatpush.bf16.msra.mxu0 0
  %5472 = vmatpush.bf16.msra.mxu0 0
  %5473 = vmatpush.bf16.msra.mxu0 %v5461
  %5474 = vmatpush.bf16.msra.mxu0 %v5460
  %5475 = vmatmul.bf16.gmra.mxu0 %v5465
  %v5476 = vpop.f32.mrf.mxu0
  %v5477 = vadd.f32 %v5450, %v5476
  %v5478 = vpop.f32.mrf.mxu0
  %v5479 = vadd.f32 %v5450, %v5478
  %5480 = vdwg.mxu0
  %v5481 = vmax.f32 %v5477, 0.0
  %v5482 = vmax.f32 %v5479, 0.0
  %v5483 = vpack.c.bf16 %v5482, %v5481
  %v5485 = vperm.slane %v5447, 0
  %v5495 = vunpack.c.l.b16 %v5439
  %v5496 = vunpack.c.l.b16 %v5440
  %v5497 = vunpack.c.l.b16 %v5441
  %v5498 = vunpack.c.l.b16 %v5442
  %v5499 = vunpack.c.l.b16 %v5443
  %v5500 = vunpack.c.l.b16 %v5444
  %v5501 = vunpack.c.l.b16 %v5445
  %v5502 = vunpack.c.l.b16 %v5446
  %v5503 = vpack.c.b16 %v5496, %v5495
  %v5504 = vpack.c.b16 %v5498, %v5497
  %v5505 = vpack.c.b16 %v5500, %v5499
  %v5506 = vpack.c.b16 %v5502, %v5501
  %v5512 = vsel %vm1268, %v5483, 0
  %5514 = vmatpush.bf16.msra.mxu0 0
  %5515 = vmatpush.bf16.msra.mxu0 0
  %5516 = vmatpush.bf16.msra.mxu0 0
  %5517 = vmatpush.bf16.msra.mxu0 0
  %5518 = vmatpush.bf16.msra.mxu0 %v5506
  %5519 = vmatpush.bf16.msra.mxu0 %v5505
  %5520 = vmatpush.bf16.msra.mxu0 %v5504
  %5521 = vmatpush.bf16.msra.mxu0 %v5503
  %5522 = vmatmul.bf16.gmra.mxu0 %v5512
  %v5523 = vpop.f32.mrf.mxu0
  %v5524 = vadd.f32 %v5485, %v5523
  %v5525 = vpop.f32.mrf.mxu0
  %v5526 = vadd.f32 %v5485, %v5525
  %5527 = vdwg.mxu0
  %v5528 = vadd.f32 %v5376, %v5524
  %v5529 = vadd.f32 %v5377, %v5526
  %v5530 = vld [vmem:[%s13] sm:$0xff]
  %v5531 = vld [vmem:[%s13 + $0x8] sm:$0xff]
  %v5532 = vld [vmem:[%s5] sm:$0xff]
  %v5533 = vld [vmem:[%s5 + $0x8] sm:$0xff]
  %s5534 = scalar_lea.vmem %s67, 3
  %v5535 = vld [vmem:[%s5534] sm:$0x1]
  %s5536 = scalar_lea.vmem %s65, 3
  %v5537 = vld [vmem:[%s5536] sm:$0x1]
  %v5538 = vsel %vm189, %v5532, 0.0
  %5539 = vadd.xlane.f32.xlu0 %v5538
  %v5540 = vpop.xlane.xlu0 %5539
  %v5541 = vsel %vm189, %v5533, 0.0
  %5542 = vadd.xlane.f32.xlu0 %v5541
  %v5543 = vpop.xlane.xlu0 %5542
  %v5544 = vmul.f32 %v5540, %v202
  %v5545 = vmul.f32 %v5543, %v202
  %v5546 = vsub.f32 %v5532, %v5544
  %v5547 = vsub.f32 %v5533, %v5545
  %v5548 = vmul.f32 %v5546, %v5546
  %v5549 = vmul.f32 %v5547, %v5547
  %v5550 = vsel %vm189, %v5548, 0.0
  %5551 = vadd.xlane.f32.xlu0 %v5550
  %v5552 = vpop.xlane.xlu0 %5551
  %v5553 = vsel %vm189, %v5549, 0.0
  %5554 = vadd.xlane.f32.xlu0 %v5553
  %v5555 = vpop.xlane.xlu0 %5554
  %v5556 = vmul.f32 %v5552, %v202
  %v5557 = vmul.f32 %v5555, %v202
  %v5558 = vadd.f32 %v5556, 1e-06
  %v5559 = vadd.f32 %v5557, 1e-06
  %v5560 = vrsqrt.pop %v5558
  %v5561 = vmul.f32 %v5560, %v5558
  %v5562 = vmul.f32 %v5561, %v5560
  %v5563 = vmul.f32 0.5, %v5562
  %v5564 = vsub.f32 1.5, %v5563
  %v5565 = vmul.f32 %v5560, %v5564
  %vm5566 = vweird.f32 %v5558
  %vm5567 = vweird.f32 %v5560
  %vm5568 = vmor %vm5566, %vm5567
  %v5569 = vsel %vm5568, %v5560, %v5565
  %v5570 = vrsqrt.pop %v5559
  %v5571 = vmul.f32 %v5570, %v5559
  %v5572 = vmul.f32 %v5571, %v5570
  %v5573 = vmul.f32 0.5, %v5572
  %v5574 = vsub.f32 1.5, %v5573
  %v5575 = vmul.f32 %v5570, %v5574
  %vm5576 = vweird.f32 %v5559
  %vm5577 = vweird.f32 %v5570
  %vm5578 = vmor %vm5576, %vm5577
  %v5579 = vsel %vm5578, %v5570, %v5575
  %v5580 = vmul.f32 %v5546, %v5569
  %v5581 = vmul.f32 %v5547, %v5579
  %v5583 = vperm.slane %v5535, 0
  %v5585 = vmul.f32 %v5580, %v5583
  %v5586 = vmul.f32 %v5581, %v5583
  %v5588 = vperm.slane %v5537, 0
  %v5590 = vadd.f32 %v5585, %v5588
  %v5591 = vadd.f32 %v5586, %v5588
  %s5592 = scalar_lea.vmem %s81, 192
  %v5593 = vld [vmem:[%s5592] sm:$0xf]
  %v5594 = vld [vmem:[%s5592 + $0x4] sm:$0xf]
  %v5595 = vld [vmem:[%s5592 + $0x8] sm:$0xf]
  %v5596 = vld [vmem:[%s5592 + $0xc] sm:$0xf]
  %v5597 = vld [vmem:[%s5592 + $0x10] sm:$0xf]
  %v5598 = vld [vmem:[%s5592 + $0x14] sm:$0xf]
  %v5599 = vld [vmem:[%s5592 + $0x18] sm:$0xf]
  %v5600 = vld [vmem:[%s5592 + $0x1c] sm:$0xf]
  %v5601 = vld [vmem:[%s5592 + $0x20] sm:$0xf]
  %v5602 = vld [vmem:[%s5592 + $0x24] sm:$0xf]
  %v5603 = vld [vmem:[%s5592 + $0x28] sm:$0xf]
  %v5604 = vld [vmem:[%s5592 + $0x2c] sm:$0xf]
  %v5605 = vld [vmem:[%s5592 + $0x30] sm:$0xf]
  %v5606 = vld [vmem:[%s5592 + $0x34] sm:$0xf]
  %v5607 = vld [vmem:[%s5592 + $0x38] sm:$0xf]
  %v5608 = vld [vmem:[%s5592 + $0x3c] sm:$0xf]
  %s5609 = scalar_lea.vmem %s77, 192
  %v5610 = vld [vmem:[%s5609] sm:$0xf]
  %v5611 = vld [vmem:[%s5609 + $0x4] sm:$0xf]
  %v5612 = vld [vmem:[%s5609 + $0x8] sm:$0xf]
  %v5613 = vld [vmem:[%s5609 + $0xc] sm:$0xf]
  %v5614 = vld [vmem:[%s5609 + $0x10] sm:$0xf]
  %v5615 = vld [vmem:[%s5609 + $0x14] sm:$0xf]
  %v5616 = vld [vmem:[%s5609 + $0x18] sm:$0xf]
  %v5617 = vld [vmem:[%s5609 + $0x1c] sm:$0xf]
  %v5618 = vld [vmem:[%s5609 + $0x20] sm:$0xf]
  %v5619 = vld [vmem:[%s5609 + $0x24] sm:$0xf]
  %v5620 = vld [vmem:[%s5609 + $0x28] sm:$0xf]
  %v5621 = vld [vmem:[%s5609 + $0x2c] sm:$0xf]
  %v5622 = vld [vmem:[%s5609 + $0x30] sm:$0xf]
  %v5623 = vld [vmem:[%s5609 + $0x34] sm:$0xf]
  %v5624 = vld [vmem:[%s5609 + $0x38] sm:$0xf]
  %v5625 = vld [vmem:[%s5609 + $0x3c] sm:$0xf]
  %s5626 = scalar_lea.vmem %s83, 192
  %v5627 = vld [vmem:[%s5626] sm:$0xf]
  %v5628 = vld [vmem:[%s5626 + $0x4] sm:$0xf]
  %v5629 = vld [vmem:[%s5626 + $0x8] sm:$0xf]
  %v5630 = vld [vmem:[%s5626 + $0xc] sm:$0xf]
  %v5631 = vld [vmem:[%s5626 + $0x10] sm:$0xf]
  %v5632 = vld [vmem:[%s5626 + $0x14] sm:$0xf]
  %v5633 = vld [vmem:[%s5626 + $0x18] sm:$0xf]
  %v5634 = vld [vmem:[%s5626 + $0x1c] sm:$0xf]
  %v5635 = vld [vmem:[%s5626 + $0x20] sm:$0xf]
  %v5636 = vld [vmem:[%s5626 + $0x24] sm:$0xf]
  %v5637 = vld [vmem:[%s5626 + $0x28] sm:$0xf]
  %v5638 = vld [vmem:[%s5626 + $0x2c] sm:$0xf]
  %v5639 = vld [vmem:[%s5626 + $0x30] sm:$0xf]
  %v5640 = vld [vmem:[%s5626 + $0x34] sm:$0xf]
  %v5641 = vld [vmem:[%s5626 + $0x38] sm:$0xf]
  %v5642 = vld [vmem:[%s5626 + $0x3c] sm:$0xf]
  %s5643 = scalar_lea.vmem %s79, 48
  %v5644 = vld [vmem:[%s5643] sm:$0xf]
  %v5645 = vld [vmem:[%s5643 + $0x4] sm:$0xf]
  %v5646 = vld [vmem:[%s5643 + $0x8] sm:$0xf]
  %v5647 = vld [vmem:[%s5643 + $0xc] sm:$0xf]
  %v5648 = vpack.c.bf16 %v5591, %v5590
  %v5653 = vunpack.c.l.b16 %v5593
  %v5654 = vunpack.c.l.b16 %v5594
  %v5655 = vunpack.c.l.b16 %v5595
  %v5656 = vunpack.c.l.b16 %v5596
  %v5657 = vpack.c.b16 %v5654, %v5653
  %v5658 = vpack.c.b16 %v5656, %v5655
  %v5662 = vsel %vm189, %v5648, 0
  %5664 = vmatpush.bf16.msra.mxu0 0
  %5665 = vmatpush.bf16.msra.mxu0 0
  %5666 = vmatpush.bf16.msra.mxu0 0
  %5667 = vmatpush.bf16.msra.mxu0 0
  %5668 = vmatpush.bf16.msra.mxu0 0
  %5669 = vmatpush.bf16.msra.mxu0 0
  %5670 = vmatpush.bf16.msra.mxu0 %v5658
  %5671 = vmatpush.bf16.msra.mxu0 %v5657
  %5672 = vmatmul.bf16.gmra.mxu0 %v5662
  %v5673 = vpop.f32.mrf.mxu0
  %v5674 = vadd.f32 0.0, %v5673
  %v5675 = vpop.f32.mrf.mxu0
  %v5676 = vadd.f32 0.0, %v5675
  %5677 = vdwg.mxu0
  %v5682 = vunpack.c.l.b16 %v5610
  %v5683 = vunpack.c.l.b16 %v5611
  %v5684 = vunpack.c.l.b16 %v5612
  %v5685 = vunpack.c.l.b16 %v5613
  %v5686 = vpack.c.b16 %v5683, %v5682
  %v5687 = vpack.c.b16 %v5685, %v5684
  %5690 = vmatpush.bf16.msra.mxu0 0
  %5691 = vmatpush.bf16.msra.mxu0 0
  %5692 = vmatpush.bf16.msra.mxu0 0
  %5693 = vmatpush.bf16.msra.mxu0 0
  %5694 = vmatpush.bf16.msra.mxu0 0
  %5695 = vmatpush.bf16.msra.mxu0 0
  %5696 = vmatpush.bf16.msra.mxu0 %v5687
  %5697 = vmatpush.bf16.msra.mxu0 %v5686
  %5698 = vmatmul.bf16.gmra.mxu0 %v5662
  %v5699 = vpop.f32.mrf.mxu0
  %v5700 = vadd.f32 0.0, %v5699
  %v5701 = vpop.f32.mrf.mxu0
  %v5702 = vadd.f32 0.0, %v5701
  %5703 = vdwg.mxu0
  %v5708 = vunpack.c.l.b16 %v5627
  %v5709 = vunpack.c.l.b16 %v5628
  %v5710 = vunpack.c.l.b16 %v5629
  %v5711 = vunpack.c.l.b16 %v5630
  %v5712 = vpack.c.b16 %v5709, %v5708
  %v5713 = vpack.c.b16 %v5711, %v5710
  %5716 = vmatpush.bf16.msra.mxu0 0
  %5717 = vmatpush.bf16.msra.mxu0 0
  %5718 = vmatpush.bf16.msra.mxu0 0
  %5719 = vmatpush.bf16.msra.mxu0 0
  %5720 = vmatpush.bf16.msra.mxu0 0
  %5721 = vmatpush.bf16.msra.mxu0 0
  %5722 = vmatpush.bf16.msra.mxu0 %v5713
  %5723 = vmatpush.bf16.msra.mxu0 %v5712
  %5724 = vmatmul.bf16.gmra.mxu0 %v5662
  %v5725 = vpop.f32.mrf.mxu0
  %v5726 = vadd.f32 0.0, %v5725
  %v5727 = vpop.f32.mrf.mxu0
  %v5728 = vadd.f32 0.0, %v5727
  %5729 = vdwg.mxu0
  %v5730 = vpack.c.bf16 %v5674, %v5674
  %v5731 = vpack.c.bf16 %v5676, %v5676
  %v5732 = vpack.c.bf16 %v5700, %v5700
  %v5733 = vpack.c.bf16 %v5702, %v5702
  %v5734 = vpack.c.bf16 %v5726, %v5726
  %v5735 = vpack.c.bf16 %v5728, %v5728
  %v5737 = vsel %vm391, %v5730, 0
  %v5740 = vsel %vm391, %v5732, 0
  %5742 = vmatpush.bf16.xpose.msra.mxu0 0
  %5743 = vmatpush.bf16.xpose.msra.mxu0 0
  %5744 = vmatpush.bf16.xpose.msra.mxu0 0
  %5745 = vmatpush.bf16.xpose.msra.mxu0 0
  %5746 = vmatpush.bf16.xpose.msra.mxu0 0
  %5747 = vmatpush.bf16.xpose.msra.mxu0 0
  %5748 = vmatpush.bf16.xpose.msra.mxu0 0
  %5749 = vmatpush.bf16.xpose.msra.mxu0 %v5740
  %5750 = vmatmul.bf16.gmra.mxu0 %v5737
  %v5751 = vpop.f32.mrf.mxu0
  %v5752 = vadd.f32 %v5530, %v5751
  %v5753 = vpop.f32.mrf.mxu0
  %5754 = vdwg.mxu0
  %v5756 = vsel %vm391, %v5731, 0
  %v5759 = vsel %vm391, %v5733, 0
  %5761 = vmatpush.bf16.xpose.msra.mxu0 0
  %5762 = vmatpush.bf16.xpose.msra.mxu0 0
  %5763 = vmatpush.bf16.xpose.msra.mxu0 0
  %5764 = vmatpush.bf16.xpose.msra.mxu0 0
  %5765 = vmatpush.bf16.xpose.msra.mxu0 0
  %5766 = vmatpush.bf16.xpose.msra.mxu0 0
  %5767 = vmatpush.bf16.xpose.msra.mxu0 0
  %5768 = vmatpush.bf16.xpose.msra.mxu0 %v5759
  %5769 = vmatmul.bf16.gmra.mxu0 %v5756
  %v5770 = vpop.f32.mrf.mxu0
  %v5771 = vadd.f32 %v5531, %v5770
  %v5772 = vpop.f32.mrf.mxu0
  %5773 = vdwg.mxu0
  %v5774 = vsel %vm391, %v5752, -inf
  %5775 = vmax.xlane.f32.xlu0 %v5774
  %v5776 = vpop.xlane.xlu0 %5775
  %v5777 = vsel %vm391, %v5771, -inf
  %5778 = vmax.xlane.f32.xlu0 %v5777
  %v5779 = vpop.xlane.xlu0 %5778
  %v5780 = vsub.f32 %v5752, %v5776
  %v5781 = vsub.f32 %v5771, %v5779
  %v5782 = vmul.f32 %v5780, 1.442695
  %v5783 = vpow.pop %v5782
  %v5784 = vmul.f32 %v5781, 1.442695
  %v5785 = vpow.pop %v5784
  %v5786 = vsel %vm391, %v5783, 0.0
  %5787 = vadd.xlane.f32.xlu0 %v5786
  %v5788 = vpop.xlane.xlu0 %5787
  %v5789 = vsel %vm391, %v5785, 0.0
  %5790 = vadd.xlane.f32.xlu0 %v5789
  %v5791 = vpop.xlane.xlu0 %5790
  %v5792 = vrcp.pop %v5788
  %v5793 = vrcp.pop %v5791
  %v5794 = vmul.f32 %v5783, %v5792
  %v5795 = vmul.f32 %v5785, %v5793
  %v5796 = vpack.c.bf16 %v5794, %v5794
  %v5797 = vpack.c.bf16 %v5795, %v5795
  %v5799 = vsel %vm391, %v5796, 0
  %v5802 = vsel %vm457, %v5734, 0
  %5804 = vmatpush.bf16.msra.mxu0 0
  %5805 = vmatpush.bf16.msra.mxu0 0
  %5806 = vmatpush.bf16.msra.mxu0 0
  %5807 = vmatpush.bf16.msra.mxu0 0
  %5808 = vmatpush.bf16.msra.mxu0 0
  %5809 = vmatpush.bf16.msra.mxu0 0
  %5810 = vmatpush.bf16.msra.mxu0 0
  %5811 = vmatpush.bf16.msra.mxu0 %v5802
  %5812 = vmatmul.bf16.gmra.mxu0 %v5799
  %v5813 = vpop.f32.mrf.mxu0
  %v5814 = vadd.f32 0.0, %v5813
  %v5815 = vpop.f32.mrf.mxu0
  %5816 = vdwg.mxu0
  %v5818 = vsel %vm391, %v5797, 0
  %v5821 = vsel %vm457, %v5735, 0
  %5823 = vmatpush.bf16.msra.mxu0 0
  %5824 = vmatpush.bf16.msra.mxu0 0
  %5825 = vmatpush.bf16.msra.mxu0 0
  %5826 = vmatpush.bf16.msra.mxu0 0
  %5827 = vmatpush.bf16.msra.mxu0 0
  %5828 = vmatpush.bf16.msra.mxu0 0
  %5829 = vmatpush.bf16.msra.mxu0 0
  %5830 = vmatpush.bf16.msra.mxu0 %v5821
  %5831 = vmatmul.bf16.gmra.mxu0 %v5818
  %v5832 = vpop.f32.mrf.mxu0
  %v5833 = vadd.f32 0.0, %v5832
  %v5834 = vpop.f32.mrf.mxu0
  %5835 = vdwg.mxu0
  %v5836 = vpack.c.bf16 %v5833, %v5814
  %v5841 = vunpack.c.l.b16 %v5597
  %v5842 = vunpack.c.l.b16 %v5598
  %v5843 = vunpack.c.l.b16 %v5599
  %v5844 = vunpack.c.l.b16 %v5600
  %v5845 = vpack.c.b16 %v5842, %v5841
  %v5846 = vpack.c.b16 %v5844, %v5843
  %5849 = vmatpush.bf16.msra.mxu0 0
  %5850 = vmatpush.bf16.msra.mxu0 0
  %5851 = vmatpush.bf16.msra.mxu0 0
  %5852 = vmatpush.bf16.msra.mxu0 0
  %5853 = vmatpush.bf16.msra.mxu0 0
  %5854 = vmatpush.bf16.msra.mxu0 0
  %5855 = vmatpush.bf16.msra.mxu0 %v5846
  %5856 = vmatpush.bf16.msra.mxu0 %v5845
  %5857 = vmatmul.bf16.gmra.mxu0 %v5662
  %v5858 = vpop.f32.mrf.mxu0
  %v5859 = vadd.f32 0.0, %v5858
  %v5860 = vpop.f32.mrf.mxu0
  %v5861 = vadd.f32 0.0, %v5860
  %5862 = vdwg.mxu0
  %v5867 = vunpack.c.l.b16 %v5614
  %v5868 = vunpack.c.l.b16 %v5615
  %v5869 = vunpack.c.l.b16 %v5616
  %v5870 = vunpack.c.l.b16 %v5617
  %v5871 = vpack.c.b16 %v5868, %v5867
  %v5872 = vpack.c.b16 %v5870, %v5869
  %5875 = vmatpush.bf16.msra.mxu0 0
  %5876 = vmatpush.bf16.msra.mxu0 0
  %5877 = vmatpush.bf16.msra.mxu0 0
  %5878 = vmatpush.bf16.msra.mxu0 0
  %5879 = vmatpush.bf16.msra.mxu0 0
  %5880 = vmatpush.bf16.msra.mxu0 0
  %5881 = vmatpush.bf16.msra.mxu0 %v5872
  %5882 = vmatpush.bf16.msra.mxu0 %v5871
  %5883 = vmatmul.bf16.gmra.mxu0 %v5662
  %v5884 = vpop.f32.mrf.mxu0
  %v5885 = vadd.f32 0.0, %v5884
  %v5886 = vpop.f32.mrf.mxu0
  %v5887 = vadd.f32 0.0, %v5886
  %5888 = vdwg.mxu0
  %v5893 = vunpack.c.l.b16 %v5631
  %v5894 = vunpack.c.l.b16 %v5632
  %v5895 = vunpack.c.l.b16 %v5633
  %v5896 = vunpack.c.l.b16 %v5634
  %v5897 = vpack.c.b16 %v5894, %v5893
  %v5898 = vpack.c.b16 %v5896, %v5895
  %5901 = vmatpush.bf16.msra.mxu0 0
  %5902 = vmatpush.bf16.msra.mxu0 0
  %5903 = vmatpush.bf16.msra.mxu0 0
  %5904 = vmatpush.bf16.msra.mxu0 0
  %5905 = vmatpush.bf16.msra.mxu0 0
  %5906 = vmatpush.bf16.msra.mxu0 0
  %5907 = vmatpush.bf16.msra.mxu0 %v5898
  %5908 = vmatpush.bf16.msra.mxu0 %v5897
  %5909 = vmatmul.bf16.gmra.mxu0 %v5662
  %v5910 = vpop.f32.mrf.mxu0
  %v5911 = vadd.f32 0.0, %v5910
  %v5912 = vpop.f32.mrf.mxu0
  %v5913 = vadd.f32 0.0, %v5912
  %5914 = vdwg.mxu0
  %v5915 = vpack.c.bf16 %v5859, %v5859
  %v5916 = vpack.c.bf16 %v5861, %v5861
  %v5917 = vpack.c.bf16 %v5885, %v5885
  %v5918 = vpack.c.bf16 %v5887, %v5887
  %v5919 = vpack.c.bf16 %v5911, %v5911
  %v5920 = vpack.c.bf16 %v5913, %v5913
  %v5922 = vsel %vm391, %v5915, 0
  %v5925 = vsel %vm391, %v5917, 0
  %5927 = vmatpush.bf16.xpose.msra.mxu0 0
  %5928 = vmatpush.bf16.xpose.msra.mxu0 0
  %5929 = vmatpush.bf16.xpose.msra.mxu0 0
  %5930 = vmatpush.bf16.xpose.msra.mxu0 0
  %5931 = vmatpush.bf16.xpose.msra.mxu0 0
  %5932 = vmatpush.bf16.xpose.msra.mxu0 0
  %5933 = vmatpush.bf16.xpose.msra.mxu0 0
  %5934 = vmatpush.bf16.xpose.msra.mxu0 %v5925
  %5935 = vmatmul.bf16.gmra.mxu0 %v5922
  %v5936 = vpop.f32.mrf.mxu0
  %v5937 = vadd.f32 %v5530, %v5936
  %v5938 = vpop.f32.mrf.mxu0
  %5939 = vdwg.mxu0
  %v5941 = vsel %vm391, %v5916, 0
  %v5944 = vsel %vm391, %v5918, 0
  %5946 = vmatpush.bf16.xpose.msra.mxu0 0
  %5947 = vmatpush.bf16.xpose.msra.mxu0 0
  %5948 = vmatpush.bf16.xpose.msra.mxu0 0
  %5949 = vmatpush.bf16.xpose.msra.mxu0 0
  %5950 = vmatpush.bf16.xpose.msra.mxu0 0
  %5951 = vmatpush.bf16.xpose.msra.mxu0 0
  %5952 = vmatpush.bf16.xpose.msra.mxu0 0
  %5953 = vmatpush.bf16.xpose.msra.mxu0 %v5944
  %5954 = vmatmul.bf16.gmra.mxu0 %v5941
  %v5955 = vpop.f32.mrf.mxu0
  %v5956 = vadd.f32 %v5531, %v5955
  %v5957 = vpop.f32.mrf.mxu0
  %5958 = vdwg.mxu0
  %v5959 = vsel %vm391, %v5937, -inf
  %5960 = vmax.xlane.f32.xlu0 %v5959
  %v5961 = vpop.xlane.xlu0 %5960
  %v5962 = vsel %vm391, %v5956, -inf
  %5963 = vmax.xlane.f32.xlu0 %v5962
  %v5964 = vpop.xlane.xlu0 %5963
  %v5965 = vsub.f32 %v5937, %v5961
  %v5966 = vsub.f32 %v5956, %v5964
  %v5967 = vmul.f32 %v5965, 1.442695
  %v5968 = vpow.pop %v5967
  %v5969 = vmul.f32 %v5966, 1.442695
  %v5970 = vpow.pop %v5969
  %v5971 = vsel %vm391, %v5968, 0.0
  %5972 = vadd.xlane.f32.xlu0 %v5971
  %v5973 = vpop.xlane.xlu0 %5972
  %v5974 = vsel %vm391, %v5970, 0.0
  %5975 = vadd.xlane.f32.xlu0 %v5974
  %v5976 = vpop.xlane.xlu0 %5975
  %v5977 = vrcp.pop %v5973
  %v5978 = vrcp.pop %v5976
  %v5979 = vmul.f32 %v5968, %v5977
  %v5980 = vmul.f32 %v5970, %v5978
  %v5981 = vpack.c.bf16 %v5979, %v5979
  %v5982 = vpack.c.bf16 %v5980, %v5980
  %v5984 = vsel %vm391, %v5981, 0
  %v5987 = vsel %vm457, %v5919, 0
  %5989 = vmatpush.bf16.msra.mxu0 0
  %5990 = vmatpush.bf16.msra.mxu0 0
  %5991 = vmatpush.bf16.msra.mxu0 0
  %5992 = vmatpush.bf16.msra.mxu0 0
  %5993 = vmatpush.bf16.msra.mxu0 0
  %5994 = vmatpush.bf16.msra.mxu0 0
  %5995 = vmatpush.bf16.msra.mxu0 0
  %5996 = vmatpush.bf16.msra.mxu0 %v5987
  %5997 = vmatmul.bf16.gmra.mxu0 %v5984
  %v5998 = vpop.f32.mrf.mxu0
  %v5999 = vadd.f32 0.0, %v5998
  %v6000 = vpop.f32.mrf.mxu0
  %6001 = vdwg.mxu0
  %v6003 = vsel %vm391, %v5982, 0
  %v6006 = vsel %vm457, %v5920, 0
  %6008 = vmatpush.bf16.msra.mxu0 0
  %6009 = vmatpush.bf16.msra.mxu0 0
  %6010 = vmatpush.bf16.msra.mxu0 0
  %6011 = vmatpush.bf16.msra.mxu0 0
  %6012 = vmatpush.bf16.msra.mxu0 0
  %6013 = vmatpush.bf16.msra.mxu0 0
  %6014 = vmatpush.bf16.msra.mxu0 0
  %6015 = vmatpush.bf16.msra.mxu0 %v6006
  %6016 = vmatmul.bf16.gmra.mxu0 %v6003
  %v6017 = vpop.f32.mrf.mxu0
  %v6018 = vadd.f32 0.0, %v6017
  %v6019 = vpop.f32.mrf.mxu0
  %6020 = vdwg.mxu0
  %v6021 = vpack.c.bf16 %v6018, %v5999
  %v6023 = vsel %vm391, %v6021, 0
  %v6026 = vsel %vm457, %v5645, 0
  %6028 = vmatpush.bf16.msra.mxu0 0
  %6029 = vmatpush.bf16.msra.mxu0 0
  %6030 = vmatpush.bf16.msra.mxu0 0
  %6031 = vmatpush.bf16.msra.mxu0 0
  %6032 = vmatpush.bf16.msra.mxu0 0
  %6033 = vmatpush.bf16.msra.mxu0 0
  %6034 = vmatpush.bf16.msra.mxu0 0
  %6035 = vmatpush.bf16.msra.mxu0 %v6026
  %6036 = vmatmul.bf16.gmra.mxu0 %v6023
  %v6037 = vpop.f32.mrf.mxu0
  %v6038 = vadd.f32 0.0, %v6037
  %v6039 = vpop.f32.mrf.mxu0
  %v6040 = vadd.f32 0.0, %v6039
  %6041 = vdwg.mxu0
  %v6043 = vsel %vm391, %v5836, 0
  %v6046 = vsel %vm457, %v5644, 0
  %6048 = vmatpush.bf16.msra.mxu0 0
  %6049 = vmatpush.bf16.msra.mxu0 0
  %6050 = vmatpush.bf16.msra.mxu0 0
  %6051 = vmatpush.bf16.msra.mxu0 0
  %6052 = vmatpush.bf16.msra.mxu0 0
  %6053 = vmatpush.bf16.msra.mxu0 0
  %6054 = vmatpush.bf16.msra.mxu0 0
  %6055 = vmatpush.bf16.msra.mxu0 %v6046
  %6056 = vmatmul.bf16.gmra.mxu0 %v6043
  %v6057 = vpop.f32.mrf.mxu0
  %v6058 = vadd.f32 %v6038, %v6057
  %v6059 = vpop.f32.mrf.mxu0
  %v6060 = vadd.f32 %v6040, %v6059
  %6061 = vdwg.mxu0
  %v6066 = vunpack.c.l.b16 %v5601
  %v6067 = vunpack.c.l.b16 %v5602
  %v6068 = vunpack.c.l.b16 %v5603
  %v6069 = vunpack.c.l.b16 %v5604
  %v6070 = vpack.c.b16 %v6067, %v6066
  %v6071 = vpack.c.b16 %v6069, %v6068
  %6074 = vmatpush.bf16.msra.mxu0 0
  %6075 = vmatpush.bf16.msra.mxu0 0
  %6076 = vmatpush.bf16.msra.mxu0 0
  %6077 = vmatpush.bf16.msra.mxu0 0
  %6078 = vmatpush.bf16.msra.mxu0 0
  %6079 = vmatpush.bf16.msra.mxu0 0
  %6080 = vmatpush.bf16.msra.mxu0 %v6071
  %6081 = vmatpush.bf16.msra.mxu0 %v6070
  %6082 = vmatmul.bf16.gmra.mxu0 %v5662
  %v6083 = vpop.f32.mrf.mxu0
  %v6084 = vadd.f32 0.0, %v6083
  %v6085 = vpop.f32.mrf.mxu0
  %v6086 = vadd.f32 0.0, %v6085
  %6087 = vdwg.mxu0
  %v6092 = vunpack.c.l.b16 %v5618
  %v6093 = vunpack.c.l.b16 %v5619
  %v6094 = vunpack.c.l.b16 %v5620
  %v6095 = vunpack.c.l.b16 %v5621
  %v6096 = vpack.c.b16 %v6093, %v6092
  %v6097 = vpack.c.b16 %v6095, %v6094
  %6100 = vmatpush.bf16.msra.mxu0 0
  %6101 = vmatpush.bf16.msra.mxu0 0
  %6102 = vmatpush.bf16.msra.mxu0 0
  %6103 = vmatpush.bf16.msra.mxu0 0
  %6104 = vmatpush.bf16.msra.mxu0 0
  %6105 = vmatpush.bf16.msra.mxu0 0
  %6106 = vmatpush.bf16.msra.mxu0 %v6097
  %6107 = vmatpush.bf16.msra.mxu0 %v6096
  %6108 = vmatmul.bf16.gmra.mxu0 %v5662
  %v6109 = vpop.f32.mrf.mxu0
  %v6110 = vadd.f32 0.0, %v6109
  %v6111 = vpop.f32.mrf.mxu0
  %v6112 = vadd.f32 0.0, %v6111
  %6113 = vdwg.mxu0
  %v6118 = vunpack.c.l.b16 %v5635
  %v6119 = vunpack.c.l.b16 %v5636
  %v6120 = vunpack.c.l.b16 %v5637
  %v6121 = vunpack.c.l.b16 %v5638
  %v6122 = vpack.c.b16 %v6119, %v6118
  %v6123 = vpack.c.b16 %v6121, %v6120
  %6126 = vmatpush.bf16.msra.mxu0 0
  %6127 = vmatpush.bf16.msra.mxu0 0
  %6128 = vmatpush.bf16.msra.mxu0 0
  %6129 = vmatpush.bf16.msra.mxu0 0
  %6130 = vmatpush.bf16.msra.mxu0 0
  %6131 = vmatpush.bf16.msra.mxu0 0
  %6132 = vmatpush.bf16.msra.mxu0 %v6123
  %6133 = vmatpush.bf16.msra.mxu0 %v6122
  %6134 = vmatmul.bf16.gmra.mxu0 %v5662
  %v6135 = vpop.f32.mrf.mxu0
  %v6136 = vadd.f32 0.0, %v6135
  %v6137 = vpop.f32.mrf.mxu0
  %v6138 = vadd.f32 0.0, %v6137
  %6139 = vdwg.mxu0
  %v6140 = vpack.c.bf16 %v6084, %v6084
  %v6141 = vpack.c.bf16 %v6086, %v6086
  %v6142 = vpack.c.bf16 %v6110, %v6110
  %v6143 = vpack.c.bf16 %v6112, %v6112
  %v6144 = vpack.c.bf16 %v6136, %v6136
  %v6145 = vpack.c.bf16 %v6138, %v6138
  %v6147 = vsel %vm391, %v6140, 0
  %v6150 = vsel %vm391, %v6142, 0
  %6152 = vmatpush.bf16.xpose.msra.mxu0 0
  %6153 = vmatpush.bf16.xpose.msra.mxu0 0
  %6154 = vmatpush.bf16.xpose.msra.mxu0 0
  %6155 = vmatpush.bf16.xpose.msra.mxu0 0
  %6156 = vmatpush.bf16.xpose.msra.mxu0 0
  %6157 = vmatpush.bf16.xpose.msra.mxu0 0
  %6158 = vmatpush.bf16.xpose.msra.mxu0 0
  %6159 = vmatpush.bf16.xpose.msra.mxu0 %v6150
  %6160 = vmatmul.bf16.gmra.mxu0 %v6147
  %v6161 = vpop.f32.mrf.mxu0
  %v6162 = vadd.f32 %v5530, %v6161
  %v6163 = vpop.f32.mrf.mxu0
  %6164 = vdwg.mxu0
  %v6166 = vsel %vm391, %v6141, 0
  %v6169 = vsel %vm391, %v6143, 0
  %6171 = vmatpush.bf16.xpose.msra.mxu0 0
  %6172 = vmatpush.bf16.xpose.msra.mxu0 0
  %6173 = vmatpush.bf16.xpose.msra.mxu0 0
  %6174 = vmatpush.bf16.xpose.msra.mxu0 0
  %6175 = vmatpush.bf16.xpose.msra.mxu0 0
  %6176 = vmatpush.bf16.xpose.msra.mxu0 0
  %6177 = vmatpush.bf16.xpose.msra.mxu0 0
  %6178 = vmatpush.bf16.xpose.msra.mxu0 %v6169
  %6179 = vmatmul.bf16.gmra.mxu0 %v6166
  %v6180 = vpop.f32.mrf.mxu0
  %v6181 = vadd.f32 %v5531, %v6180
  %v6182 = vpop.f32.mrf.mxu0
  %6183 = vdwg.mxu0
  %v6184 = vsel %vm391, %v6162, -inf
  %6185 = vmax.xlane.f32.xlu0 %v6184
  %v6186 = vpop.xlane.xlu0 %6185
  %v6187 = vsel %vm391, %v6181, -inf
  %6188 = vmax.xlane.f32.xlu0 %v6187
  %v6189 = vpop.xlane.xlu0 %6188
  %v6190 = vsub.f32 %v6162, %v6186
  %v6191 = vsub.f32 %v6181, %v6189
  %v6192 = vmul.f32 %v6190, 1.442695
  %v6193 = vpow.pop %v6192
  %v6194 = vmul.f32 %v6191, 1.442695
  %v6195 = vpow.pop %v6194
  %v6196 = vsel %vm391, %v6193, 0.0
  %6197 = vadd.xlane.f32.xlu0 %v6196
  %v6198 = vpop.xlane.xlu0 %6197
  %v6199 = vsel %vm391, %v6195, 0.0
  %6200 = vadd.xlane.f32.xlu0 %v6199
  %v6201 = vpop.xlane.xlu0 %6200
  %v6202 = vrcp.pop %v6198
  %v6203 = vrcp.pop %v6201
  %v6204 = vmul.f32 %v6193, %v6202
  %v6205 = vmul.f32 %v6195, %v6203
  %v6206 = vpack.c.bf16 %v6204, %v6204
  %v6207 = vpack.c.bf16 %v6205, %v6205
  %v6209 = vsel %vm391, %v6206, 0
  %v6212 = vsel %vm457, %v6144, 0
  %6214 = vmatpush.bf16.msra.mxu0 0
  %6215 = vmatpush.bf16.msra.mxu0 0
  %6216 = vmatpush.bf16.msra.mxu0 0
  %6217 = vmatpush.bf16.msra.mxu0 0
  %6218 = vmatpush.bf16.msra.mxu0 0
  %6219 = vmatpush.bf16.msra.mxu0 0
  %6220 = vmatpush.bf16.msra.mxu0 0
  %6221 = vmatpush.bf16.msra.mxu0 %v6212
  %6222 = vmatmul.bf16.gmra.mxu0 %v6209
  %v6223 = vpop.f32.mrf.mxu0
  %v6224 = vadd.f32 0.0, %v6223
  %v6225 = vpop.f32.mrf.mxu0
  %6226 = vdwg.mxu0
  %v6228 = vsel %vm391, %v6207, 0
  %v6231 = vsel %vm457, %v6145, 0
  %6233 = vmatpush.bf16.msra.mxu0 0
  %6234 = vmatpush.bf16.msra.mxu0 0
  %6235 = vmatpush.bf16.msra.mxu0 0
  %6236 = vmatpush.bf16.msra.mxu0 0
  %6237 = vmatpush.bf16.msra.mxu0 0
  %6238 = vmatpush.bf16.msra.mxu0 0
  %6239 = vmatpush.bf16.msra.mxu0 0
  %6240 = vmatpush.bf16.msra.mxu0 %v6231
  %6241 = vmatmul.bf16.gmra.mxu0 %v6228
  %v6242 = vpop.f32.mrf.mxu0
  %v6243 = vadd.f32 0.0, %v6242
  %v6244 = vpop.f32.mrf.mxu0
  %6245 = vdwg.mxu0
  %v6246 = vpack.c.bf16 %v6243, %v6224
  %v6248 = vsel %vm391, %v6246, 0
  %v6251 = vsel %vm457, %v5646, 0
  %6253 = vmatpush.bf16.msra.mxu0 0
  %6254 = vmatpush.bf16.msra.mxu0 0
  %6255 = vmatpush.bf16.msra.mxu0 0
  %6256 = vmatpush.bf16.msra.mxu0 0
  %6257 = vmatpush.bf16.msra.mxu0 0
  %6258 = vmatpush.bf16.msra.mxu0 0
  %6259 = vmatpush.bf16.msra.mxu0 0
  %6260 = vmatpush.bf16.msra.mxu0 %v6251
  %6261 = vmatmul.bf16.gmra.mxu0 %v6248
  %v6262 = vpop.f32.mrf.mxu0
  %v6263 = vadd.f32 0.0, %v6262
  %v6264 = vpop.f32.mrf.mxu0
  %v6265 = vadd.f32 0.0, %v6264
  %6266 = vdwg.mxu0
  %v6267 = vadd.f32 %v6058, %v6263
  %v6268 = vadd.f32 %v6060, %v6265
  %v6273 = vunpack.c.l.b16 %v5605
  %v6274 = vunpack.c.l.b16 %v5606
  %v6275 = vunpack.c.l.b16 %v5607
  %v6276 = vunpack.c.l.b16 %v5608
  %v6277 = vpack.c.b16 %v6274, %v6273
  %v6278 = vpack.c.b16 %v6276, %v6275
  %6281 = vmatpush.bf16.msra.mxu0 0
  %6282 = vmatpush.bf16.msra.mxu0 0
  %6283 = vmatpush.bf16.msra.mxu0 0
  %6284 = vmatpush.bf16.msra.mxu0 0
  %6285 = vmatpush.bf16.msra.mxu0 0
  %6286 = vmatpush.bf16.msra.mxu0 0
  %6287 = vmatpush.bf16.msra.mxu0 %v6278
  %6288 = vmatpush.bf16.msra.mxu0 %v6277
  %6289 = vmatmul.bf16.gmra.mxu0 %v5662
  %v6290 = vpop.f32.mrf.mxu0
  %v6291 = vadd.f32 0.0, %v6290
  %v6292 = vpop.f32.mrf.mxu0
  %v6293 = vadd.f32 0.0, %v6292
  %6294 = vdwg.mxu0
  %v6299 = vunpack.c.l.b16 %v5622
  %v6300 = vunpack.c.l.b16 %v5623
  %v6301 = vunpack.c.l.b16 %v5624
  %v6302 = vunpack.c.l.b16 %v5625
  %v6303 = vpack.c.b16 %v6300, %v6299
  %v6304 = vpack.c.b16 %v6302, %v6301
  %6307 = vmatpush.bf16.msra.mxu0 0
  %6308 = vmatpush.bf16.msra.mxu0 0
  %6309 = vmatpush.bf16.msra.mxu0 0
  %6310 = vmatpush.bf16.msra.mxu0 0
  %6311 = vmatpush.bf16.msra.mxu0 0
  %6312 = vmatpush.bf16.msra.mxu0 0
  %6313 = vmatpush.bf16.msra.mxu0 %v6304
  %6314 = vmatpush.bf16.msra.mxu0 %v6303
  %6315 = vmatmul.bf16.gmra.mxu0 %v5662
  %v6316 = vpop.f32.mrf.mxu0
  %v6317 = vadd.f32 0.0, %v6316
  %v6318 = vpop.f32.mrf.mxu0
  %v6319 = vadd.f32 0.0, %v6318
  %6320 = vdwg.mxu0
  %v6325 = vunpack.c.l.b16 %v5639
  %v6326 = vunpack.c.l.b16 %v5640
  %v6327 = vunpack.c.l.b16 %v5641
  %v6328 = vunpack.c.l.b16 %v5642
  %v6329 = vpack.c.b16 %v6326, %v6325
  %v6330 = vpack.c.b16 %v6328, %v6327
  %6333 = vmatpush.bf16.msra.mxu0 0
  %6334 = vmatpush.bf16.msra.mxu0 0
  %6335 = vmatpush.bf16.msra.mxu0 0
  %6336 = vmatpush.bf16.msra.mxu0 0
  %6337 = vmatpush.bf16.msra.mxu0 0
  %6338 = vmatpush.bf16.msra.mxu0 0
  %6339 = vmatpush.bf16.msra.mxu0 %v6330
  %6340 = vmatpush.bf16.msra.mxu0 %v6329
  %6341 = vmatmul.bf16.gmra.mxu0 %v5662
  %v6342 = vpop.f32.mrf.mxu0
  %v6343 = vadd.f32 0.0, %v6342
  %v6344 = vpop.f32.mrf.mxu0
  %v6345 = vadd.f32 0.0, %v6344
  %6346 = vdwg.mxu0
  %v6347 = vpack.c.bf16 %v6291, %v6291
  %v6348 = vpack.c.bf16 %v6293, %v6293
  %v6349 = vpack.c.bf16 %v6317, %v6317
  %v6350 = vpack.c.bf16 %v6319, %v6319
  %v6351 = vpack.c.bf16 %v6343, %v6343
  %v6352 = vpack.c.bf16 %v6345, %v6345
  %v6354 = vsel %vm391, %v6347, 0
  %v6357 = vsel %vm391, %v6349, 0
  %6359 = vmatpush.bf16.xpose.msra.mxu0 0
  %6360 = vmatpush.bf16.xpose.msra.mxu0 0
  %6361 = vmatpush.bf16.xpose.msra.mxu0 0
  %6362 = vmatpush.bf16.xpose.msra.mxu0 0
  %6363 = vmatpush.bf16.xpose.msra.mxu0 0
  %6364 = vmatpush.bf16.xpose.msra.mxu0 0
  %6365 = vmatpush.bf16.xpose.msra.mxu0 0
  %6366 = vmatpush.bf16.xpose.msra.mxu0 %v6357
  %6367 = vmatmul.bf16.gmra.mxu0 %v6354
  %v6368 = vpop.f32.mrf.mxu0
  %v6369 = vadd.f32 %v5530, %v6368
  %v6370 = vpop.f32.mrf.mxu0
  %6371 = vdwg.mxu0
  %v6373 = vsel %vm391, %v6348, 0
  %v6376 = vsel %vm391, %v6350, 0
  %6378 = vmatpush.bf16.xpose.msra.mxu0 0
  %6379 = vmatpush.bf16.xpose.msra.mxu0 0
  %6380 = vmatpush.bf16.xpose.msra.mxu0 0
  %6381 = vmatpush.bf16.xpose.msra.mxu0 0
  %6382 = vmatpush.bf16.xpose.msra.mxu0 0
  %6383 = vmatpush.bf16.xpose.msra.mxu0 0
  %6384 = vmatpush.bf16.xpose.msra.mxu0 0
  %6385 = vmatpush.bf16.xpose.msra.mxu0 %v6376
  %6386 = vmatmul.bf16.gmra.mxu0 %v6373
  %v6387 = vpop.f32.mrf.mxu0
  %v6388 = vadd.f32 %v5531, %v6387
  %v6389 = vpop.f32.mrf.mxu0
  %6390 = vdwg.mxu0
  %v6391 = vsel %vm391, %v6369, -inf
  %6392 = vmax.xlane.f32.xlu0 %v6391
  %v6393 = vpop.xlane.xlu0 %6392
  %v6394 = vsel %vm391, %v6388, -inf
  %6395 = vmax.xlane.f32.xlu0 %v6394
  %v6396 = vpop.xlane.xlu0 %6395
  %v6397 = vsub.f32 %v6369, %v6393
  %v6398 = vsub.f32 %v6388, %v6396
  %v6399 = vmul.f32 %v6397, 1.442695
  %v6400 = vpow.pop %v6399
  %v6401 = vmul.f32 %v6398, 1.442695
  %v6402 = vpow.pop %v6401
  %v6403 = vsel %vm391, %v6400, 0.0
  %6404 = vadd.xlane.f32.xlu0 %v6403
  %v6405 = vpop.xlane.xlu0 %6404
  %v6406 = vsel %vm391, %v6402, 0.0
  %6407 = vadd.xlane.f32.xlu0 %v6406
  %v6408 = vpop.xlane.xlu0 %6407
  %v6409 = vrcp.pop %v6405
  %v6410 = vrcp.pop %v6408
  %v6411 = vmul.f32 %v6400, %v6409
  %v6412 = vmul.f32 %v6402, %v6410
  %v6413 = vpack.c.bf16 %v6411, %v6411
  %v6414 = vpack.c.bf16 %v6412, %v6412
  %v6416 = vsel %vm391, %v6413, 0
  %v6419 = vsel %vm457, %v6351, 0
  %6421 = vmatpush.bf16.msra.mxu0 0
  %6422 = vmatpush.bf16.msra.mxu0 0
  %6423 = vmatpush.bf16.msra.mxu0 0
  %6424 = vmatpush.bf16.msra.mxu0 0
  %6425 = vmatpush.bf16.msra.mxu0 0
  %6426 = vmatpush.bf16.msra.mxu0 0
  %6427 = vmatpush.bf16.msra.mxu0 0
  %6428 = vmatpush.bf16.msra.mxu0 %v6419
  %6429 = vmatmul.bf16.gmra.mxu0 %v6416
  %v6430 = vpop.f32.mrf.mxu0
  %v6431 = vadd.f32 0.0, %v6430
  %v6432 = vpop.f32.mrf.mxu0
  %6433 = vdwg.mxu0
  %v6435 = vsel %vm391, %v6414, 0
  %v6438 = vsel %vm457, %v6352, 0
  %6440 = vmatpush.bf16.msra.mxu0 0
  %6441 = vmatpush.bf16.msra.mxu0 0
  %6442 = vmatpush.bf16.msra.mxu0 0
  %6443 = vmatpush.bf16.msra.mxu0 0
  %6444 = vmatpush.bf16.msra.mxu0 0
  %6445 = vmatpush.bf16.msra.mxu0 0
  %6446 = vmatpush.bf16.msra.mxu0 0
  %6447 = vmatpush.bf16.msra.mxu0 %v6438
  %6448 = vmatmul.bf16.gmra.mxu0 %v6435
  %v6449 = vpop.f32.mrf.mxu0
  %v6450 = vadd.f32 0.0, %v6449
  %v6451 = vpop.f32.mrf.mxu0
  %6452 = vdwg.mxu0
  %v6453 = vpack.c.bf16 %v6450, %v6431
  %v6455 = vsel %vm391, %v6453, 0
  %v6458 = vsel %vm457, %v5647, 0
  %6460 = vmatpush.bf16.msra.mxu0 0
  %6461 = vmatpush.bf16.msra.mxu0 0
  %6462 = vmatpush.bf16.msra.mxu0 0
  %6463 = vmatpush.bf16.msra.mxu0 0
  %6464 = vmatpush.bf16.msra.mxu0 0
  %6465 = vmatpush.bf16.msra.mxu0 0
  %6466 = vmatpush.bf16.msra.mxu0 0
  %6467 = vmatpush.bf16.msra.mxu0 %v6458
  %6468 = vmatmul.bf16.gmra.mxu0 %v6455
  %v6469 = vpop.f32.mrf.mxu0
  %v6470 = vadd.f32 0.0, %v6469
  %v6471 = vpop.f32.mrf.mxu0
  %v6472 = vadd.f32 0.0, %v6471
  %6473 = vdwg.mxu0
  %v6474 = vadd.f32 %v6267, %v6470
  %v6475 = vadd.f32 %v6268, %v6472
  %v6476 = vadd.f32 %v5532, %v6474
  %v6477 = vadd.f32 %v5533, %v6475
  %s6478 = scalar_lea.vmem %s71, 3
  %v6479 = vld [vmem:[%s6478] sm:$0x1]
  %s6480 = scalar_lea.vmem %s69, 3
  %v6481 = vld [vmem:[%s6480] sm:$0x1]
  %v6482 = vsel %vm189, %v6476, 0.0
  %6483 = vadd.xlane.f32.xlu0 %v6482
  %v6484 = vpop.xlane.xlu0 %6483
  %v6485 = vsel %vm189, %v6477, 0.0
  %6486 = vadd.xlane.f32.xlu0 %v6485
  %v6487 = vpop.xlane.xlu0 %6486
  %v6488 = vmul.f32 %v6484, %v202
  %v6489 = vmul.f32 %v6487, %v202
  %v6490 = vsub.f32 %v6476, %v6488
  %v6491 = vsub.f32 %v6477, %v6489
  %v6492 = vmul.f32 %v6490, %v6490
  %v6493 = vmul.f32 %v6491, %v6491
  %v6494 = vsel %vm189, %v6492, 0.0
  %6495 = vadd.xlane.f32.xlu0 %v6494
  %v6496 = vpop.xlane.xlu0 %6495
  %v6497 = vsel %vm189, %v6493, 0.0
  %6498 = vadd.xlane.f32.xlu0 %v6497
  %v6499 = vpop.xlane.xlu0 %6498
  %v6500 = vmul.f32 %v6496, %v202
  %v6501 = vmul.f32 %v6499, %v202
  %v6502 = vadd.f32 %v6500, 1e-06
  %v6503 = vadd.f32 %v6501, 1e-06
  %v6504 = vrsqrt.pop %v6502
  %v6505 = vmul.f32 %v6504, %v6502
  %v6506 = vmul.f32 %v6505, %v6504
  %v6507 = vmul.f32 0.5, %v6506
  %v6508 = vsub.f32 1.5, %v6507
  %v6509 = vmul.f32 %v6504, %v6508
  %vm6510 = vweird.f32 %v6502
  %vm6511 = vweird.f32 %v6504
  %vm6512 = vmor %vm6510, %vm6511
  %v6513 = vsel %vm6512, %v6504, %v6509
  %v6514 = vrsqrt.pop %v6503
  %v6515 = vmul.f32 %v6514, %v6503
  %v6516 = vmul.f32 %v6515, %v6514
  %v6517 = vmul.f32 0.5, %v6516
  %v6518 = vsub.f32 1.5, %v6517
  %v6519 = vmul.f32 %v6514, %v6518
  %vm6520 = vweird.f32 %v6503
  %vm6521 = vweird.f32 %v6514
  %vm6522 = vmor %vm6520, %vm6521
  %v6523 = vsel %vm6522, %v6514, %v6519
  %v6524 = vmul.f32 %v6490, %v6513
  %v6525 = vmul.f32 %v6491, %v6523
  %v6527 = vperm.slane %v6479, 0
  %v6529 = vmul.f32 %v6524, %v6527
  %v6530 = vmul.f32 %v6525, %v6527
  %v6532 = vperm.slane %v6481, 0
  %v6534 = vadd.f32 %v6529, %v6532
  %v6535 = vadd.f32 %v6530, %v6532
  %s6536 = scalar_lea.vmem %s73, 48
  %v6537 = vld [vmem:[%s6536] sm:$0xf]
  %v6538 = vld [vmem:[%s6536 + $0x4] sm:$0xf]
  %v6539 = vld [vmem:[%s6536 + $0x8] sm:$0xf]
  %v6540 = vld [vmem:[%s6536 + $0xc] sm:$0xf]
  %s6541 = scalar_lea.vmem %s61, 3
  %v6542 = vld [vmem:[%s6541] sm:$0x1]
  %s6543 = scalar_lea.vmem %s75, 96
  %v6544 = vld [vmem:[%s6543] sm:$0xf]
  %v6545 = vld [vmem:[%s6543 + $0x4] sm:$0xf]
  %v6546 = vld [vmem:[%s6543 + $0x8] sm:$0xf]
  %v6547 = vld [vmem:[%s6543 + $0xc] sm:$0xf]
  %v6548 = vld [vmem:[%s6543 + $0x10] sm:$0xf]
  %v6549 = vld [vmem:[%s6543 + $0x14] sm:$0xf]
  %v6550 = vld [vmem:[%s6543 + $0x18] sm:$0xf]
  %v6551 = vld [vmem:[%s6543 + $0x1c] sm:$0xf]
  %s6552 = scalar_lea.vmem %s63, 3
  %v6553 = vld [vmem:[%s6552] sm:$0x1]
  %v6554 = vpack.c.bf16 %v6535, %v6534
  %v6556 = vperm.slane %v6542, 0
  %v6562 = vunpack.c.l.b16 %v6537
  %v6563 = vunpack.c.l.b16 %v6538
  %v6564 = vunpack.c.l.b16 %v6539
  %v6565 = vunpack.c.l.b16 %v6540
  %v6566 = vpack.c.b16 %v6563, %v6562
  %v6567 = vpack.c.b16 %v6565, %v6564
  %v6571 = vsel %vm189, %v6554, 0
  %6573 = vmatpush.bf16.msra.mxu0 0
  %6574 = vmatpush.bf16.msra.mxu0 0
  %6575 = vmatpush.bf16.msra.mxu0 0
  %6576 = vmatpush.bf16.msra.mxu0 0
  %6577 = vmatpush.bf16.msra.mxu0 0
  %6578 = vmatpush.bf16.msra.mxu0 0
  %6579 = vmatpush.bf16.msra.mxu0 %v6567
  %6580 = vmatpush.bf16.msra.mxu0 %v6566
  %6581 = vmatmul.bf16.gmra.mxu0 %v6571
  %v6582 = vpop.f32.mrf.mxu0
  %v6583 = vadd.f32 %v6556, %v6582
  %v6584 = vpop.f32.mrf.mxu0
  %v6585 = vadd.f32 %v6556, %v6584
  %6586 = vdwg.mxu0
  %v6587 = vmax.f32 %v6583, 0.0
  %v6588 = vmax.f32 %v6585, 0.0
  %v6589 = vpack.c.bf16 %v6588, %v6587
  %v6591 = vperm.slane %v6553, 0
  %v6601 = vunpack.c.l.b16 %v6544
  %v6602 = vunpack.c.l.b16 %v6545
  %v6603 = vunpack.c.l.b16 %v6546
  %v6604 = vunpack.c.l.b16 %v6547
  %v6605 = vunpack.c.l.b16 %v6548
  %v6606 = vunpack.c.l.b16 %v6549
  %v6607 = vunpack.c.l.b16 %v6550
  %v6608 = vunpack.c.l.b16 %v6551
  %v6609 = vpack.c.b16 %v6602, %v6601
  %v6610 = vpack.c.b16 %v6604, %v6603
  %v6611 = vpack.c.b16 %v6606, %v6605
  %v6612 = vpack.c.b16 %v6608, %v6607
  %v6618 = vsel %vm1268, %v6589, 0
  %6620 = vmatpush.bf16.msra.mxu0 0
  %6621 = vmatpush.bf16.msra.mxu0 0
  %6622 = vmatpush.bf16.msra.mxu0 0
  %6623 = vmatpush.bf16.msra.mxu0 0
  %6624 = vmatpush.bf16.msra.mxu0 %v6612
  %6625 = vmatpush.bf16.msra.mxu0 %v6611
  %6626 = vmatpush.bf16.msra.mxu0 %v6610
  %6627 = vmatpush.bf16.msra.mxu0 %v6609
  %6628 = vmatmul.bf16.gmra.mxu0 %v6618
  %v6629 = vpop.f32.mrf.mxu0
  %v6630 = vadd.f32 %v6591, %v6629
  %v6631 = vpop.f32.mrf.mxu0
  %v6632 = vadd.f32 %v6591, %v6631
  %6633 = vdwg.mxu0
  %v6634 = vadd.f32 %v6476, %v6630
  %v6635 = vadd.f32 %v6477, %v6632
  %v6636 = vld [vmem:[%s15] sm:$0xff]
  %v6637 = vld [vmem:[%s15 + $0x8] sm:$0xff]
  %v6638 = vld [vmem:[%s57] sm:$0xf]
  %v6639 = vld [vmem:[%s57 + $0x4] sm:$0xf]
  %v6640 = vld [vmem:[%s57 + $0x8] sm:$0xf]
  %v6641 = vld [vmem:[%s57 + $0xc] sm:$0xf]
  %v6642 = vld [vmem:[%s57 + $0x10] sm:$0xf]
  %v6643 = vld [vmem:[%s57 + $0x14] sm:$0xf]
  %v6644 = vld [vmem:[%s57 + $0x18] sm:$0xf]
  %v6645 = vld [vmem:[%s57 + $0x1c] sm:$0xf]
  %v6646 = vld [vmem:[%s57 + $0x20] sm:$0xf]
  %v6647 = vld [vmem:[%s57 + $0x24] sm:$0xf]
  %v6648 = vld [vmem:[%s57 + $0x28] sm:$0xf]
  %v6649 = vld [vmem:[%s57 + $0x2c] sm:$0xf]
  %v6650 = vld [vmem:[%s57 + $0x30] sm:$0xf]
  %v6651 = vld [vmem:[%s57 + $0x34] sm:$0xf]
  %v6652 = vld [vmem:[%s57 + $0x38] sm:$0xf]
  %v6653 = vld [vmem:[%s57 + $0x3c] sm:$0xf]
  %v6654 = vld [vmem:[%s53] sm:$0xf]
  %v6655 = vld [vmem:[%s53 + $0x4] sm:$0xf]
  %v6656 = vld [vmem:[%s53 + $0x8] sm:$0xf]
  %v6657 = vld [vmem:[%s53 + $0xc] sm:$0xf]
  %v6658 = vld [vmem:[%s53 + $0x10] sm:$0xf]
  %v6659 = vld [vmem:[%s53 + $0x14] sm:$0xf]
  %v6660 = vld [vmem:[%s53 + $0x18] sm:$0xf]
  %v6661 = vld [vmem:[%s53 + $0x1c] sm:$0xf]
  %v6662 = vld [vmem:[%s53 + $0x20] sm:$0xf]
  %v6663 = vld [vmem:[%s53 + $0x24] sm:$0xf]
  %v6664 = vld [vmem:[%s53 + $0x28] sm:$0xf]
  %v6665 = vld [vmem:[%s53 + $0x2c] sm:$0xf]
  %v6666 = vld [vmem:[%s53 + $0x30] sm:$0xf]
  %v6667 = vld [vmem:[%s53 + $0x34] sm:$0xf]
  %v6668 = vld [vmem:[%s53 + $0x38] sm:$0xf]
  %v6669 = vld [vmem:[%s53 + $0x3c] sm:$0xf]
  %v6670 = vld [vmem:[%s59] sm:$0xf]
  %v6671 = vld [vmem:[%s59 + $0x4] sm:$0xf]
  %v6672 = vld [vmem:[%s59 + $0x8] sm:$0xf]
  %v6673 = vld [vmem:[%s59 + $0xc] sm:$0xf]
  %v6674 = vld [vmem:[%s59 + $0x10] sm:$0xf]
  %v6675 = vld [vmem:[%s59 + $0x14] sm:$0xf]
  %v6676 = vld [vmem:[%s59 + $0x18] sm:$0xf]
  %v6677 = vld [vmem:[%s59 + $0x1c] sm:$0xf]
  %v6678 = vld [vmem:[%s59 + $0x20] sm:$0xf]
  %v6679 = vld [vmem:[%s59 + $0x24] sm:$0xf]
  %v6680 = vld [vmem:[%s59 + $0x28] sm:$0xf]
  %v6681 = vld [vmem:[%s59 + $0x2c] sm:$0xf]
  %v6682 = vld [vmem:[%s59 + $0x30] sm:$0xf]
  %v6683 = vld [vmem:[%s59 + $0x34] sm:$0xf]
  %v6684 = vld [vmem:[%s59 + $0x38] sm:$0xf]
  %v6685 = vld [vmem:[%s59 + $0x3c] sm:$0xf]
  %v6686 = vld [vmem:[%s55] sm:$0xf]
  %v6687 = vld [vmem:[%s55 + $0x4] sm:$0xf]
  %v6688 = vld [vmem:[%s55 + $0x8] sm:$0xf]
  %v6689 = vld [vmem:[%s55 + $0xc] sm:$0xf]
  %v6690 = vpack.c.bf16 %v5529, %v5528
  %v6691 = vpack.c.bf16 %v6635, %v6634
  %v6696 = vunpack.c.l.b16 %v6638
  %v6697 = vunpack.c.l.b16 %v6639
  %v6698 = vunpack.c.l.b16 %v6640
  %v6699 = vunpack.c.l.b16 %v6641
  %v6700 = vpack.c.b16 %v6697, %v6696
  %v6701 = vpack.c.b16 %v6699, %v6698
  %v6705 = vsel %vm189, %v6690, 0
  %6707 = vmatpush.bf16.msra.mxu0 0
  %6708 = vmatpush.bf16.msra.mxu0 0
  %6709 = vmatpush.bf16.msra.mxu0 0
  %6710 = vmatpush.bf16.msra.mxu0 0
  %6711 = vmatpush.bf16.msra.mxu0 0
  %6712 = vmatpush.bf16.msra.mxu0 0
  %6713 = vmatpush.bf16.msra.mxu0 %v6701
  %6714 = vmatpush.bf16.msra.mxu0 %v6700
  %6715 = vmatmul.bf16.gmra.mxu0 %v6705
  %v6716 = vpop.f32.mrf.mxu0
  %v6717 = vadd.f32 0.0, %v6716
  %v6718 = vpop.f32.mrf.mxu0
  %v6719 = vadd.f32 0.0, %v6718
  %6720 = vdwg.mxu0
  %v6725 = vunpack.c.l.b16 %v6654
  %v6726 = vunpack.c.l.b16 %v6655
  %v6727 = vunpack.c.l.b16 %v6656
  %v6728 = vunpack.c.l.b16 %v6657
  %v6729 = vpack.c.b16 %v6726, %v6725
  %v6730 = vpack.c.b16 %v6728, %v6727
  %v6734 = vsel %vm189, %v6691, 0
  %6736 = vmatpush.bf16.msra.mxu0 0
  %6737 = vmatpush.bf16.msra.mxu0 0
  %6738 = vmatpush.bf16.msra.mxu0 0
  %6739 = vmatpush.bf16.msra.mxu0 0
  %6740 = vmatpush.bf16.msra.mxu0 0
  %6741 = vmatpush.bf16.msra.mxu0 0
  %6742 = vmatpush.bf16.msra.mxu0 %v6730
  %6743 = vmatpush.bf16.msra.mxu0 %v6729
  %6744 = vmatmul.bf16.gmra.mxu0 %v6734
  %v6745 = vpop.f32.mrf.mxu0
  %v6746 = vadd.f32 0.0, %v6745
  %v6747 = vpop.f32.mrf.mxu0
  %v6748 = vadd.f32 0.0, %v6747
  %6749 = vdwg.mxu0
  %v6754 = vunpack.c.l.b16 %v6670
  %v6755 = vunpack.c.l.b16 %v6671
  %v6756 = vunpack.c.l.b16 %v6672
  %v6757 = vunpack.c.l.b16 %v6673
  %v6758 = vpack.c.b16 %v6755, %v6754
  %v6759 = vpack.c.b16 %v6757, %v6756
  %6762 = vmatpush.bf16.msra.mxu0 0
  %6763 = vmatpush.bf16.msra.mxu0 0
  %6764 = vmatpush.bf16.msra.mxu0 0
  %6765 = vmatpush.bf16.msra.mxu0 0
  %6766 = vmatpush.bf16.msra.mxu0 0
  %6767 = vmatpush.bf16.msra.mxu0 0
  %6768 = vmatpush.bf16.msra.mxu0 %v6759
  %6769 = vmatpush.bf16.msra.mxu0 %v6758
  %6770 = vmatmul.bf16.gmra.mxu0 %v6734
  %v6771 = vpop.f32.mrf.mxu0
  %v6772 = vadd.f32 0.0, %v6771
  %v6773 = vpop.f32.mrf.mxu0
  %v6774 = vadd.f32 0.0, %v6773
  %6775 = vdwg.mxu0
  %v6776 = vpack.c.bf16 %v6717, %v6717
  %v6777 = vpack.c.bf16 %v6719, %v6719
  %v6778 = vpack.c.bf16 %v6746, %v6746
  %v6779 = vpack.c.bf16 %v6748, %v6748
  %v6780 = vpack.c.bf16 %v6772, %v6772
  %v6781 = vpack.c.bf16 %v6774, %v6774
  %v6783 = vsel %vm391, %v6776, 0
  %v6786 = vsel %vm391, %v6778, 0
  %6788 = vmatpush.bf16.xpose.msra.mxu0 0
  %6789 = vmatpush.bf16.xpose.msra.mxu0 0
  %6790 = vmatpush.bf16.xpose.msra.mxu0 0
  %6791 = vmatpush.bf16.xpose.msra.mxu0 0
  %6792 = vmatpush.bf16.xpose.msra.mxu0 0
  %6793 = vmatpush.bf16.xpose.msra.mxu0 0
  %6794 = vmatpush.bf16.xpose.msra.mxu0 0
  %6795 = vmatpush.bf16.xpose.msra.mxu0 %v6786
  %6796 = vmatmul.bf16.gmra.mxu0 %v6783
  %v6797 = vpop.f32.mrf.mxu0
  %v6798 = vadd.f32 %v6636, %v6797
  %v6799 = vpop.f32.mrf.mxu0
  %6800 = vdwg.mxu0
  %v6802 = vsel %vm391, %v6777, 0
  %v6805 = vsel %vm391, %v6779, 0
  %6807 = vmatpush.bf16.xpose.msra.mxu0 0
  %6808 = vmatpush.bf16.xpose.msra.mxu0 0
  %6809 = vmatpush.bf16.xpose.msra.mxu0 0
  %6810 = vmatpush.bf16.xpose.msra.mxu0 0
  %6811 = vmatpush.bf16.xpose.msra.mxu0 0
  %6812 = vmatpush.bf16.xpose.msra.mxu0 0
  %6813 = vmatpush.bf16.xpose.msra.mxu0 0
  %6814 = vmatpush.bf16.xpose.msra.mxu0 %v6805
  %6815 = vmatmul.bf16.gmra.mxu0 %v6802
  %v6816 = vpop.f32.mrf.mxu0
  %v6817 = vadd.f32 %v6637, %v6816
  %v6818 = vpop.f32.mrf.mxu0
  %6819 = vdwg.mxu0
  %v6820 = vsel %vm391, %v6798, -inf
  %6821 = vmax.xlane.f32.xlu0 %v6820
  %v6822 = vpop.xlane.xlu0 %6821
  %v6823 = vsel %vm391, %v6817, -inf
  %6824 = vmax.xlane.f32.xlu0 %v6823
  %v6825 = vpop.xlane.xlu0 %6824
  %v6826 = vsub.f32 %v6798, %v6822
  %v6827 = vsub.f32 %v6817, %v6825
  %v6828 = vmul.f32 %v6826, 1.442695
  %v6829 = vpow.pop %v6828
  %v6830 = vmul.f32 %v6827, 1.442695
  %v6831 = vpow.pop %v6830
  %v6832 = vsel %vm391, %v6829, 0.0
  %6833 = vadd.xlane.f32.xlu0 %v6832
  %v6834 = vpop.xlane.xlu0 %6833
  %v6835 = vsel %vm391, %v6831, 0.0
  %6836 = vadd.xlane.f32.xlu0 %v6835
  %v6837 = vpop.xlane.xlu0 %6836
  %v6838 = vrcp.pop %v6834
  %v6839 = vrcp.pop %v6837
  %v6840 = vmul.f32 %v6829, %v6838
  %v6841 = vmul.f32 %v6831, %v6839
  %v6842 = vpack.c.bf16 %v6840, %v6840
  %v6843 = vpack.c.bf16 %v6841, %v6841
  %v6845 = vsel %vm391, %v6842, 0
  %v6848 = vsel %vm457, %v6780, 0
  %6850 = vmatpush.bf16.msra.mxu0 0
  %6851 = vmatpush.bf16.msra.mxu0 0
  %6852 = vmatpush.bf16.msra.mxu0 0
  %6853 = vmatpush.bf16.msra.mxu0 0
  %6854 = vmatpush.bf16.msra.mxu0 0
  %6855 = vmatpush.bf16.msra.mxu0 0
  %6856 = vmatpush.bf16.msra.mxu0 0
  %6857 = vmatpush.bf16.msra.mxu0 %v6848
  %6858 = vmatmul.bf16.gmra.mxu0 %v6845
  %v6859 = vpop.f32.mrf.mxu0
  %v6860 = vadd.f32 0.0, %v6859
  %v6861 = vpop.f32.mrf.mxu0
  %6862 = vdwg.mxu0
  %v6864 = vsel %vm391, %v6843, 0
  %v6867 = vsel %vm457, %v6781, 0
  %6869 = vmatpush.bf16.msra.mxu0 0
  %6870 = vmatpush.bf16.msra.mxu0 0
  %6871 = vmatpush.bf16.msra.mxu0 0
  %6872 = vmatpush.bf16.msra.mxu0 0
  %6873 = vmatpush.bf16.msra.mxu0 0
  %6874 = vmatpush.bf16.msra.mxu0 0
  %6875 = vmatpush.bf16.msra.mxu0 0
  %6876 = vmatpush.bf16.msra.mxu0 %v6867
  %6877 = vmatmul.bf16.gmra.mxu0 %v6864
  %v6878 = vpop.f32.mrf.mxu0
  %v6879 = vadd.f32 0.0, %v6878
  %v6880 = vpop.f32.mrf.mxu0
  %6881 = vdwg.mxu0
  %v6882 = vpack.c.bf16 %v6879, %v6860
  %v6887 = vunpack.c.l.b16 %v6642
  %v6888 = vunpack.c.l.b16 %v6643
  %v6889 = vunpack.c.l.b16 %v6644
  %v6890 = vunpack.c.l.b16 %v6645
  %v6891 = vpack.c.b16 %v6888, %v6887
  %v6892 = vpack.c.b16 %v6890, %v6889
  %6895 = vmatpush.bf16.msra.mxu0 0
  %6896 = vmatpush.bf16.msra.mxu0 0
  %6897 = vmatpush.bf16.msra.mxu0 0
  %6898 = vmatpush.bf16.msra.mxu0 0
  %6899 = vmatpush.bf16.msra.mxu0 0
  %6900 = vmatpush.bf16.msra.mxu0 0
  %6901 = vmatpush.bf16.msra.mxu0 %v6892
  %6902 = vmatpush.bf16.msra.mxu0 %v6891
  %6903 = vmatmul.bf16.gmra.mxu0 %v6705
  %v6904 = vpop.f32.mrf.mxu0
  %v6905 = vadd.f32 0.0, %v6904
  %v6906 = vpop.f32.mrf.mxu0
  %v6907 = vadd.f32 0.0, %v6906
  %6908 = vdwg.mxu0
  %v6913 = vunpack.c.l.b16 %v6658
  %v6914 = vunpack.c.l.b16 %v6659
  %v6915 = vunpack.c.l.b16 %v6660
  %v6916 = vunpack.c.l.b16 %v6661
  %v6917 = vpack.c.b16 %v6914, %v6913
  %v6918 = vpack.c.b16 %v6916, %v6915
  %6921 = vmatpush.bf16.msra.mxu0 0
  %6922 = vmatpush.bf16.msra.mxu0 0
  %6923 = vmatpush.bf16.msra.mxu0 0
  %6924 = vmatpush.bf16.msra.mxu0 0
  %6925 = vmatpush.bf16.msra.mxu0 0
  %6926 = vmatpush.bf16.msra.mxu0 0
  %6927 = vmatpush.bf16.msra.mxu0 %v6918
  %6928 = vmatpush.bf16.msra.mxu0 %v6917
  %6929 = vmatmul.bf16.gmra.mxu0 %v6734
  %v6930 = vpop.f32.mrf.mxu0
  %v6931 = vadd.f32 0.0, %v6930
  %v6932 = vpop.f32.mrf.mxu0
  %v6933 = vadd.f32 0.0, %v6932
  %6934 = vdwg.mxu0
  %v6939 = vunpack.c.l.b16 %v6674
  %v6940 = vunpack.c.l.b16 %v6675
  %v6941 = vunpack.c.l.b16 %v6676
  %v6942 = vunpack.c.l.b16 %v6677
  %v6943 = vpack.c.b16 %v6940, %v6939
  %v6944 = vpack.c.b16 %v6942, %v6941
  %6947 = vmatpush.bf16.msra.mxu0 0
  %6948 = vmatpush.bf16.msra.mxu0 0
  %6949 = vmatpush.bf16.msra.mxu0 0
  %6950 = vmatpush.bf16.msra.mxu0 0
  %6951 = vmatpush.bf16.msra.mxu0 0
  %6952 = vmatpush.bf16.msra.mxu0 0
  %6953 = vmatpush.bf16.msra.mxu0 %v6944
  %6954 = vmatpush.bf16.msra.mxu0 %v6943
  %6955 = vmatmul.bf16.gmra.mxu0 %v6734
  %v6956 = vpop.f32.mrf.mxu0
  %v6957 = vadd.f32 0.0, %v6956
  %v6958 = vpop.f32.mrf.mxu0
  %v6959 = vadd.f32 0.0, %v6958
  %6960 = vdwg.mxu0
  %v6961 = vpack.c.bf16 %v6905, %v6905
  %v6962 = vpack.c.bf16 %v6907, %v6907
  %v6963 = vpack.c.bf16 %v6931, %v6931
  %v6964 = vpack.c.bf16 %v6933, %v6933
  %v6965 = vpack.c.bf16 %v6957, %v6957
  %v6966 = vpack.c.bf16 %v6959, %v6959
  %v6968 = vsel %vm391, %v6961, 0
  %v6971 = vsel %vm391, %v6963, 0
  %6973 = vmatpush.bf16.xpose.msra.mxu0 0
  %6974 = vmatpush.bf16.xpose.msra.mxu0 0
  %6975 = vmatpush.bf16.xpose.msra.mxu0 0
  %6976 = vmatpush.bf16.xpose.msra.mxu0 0
  %6977 = vmatpush.bf16.xpose.msra.mxu0 0
  %6978 = vmatpush.bf16.xpose.msra.mxu0 0
  %6979 = vmatpush.bf16.xpose.msra.mxu0 0
  %6980 = vmatpush.bf16.xpose.msra.mxu0 %v6971
  %6981 = vmatmul.bf16.gmra.mxu0 %v6968
  %v6982 = vpop.f32.mrf.mxu0
  %v6983 = vadd.f32 %v6636, %v6982
  %v6984 = vpop.f32.mrf.mxu0
  %6985 = vdwg.mxu0
  %v6987 = vsel %vm391, %v6962, 0
  %v6990 = vsel %vm391, %v6964, 0
  %6992 = vmatpush.bf16.xpose.msra.mxu0 0
  %6993 = vmatpush.bf16.xpose.msra.mxu0 0
  %6994 = vmatpush.bf16.xpose.msra.mxu0 0
  %6995 = vmatpush.bf16.xpose.msra.mxu0 0
  %6996 = vmatpush.bf16.xpose.msra.mxu0 0
  %6997 = vmatpush.bf16.xpose.msra.mxu0 0
  %6998 = vmatpush.bf16.xpose.msra.mxu0 0
  %6999 = vmatpush.bf16.xpose.msra.mxu0 %v6990
  %7000 = vmatmul.bf16.gmra.mxu0 %v6987
  %v7001 = vpop.f32.mrf.mxu0
  %v7002 = vadd.f32 %v6637, %v7001
  %v7003 = vpop.f32.mrf.mxu0
  %7004 = vdwg.mxu0
  %v7005 = vsel %vm391, %v6983, -inf
  %7006 = vmax.xlane.f32.xlu0 %v7005
  %v7007 = vpop.xlane.xlu0 %7006
  %v7008 = vsel %vm391, %v7002, -inf
  %7009 = vmax.xlane.f32.xlu0 %v7008
  %v7010 = vpop.xlane.xlu0 %7009
  %v7011 = vsub.f32 %v6983, %v7007
  %v7012 = vsub.f32 %v7002, %v7010
  %v7013 = vmul.f32 %v7011, 1.442695
  %v7014 = vpow.pop %v7013
  %v7015 = vmul.f32 %v7012, 1.442695
  %v7016 = vpow.pop %v7015
  %v7017 = vsel %vm391, %v7014, 0.0
  %7018 = vadd.xlane.f32.xlu0 %v7017
  %v7019 = vpop.xlane.xlu0 %7018
  %v7020 = vsel %vm391, %v7016, 0.0
  %7021 = vadd.xlane.f32.xlu0 %v7020
  %v7022 = vpop.xlane.xlu0 %7021
  %v7023 = vrcp.pop %v7019
  %v7024 = vrcp.pop %v7022
  %v7025 = vmul.f32 %v7014, %v7023
  %v7026 = vmul.f32 %v7016, %v7024
  %v7027 = vpack.c.bf16 %v7025, %v7025
  %v7028 = vpack.c.bf16 %v7026, %v7026
  %v7030 = vsel %vm391, %v7027, 0
  %v7033 = vsel %vm457, %v6965, 0
  %7035 = vmatpush.bf16.msra.mxu0 0
  %7036 = vmatpush.bf16.msra.mxu0 0
  %7037 = vmatpush.bf16.msra.mxu0 0
  %7038 = vmatpush.bf16.msra.mxu0 0
  %7039 = vmatpush.bf16.msra.mxu0 0
  %7040 = vmatpush.bf16.msra.mxu0 0
  %7041 = vmatpush.bf16.msra.mxu0 0
  %7042 = vmatpush.bf16.msra.mxu0 %v7033
  %7043 = vmatmul.bf16.gmra.mxu0 %v7030
  %v7044 = vpop.f32.mrf.mxu0
  %v7045 = vadd.f32 0.0, %v7044
  %v7046 = vpop.f32.mrf.mxu0
  %7047 = vdwg.mxu0
  %v7049 = vsel %vm391, %v7028, 0
  %v7052 = vsel %vm457, %v6966, 0
  %7054 = vmatpush.bf16.msra.mxu0 0
  %7055 = vmatpush.bf16.msra.mxu0 0
  %7056 = vmatpush.bf16.msra.mxu0 0
  %7057 = vmatpush.bf16.msra.mxu0 0
  %7058 = vmatpush.bf16.msra.mxu0 0
  %7059 = vmatpush.bf16.msra.mxu0 0
  %7060 = vmatpush.bf16.msra.mxu0 0
  %7061 = vmatpush.bf16.msra.mxu0 %v7052
  %7062 = vmatmul.bf16.gmra.mxu0 %v7049
  %v7063 = vpop.f32.mrf.mxu0
  %v7064 = vadd.f32 0.0, %v7063
  %v7065 = vpop.f32.mrf.mxu0
  %7066 = vdwg.mxu0
  %v7067 = vpack.c.bf16 %v7064, %v7045
  %v7069 = vsel %vm391, %v7067, 0
  %v7072 = vsel %vm457, %v6687, 0
  %7074 = vmatpush.bf16.msra.mxu0 0
  %7075 = vmatpush.bf16.msra.mxu0 0
  %7076 = vmatpush.bf16.msra.mxu0 0
  %7077 = vmatpush.bf16.msra.mxu0 0
  %7078 = vmatpush.bf16.msra.mxu0 0
  %7079 = vmatpush.bf16.msra.mxu0 0
  %7080 = vmatpush.bf16.msra.mxu0 0
  %7081 = vmatpush.bf16.msra.mxu0 %v7072
  %7082 = vmatmul.bf16.gmra.mxu0 %v7069
  %v7083 = vpop.f32.mrf.mxu0
  %v7084 = vadd.f32 0.0, %v7083
  %v7085 = vpop.f32.mrf.mxu0
  %v7086 = vadd.f32 0.0, %v7085
  %7087 = vdwg.mxu0
  %v7089 = vsel %vm391, %v6882, 0
  %v7092 = vsel %vm457, %v6686, 0
  %7094 = vmatpush.bf16.msra.mxu0 0
  %7095 = vmatpush.bf16.msra.mxu0 0
  %7096 = vmatpush.bf16.msra.mxu0 0
  %7097 = vmatpush.bf16.msra.mxu0 0
  %7098 = vmatpush.bf16.msra.mxu0 0
  %7099 = vmatpush.bf16.msra.mxu0 0
  %7100 = vmatpush.bf16.msra.mxu0 0
  %7101 = vmatpush.bf16.msra.mxu0 %v7092
  %7102 = vmatmul.bf16.gmra.mxu0 %v7089
  %v7103 = vpop.f32.mrf.mxu0
  %v7104 = vadd.f32 %v7084, %v7103
  %v7105 = vpop.f32.mrf.mxu0
  %v7106 = vadd.f32 %v7086, %v7105
  %7107 = vdwg.mxu0
  %v7112 = vunpack.c.l.b16 %v6646
  %v7113 = vunpack.c.l.b16 %v6647
  %v7114 = vunpack.c.l.b16 %v6648
  %v7115 = vunpack.c.l.b16 %v6649
  %v7116 = vpack.c.b16 %v7113, %v7112
  %v7117 = vpack.c.b16 %v7115, %v7114
  %7120 = vmatpush.bf16.msra.mxu0 0
  %7121 = vmatpush.bf16.msra.mxu0 0
  %7122 = vmatpush.bf16.msra.mxu0 0
  %7123 = vmatpush.bf16.msra.mxu0 0
  %7124 = vmatpush.bf16.msra.mxu0 0
  %7125 = vmatpush.bf16.msra.mxu0 0
  %7126 = vmatpush.bf16.msra.mxu0 %v7117
  %7127 = vmatpush.bf16.msra.mxu0 %v7116
  %7128 = vmatmul.bf16.gmra.mxu0 %v6705
  %v7129 = vpop.f32.mrf.mxu0
  %v7130 = vadd.f32 0.0, %v7129
  %v7131 = vpop.f32.mrf.mxu0
  %v7132 = vadd.f32 0.0, %v7131
  %7133 = vdwg.mxu0
  %v7138 = vunpack.c.l.b16 %v6662
  %v7139 = vunpack.c.l.b16 %v6663
  %v7140 = vunpack.c.l.b16 %v6664
  %v7141 = vunpack.c.l.b16 %v6665
  %v7142 = vpack.c.b16 %v7139, %v7138
  %v7143 = vpack.c.b16 %v7141, %v7140
  %7146 = vmatpush.bf16.msra.mxu0 0
  %7147 = vmatpush.bf16.msra.mxu0 0
  %7148 = vmatpush.bf16.msra.mxu0 0
  %7149 = vmatpush.bf16.msra.mxu0 0
  %7150 = vmatpush.bf16.msra.mxu0 0
  %7151 = vmatpush.bf16.msra.mxu0 0
  %7152 = vmatpush.bf16.msra.mxu0 %v7143
  %7153 = vmatpush.bf16.msra.mxu0 %v7142
  %7154 = vmatmul.bf16.gmra.mxu0 %v6734
  %v7155 = vpop.f32.mrf.mxu0
  %v7156 = vadd.f32 0.0, %v7155
  %v7157 = vpop.f32.mrf.mxu0
  %v7158 = vadd.f32 0.0, %v7157
  %7159 = vdwg.mxu0
  %v7164 = vunpack.c.l.b16 %v6678
  %v7165 = vunpack.c.l.b16 %v6679
  %v7166 = vunpack.c.l.b16 %v6680
  %v7167 = vunpack.c.l.b16 %v6681
  %v7168 = vpack.c.b16 %v7165, %v7164
  %v7169 = vpack.c.b16 %v7167, %v7166
  %7172 = vmatpush.bf16.msra.mxu0 0
  %7173 = vmatpush.bf16.msra.mxu0 0
  %7174 = vmatpush.bf16.msra.mxu0 0
  %7175 = vmatpush.bf16.msra.mxu0 0
  %7176 = vmatpush.bf16.msra.mxu0 0
  %7177 = vmatpush.bf16.msra.mxu0 0
  %7178 = vmatpush.bf16.msra.mxu0 %v7169
  %7179 = vmatpush.bf16.msra.mxu0 %v7168
  %7180 = vmatmul.bf16.gmra.mxu0 %v6734
  %v7181 = vpop.f32.mrf.mxu0
  %v7182 = vadd.f32 0.0, %v7181
  %v7183 = vpop.f32.mrf.mxu0
  %v7184 = vadd.f32 0.0, %v7183
  %7185 = vdwg.mxu0
  %v7186 = vpack.c.bf16 %v7130, %v7130
  %v7187 = vpack.c.bf16 %v7132, %v7132
  %v7188 = vpack.c.bf16 %v7156, %v7156
  %v7189 = vpack.c.bf16 %v7158, %v7158
  %v7190 = vpack.c.bf16 %v7182, %v7182
  %v7191 = vpack.c.bf16 %v7184, %v7184
  %v7193 = vsel %vm391, %v7186, 0
  %v7196 = vsel %vm391, %v7188, 0
  %7198 = vmatpush.bf16.xpose.msra.mxu0 0
  %7199 = vmatpush.bf16.xpose.msra.mxu0 0
  %7200 = vmatpush.bf16.xpose.msra.mxu0 0
  %7201 = vmatpush.bf16.xpose.msra.mxu0 0
  %7202 = vmatpush.bf16.xpose.msra.mxu0 0
  %7203 = vmatpush.bf16.xpose.msra.mxu0 0
  %7204 = vmatpush.bf16.xpose.msra.mxu0 0
  %7205 = vmatpush.bf16.xpose.msra.mxu0 %v7196
  %7206 = vmatmul.bf16.gmra.mxu0 %v7193
  %v7207 = vpop.f32.mrf.mxu0
  %v7208 = vadd.f32 %v6636, %v7207
  %v7209 = vpop.f32.mrf.mxu0
  %7210 = vdwg.mxu0
  %v7212 = vsel %vm391, %v7187, 0
  %v7215 = vsel %vm391, %v7189, 0
  %7217 = vmatpush.bf16.xpose.msra.mxu0 0
  %7218 = vmatpush.bf16.xpose.msra.mxu0 0
  %7219 = vmatpush.bf16.xpose.msra.mxu0 0
  %7220 = vmatpush.bf16.xpose.msra.mxu0 0
  %7221 = vmatpush.bf16.xpose.msra.mxu0 0
  %7222 = vmatpush.bf16.xpose.msra.mxu0 0
  %7223 = vmatpush.bf16.xpose.msra.mxu0 0
  %7224 = vmatpush.bf16.xpose.msra.mxu0 %v7215
  %7225 = vmatmul.bf16.gmra.mxu0 %v7212
  %v7226 = vpop.f32.mrf.mxu0
  %v7227 = vadd.f32 %v6637, %v7226
  %v7228 = vpop.f32.mrf.mxu0
  %7229 = vdwg.mxu0
  %v7230 = vsel %vm391, %v7208, -inf
  %7231 = vmax.xlane.f32.xlu0 %v7230
  %v7232 = vpop.xlane.xlu0 %7231
  %v7233 = vsel %vm391, %v7227, -inf
  %7234 = vmax.xlane.f32.xlu0 %v7233
  %v7235 = vpop.xlane.xlu0 %7234
  %v7236 = vsub.f32 %v7208, %v7232
  %v7237 = vsub.f32 %v7227, %v7235
  %v7238 = vmul.f32 %v7236, 1.442695
  %v7239 = vpow.pop %v7238
  %v7240 = vmul.f32 %v7237, 1.442695
  %v7241 = vpow.pop %v7240
  %v7242 = vsel %vm391, %v7239, 0.0
  %7243 = vadd.xlane.f32.xlu0 %v7242
  %v7244 = vpop.xlane.xlu0 %7243
  %v7245 = vsel %vm391, %v7241, 0.0
  %7246 = vadd.xlane.f32.xlu0 %v7245
  %v7247 = vpop.xlane.xlu0 %7246
  %v7248 = vrcp.pop %v7244
  %v7249 = vrcp.pop %v7247
  %v7250 = vmul.f32 %v7239, %v7248
  %v7251 = vmul.f32 %v7241, %v7249
  %v7252 = vpack.c.bf16 %v7250, %v7250
  %v7253 = vpack.c.bf16 %v7251, %v7251
  %v7255 = vsel %vm391, %v7252, 0
  %v7258 = vsel %vm457, %v7190, 0
  %7260 = vmatpush.bf16.msra.mxu0 0
  %7261 = vmatpush.bf16.msra.mxu0 0
  %7262 = vmatpush.bf16.msra.mxu0 0
  %7263 = vmatpush.bf16.msra.mxu0 0
  %7264 = vmatpush.bf16.msra.mxu0 0
  %7265 = vmatpush.bf16.msra.mxu0 0
  %7266 = vmatpush.bf16.msra.mxu0 0
  %7267 = vmatpush.bf16.msra.mxu0 %v7258
  %7268 = vmatmul.bf16.gmra.mxu0 %v7255
  %v7269 = vpop.f32.mrf.mxu0
  %v7270 = vadd.f32 0.0, %v7269
  %v7271 = vpop.f32.mrf.mxu0
  %7272 = vdwg.mxu0
  %v7274 = vsel %vm391, %v7253, 0
  %v7277 = vsel %vm457, %v7191, 0
  %7279 = vmatpush.bf16.msra.mxu0 0
  %7280 = vmatpush.bf16.msra.mxu0 0
  %7281 = vmatpush.bf16.msra.mxu0 0
  %7282 = vmatpush.bf16.msra.mxu0 0
  %7283 = vmatpush.bf16.msra.mxu0 0
  %7284 = vmatpush.bf16.msra.mxu0 0
  %7285 = vmatpush.bf16.msra.mxu0 0
  %7286 = vmatpush.bf16.msra.mxu0 %v7277
  %7287 = vmatmul.bf16.gmra.mxu0 %v7274
  %v7288 = vpop.f32.mrf.mxu0
  %v7289 = vadd.f32 0.0, %v7288
  %v7290 = vpop.f32.mrf.mxu0
  %7291 = vdwg.mxu0
  %v7292 = vpack.c.bf16 %v7289, %v7270
  %v7294 = vsel %vm391, %v7292, 0
  %v7297 = vsel %vm457, %v6688, 0
  %7299 = vmatpush.bf16.msra.mxu0 0
  %7300 = vmatpush.bf16.msra.mxu0 0
  %7301 = vmatpush.bf16.msra.mxu0 0
  %7302 = vmatpush.bf16.msra.mxu0 0
  %7303 = vmatpush.bf16.msra.mxu0 0
  %7304 = vmatpush.bf16.msra.mxu0 0
  %7305 = vmatpush.bf16.msra.mxu0 0
  %7306 = vmatpush.bf16.msra.mxu0 %v7297
  %7307 = vmatmul.bf16.gmra.mxu0 %v7294
  %v7308 = vpop.f32.mrf.mxu0
  %v7309 = vadd.f32 0.0, %v7308
  %v7310 = vpop.f32.mrf.mxu0
  %v7311 = vadd.f32 0.0, %v7310
  %7312 = vdwg.mxu0
  %v7313 = vadd.f32 %v7104, %v7309
  %v7314 = vadd.f32 %v7106, %v7311
  %v7319 = vunpack.c.l.b16 %v6650
  %v7320 = vunpack.c.l.b16 %v6651
  %v7321 = vunpack.c.l.b16 %v6652
  %v7322 = vunpack.c.l.b16 %v6653
  %v7323 = vpack.c.b16 %v7320, %v7319
  %v7324 = vpack.c.b16 %v7322, %v7321
  %7327 = vmatpush.bf16.msra.mxu0 0
  %7328 = vmatpush.bf16.msra.mxu0 0
  %7329 = vmatpush.bf16.msra.mxu0 0
  %7330 = vmatpush.bf16.msra.mxu0 0
  %7331 = vmatpush.bf16.msra.mxu0 0
  %7332 = vmatpush.bf16.msra.mxu0 0
  %7333 = vmatpush.bf16.msra.mxu0 %v7324
  %7334 = vmatpush.bf16.msra.mxu0 %v7323
  %7335 = vmatmul.bf16.gmra.mxu0 %v6705
  %v7336 = vpop.f32.mrf.mxu0
  %v7337 = vadd.f32 0.0, %v7336
  %v7338 = vpop.f32.mrf.mxu0
  %v7339 = vadd.f32 0.0, %v7338
  %7340 = vdwg.mxu0
  %v7345 = vunpack.c.l.b16 %v6666
  %v7346 = vunpack.c.l.b16 %v6667
  %v7347 = vunpack.c.l.b16 %v6668
  %v7348 = vunpack.c.l.b16 %v6669
  %v7349 = vpack.c.b16 %v7346, %v7345
  %v7350 = vpack.c.b16 %v7348, %v7347
  %7353 = vmatpush.bf16.msra.mxu0 0
  %7354 = vmatpush.bf16.msra.mxu0 0
  %7355 = vmatpush.bf16.msra.mxu0 0
  %7356 = vmatpush.bf16.msra.mxu0 0
  %7357 = vmatpush.bf16.msra.mxu0 0
  %7358 = vmatpush.bf16.msra.mxu0 0
  %7359 = vmatpush.bf16.msra.mxu0 %v7350
  %7360 = vmatpush.bf16.msra.mxu0 %v7349
  %7361 = vmatmul.bf16.gmra.mxu0 %v6734
  %v7362 = vpop.f32.mrf.mxu0
  %v7363 = vadd.f32 0.0, %v7362
  %v7364 = vpop.f32.mrf.mxu0
  %v7365 = vadd.f32 0.0, %v7364
  %7366 = vdwg.mxu0
  %v7371 = vunpack.c.l.b16 %v6682
  %v7372 = vunpack.c.l.b16 %v6683
  %v7373 = vunpack.c.l.b16 %v6684
  %v7374 = vunpack.c.l.b16 %v6685
  %v7375 = vpack.c.b16 %v7372, %v7371
  %v7376 = vpack.c.b16 %v7374, %v7373
  %7379 = vmatpush.bf16.msra.mxu0 0
  %7380 = vmatpush.bf16.msra.mxu0 0
  %7381 = vmatpush.bf16.msra.mxu0 0
  %7382 = vmatpush.bf16.msra.mxu0 0
  %7383 = vmatpush.bf16.msra.mxu0 0
  %7384 = vmatpush.bf16.msra.mxu0 0
  %7385 = vmatpush.bf16.msra.mxu0 %v7376
  %7386 = vmatpush.bf16.msra.mxu0 %v7375
  %7387 = vmatmul.bf16.gmra.mxu0 %v6734
  %v7388 = vpop.f32.mrf.mxu0
  %v7389 = vadd.f32 0.0, %v7388
  %v7390 = vpop.f32.mrf.mxu0
  %v7391 = vadd.f32 0.0, %v7390
  %7392 = vdwg.mxu0
  %v7393 = vpack.c.bf16 %v7337, %v7337
  %v7394 = vpack.c.bf16 %v7339, %v7339
  %v7395 = vpack.c.bf16 %v7363, %v7363
  %v7396 = vpack.c.bf16 %v7365, %v7365
  %v7397 = vpack.c.bf16 %v7389, %v7389
  %v7398 = vpack.c.bf16 %v7391, %v7391
  %v7400 = vsel %vm391, %v7393, 0
  %v7403 = vsel %vm391, %v7395, 0
  %7405 = vmatpush.bf16.xpose.msra.mxu0 0
  %7406 = vmatpush.bf16.xpose.msra.mxu0 0
  %7407 = vmatpush.bf16.xpose.msra.mxu0 0
  %7408 = vmatpush.bf16.xpose.msra.mxu0 0
  %7409 = vmatpush.bf16.xpose.msra.mxu0 0
  %7410 = vmatpush.bf16.xpose.msra.mxu0 0
  %7411 = vmatpush.bf16.xpose.msra.mxu0 0
  %7412 = vmatpush.bf16.xpose.msra.mxu0 %v7403
  %7413 = vmatmul.bf16.gmra.mxu0 %v7400
  %v7414 = vpop.f32.mrf.mxu0
  %v7415 = vadd.f32 %v6636, %v7414
  %v7416 = vpop.f32.mrf.mxu0
  %7417 = vdwg.mxu0
  %v7419 = vsel %vm391, %v7394, 0
  %v7422 = vsel %vm391, %v7396, 0
  %7424 = vmatpush.bf16.xpose.msra.mxu0 0
  %7425 = vmatpush.bf16.xpose.msra.mxu0 0
  %7426 = vmatpush.bf16.xpose.msra.mxu0 0
  %7427 = vmatpush.bf16.xpose.msra.mxu0 0
  %7428 = vmatpush.bf16.xpose.msra.mxu0 0
  %7429 = vmatpush.bf16.xpose.msra.mxu0 0
  %7430 = vmatpush.bf16.xpose.msra.mxu0 0
  %7431 = vmatpush.bf16.xpose.msra.mxu0 %v7422
  %7432 = vmatmul.bf16.gmra.mxu0 %v7419
  %v7433 = vpop.f32.mrf.mxu0
  %v7434 = vadd.f32 %v6637, %v7433
  %v7435 = vpop.f32.mrf.mxu0
  %7436 = vdwg.mxu0
  %v7437 = vsel %vm391, %v7415, -inf
  %7438 = vmax.xlane.f32.xlu0 %v7437
  %v7439 = vpop.xlane.xlu0 %7438
  %v7440 = vsel %vm391, %v7434, -inf
  %7441 = vmax.xlane.f32.xlu0 %v7440
  %v7442 = vpop.xlane.xlu0 %7441
  %v7443 = vsub.f32 %v7415, %v7439
  %v7444 = vsub.f32 %v7434, %v7442
  %v7445 = vmul.f32 %v7443, 1.442695
  %v7446 = vpow.pop %v7445
  %v7447 = vmul.f32 %v7444, 1.442695
  %v7448 = vpow.pop %v7447
  %v7449 = vsel %vm391, %v7446, 0.0
  %7450 = vadd.xlane.f32.xlu0 %v7449
  %v7451 = vpop.xlane.xlu0 %7450
  %v7452 = vsel %vm391, %v7448, 0.0
  %7453 = vadd.xlane.f32.xlu0 %v7452
  %v7454 = vpop.xlane.xlu0 %7453
  %v7455 = vrcp.pop %v7451
  %v7456 = vrcp.pop %v7454
  %v7457 = vmul.f32 %v7446, %v7455
  %v7458 = vmul.f32 %v7448, %v7456
  %v7459 = vpack.c.bf16 %v7457, %v7457
  %v7460 = vpack.c.bf16 %v7458, %v7458
  %v7462 = vsel %vm391, %v7459, 0
  %v7465 = vsel %vm457, %v7397, 0
  %7467 = vmatpush.bf16.msra.mxu0 0
  %7468 = vmatpush.bf16.msra.mxu0 0
  %7469 = vmatpush.bf16.msra.mxu0 0
  %7470 = vmatpush.bf16.msra.mxu0 0
  %7471 = vmatpush.bf16.msra.mxu0 0
  %7472 = vmatpush.bf16.msra.mxu0 0
  %7473 = vmatpush.bf16.msra.mxu0 0
  %7474 = vmatpush.bf16.msra.mxu0 %v7465
  %7475 = vmatmul.bf16.gmra.mxu0 %v7462
  %v7476 = vpop.f32.mrf.mxu0
  %v7477 = vadd.f32 0.0, %v7476
  %v7478 = vpop.f32.mrf.mxu0
  %7479 = vdwg.mxu0
  %v7481 = vsel %vm391, %v7460, 0
  %v7484 = vsel %vm457, %v7398, 0
  %7486 = vmatpush.bf16.msra.mxu0 0
  %7487 = vmatpush.bf16.msra.mxu0 0
  %7488 = vmatpush.bf16.msra.mxu0 0
  %7489 = vmatpush.bf16.msra.mxu0 0
  %7490 = vmatpush.bf16.msra.mxu0 0
  %7491 = vmatpush.bf16.msra.mxu0 0
  %7492 = vmatpush.bf16.msra.mxu0 0
  %7493 = vmatpush.bf16.msra.mxu0 %v7484
  %7494 = vmatmul.bf16.gmra.mxu0 %v7481
  %v7495 = vpop.f32.mrf.mxu0
  %v7496 = vadd.f32 0.0, %v7495
  %v7497 = vpop.f32.mrf.mxu0
  %7498 = vdwg.mxu0
  %v7499 = vpack.c.bf16 %v7496, %v7477
  %v7501 = vsel %vm391, %v7499, 0
  %v7504 = vsel %vm457, %v6689, 0
  %7506 = vmatpush.bf16.msra.mxu0 0
  %7507 = vmatpush.bf16.msra.mxu0 0
  %7508 = vmatpush.bf16.msra.mxu0 0
  %7509 = vmatpush.bf16.msra.mxu0 0
  %7510 = vmatpush.bf16.msra.mxu0 0
  %7511 = vmatpush.bf16.msra.mxu0 0
  %7512 = vmatpush.bf16.msra.mxu0 0
  %7513 = vmatpush.bf16.msra.mxu0 %v7504
  %7514 = vmatmul.bf16.gmra.mxu0 %v7501
  %v7515 = vpop.f32.mrf.mxu0
  %v7516 = vadd.f32 0.0, %v7515
  %v7517 = vpop.f32.mrf.mxu0
  %v7518 = vadd.f32 0.0, %v7517
  %7519 = vdwg.mxu0
  %v7520 = vadd.f32 %v7313, %v7516
  %v7521 = vadd.f32 %v7314, %v7518
  %v7522 = vpack.c.bf16 %v7521, %v7520
  %v7523 = vld [vmem:[%s87] sm:$0xf]
  %v7524 = vld [vmem:[%s87 + $0x4] sm:$0xf]
  %v7525 = vld [vmem:[%s87 + $0x8] sm:$0xf]
  %v7526 = vld [vmem:[%s87 + $0xc] sm:$0xf]
  %v7527 = vld [vmem:[%s85] sm:$0x1]
  %v7529 = vperm.slane %v7527, 0
  %v7535 = vunpack.c.l.b16 %v7523
  %v7536 = vunpack.c.l.b16 %v7524
  %v7537 = vunpack.c.l.b16 %v7525
  %v7538 = vunpack.c.l.b16 %v7526
  %v7539 = vpack.c.b16 %v7536, %v7535
  %v7540 = vpack.c.b16 %v7538, %v7537
  %v7544 = vsel %vm189, %v7522, 0
  %7546 = vmatpush.bf16.msra.mxu0 0
  %7547 = vmatpush.bf16.msra.mxu0 0
  %7548 = vmatpush.bf16.msra.mxu0 0
  %7549 = vmatpush.bf16.msra.mxu0 0
  %7550 = vmatpush.bf16.msra.mxu0 0
  %7551 = vmatpush.bf16.msra.mxu0 0
  %7552 = vmatpush.bf16.msra.mxu0 %v7540
  %7553 = vmatpush.bf16.msra.mxu0 %v7539
  %7554 = vmatmul.bf16.gmra.mxu0 %v7544
  %v7555 = vpop.f32.mrf.mxu0
  %v7556 = vadd.f32 %v7529, %v7555
  %v7557 = vpop.f32.mrf.mxu0
  %v7558 = vadd.f32 %v7529, %v7557
  %7559 = vdwg.mxu0
  %7560 = vst [vmem:[%s89] sm:$0xff] %v7556
  %7561 = vst [vmem:[%s89 + $0x8] sm:$0xff] %v7558
  // Predicated region
  $region178: #{glossification_forward.1} parent=0 // pred_check
    _
  $region179: #{glossification_forward.1} parent=0 // pred_check_branch
    %7563 = sbr.rel (0) target = $region181
  $region180: #{glossification_forward.1} parent=0 // pred_region
    _
  $region181: #{glossification_forward.1} parent=0 // pred_fallthru
    _
  // Predicated region
  $region182: #{glossification_forward.1} parent=0 // pred_check
    _
  $region183: #{glossification_forward.1} parent=0 // pred_check_branch
    %7565 = sbr.rel (0) target = $region185
  $region184: #{glossification_forward.1} parent=0 // pred_region
    _
  $region185: #{glossification_forward.1} parent=0 // pred_fallthru
    _

</llo_original>
